<compile_context>
chip_gen: v7x
topology: tpu7x:2x2x1
jax: 0.10.0
libtpu: 0.0.40
codegen_flags: <defaults>
</compile_context>

<pallas_src>
import functools

import jax
import jax.numpy as jnp
from jax.experimental import pallas as pl
from jax.experimental.pallas import tpu as pltpu


# ----------------------------------------------------------------------------
# In-kernel building blocks (operate on loaded values, all in VMEM/vregs)
# ----------------------------------------------------------------------------

def _linear(x, w_bf16, b_f32=None, relu=False):
    """y = x @ W + b.  W is a bf16 (in, out) value; accumulate in f32."""
    y = jnp.dot(x.astype(jnp.bfloat16), w_bf16,
                preferred_element_type=jnp.float32)
    if b_f32 is not None:
        y = y + b_f32
    return jnp.maximum(y, 0.0) if relu else y


def _layernorm(x, g, b, eps):
    """Fused-stat LayerNorm: var = E[x^2] - E[x]^2 (independent reductions)."""
    inv_d = 1.0 / x.shape[-1]
    mu = jnp.sum(x, axis=-1, keepdims=True) * inv_d
    ms = jnp.sum(x * x, axis=-1, keepdims=True) * inv_d
    var = ms - mu * mu
    return (x - mu) * jax.lax.rsqrt(var + eps) * g + b


def _mha(q, k, v, w_out, b_out, nhead):
    """Multi-head attention on one group (seq-len = original batch B).

    q/k/v are (B, D) f32; the softmax scale is already folded into the Q
    projection weights at init time.  Per-head context is folded directly
    into the output projection (ctx_h @ W_out[h*Dh:(h+1)*Dh]) so there is no
    lane concat; scores/ctx matmuls run on bf16 MXU inputs with f32 accum.
    """
    _, D = q.shape
    Dh = D // nhead
    out = None
    for h in range(nhead):
        lo = h * Dh
        qh = q[:, lo:lo + Dh].astype(jnp.bfloat16)
        kh = k[:, lo:lo + Dh].astype(jnp.bfloat16)
        vh = v[:, lo:lo + Dh].astype(jnp.bfloat16)
        # scores: (B, B) = qh @ kh^T  (NT contraction, MXU native)
        s = jax.lax.dot_general(qh, kh, (((1,), (1,)), ((), ())),
                                preferred_element_type=jnp.float32)
        m = jnp.max(s, axis=-1, keepdims=True)
        e = jnp.exp(s - m)
        p = e * pl.reciprocal(jnp.sum(e, axis=-1, keepdims=True), approx=True)
        ctx = jnp.dot(p.astype(jnp.bfloat16), vh,
                      preferred_element_type=jnp.float32)            # (B, Dh)
        part = jnp.dot(ctx.astype(jnp.bfloat16), w_out[lo:lo + Dh, :],
                       preferred_element_type=jnp.float32)           # (B, D)
        out = part if out is None else out + part
    return out + b_out


def _encoder_layer(x, p, l, nhead, eps):
    D = x.shape[-1]
    w_qkv, b_qkv = p['enc_w_qkv'][l], p['enc_b_qkv'][l]
    w_out = p['enc_w_out'][l]
    w_ff1, b_ff1 = p['enc_w_ff1'][l], p['enc_b_ff1'][l]
    w_ff2 = p['enc_w_ff2'][l]
    vec = p['enc_vec'][l]                                   # (6, D) f32
    b_out, b_ff2 = vec[0:1], vec[1:2]
    ln1_g, ln1_b, ln2_g, ln2_b = vec[2:3], vec[3:4], vec[4:5], vec[5:6]

    qkv = _linear(x, w_qkv, b_qkv)                          # fused QKV (B, 3D)
    sa = _mha(qkv[:, :D], qkv[:, D:2 * D], qkv[:, 2 * D:], w_out, b_out, nhead)
    x = _layernorm(x + sa, ln1_g, ln1_b, eps)
    ff = _linear(_linear(x, w_ff1, b_ff1, relu=True), w_ff2, b_ff2)
    return _layernorm(x + ff, ln2_g, ln2_b, eps)


def _decoder_layer(t, mem, p, l, nhead, eps):
    D = t.shape[-1]
    sa_w_qkv, sa_b_qkv = p['dec_w_sa_qkv'][l], p['dec_b_sa_qkv'][l]
    sa_w_out = p['dec_w_sa_out'][l]
    ca_w_q = p['dec_w_ca_q'][l]
    ca_w_kv, ca_b_kv = p['dec_w_ca_kv'][l], p['dec_b_ca_kv'][l]
    ca_w_out = p['dec_w_ca_out'][l]
    w_ff1, b_ff1 = p['dec_w_ff1'][l], p['dec_b_ff1'][l]
    w_ff2 = p['dec_w_ff2'][l]
    vec = p['dec_vec'][l]                                   # (10, D) f32
    sa_b_out, ca_b_q, ca_b_out, b_ff2 = vec[0:1], vec[1:2], vec[2:3], vec[3:4]
    ln1_g, ln1_b = vec[4:5], vec[5:6]
    ln2_g, ln2_b = vec[6:7], vec[7:8]
    ln3_g, ln3_b = vec[8:9], vec[9:10]

    # self-attention (fused QKV)
    qkv = _linear(t, sa_w_qkv, sa_b_qkv)
    sa = _mha(qkv[:, :D], qkv[:, D:2 * D], qkv[:, 2 * D:],
              sa_w_out, sa_b_out, nhead)
    t = _layernorm(t + sa, ln1_g, ln1_b, eps)
    # cross-attention (fused KV on this group's encoder memory)
    q = _linear(t, ca_w_q, ca_b_q)
    kv = _linear(mem, ca_w_kv, ca_b_kv)
    ca = _mha(q, kv[:, :D], kv[:, D:], ca_w_out, ca_b_out, nhead)
    t = _layernorm(t + ca, ln2_g, ln2_b, eps)
    # feed-forward
    ff = _linear(_linear(t, w_ff1, b_ff1, relu=True), w_ff2, b_ff2)
    return _layernorm(t + ff, ln3_g, ln3_b, eps)


# ----------------------------------------------------------------------------
# Fused kernel: one grid step == one transformer batch element (one group)
# ----------------------------------------------------------------------------

def _tft_kernel(x_ref, *refs, treedef, nhead, n_enc, n_dec, eps):
    out_ref = refs[-1]
    p = jax.tree_util.tree_unflatten(treedef, refs[:-1])    # pytree of VMEM Refs

    # embedding for this group's B rows
    h = _linear(x_ref[0], p['emb_w'][...], p['emb_b'][...])  # (B, D)

    # encoder stack + final encoder LayerNorm
    mem = h
    for l in range(n_enc):
        mem = _encoder_layer(mem, p, l, nhead, eps)
    fl = p['final_ln'][...]                                  # (4, D)
    mem = _layernorm(mem, fl[0:1], fl[1:2], eps)

    # decoder stack (tgt = embedded input, memory = encoder output) + final norm
    t = h
    for l in range(n_dec):
        t = _decoder_layer(t, mem, p, l, nhead, eps)
    t = _layernorm(t, fl[2:3], fl[3:4], eps)

    # classification head for this group
    out_ref[0] = _linear(t, p['fc_w'][...], p['fc_b'][...])  # (B, num_classes)


def tft_forward(x, params, *, nhead, eps=1e-5):
    """Forward pass matching TemporalFusionTransformer.forward (inference)."""
    B, S, In = x.shape
    C = params['fc_w'].shape[1]
    n_enc = params['enc_w_qkv'].shape[0]
    n_dec = params['dec_w_sa_qkv'].shape[0]

    # embedding commutes with the module's transpose(0,1): transpose the tiny
    # raw input once in XLA so group s holds rows x[:, s, :] (transformer
    # batch element s, sequence length B).
    x_groups = x.transpose(1, 0, 2)                          # (S, B, In)

    leaves, treedef = jax.tree_util.tree_flatten(params)
    kernel = functools.partial(_tft_kernel, treedef=treedef, nhead=nhead,
                               n_enc=n_enc, n_dec=n_dec, eps=eps)

    def rep_spec(a):                # full-array block, fetched once, resident
        nd = a.ndim
        return pl.BlockSpec(a.shape, lambda s: (0,) * nd)

    out_all = pl.pallas_call(
        kernel,
        out_shape=jax.ShapeDtypeStruct((S, B, C), jnp.float32),
        grid=(S,),
        in_specs=[pl.BlockSpec((1, B, In), lambda s: (s, 0, 0))]
                 + [rep_spec(a) for a in leaves],
        out_specs=pl.BlockSpec((1, B, C), lambda s: (s, 0, 0)),
        compiler_params=pltpu.CompilerParams(
            dimension_semantics=("parallel",),          # 2 TCs on v7x
            vmem_limit_bytes=48 * 1024 * 1024),
    )(x_groups, *leaves)

    # module's x[-1, :, :]: only the last transformer batch element feeds fc
    return out_all[S - 1]


# ----------------------------------------------------------------------------
# Deterministic parameter init.
#   * matrices stored pre-transposed (in, out) in bf16
#   * biases / LayerNorm params in f32, coalesced into stacked slabs
#   * softmax 1/sqrt(Dh) folded into the Q projection weights & biases
# ----------------------------------------------------------------------------

def init_params(key, input_dim, num_classes, d_model, nhead, n_enc, n_dec, dff):
    dh = d_model // nhead
    q_scale = 1.0 / float(dh) ** 0.5
    keys = iter(jax.random.split(key, 128))
    f32, bf16 = jnp.float32, jnp.bfloat16

    def w(shape, scale=0.02):
        return scale * jax.random.normal(next(keys), shape, f32)

    ones = lambda: jnp.ones((d_model,), f32)
    zeros = lambda: jnp.zeros((d_model,), f32)

    emb_w = w((input_dim, d_model))
    emb_b = w((1, d_model))

    e_w_qkv, e_w_out, e_w_ff1, e_w_ff2 = [], [], [], []
    e_b_qkv, e_b_ff1, e_vec = [], [], []
    for _ in range(n_enc):
        wq = w((d_model, 3 * d_model)).at[:, :d_model].multiply(q_scale)
        bq = w((1, 3 * d_model)).at[:, :d_model].multiply(q_scale)
        e_w_qkv.append(wq); e_b_qkv.append(bq)
        e_w_out.append(w((d_model, d_model)))
        b_out = w((d_model,))
        e_w_ff1.append(w((d_model, dff))); e_b_ff1.append(w((1, dff)))
        e_w_ff2.append(w((dff, d_model)))
        b_ff2 = w((d_model,))
        e_vec.append(jnp.stack([b_out, b_ff2, ones(), zeros(), ones(), zeros()]))

    d_w_sa_qkv, d_w_sa_out, d_w_ca_q, d_w_ca_kv = [], [], [], []
    d_w_ca_out, d_w_ff1, d_w_ff2 = [], [], []
    d_b_sa_qkv, d_b_ca_kv, d_b_ff1, d_vec = [], [], [], []
    for _ in range(n_dec):
        wq = w((d_model, 3 * d_model)).at[:, :d_model].multiply(q_scale)
        bq = w((1, 3 * d_model)).at[:, :d_model].multiply(q_scale)
        d_w_sa_qkv.append(wq); d_b_sa_qkv.append(bq)
        d_w_sa_out.append(w((d_model, d_model)))
        sa_b_out = w((d_model,))
        d_w_ca_q.append(w((d_model, d_model)) * q_scale)
        ca_b_q = w((d_model,)) * q_scale
        d_w_ca_kv.append(w((d_model, 2 * d_model)))
        d_b_ca_kv.append(w((1, 2 * d_model)))
        d_w_ca_out.append(w((d_model, d_model)))
        ca_b_out = w((d_model,))
        d_w_ff1.append(w((d_model, dff))); d_b_ff1.append(w((1, dff)))
        d_w_ff2.append(w((dff, d_model)))
        b_ff2 = w((d_model,))
        d_vec.append(jnp.stack([sa_b_out, ca_b_q, ca_b_out, b_ff2,
                                ones(), zeros(), ones(), zeros(),
                                ones(), zeros()]))

    final_ln = jnp.stack([ones(), zeros(), ones(), zeros()])   # enc_g/b, dec_g/b
    fc_w = w((d_model, num_classes))
    fc_b = w((1, num_classes))

    st = jnp.stack
    return dict(
        emb_w=emb_w.astype(bf16), emb_b=emb_b,
        enc_w_qkv=st(e_w_qkv).astype(bf16),
        enc_w_out=st(e_w_out).astype(bf16),
        enc_w_ff1=st(e_w_ff1).astype(bf16),
        enc_w_ff2=st(e_w_ff2).astype(bf16),
        enc_b_qkv=st(e_b_qkv), enc_b_ff1=st(e_b_ff1), enc_vec=st(e_vec),
        dec_w_sa_qkv=st(d_w_sa_qkv).astype(bf16),
        dec_w_sa_out=st(d_w_sa_out).astype(bf16),
        dec_w_ca_q=st(d_w_ca_q).astype(bf16),
        dec_w_ca_kv=st(d_w_ca_kv).astype(bf16),
        dec_w_ca_out=st(d_w_ca_out).astype(bf16),
        dec_w_ff1=st(d_w_ff1).astype(bf16),
        dec_w_ff2=st(d_w_ff2).astype(bf16),
        dec_b_sa_qkv=st(d_b_sa_qkv), dec_b_ca_kv=st(d_b_ca_kv),
        dec_b_ff1=st(d_b_ff1), dec_vec=st(d_vec),
        final_ln=final_ln,
        fc_w=fc_w.astype(bf16), fc_b=fc_b,
    )


# ----------------------------------------------------------------------------
# Main
# ----------------------------------------------------------------------------

if __name__ == "__main__":
    # small, module-consistent sizes
    BATCH, SEQ, INPUT_DIM, NUM_CLASSES = 2, 8, 16, 10
    D_MODEL, NHEAD, DFF, N_ENC, N_DEC = 128, 4, 256, 2, 2

    key = jax.random.PRNGKey(0)
    k_x, k_p = jax.random.split(key)

    x = jax.random.normal(k_x, (BATCH, SEQ, INPUT_DIM), jnp.float32)
    params = init_params(k_p, INPUT_DIM, NUM_CLASSES, D_MODEL, NHEAD,
                         N_ENC, N_DEC, DFF)

    fwd = jax.jit(functools.partial(tft_forward, nhead=NHEAD))
    out = jax.block_until_ready(fwd(x, params))

    assert out.shape == (BATCH, NUM_CLASSES), out.shape
    assert bool(jnp.all(jnp.isfinite(out)))
    print("KERNEL_OK")
</pallas_src>

<mosaic_0001>
module attributes {stable_mosaic.version = 11 : i64} {
  func.func @_tft_kernel(%arg0: i32, %arg1: memref<1x2x16xf32, #tpu.memory_space<vmem>>, %arg2: memref<2x1x256xf32, #tpu.memory_space<vmem>>, %arg3: memref<2x1x256xf32, #tpu.memory_space<vmem>>, %arg4: memref<2x1x384xf32, #tpu.memory_space<vmem>>, %arg5: memref<2x10x128xf32, #tpu.memory_space<vmem>>, %arg6: memref<2x128x256xbf16, #tpu.memory_space<vmem>>, %arg7: memref<2x128x128xbf16, #tpu.memory_space<vmem>>, %arg8: memref<2x128x128xbf16, #tpu.memory_space<vmem>>, %arg9: memref<2x128x256xbf16, #tpu.memory_space<vmem>>, %arg10: memref<2x256x128xbf16, #tpu.memory_space<vmem>>, %arg11: memref<2x128x128xbf16, #tpu.memory_space<vmem>>, %arg12: memref<2x128x384xbf16, #tpu.memory_space<vmem>>, %arg13: memref<1x128xf32, #tpu.memory_space<vmem>>, %arg14: memref<16x128xbf16, #tpu.memory_space<vmem>>, %arg15: memref<2x1x256xf32, #tpu.memory_space<vmem>>, %arg16: memref<2x1x384xf32, #tpu.memory_space<vmem>>, %arg17: memref<2x6x128xf32, #tpu.memory_space<vmem>>, %arg18: memref<2x128x256xbf16, #tpu.memory_space<vmem>>, %arg19: memref<2x256x128xbf16, #tpu.memory_space<vmem>>, %arg20: memref<2x128x128xbf16, #tpu.memory_space<vmem>>, %arg21: memref<2x128x384xbf16, #tpu.memory_space<vmem>>, %arg22: memref<1x10xf32, #tpu.memory_space<vmem>>, %arg23: memref<128x10xbf16, #tpu.memory_space<vmem>>, %arg24: memref<4x128xf32, #tpu.memory_space<vmem>>, %arg25: memref<1x2x10xf32, #tpu.memory_space<vmem>>) attributes {dimension_semantics = [#tpu.dimension_semantics<parallel>], iteration_bounds = array<i64: 8>, scalar_prefetch = 0 : i64, scratch_operands = 0 : i64, tpu.core_type = #tpu.core_type<tc>, window_params = [{transform_indices = @transform_0, window_bounds = array<i64: 1, 2, 16>}, {pipeline_mode = #tpu.pipeline_mode<synchronous>, transform_indices = @transform_1, window_bounds = array<i64: 2, 1, 256>}, {pipeline_mode = #tpu.pipeline_mode<synchronous>, transform_indices = @transform_2, window_bounds = array<i64: 2, 1, 256>}, {pipeline_mode = #tpu.pipeline_mode<synchronous>, transform_indices = @transform_3, window_bounds = array<i64: 2, 1, 384>}, {pipeline_mode = #tpu.pipeline_mode<synchronous>, transform_indices = @transform_4, window_bounds = array<i64: 2, 10, 128>}, {pipeline_mode = #tpu.pipeline_mode<synchronous>, transform_indices = @transform_5, window_bounds = array<i64: 2, 128, 256>}, {pipeline_mode = #tpu.pipeline_mode<synchronous>, transform_indices = @transform_6, window_bounds = array<i64: 2, 128, 128>}, {pipeline_mode = #tpu.pipeline_mode<synchronous>, transform_indices = @transform_7, window_bounds = array<i64: 2, 128, 128>}, {pipeline_mode = #tpu.pipeline_mode<synchronous>, transform_indices = @transform_8, window_bounds = array<i64: 2, 128, 256>}, {pipeline_mode = #tpu.pipeline_mode<synchronous>, transform_indices = @transform_9, window_bounds = array<i64: 2, 256, 128>}, {pipeline_mode = #tpu.pipeline_mode<synchronous>, transform_indices = @transform_10, window_bounds = array<i64: 2, 128, 128>}, {pipeline_mode = #tpu.pipeline_mode<synchronous>, transform_indices = @transform_11, window_bounds = array<i64: 2, 128, 384>}, {pipeline_mode = #tpu.pipeline_mode<synchronous>, transform_indices = @transform_12, window_bounds = array<i64: 1, 128>}, {pipeline_mode = #tpu.pipeline_mode<synchronous>, transform_indices = @transform_13, window_bounds = array<i64: 16, 128>}, {pipeline_mode = #tpu.pipeline_mode<synchronous>, transform_indices = @transform_14, window_bounds = array<i64: 2, 1, 256>}, {pipeline_mode = #tpu.pipeline_mode<synchronous>, transform_indices = @transform_15, window_bounds = array<i64: 2, 1, 384>}, {pipeline_mode = #tpu.pipeline_mode<synchronous>, transform_indices = @transform_16, window_bounds = array<i64: 2, 6, 128>}, {pipeline_mode = #tpu.pipeline_mode<synchronous>, transform_indices = @transform_17, window_bounds = array<i64: 2, 128, 256>}, {pipeline_mode = #tpu.pipeline_mode<synchronous>, transform_indices = @transform_18, window_bounds = array<i64: 2, 256, 128>}, {pipeline_mode = #tpu.pipeline_mode<synchronous>, transform_indices = @transform_19, window_bounds = array<i64: 2, 128, 128>}, {pipeline_mode = #tpu.pipeline_mode<synchronous>, transform_indices = @transform_20, window_bounds = array<i64: 2, 128, 384>}, {pipeline_mode = #tpu.pipeline_mode<synchronous>, transform_indices = @transform_21, window_bounds = array<i64: 1, 10>}, {pipeline_mode = #tpu.pipeline_mode<synchronous>, transform_indices = @transform_22, window_bounds = array<i64: 128, 10>}, {pipeline_mode = #tpu.pipeline_mode<synchronous>, transform_indices = @transform_23, window_bounds = array<i64: 4, 128>}, {transform_indices = @transform_24, window_bounds = array<i64: 1, 2, 10>}]} {
    %c0 = arith.constant 0 : index
    %c0_0 = arith.constant 0 : index
    %c0_1 = arith.constant 0 : index
    %0 = vector.load %arg1[%c0, %c0_0, %c0_1] : memref<1x2x16xf32, #tpu.memory_space<vmem>>, vector<1x2x16xf32>
    %1 = vector.shape_cast %0 : vector<1x2x16xf32> to vector<2x16xf32>
    %c0_2 = arith.constant 0 : index
    %c0_3 = arith.constant 0 : index
    %2 = vector.load %arg14[%c0_2, %c0_3] : memref<16x128xbf16, #tpu.memory_space<vmem>>, vector<16x128xbf16>
    %c0_4 = arith.constant 0 : index
    %c0_5 = arith.constant 0 : index
    %3 = vector.load %arg13[%c0_4, %c0_5] : memref<1x128xf32, #tpu.memory_space<vmem>>, vector<1x128xf32>
    %4 = arith.truncf %1 : vector<2x16xf32> to vector<2x16xbf16>
    %cst = arith.constant dense<0.000000e+00> : vector<2x128xf32>
    %5 = tpu.matmul %4, %2, %cst {dimension_numbers = #tpu.dot_dimension_numbers<[1], [0], [0], [1], [0, 0, 1, 1], [], []>} : vector<2x16xbf16>, vector<16x128xbf16>, vector<2x128xf32> -> vector<2x128xf32>
    %6 = vector.broadcast %3 : vector<1x128xf32> to vector<2x128xf32>
    %7 = arith.addf %5, %6 : vector<2x128xf32>
    %c0_6 = arith.constant 0 : index
    %c0_7 = arith.constant 0 : index
    %c0_8 = arith.constant 0 : index
    %8 = vector.load %arg21[%c0_6, %c0_7, %c0_8] : memref<2x128x384xbf16, #tpu.memory_space<vmem>>, vector<1x128x384xbf16>
    %9 = vector.shape_cast %8 : vector<1x128x384xbf16> to vector<128x384xbf16>
    %c0_9 = arith.constant 0 : index
    %c0_10 = arith.constant 0 : index
    %c0_11 = arith.constant 0 : index
    %10 = vector.load %arg16[%c0_9, %c0_10, %c0_11] : memref<2x1x384xf32, #tpu.memory_space<vmem>>, vector<1x1x384xf32>
    %11 = vector.shape_cast %10 : vector<1x1x384xf32> to vector<1x384xf32>
    %c0_12 = arith.constant 0 : index
    %c0_13 = arith.constant 0 : index
    %c0_14 = arith.constant 0 : index
    %12 = vector.load %arg20[%c0_12, %c0_13, %c0_14] : memref<2x128x128xbf16, #tpu.memory_space<vmem>>, vector<1x128x128xbf16>
    %13 = vector.shape_cast %12 : vector<1x128x128xbf16> to vector<128x128xbf16>
    %c0_15 = arith.constant 0 : index
    %c0_16 = arith.constant 0 : index
    %c0_17 = arith.constant 0 : index
    %14 = vector.load %arg18[%c0_15, %c0_16, %c0_17] : memref<2x128x256xbf16, #tpu.memory_space<vmem>>, vector<1x128x256xbf16>
    %15 = vector.shape_cast %14 : vector<1x128x256xbf16> to vector<128x256xbf16>
    %c0_18 = arith.constant 0 : index
    %c0_19 = arith.constant 0 : index
    %c0_20 = arith.constant 0 : index
    %16 = vector.load %arg15[%c0_18, %c0_19, %c0_20] : memref<2x1x256xf32, #tpu.memory_space<vmem>>, vector<1x1x256xf32>
    %17 = vector.shape_cast %16 : vector<1x1x256xf32> to vector<1x256xf32>
    %c0_21 = arith.constant 0 : index
    %c0_22 = arith.constant 0 : index
    %c0_23 = arith.constant 0 : index
    %18 = vector.load %arg19[%c0_21, %c0_22, %c0_23] : memref<2x256x128xbf16, #tpu.memory_space<vmem>>, vector<1x256x128xbf16>
    %19 = vector.shape_cast %18 : vector<1x256x128xbf16> to vector<256x128xbf16>
    %c0_24 = arith.constant 0 : index
    %c0_25 = arith.constant 0 : index
    %c0_26 = arith.constant 0 : index
    %20 = vector.load %arg17[%c0_24, %c0_25, %c0_26] : memref<2x6x128xf32, #tpu.memory_space<vmem>>, vector<1x6x128xf32>
    %21 = vector.shape_cast %20 : vector<1x6x128xf32> to vector<6x128xf32>
    %22 = vector.extract_strided_slice %21 {offsets = [0, 0], sizes = [1, 128], strides = [1, 1]} : vector<6x128xf32> to vector<1x128xf32>
    %23 = vector.extract_strided_slice %21 {offsets = [1, 0], sizes = [1, 128], strides = [1, 1]} : vector<6x128xf32> to vector<1x128xf32>
    %24 = vector.extract_strided_slice %21 {offsets = [2, 0], sizes = [1, 128], strides = [1, 1]} : vector<6x128xf32> to vector<1x128xf32>
    %25 = vector.extract_strided_slice %21 {offsets = [3, 0], sizes = [1, 128], strides = [1, 1]} : vector<6x128xf32> to vector<1x128xf32>
    %26 = vector.extract_strided_slice %21 {offsets = [4, 0], sizes = [1, 128], strides = [1, 1]} : vector<6x128xf32> to vector<1x128xf32>
    %27 = vector.extract_strided_slice %21 {offsets = [5, 0], sizes = [1, 128], strides = [1, 1]} : vector<6x128xf32> to vector<1x128xf32>
    %28 = arith.truncf %7 : vector<2x128xf32> to vector<2x128xbf16>
    %cst_27 = arith.constant dense<0.000000e+00> : vector<2x384xf32>
    %29 = tpu.matmul %28, %9, %cst_27 {dimension_numbers = #tpu.dot_dimension_numbers<[1], [0], [0], [1], [0, 0, 1, 1], [], []>} : vector<2x128xbf16>, vector<128x384xbf16>, vector<2x384xf32> -> vector<2x384xf32>
    %30 = vector.broadcast %11 : vector<1x384xf32> to vector<2x384xf32>
    %31 = arith.addf %29, %30 : vector<2x384xf32>
    %32 = vector.extract_strided_slice %31 {offsets = [0, 0], sizes = [2, 128], strides = [1, 1]} : vector<2x384xf32> to vector<2x128xf32>
    %33 = vector.extract_strided_slice %31 {offsets = [0, 128], sizes = [2, 128], strides = [1, 1]} : vector<2x384xf32> to vector<2x128xf32>
    %34 = vector.extract_strided_slice %31 {offsets = [0, 256], sizes = [2, 128], strides = [1, 1]} : vector<2x384xf32> to vector<2x128xf32>
    %35 = vector.extract_strided_slice %32 {offsets = [0, 0], sizes = [2, 32], strides = [1, 1]} : vector<2x128xf32> to vector<2x32xf32>
    %36 = arith.truncf %35 : vector<2x32xf32> to vector<2x32xbf16>
    %37 = vector.extract_strided_slice %33 {offsets = [0, 0], sizes = [2, 32], strides = [1, 1]} : vector<2x128xf32> to vector<2x32xf32>
    %38 = arith.truncf %37 : vector<2x32xf32> to vector<2x32xbf16>
    %39 = vector.extract_strided_slice %34 {offsets = [0, 0], sizes = [2, 32], strides = [1, 1]} : vector<2x128xf32> to vector<2x32xf32>
    %40 = arith.truncf %39 : vector<2x32xf32> to vector<2x32xbf16>
    %cst_28 = arith.constant dense<0.000000e+00> : vector<2x2xf32>
    %41 = tpu.matmul %36, %38, %cst_28 {dimension_numbers = #tpu.dot_dimension_numbers<[1], [1], [0], [0], [0, 0, 1, 0], [], []>} : vector<2x32xbf16>, vector<2x32xbf16>, vector<2x2xf32> -> vector<2x2xf32>
    %cst_29 = arith.constant dense<0xFF800000> : vector<2xf32>
    %42 = vector.multi_reduction <maximumf>, %41, %cst_29 [1] : vector<2x2xf32> to vector<2xf32>
    %43 = vector.shape_cast %42 : vector<2xf32> to vector<2x1xf32>
    %44 = vector.broadcast %43 : vector<2x1xf32> to vector<2x2xf32>
    %45 = arith.subf %41, %44 : vector<2x2xf32>
    %46 = math.exp %45 : vector<2x2xf32>
    %cst_30 = arith.constant dense<0.000000e+00> : vector<2xf32>
    %47 = vector.multi_reduction <add>, %46, %cst_30 [1] : vector<2x2xf32> to vector<2xf32>
    %48 = vector.shape_cast %47 : vector<2xf32> to vector<2x1xf32>
    %49 = tpu.reciprocal %48 {approx = true} : vector<2x1xf32> -> vector<2x1xf32>
    %50 = vector.broadcast %49 : vector<2x1xf32> to vector<2x2xf32>
    %51 = arith.mulf %46, %50 : vector<2x2xf32>
    %52 = arith.truncf %51 : vector<2x2xf32> to vector<2x2xbf16>
    %cst_31 = arith.constant dense<0.000000e+00> : vector<2x32xf32>
    %53 = tpu.matmul %52, %40, %cst_31 {dimension_numbers = #tpu.dot_dimension_numbers<[1], [0], [0], [1], [0, 0, 1, 1], [], []>} : vector<2x2xbf16>, vector<2x32xbf16>, vector<2x32xf32> -> vector<2x32xf32>
    %54 = arith.truncf %53 : vector<2x32xf32> to vector<2x32xbf16>
    %55 = vector.extract_strided_slice %13 {offsets = [0, 0], sizes = [32, 128], strides = [1, 1]} : vector<128x128xbf16> to vector<32x128xbf16>
    %cst_32 = arith.constant dense<0.000000e+00> : vector<2x128xf32>
    %56 = tpu.matmul %54, %55, %cst_32 {dimension_numbers = #tpu.dot_dimension_numbers<[1], [0], [0], [1], [0, 0, 1, 1], [], []>} : vector<2x32xbf16>, vector<32x128xbf16>, vector<2x128xf32> -> vector<2x128xf32>
    %57 = vector.extract_strided_slice %32 {offsets = [0, 32], sizes = [2, 32], strides = [1, 1]} : vector<2x128xf32> to vector<2x32xf32>
    %58 = arith.truncf %57 : vector<2x32xf32> to vector<2x32xbf16>
    %59 = vector.extract_strided_slice %33 {offsets = [0, 32], sizes = [2, 32], strides = [1, 1]} : vector<2x128xf32> to vector<2x32xf32>
    %60 = arith.truncf %59 : vector<2x32xf32> to vector<2x32xbf16>
    %61 = vector.extract_strided_slice %34 {offsets = [0, 32], sizes = [2, 32], strides = [1, 1]} : vector<2x128xf32> to vector<2x32xf32>
    %62 = arith.truncf %61 : vector<2x32xf32> to vector<2x32xbf16>
    %cst_33 = arith.constant dense<0.000000e+00> : vector<2x2xf32>
    %63 = tpu.matmul %58, %60, %cst_33 {dimension_numbers = #tpu.dot_dimension_numbers<[1], [1], [0], [0], [0, 0, 1, 0], [], []>} : vector<2x32xbf16>, vector<2x32xbf16>, vector<2x2xf32> -> vector<2x2xf32>
    %cst_34 = arith.constant dense<0xFF800000> : vector<2xf32>
    %64 = vector.multi_reduction <maximumf>, %63, %cst_34 [1] : vector<2x2xf32> to vector<2xf32>
    %65 = vector.shape_cast %64 : vector<2xf32> to vector<2x1xf32>
    %66 = vector.broadcast %65 : vector<2x1xf32> to vector<2x2xf32>
    %67 = arith.subf %63, %66 : vector<2x2xf32>
    %68 = math.exp %67 : vector<2x2xf32>
    %cst_35 = arith.constant dense<0.000000e+00> : vector<2xf32>
    %69 = vector.multi_reduction <add>, %68, %cst_35 [1] : vector<2x2xf32> to vector<2xf32>
    %70 = vector.shape_cast %69 : vector<2xf32> to vector<2x1xf32>
    %71 = tpu.reciprocal %70 {approx = true} : vector<2x1xf32> -> vector<2x1xf32>
    %72 = vector.broadcast %71 : vector<2x1xf32> to vector<2x2xf32>
    %73 = arith.mulf %68, %72 : vector<2x2xf32>
    %74 = arith.truncf %73 : vector<2x2xf32> to vector<2x2xbf16>
    %cst_36 = arith.constant dense<0.000000e+00> : vector<2x32xf32>
    %75 = tpu.matmul %74, %62, %cst_36 {dimension_numbers = #tpu.dot_dimension_numbers<[1], [0], [0], [1], [0, 0, 1, 1], [], []>} : vector<2x2xbf16>, vector<2x32xbf16>, vector<2x32xf32> -> vector<2x32xf32>
    %76 = arith.truncf %75 : vector<2x32xf32> to vector<2x32xbf16>
    %77 = vector.extract_strided_slice %13 {offsets = [32, 0], sizes = [32, 128], strides = [1, 1]} : vector<128x128xbf16> to vector<32x128xbf16>
    %cst_37 = arith.constant dense<0.000000e+00> : vector<2x128xf32>
    %78 = tpu.matmul %76, %77, %cst_37 {dimension_numbers = #tpu.dot_dimension_numbers<[1], [0], [0], [1], [0, 0, 1, 1], [], []>} : vector<2x32xbf16>, vector<32x128xbf16>, vector<2x128xf32> -> vector<2x128xf32>
    %79 = arith.addf %56, %78 : vector<2x128xf32>
    %80 = vector.extract_strided_slice %32 {offsets = [0, 64], sizes = [2, 32], strides = [1, 1]} : vector<2x128xf32> to vector<2x32xf32>
    %81 = arith.truncf %80 : vector<2x32xf32> to vector<2x32xbf16>
    %82 = vector.extract_strided_slice %33 {offsets = [0, 64], sizes = [2, 32], strides = [1, 1]} : vector<2x128xf32> to vector<2x32xf32>
    %83 = arith.truncf %82 : vector<2x32xf32> to vector<2x32xbf16>
    %84 = vector.extract_strided_slice %34 {offsets = [0, 64], sizes = [2, 32], strides = [1, 1]} : vector<2x128xf32> to vector<2x32xf32>
    %85 = arith.truncf %84 : vector<2x32xf32> to vector<2x32xbf16>
    %cst_38 = arith.constant dense<0.000000e+00> : vector<2x2xf32>
    %86 = tpu.matmul %81, %83, %cst_38 {dimension_numbers = #tpu.dot_dimension_numbers<[1], [1], [0], [0], [0, 0, 1, 0], [], []>} : vector<2x32xbf16>, vector<2x32xbf16>, vector<2x2xf32> -> vector<2x2xf32>
    %cst_39 = arith.constant dense<0xFF800000> : vector<2xf32>
    %87 = vector.multi_reduction <maximumf>, %86, %cst_39 [1] : vector<2x2xf32> to vector<2xf32>
    %88 = vector.shape_cast %87 : vector<2xf32> to vector<2x1xf32>
    %89 = vector.broadcast %88 : vector<2x1xf32> to vector<2x2xf32>
    %90 = arith.subf %86, %89 : vector<2x2xf32>
    %91 = math.exp %90 : vector<2x2xf32>
    %cst_40 = arith.constant dense<0.000000e+00> : vector<2xf32>
    %92 = vector.multi_reduction <add>, %91, %cst_40 [1] : vector<2x2xf32> to vector<2xf32>
    %93 = vector.shape_cast %92 : vector<2xf32> to vector<2x1xf32>
    %94 = tpu.reciprocal %93 {approx = true} : vector<2x1xf32> -> vector<2x1xf32>
    %95 = vector.broadcast %94 : vector<2x1xf32> to vector<2x2xf32>
    %96 = arith.mulf %91, %95 : vector<2x2xf32>
    %97 = arith.truncf %96 : vector<2x2xf32> to vector<2x2xbf16>
    %cst_41 = arith.constant dense<0.000000e+00> : vector<2x32xf32>
    %98 = tpu.matmul %97, %85, %cst_41 {dimension_numbers = #tpu.dot_dimension_numbers<[1], [0], [0], [1], [0, 0, 1, 1], [], []>} : vector<2x2xbf16>, vector<2x32xbf16>, vector<2x32xf32> -> vector<2x32xf32>
    %99 = arith.truncf %98 : vector<2x32xf32> to vector<2x32xbf16>
    %100 = vector.extract_strided_slice %13 {offsets = [64, 0], sizes = [32, 128], strides = [1, 1]} : vector<128x128xbf16> to vector<32x128xbf16>
    %cst_42 = arith.constant dense<0.000000e+00> : vector<2x128xf32>
    %101 = tpu.matmul %99, %100, %cst_42 {dimension_numbers = #tpu.dot_dimension_numbers<[1], [0], [0], [1], [0, 0, 1, 1], [], []>} : vector<2x32xbf16>, vector<32x128xbf16>, vector<2x128xf32> -> vector<2x128xf32>
    %102 = arith.addf %79, %101 : vector<2x128xf32>
    %103 = vector.extract_strided_slice %32 {offsets = [0, 96], sizes = [2, 32], strides = [1, 1]} : vector<2x128xf32> to vector<2x32xf32>
    %104 = arith.truncf %103 : vector<2x32xf32> to vector<2x32xbf16>
    %105 = vector.extract_strided_slice %33 {offsets = [0, 96], sizes = [2, 32], strides = [1, 1]} : vector<2x128xf32> to vector<2x32xf32>
    %106 = arith.truncf %105 : vector<2x32xf32> to vector<2x32xbf16>
    %107 = vector.extract_strided_slice %34 {offsets = [0, 96], sizes = [2, 32], strides = [1, 1]} : vector<2x128xf32> to vector<2x32xf32>
    %108 = arith.truncf %107 : vector<2x32xf32> to vector<2x32xbf16>
    %cst_43 = arith.constant dense<0.000000e+00> : vector<2x2xf32>
    %109 = tpu.matmul %104, %106, %cst_43 {dimension_numbers = #tpu.dot_dimension_numbers<[1], [1], [0], [0], [0, 0, 1, 0], [], []>} : vector<2x32xbf16>, vector<2x32xbf16>, vector<2x2xf32> -> vector<2x2xf32>
    %cst_44 = arith.constant dense<0xFF800000> : vector<2xf32>
    %110 = vector.multi_reduction <maximumf>, %109, %cst_44 [1] : vector<2x2xf32> to vector<2xf32>
    %111 = vector.shape_cast %110 : vector<2xf32> to vector<2x1xf32>
    %112 = vector.broadcast %111 : vector<2x1xf32> to vector<2x2xf32>
    %113 = arith.subf %109, %112 : vector<2x2xf32>
    %114 = math.exp %113 : vector<2x2xf32>
    %cst_45 = arith.constant dense<0.000000e+00> : vector<2xf32>
    %115 = vector.multi_reduction <add>, %114, %cst_45 [1] : vector<2x2xf32> to vector<2xf32>
    %116 = vector.shape_cast %115 : vector<2xf32> to vector<2x1xf32>
    %117 = tpu.reciprocal %116 {approx = true} : vector<2x1xf32> -> vector<2x1xf32>
    %118 = vector.broadcast %117 : vector<2x1xf32> to vector<2x2xf32>
    %119 = arith.mulf %114, %118 : vector<2x2xf32>
    %120 = arith.truncf %119 : vector<2x2xf32> to vector<2x2xbf16>
    %cst_46 = arith.constant dense<0.000000e+00> : vector<2x32xf32>
    %121 = tpu.matmul %120, %108, %cst_46 {dimension_numbers = #tpu.dot_dimension_numbers<[1], [0], [0], [1], [0, 0, 1, 1], [], []>} : vector<2x2xbf16>, vector<2x32xbf16>, vector<2x32xf32> -> vector<2x32xf32>
    %122 = arith.truncf %121 : vector<2x32xf32> to vector<2x32xbf16>
    %123 = vector.extract_strided_slice %13 {offsets = [96, 0], sizes = [32, 128], strides = [1, 1]} : vector<128x128xbf16> to vector<32x128xbf16>
    %cst_47 = arith.constant dense<0.000000e+00> : vector<2x128xf32>
    %124 = tpu.matmul %122, %123, %cst_47 {dimension_numbers = #tpu.dot_dimension_numbers<[1], [0], [0], [1], [0, 0, 1, 1], [], []>} : vector<2x32xbf16>, vector<32x128xbf16>, vector<2x128xf32> -> vector<2x128xf32>
    %125 = arith.addf %102, %124 : vector<2x128xf32>
    %126 = vector.broadcast %22 : vector<1x128xf32> to vector<2x128xf32>
    %127 = arith.addf %125, %126 : vector<2x128xf32>
    %128 = arith.addf %7, %127 : vector<2x128xf32>
    %cst_48 = arith.constant dense<0.000000e+00> : vector<2xf32>
    %129 = vector.multi_reduction <add>, %128, %cst_48 [1] : vector<2x128xf32> to vector<2xf32>
    %130 = vector.shape_cast %129 : vector<2xf32> to vector<2x1xf32>
    %cst_49 = arith.constant 7.812500e-03 : f32
    %131 = vector.broadcast %cst_49 : f32 to vector<2x1xf32>
    %132 = arith.mulf %130, %131 : vector<2x1xf32>
    %133 = arith.mulf %128, %128 : vector<2x128xf32>
    %cst_50 = arith.constant dense<0.000000e+00> : vector<2xf32>
    %134 = vector.multi_reduction <add>, %133, %cst_50 [1] : vector<2x128xf32> to vector<2xf32>
    %135 = vector.shape_cast %134 : vector<2xf32> to vector<2x1xf32>
    %cst_51 = arith.constant 7.812500e-03 : f32
    %136 = vector.broadcast %cst_51 : f32 to vector<2x1xf32>
    %137 = arith.mulf %135, %136 : vector<2x1xf32>
    %138 = arith.mulf %132, %132 : vector<2x1xf32>
    %139 = arith.subf %137, %138 : vector<2x1xf32>
    %140 = vector.broadcast %132 : vector<2x1xf32> to vector<2x128xf32>
    %141 = arith.subf %128, %140 : vector<2x128xf32>
    %cst_52 = arith.constant 9.99999974E-6 : f32
    %142 = vector.broadcast %cst_52 : f32 to vector<2x1xf32>
    %143 = arith.addf %139, %142 : vector<2x1xf32>
    %144 = math.rsqrt %143 : vector<2x1xf32>
    %145 = vector.broadcast %144 : vector<2x1xf32> to vector<2x128xf32>
    %146 = arith.mulf %141, %145 : vector<2x128xf32>
    %147 = vector.broadcast %24 : vector<1x128xf32> to vector<2x128xf32>
    %148 = arith.mulf %146, %147 : vector<2x128xf32>
    %149 = vector.broadcast %25 : vector<1x128xf32> to vector<2x128xf32>
    %150 = arith.addf %148, %149 : vector<2x128xf32>
    %151 = arith.truncf %150 : vector<2x128xf32> to vector<2x128xbf16>
    %cst_53 = arith.constant dense<0.000000e+00> : vector<2x256xf32>
    %152 = tpu.matmul %151, %15, %cst_53 {dimension_numbers = #tpu.dot_dimension_numbers<[1], [0], [0], [1], [0, 0, 1, 1], [], []>} : vector<2x128xbf16>, vector<128x256xbf16>, vector<2x256xf32> -> vector<2x256xf32>
    %153 = vector.broadcast %17 : vector<1x256xf32> to vector<2x256xf32>
    %154 = arith.addf %152, %153 : vector<2x256xf32>
    %cst_54 = arith.constant 0.000000e+00 : f32
    %155 = vector.broadcast %cst_54 : f32 to vector<2x256xf32>
    %156 = arith.maximumf %154, %155 : vector<2x256xf32>
    %157 = arith.truncf %156 : vector<2x256xf32> to vector<2x256xbf16>
    %cst_55 = arith.constant dense<0.000000e+00> : vector<2x128xf32>
    %158 = tpu.matmul %157, %19, %cst_55 {dimension_numbers = #tpu.dot_dimension_numbers<[1], [0], [0], [1], [0, 0, 1, 1], [], []>} : vector<2x256xbf16>, vector<256x128xbf16>, vector<2x128xf32> -> vector<2x128xf32>
    %159 = vector.broadcast %23 : vector<1x128xf32> to vector<2x128xf32>
    %160 = arith.addf %158, %159 : vector<2x128xf32>
    %161 = arith.addf %150, %160 : vector<2x128xf32>
    %cst_56 = arith.constant dense<0.000000e+00> : vector<2xf32>
    %162 = vector.multi_reduction <add>, %161, %cst_56 [1] : vector<2x128xf32> to vector<2xf32>
    %163 = vector.shape_cast %162 : vector<2xf32> to vector<2x1xf32>
    %cst_57 = arith.constant 7.812500e-03 : f32
    %164 = vector.broadcast %cst_57 : f32 to vector<2x1xf32>
    %165 = arith.mulf %163, %164 : vector<2x1xf32>
    %166 = arith.mulf %161, %161 : vector<2x128xf32>
    %cst_58 = arith.constant dense<0.000000e+00> : vector<2xf32>
    %167 = vector.multi_reduction <add>, %166, %cst_58 [1] : vector<2x128xf32> to vector<2xf32>
    %168 = vector.shape_cast %167 : vector<2xf32> to vector<2x1xf32>
    %cst_59 = arith.constant 7.812500e-03 : f32
    %169 = vector.broadcast %cst_59 : f32 to vector<2x1xf32>
    %170 = arith.mulf %168, %169 : vector<2x1xf32>
    %171 = arith.mulf %165, %165 : vector<2x1xf32>
    %172 = arith.subf %170, %171 : vector<2x1xf32>
    %173 = vector.broadcast %165 : vector<2x1xf32> to vector<2x128xf32>
    %174 = arith.subf %161, %173 : vector<2x128xf32>
    %cst_60 = arith.constant 9.99999974E-6 : f32
    %175 = vector.broadcast %cst_60 : f32 to vector<2x1xf32>
    %176 = arith.addf %172, %175 : vector<2x1xf32>
    %177 = math.rsqrt %176 : vector<2x1xf32>
    %178 = vector.broadcast %177 : vector<2x1xf32> to vector<2x128xf32>
    %179 = arith.mulf %174, %178 : vector<2x128xf32>
    %180 = vector.broadcast %26 : vector<1x128xf32> to vector<2x128xf32>
    %181 = arith.mulf %179, %180 : vector<2x128xf32>
    %182 = vector.broadcast %27 : vector<1x128xf32> to vector<2x128xf32>
    %183 = arith.addf %181, %182 : vector<2x128xf32>
    %c1 = arith.constant 1 : index
    %c0_61 = arith.constant 0 : index
    %c0_62 = arith.constant 0 : index
    %184 = vector.load %arg21[%c1, %c0_61, %c0_62] : memref<2x128x384xbf16, #tpu.memory_space<vmem>>, vector<1x128x384xbf16>
    %185 = vector.shape_cast %184 : vector<1x128x384xbf16> to vector<128x384xbf16>
    %c1_63 = arith.constant 1 : index
    %c0_64 = arith.constant 0 : index
    %c0_65 = arith.constant 0 : index
    %186 = vector.load %arg16[%c1_63, %c0_64, %c0_65] : memref<2x1x384xf32, #tpu.memory_space<vmem>>, vector<1x1x384xf32>
    %187 = vector.shape_cast %186 : vector<1x1x384xf32> to vector<1x384xf32>
    %c1_66 = arith.constant 1 : index
    %c0_67 = arith.constant 0 : index
    %c0_68 = arith.constant 0 : index
    %188 = vector.load %arg20[%c1_66, %c0_67, %c0_68] : memref<2x128x128xbf16, #tpu.memory_space<vmem>>, vector<1x128x128xbf16>
    %189 = vector.shape_cast %188 : vector<1x128x128xbf16> to vector<128x128xbf16>
    %c1_69 = arith.constant 1 : index
    %c0_70 = arith.constant 0 : index
    %c0_71 = arith.constant 0 : index
    %190 = vector.load %arg18[%c1_69, %c0_70, %c0_71] : memref<2x128x256xbf16, #tpu.memory_space<vmem>>, vector<1x128x256xbf16>
    %191 = vector.shape_cast %190 : vector<1x128x256xbf16> to vector<128x256xbf16>
    %c1_72 = arith.constant 1 : index
    %c0_73 = arith.constant 0 : index
    %c0_74 = arith.constant 0 : index
    %192 = vector.load %arg15[%c1_72, %c0_73, %c0_74] : memref<2x1x256xf32, #tpu.memory_space<vmem>>, vector<1x1x256xf32>
    %193 = vector.shape_cast %192 : vector<1x1x256xf32> to vector<1x256xf32>
    %c1_75 = arith.constant 1 : index
    %c0_76 = arith.constant 0 : index
    %c0_77 = arith.constant 0 : index
    %194 = vector.load %arg19[%c1_75, %c0_76, %c0_77] : memref<2x256x128xbf16, #tpu.memory_space<vmem>>, vector<1x256x128xbf16>
    %195 = vector.shape_cast %194 : vector<1x256x128xbf16> to vector<256x128xbf16>
    %c1_78 = arith.constant 1 : index
    %c0_79 = arith.constant 0 : index
    %c0_80 = arith.constant 0 : index
    %196 = vector.load %arg17[%c1_78, %c0_79, %c0_80] : memref<2x6x128xf32, #tpu.memory_space<vmem>>, vector<1x6x128xf32>
    %197 = vector.shape_cast %196 : vector<1x6x128xf32> to vector<6x128xf32>
    %198 = vector.extract_strided_slice %197 {offsets = [0, 0], sizes = [1, 128], strides = [1, 1]} : vector<6x128xf32> to vector<1x128xf32>
    %199 = vector.extract_strided_slice %197 {offsets = [1, 0], sizes = [1, 128], strides = [1, 1]} : vector<6x128xf32> to vector<1x128xf32>
    %200 = vector.extract_strided_slice %197 {offsets = [2, 0], sizes = [1, 128], strides = [1, 1]} : vector<6x128xf32> to vector<1x128xf32>
    %201 = vector.extract_strided_slice %197 {offsets = [3, 0], sizes = [1, 128], strides = [1, 1]} : vector<6x128xf32> to vector<1x128xf32>
    %202 = vector.extract_strided_slice %197 {offsets = [4, 0], sizes = [1, 128], strides = [1, 1]} : vector<6x128xf32> to vector<1x128xf32>
    %203 = vector.extract_strided_slice %197 {offsets = [5, 0], sizes = [1, 128], strides = [1, 1]} : vector<6x128xf32> to vector<1x128xf32>
    %204 = arith.truncf %183 : vector<2x128xf32> to vector<2x128xbf16>
    %cst_81 = arith.constant dense<0.000000e+00> : vector<2x384xf32>
    %205 = tpu.matmul %204, %185, %cst_81 {dimension_numbers = #tpu.dot_dimension_numbers<[1], [0], [0], [1], [0, 0, 1, 1], [], []>} : vector<2x128xbf16>, vector<128x384xbf16>, vector<2x384xf32> -> vector<2x384xf32>
    %206 = vector.broadcast %187 : vector<1x384xf32> to vector<2x384xf32>
    %207 = arith.addf %205, %206 : vector<2x384xf32>
    %208 = vector.extract_strided_slice %207 {offsets = [0, 0], sizes = [2, 128], strides = [1, 1]} : vector<2x384xf32> to vector<2x128xf32>
    %209 = vector.extract_strided_slice %207 {offsets = [0, 128], sizes = [2, 128], strides = [1, 1]} : vector<2x384xf32> to vector<2x128xf32>
    %210 = vector.extract_strided_slice %207 {offsets = [0, 256], sizes = [2, 128], strides = [1, 1]} : vector<2x384xf32> to vector<2x128xf32>
    %211 = vector.extract_strided_slice %208 {offsets = [0, 0], sizes = [2, 32], strides = [1, 1]} : vector<2x128xf32> to vector<2x32xf32>
    %212 = arith.truncf %211 : vector<2x32xf32> to vector<2x32xbf16>
    %213 = vector.extract_strided_slice %209 {offsets = [0, 0], sizes = [2, 32], strides = [1, 1]} : vector<2x128xf32> to vector<2x32xf32>
    %214 = arith.truncf %213 : vector<2x32xf32> to vector<2x32xbf16>
    %215 = vector.extract_strided_slice %210 {offsets = [0, 0], sizes = [2, 32], strides = [1, 1]} : vector<2x128xf32> to vector<2x32xf32>
    %216 = arith.truncf %215 : vector<2x32xf32> to vector<2x32xbf16>
    %cst_82 = arith.constant dense<0.000000e+00> : vector<2x2xf32>
    %217 = tpu.matmul %212, %214, %cst_82 {dimension_numbers = #tpu.dot_dimension_numbers<[1], [1], [0], [0], [0, 0, 1, 0], [], []>} : vector<2x32xbf16>, vector<2x32xbf16>, vector<2x2xf32> -> vector<2x2xf32>
    %cst_83 = arith.constant dense<0xFF800000> : vector<2xf32>
    %218 = vector.multi_reduction <maximumf>, %217, %cst_83 [1] : vector<2x2xf32> to vector<2xf32>
    %219 = vector.shape_cast %218 : vector<2xf32> to vector<2x1xf32>
    %220 = vector.broadcast %219 : vector<2x1xf32> to vector<2x2xf32>
    %221 = arith.subf %217, %220 : vector<2x2xf32>
    %222 = math.exp %221 : vector<2x2xf32>
    %cst_84 = arith.constant dense<0.000000e+00> : vector<2xf32>
    %223 = vector.multi_reduction <add>, %222, %cst_84 [1] : vector<2x2xf32> to vector<2xf32>
    %224 = vector.shape_cast %223 : vector<2xf32> to vector<2x1xf32>
    %225 = tpu.reciprocal %224 {approx = true} : vector<2x1xf32> -> vector<2x1xf32>
    %226 = vector.broadcast %225 : vector<2x1xf32> to vector<2x2xf32>
    %227 = arith.mulf %222, %226 : vector<2x2xf32>
    %228 = arith.truncf %227 : vector<2x2xf32> to vector<2x2xbf16>
    %cst_85 = arith.constant dense<0.000000e+00> : vector<2x32xf32>
    %229 = tpu.matmul %228, %216, %cst_85 {dimension_numbers = #tpu.dot_dimension_numbers<[1], [0], [0], [1], [0, 0, 1, 1], [], []>} : vector<2x2xbf16>, vector<2x32xbf16>, vector<2x32xf32> -> vector<2x32xf32>
    %230 = arith.truncf %229 : vector<2x32xf32> to vector<2x32xbf16>
    %231 = vector.extract_strided_slice %189 {offsets = [0, 0], sizes = [32, 128], strides = [1, 1]} : vector<128x128xbf16> to vector<32x128xbf16>
    %cst_86 = arith.constant dense<0.000000e+00> : vector<2x128xf32>
    %232 = tpu.matmul %230, %231, %cst_86 {dimension_numbers = #tpu.dot_dimension_numbers<[1], [0], [0], [1], [0, 0, 1, 1], [], []>} : vector<2x32xbf16>, vector<32x128xbf16>, vector<2x128xf32> -> vector<2x128xf32>
    %233 = vector.extract_strided_slice %208 {offsets = [0, 32], sizes = [2, 32], strides = [1, 1]} : vector<2x128xf32> to vector<2x32xf32>
    %234 = arith.truncf %233 : vector<2x32xf32> to vector<2x32xbf16>
    %235 = vector.extract_strided_slice %209 {offsets = [0, 32], sizes = [2, 32], strides = [1, 1]} : vector<2x128xf32> to vector<2x32xf32>
    %236 = arith.truncf %235 : vector<2x32xf32> to vector<2x32xbf16>
    %237 = vector.extract_strided_slice %210 {offsets = [0, 32], sizes = [2, 32], strides = [1, 1]} : vector<2x128xf32> to vector<2x32xf32>
    %238 = arith.truncf %237 : vector<2x32xf32> to vector<2x32xbf16>
    %cst_87 = arith.constant dense<0.000000e+00> : vector<2x2xf32>
    %239 = tpu.matmul %234, %236, %cst_87 {dimension_numbers = #tpu.dot_dimension_numbers<[1], [1], [0], [0], [0, 0, 1, 0], [], []>} : vector<2x32xbf16>, vector<2x32xbf16>, vector<2x2xf32> -> vector<2x2xf32>
    %cst_88 = arith.constant dense<0xFF800000> : vector<2xf32>
    %240 = vector.multi_reduction <maximumf>, %239, %cst_88 [1] : vector<2x2xf32> to vector<2xf32>
    %241 = vector.shape_cast %240 : vector<2xf32> to vector<2x1xf32>
    %242 = vector.broadcast %241 : vector<2x1xf32> to vector<2x2xf32>
    %243 = arith.subf %239, %242 : vector<2x2xf32>
    %244 = math.exp %243 : vector<2x2xf32>
    %cst_89 = arith.constant dense<0.000000e+00> : vector<2xf32>
    %245 = vector.multi_reduction <add>, %244, %cst_89 [1] : vector<2x2xf32> to vector<2xf32>
    %246 = vector.shape_cast %245 : vector<2xf32> to vector<2x1xf32>
    %247 = tpu.reciprocal %246 {approx = true} : vector<2x1xf32> -> vector<2x1xf32>
    %248 = vector.broadcast %247 : vector<2x1xf32> to vector<2x2xf32>
    %249 = arith.mulf %244, %248 : vector<2x2xf32>
    %250 = arith.truncf %249 : vector<2x2xf32> to vector<2x2xbf16>
    %cst_90 = arith.constant dense<0.000000e+00> : vector<2x32xf32>
    %251 = tpu.matmul %250, %238, %cst_90 {dimension_numbers = #tpu.dot_dimension_numbers<[1], [0], [0], [1], [0, 0, 1, 1], [], []>} : vector<2x2xbf16>, vector<2x32xbf16>, vector<2x32xf32> -> vector<2x32xf32>
    %252 = arith.truncf %251 : vector<2x32xf32> to vector<2x32xbf16>
    %253 = vector.extract_strided_slice %189 {offsets = [32, 0], sizes = [32, 128], strides = [1, 1]} : vector<128x128xbf16> to vector<32x128xbf16>
    %cst_91 = arith.constant dense<0.000000e+00> : vector<2x128xf32>
    %254 = tpu.matmul %252, %253, %cst_91 {dimension_numbers = #tpu.dot_dimension_numbers<[1], [0], [0], [1], [0, 0, 1, 1], [], []>} : vector<2x32xbf16>, vector<32x128xbf16>, vector<2x128xf32> -> vector<2x128xf32>
    %255 = arith.addf %232, %254 : vector<2x128xf32>
    %256 = vector.extract_strided_slice %208 {offsets = [0, 64], sizes = [2, 32], strides = [1, 1]} : vector<2x128xf32> to vector<2x32xf32>
    %257 = arith.truncf %256 : vector<2x32xf32> to vector<2x32xbf16>
    %258 = vector.extract_strided_slice %209 {offsets = [0, 64], sizes = [2, 32], strides = [1, 1]} : vector<2x128xf32> to vector<2x32xf32>
    %259 = arith.truncf %258 : vector<2x32xf32> to vector<2x32xbf16>
    %260 = vector.extract_strided_slice %210 {offsets = [0, 64], sizes = [2, 32], strides = [1, 1]} : vector<2x128xf32> to vector<2x32xf32>
    %261 = arith.truncf %260 : vector<2x32xf32> to vector<2x32xbf16>
    %cst_92 = arith.constant dense<0.000000e+00> : vector<2x2xf32>
    %262 = tpu.matmul %257, %259, %cst_92 {dimension_numbers = #tpu.dot_dimension_numbers<[1], [1], [0], [0], [0, 0, 1, 0], [], []>} : vector<2x32xbf16>, vector<2x32xbf16>, vector<2x2xf32> -> vector<2x2xf32>
    %cst_93 = arith.constant dense<0xFF800000> : vector<2xf32>
    %263 = vector.multi_reduction <maximumf>, %262, %cst_93 [1] : vector<2x2xf32> to vector<2xf32>
    %264 = vector.shape_cast %263 : vector<2xf32> to vector<2x1xf32>
    %265 = vector.broadcast %264 : vector<2x1xf32> to vector<2x2xf32>
    %266 = arith.subf %262, %265 : vector<2x2xf32>
    %267 = math.exp %266 : vector<2x2xf32>
    %cst_94 = arith.constant dense<0.000000e+00> : vector<2xf32>
    %268 = vector.multi_reduction <add>, %267, %cst_94 [1] : vector<2x2xf32> to vector<2xf32>
    %269 = vector.shape_cast %268 : vector<2xf32> to vector<2x1xf32>
    %270 = tpu.reciprocal %269 {approx = true} : vector<2x1xf32> -> vector<2x1xf32>
    %271 = vector.broadcast %270 : vector<2x1xf32> to vector<2x2xf32>
    %272 = arith.mulf %267, %271 : vector<2x2xf32>
    %273 = arith.truncf %272 : vector<2x2xf32> to vector<2x2xbf16>
    %cst_95 = arith.constant dense<0.000000e+00> : vector<2x32xf32>
    %274 = tpu.matmul %273, %261, %cst_95 {dimension_numbers = #tpu.dot_dimension_numbers<[1], [0], [0], [1], [0, 0, 1, 1], [], []>} : vector<2x2xbf16>, vector<2x32xbf16>, vector<2x32xf32> -> vector<2x32xf32>
    %275 = arith.truncf %274 : vector<2x32xf32> to vector<2x32xbf16>
    %276 = vector.extract_strided_slice %189 {offsets = [64, 0], sizes = [32, 128], strides = [1, 1]} : vector<128x128xbf16> to vector<32x128xbf16>
    %cst_96 = arith.constant dense<0.000000e+00> : vector<2x128xf32>
    %277 = tpu.matmul %275, %276, %cst_96 {dimension_numbers = #tpu.dot_dimension_numbers<[1], [0], [0], [1], [0, 0, 1, 1], [], []>} : vector<2x32xbf16>, vector<32x128xbf16>, vector<2x128xf32> -> vector<2x128xf32>
    %278 = arith.addf %255, %277 : vector<2x128xf32>
    %279 = vector.extract_strided_slice %208 {offsets = [0, 96], sizes = [2, 32], strides = [1, 1]} : vector<2x128xf32> to vector<2x32xf32>
    %280 = arith.truncf %279 : vector<2x32xf32> to vector<2x32xbf16>
    %281 = vector.extract_strided_slice %209 {offsets = [0, 96], sizes = [2, 32], strides = [1, 1]} : vector<2x128xf32> to vector<2x32xf32>
    %282 = arith.truncf %281 : vector<2x32xf32> to vector<2x32xbf16>
    %283 = vector.extract_strided_slice %210 {offsets = [0, 96], sizes = [2, 32], strides = [1, 1]} : vector<2x128xf32> to vector<2x32xf32>
    %284 = arith.truncf %283 : vector<2x32xf32> to vector<2x32xbf16>
    %cst_97 = arith.constant dense<0.000000e+00> : vector<2x2xf32>
    %285 = tpu.matmul %280, %282, %cst_97 {dimension_numbers = #tpu.dot_dimension_numbers<[1], [1], [0], [0], [0, 0, 1, 0], [], []>} : vector<2x32xbf16>, vector<2x32xbf16>, vector<2x2xf32> -> vector<2x2xf32>
    %cst_98 = arith.constant dense<0xFF800000> : vector<2xf32>
    %286 = vector.multi_reduction <maximumf>, %285, %cst_98 [1] : vector<2x2xf32> to vector<2xf32>
    %287 = vector.shape_cast %286 : vector<2xf32> to vector<2x1xf32>
    %288 = vector.broadcast %287 : vector<2x1xf32> to vector<2x2xf32>
    %289 = arith.subf %285, %288 : vector<2x2xf32>
    %290 = math.exp %289 : vector<2x2xf32>
    %cst_99 = arith.constant dense<0.000000e+00> : vector<2xf32>
    %291 = vector.multi_reduction <add>, %290, %cst_99 [1] : vector<2x2xf32> to vector<2xf32>
    %292 = vector.shape_cast %291 : vector<2xf32> to vector<2x1xf32>
    %293 = tpu.reciprocal %292 {approx = true} : vector<2x1xf32> -> vector<2x1xf32>
    %294 = vector.broadcast %293 : vector<2x1xf32> to vector<2x2xf32>
    %295 = arith.mulf %290, %294 : vector<2x2xf32>
    %296 = arith.truncf %295 : vector<2x2xf32> to vector<2x2xbf16>
    %cst_100 = arith.constant dense<0.000000e+00> : vector<2x32xf32>
    %297 = tpu.matmul %296, %284, %cst_100 {dimension_numbers = #tpu.dot_dimension_numbers<[1], [0], [0], [1], [0, 0, 1, 1], [], []>} : vector<2x2xbf16>, vector<2x32xbf16>, vector<2x32xf32> -> vector<2x32xf32>
    %298 = arith.truncf %297 : vector<2x32xf32> to vector<2x32xbf16>
    %299 = vector.extract_strided_slice %189 {offsets = [96, 0], sizes = [32, 128], strides = [1, 1]} : vector<128x128xbf16> to vector<32x128xbf16>
    %cst_101 = arith.constant dense<0.000000e+00> : vector<2x128xf32>
    %300 = tpu.matmul %298, %299, %cst_101 {dimension_numbers = #tpu.dot_dimension_numbers<[1], [0], [0], [1], [0, 0, 1, 1], [], []>} : vector<2x32xbf16>, vector<32x128xbf16>, vector<2x128xf32> -> vector<2x128xf32>
    %301 = arith.addf %278, %300 : vector<2x128xf32>
    %302 = vector.broadcast %198 : vector<1x128xf32> to vector<2x128xf32>
    %303 = arith.addf %301, %302 : vector<2x128xf32>
    %304 = arith.addf %183, %303 : vector<2x128xf32>
    %cst_102 = arith.constant dense<0.000000e+00> : vector<2xf32>
    %305 = vector.multi_reduction <add>, %304, %cst_102 [1] : vector<2x128xf32> to vector<2xf32>
    %306 = vector.shape_cast %305 : vector<2xf32> to vector<2x1xf32>
    %cst_103 = arith.constant 7.812500e-03 : f32
    %307 = vector.broadcast %cst_103 : f32 to vector<2x1xf32>
    %308 = arith.mulf %306, %307 : vector<2x1xf32>
    %309 = arith.mulf %304, %304 : vector<2x128xf32>
    %cst_104 = arith.constant dense<0.000000e+00> : vector<2xf32>
    %310 = vector.multi_reduction <add>, %309, %cst_104 [1] : vector<2x128xf32> to vector<2xf32>
    %311 = vector.shape_cast %310 : vector<2xf32> to vector<2x1xf32>
    %cst_105 = arith.constant 7.812500e-03 : f32
    %312 = vector.broadcast %cst_105 : f32 to vector<2x1xf32>
    %313 = arith.mulf %311, %312 : vector<2x1xf32>
    %314 = arith.mulf %308, %308 : vector<2x1xf32>
    %315 = arith.subf %313, %314 : vector<2x1xf32>
    %316 = vector.broadcast %308 : vector<2x1xf32> to vector<2x128xf32>
    %317 = arith.subf %304, %316 : vector<2x128xf32>
    %cst_106 = arith.constant 9.99999974E-6 : f32
    %318 = vector.broadcast %cst_106 : f32 to vector<2x1xf32>
    %319 = arith.addf %315, %318 : vector<2x1xf32>
    %320 = math.rsqrt %319 : vector<2x1xf32>
    %321 = vector.broadcast %320 : vector<2x1xf32> to vector<2x128xf32>
    %322 = arith.mulf %317, %321 : vector<2x128xf32>
    %323 = vector.broadcast %200 : vector<1x128xf32> to vector<2x128xf32>
    %324 = arith.mulf %322, %323 : vector<2x128xf32>
    %325 = vector.broadcast %201 : vector<1x128xf32> to vector<2x128xf32>
    %326 = arith.addf %324, %325 : vector<2x128xf32>
    %327 = arith.truncf %326 : vector<2x128xf32> to vector<2x128xbf16>
    %cst_107 = arith.constant dense<0.000000e+00> : vector<2x256xf32>
    %328 = tpu.matmul %327, %191, %cst_107 {dimension_numbers = #tpu.dot_dimension_numbers<[1], [0], [0], [1], [0, 0, 1, 1], [], []>} : vector<2x128xbf16>, vector<128x256xbf16>, vector<2x256xf32> -> vector<2x256xf32>
    %329 = vector.broadcast %193 : vector<1x256xf32> to vector<2x256xf32>
    %330 = arith.addf %328, %329 : vector<2x256xf32>
    %cst_108 = arith.constant 0.000000e+00 : f32
    %331 = vector.broadcast %cst_108 : f32 to vector<2x256xf32>
    %332 = arith.maximumf %330, %331 : vector<2x256xf32>
    %333 = arith.truncf %332 : vector<2x256xf32> to vector<2x256xbf16>
    %cst_109 = arith.constant dense<0.000000e+00> : vector<2x128xf32>
    %334 = tpu.matmul %333, %195, %cst_109 {dimension_numbers = #tpu.dot_dimension_numbers<[1], [0], [0], [1], [0, 0, 1, 1], [], []>} : vector<2x256xbf16>, vector<256x128xbf16>, vector<2x128xf32> -> vector<2x128xf32>
    %335 = vector.broadcast %199 : vector<1x128xf32> to vector<2x128xf32>
    %336 = arith.addf %334, %335 : vector<2x128xf32>
    %337 = arith.addf %326, %336 : vector<2x128xf32>
    %cst_110 = arith.constant dense<0.000000e+00> : vector<2xf32>
    %338 = vector.multi_reduction <add>, %337, %cst_110 [1] : vector<2x128xf32> to vector<2xf32>
    %339 = vector.shape_cast %338 : vector<2xf32> to vector<2x1xf32>
    %cst_111 = arith.constant 7.812500e-03 : f32
    %340 = vector.broadcast %cst_111 : f32 to vector<2x1xf32>
    %341 = arith.mulf %339, %340 : vector<2x1xf32>
    %342 = arith.mulf %337, %337 : vector<2x128xf32>
    %cst_112 = arith.constant dense<0.000000e+00> : vector<2xf32>
    %343 = vector.multi_reduction <add>, %342, %cst_112 [1] : vector<2x128xf32> to vector<2xf32>
    %344 = vector.shape_cast %343 : vector<2xf32> to vector<2x1xf32>
    %cst_113 = arith.constant 7.812500e-03 : f32
    %345 = vector.broadcast %cst_113 : f32 to vector<2x1xf32>
    %346 = arith.mulf %344, %345 : vector<2x1xf32>
    %347 = arith.mulf %341, %341 : vector<2x1xf32>
    %348 = arith.subf %346, %347 : vector<2x1xf32>
    %349 = vector.broadcast %341 : vector<2x1xf32> to vector<2x128xf32>
    %350 = arith.subf %337, %349 : vector<2x128xf32>
    %cst_114 = arith.constant 9.99999974E-6 : f32
    %351 = vector.broadcast %cst_114 : f32 to vector<2x1xf32>
    %352 = arith.addf %348, %351 : vector<2x1xf32>
    %353 = math.rsqrt %352 : vector<2x1xf32>
    %354 = vector.broadcast %353 : vector<2x1xf32> to vector<2x128xf32>
    %355 = arith.mulf %350, %354 : vector<2x128xf32>
    %356 = vector.broadcast %202 : vector<1x128xf32> to vector<2x128xf32>
    %357 = arith.mulf %355, %356 : vector<2x128xf32>
    %358 = vector.broadcast %203 : vector<1x128xf32> to vector<2x128xf32>
    %359 = arith.addf %357, %358 : vector<2x128xf32>
    %c0_115 = arith.constant 0 : index
    %c0_116 = arith.constant 0 : index
    %360 = vector.load %arg24[%c0_115, %c0_116] : memref<4x128xf32, #tpu.memory_space<vmem>>, vector<4x128xf32>
    %361 = vector.extract_strided_slice %360 {offsets = [0, 0], sizes = [1, 128], strides = [1, 1]} : vector<4x128xf32> to vector<1x128xf32>
    %362 = vector.extract_strided_slice %360 {offsets = [1, 0], sizes = [1, 128], strides = [1, 1]} : vector<4x128xf32> to vector<1x128xf32>
    %cst_117 = arith.constant dense<0.000000e+00> : vector<2xf32>
    %363 = vector.multi_reduction <add>, %359, %cst_117 [1] : vector<2x128xf32> to vector<2xf32>
    %364 = vector.shape_cast %363 : vector<2xf32> to vector<2x1xf32>
    %cst_118 = arith.constant 7.812500e-03 : f32
    %365 = vector.broadcast %cst_118 : f32 to vector<2x1xf32>
    %366 = arith.mulf %364, %365 : vector<2x1xf32>
    %367 = arith.mulf %359, %359 : vector<2x128xf32>
    %cst_119 = arith.constant dense<0.000000e+00> : vector<2xf32>
    %368 = vector.multi_reduction <add>, %367, %cst_119 [1] : vector<2x128xf32> to vector<2xf32>
    %369 = vector.shape_cast %368 : vector<2xf32> to vector<2x1xf32>
    %cst_120 = arith.constant 7.812500e-03 : f32
    %370 = vector.broadcast %cst_120 : f32 to vector<2x1xf32>
    %371 = arith.mulf %369, %370 : vector<2x1xf32>
    %372 = arith.mulf %366, %366 : vector<2x1xf32>
    %373 = arith.subf %371, %372 : vector<2x1xf32>
    %374 = vector.broadcast %366 : vector<2x1xf32> to vector<2x128xf32>
    %375 = arith.subf %359, %374 : vector<2x128xf32>
    %cst_121 = arith.constant 9.99999974E-6 : f32
    %376 = vector.broadcast %cst_121 : f32 to vector<2x1xf32>
    %377 = arith.addf %373, %376 : vector<2x1xf32>
    %378 = math.rsqrt %377 : vector<2x1xf32>
    %379 = vector.broadcast %378 : vector<2x1xf32> to vector<2x128xf32>
    %380 = arith.mulf %375, %379 : vector<2x128xf32>
    %381 = vector.broadcast %361 : vector<1x128xf32> to vector<2x128xf32>
    %382 = arith.mulf %380, %381 : vector<2x128xf32>
    %383 = vector.broadcast %362 : vector<1x128xf32> to vector<2x128xf32>
    %384 = arith.addf %382, %383 : vector<2x128xf32>
    %c0_122 = arith.constant 0 : index
    %c0_123 = arith.constant 0 : index
    %c0_124 = arith.constant 0 : index
    %385 = vector.load %arg12[%c0_122, %c0_123, %c0_124] : memref<2x128x384xbf16, #tpu.memory_space<vmem>>, vector<1x128x384xbf16>
    %386 = vector.shape_cast %385 : vector<1x128x384xbf16> to vector<128x384xbf16>
    %c0_125 = arith.constant 0 : index
    %c0_126 = arith.constant 0 : index
    %c0_127 = arith.constant 0 : index
    %387 = vector.load %arg4[%c0_125, %c0_126, %c0_127] : memref<2x1x384xf32, #tpu.memory_space<vmem>>, vector<1x1x384xf32>
    %388 = vector.shape_cast %387 : vector<1x1x384xf32> to vector<1x384xf32>
    %c0_128 = arith.constant 0 : index
    %c0_129 = arith.constant 0 : index
    %c0_130 = arith.constant 0 : index
    %389 = vector.load %arg11[%c0_128, %c0_129, %c0_130] : memref<2x128x128xbf16, #tpu.memory_space<vmem>>, vector<1x128x128xbf16>
    %390 = vector.shape_cast %389 : vector<1x128x128xbf16> to vector<128x128xbf16>
    %c0_131 = arith.constant 0 : index
    %c0_132 = arith.constant 0 : index
    %c0_133 = arith.constant 0 : index
    %391 = vector.load %arg8[%c0_131, %c0_132, %c0_133] : memref<2x128x128xbf16, #tpu.memory_space<vmem>>, vector<1x128x128xbf16>
    %392 = vector.shape_cast %391 : vector<1x128x128xbf16> to vector<128x128xbf16>
    %c0_134 = arith.constant 0 : index
    %c0_135 = arith.constant 0 : index
    %c0_136 = arith.constant 0 : index
    %393 = vector.load %arg6[%c0_134, %c0_135, %c0_136] : memref<2x128x256xbf16, #tpu.memory_space<vmem>>, vector<1x128x256xbf16>
    %394 = vector.shape_cast %393 : vector<1x128x256xbf16> to vector<128x256xbf16>
    %c0_137 = arith.constant 0 : index
    %c0_138 = arith.constant 0 : index
    %c0_139 = arith.constant 0 : index
    %395 = vector.load %arg2[%c0_137, %c0_138, %c0_139] : memref<2x1x256xf32, #tpu.memory_space<vmem>>, vector<1x1x256xf32>
    %396 = vector.shape_cast %395 : vector<1x1x256xf32> to vector<1x256xf32>
    %c0_140 = arith.constant 0 : index
    %c0_141 = arith.constant 0 : index
    %c0_142 = arith.constant 0 : index
    %397 = vector.load %arg7[%c0_140, %c0_141, %c0_142] : memref<2x128x128xbf16, #tpu.memory_space<vmem>>, vector<1x128x128xbf16>
    %398 = vector.shape_cast %397 : vector<1x128x128xbf16> to vector<128x128xbf16>
    %c0_143 = arith.constant 0 : index
    %c0_144 = arith.constant 0 : index
    %c0_145 = arith.constant 0 : index
    %399 = vector.load %arg9[%c0_143, %c0_144, %c0_145] : memref<2x128x256xbf16, #tpu.memory_space<vmem>>, vector<1x128x256xbf16>
    %400 = vector.shape_cast %399 : vector<1x128x256xbf16> to vector<128x256xbf16>
    %c0_146 = arith.constant 0 : index
    %c0_147 = arith.constant 0 : index
    %c0_148 = arith.constant 0 : index
    %401 = vector.load %arg3[%c0_146, %c0_147, %c0_148] : memref<2x1x256xf32, #tpu.memory_space<vmem>>, vector<1x1x256xf32>
    %402 = vector.shape_cast %401 : vector<1x1x256xf32> to vector<1x256xf32>
    %c0_149 = arith.constant 0 : index
    %c0_150 = arith.constant 0 : index
    %c0_151 = arith.constant 0 : index
    %403 = vector.load %arg10[%c0_149, %c0_150, %c0_151] : memref<2x256x128xbf16, #tpu.memory_space<vmem>>, vector<1x256x128xbf16>
    %404 = vector.shape_cast %403 : vector<1x256x128xbf16> to vector<256x128xbf16>
    %c0_152 = arith.constant 0 : index
    %c0_153 = arith.constant 0 : index
    %c0_154 = arith.constant 0 : index
    %405 = vector.load %arg5[%c0_152, %c0_153, %c0_154] : memref<2x10x128xf32, #tpu.memory_space<vmem>>, vector<1x10x128xf32>
    %406 = vector.shape_cast %405 : vector<1x10x128xf32> to vector<10x128xf32>
    %407 = vector.extract_strided_slice %406 {offsets = [0, 0], sizes = [1, 128], strides = [1, 1]} : vector<10x128xf32> to vector<1x128xf32>
    %408 = vector.extract_strided_slice %406 {offsets = [1, 0], sizes = [1, 128], strides = [1, 1]} : vector<10x128xf32> to vector<1x128xf32>
    %409 = vector.extract_strided_slice %406 {offsets = [2, 0], sizes = [1, 128], strides = [1, 1]} : vector<10x128xf32> to vector<1x128xf32>
    %410 = vector.extract_strided_slice %406 {offsets = [3, 0], sizes = [1, 128], strides = [1, 1]} : vector<10x128xf32> to vector<1x128xf32>
    %411 = vector.extract_strided_slice %406 {offsets = [4, 0], sizes = [1, 128], strides = [1, 1]} : vector<10x128xf32> to vector<1x128xf32>
    %412 = vector.extract_strided_slice %406 {offsets = [5, 0], sizes = [1, 128], strides = [1, 1]} : vector<10x128xf32> to vector<1x128xf32>
    %413 = vector.extract_strided_slice %406 {offsets = [6, 0], sizes = [1, 128], strides = [1, 1]} : vector<10x128xf32> to vector<1x128xf32>
    %414 = vector.extract_strided_slice %406 {offsets = [7, 0], sizes = [1, 128], strides = [1, 1]} : vector<10x128xf32> to vector<1x128xf32>
    %415 = vector.extract_strided_slice %406 {offsets = [8, 0], sizes = [1, 128], strides = [1, 1]} : vector<10x128xf32> to vector<1x128xf32>
    %416 = vector.extract_strided_slice %406 {offsets = [9, 0], sizes = [1, 128], strides = [1, 1]} : vector<10x128xf32> to vector<1x128xf32>
    %417 = arith.truncf %7 : vector<2x128xf32> to vector<2x128xbf16>
    %cst_155 = arith.constant dense<0.000000e+00> : vector<2x384xf32>
    %418 = tpu.matmul %417, %386, %cst_155 {dimension_numbers = #tpu.dot_dimension_numbers<[1], [0], [0], [1], [0, 0, 1, 1], [], []>} : vector<2x128xbf16>, vector<128x384xbf16>, vector<2x384xf32> -> vector<2x384xf32>
    %419 = vector.broadcast %388 : vector<1x384xf32> to vector<2x384xf32>
    %420 = arith.addf %418, %419 : vector<2x384xf32>
    %421 = vector.extract_strided_slice %420 {offsets = [0, 0], sizes = [2, 128], strides = [1, 1]} : vector<2x384xf32> to vector<2x128xf32>
    %422 = vector.extract_strided_slice %420 {offsets = [0, 128], sizes = [2, 128], strides = [1, 1]} : vector<2x384xf32> to vector<2x128xf32>
    %423 = vector.extract_strided_slice %420 {offsets = [0, 256], sizes = [2, 128], strides = [1, 1]} : vector<2x384xf32> to vector<2x128xf32>
    %424 = vector.extract_strided_slice %421 {offsets = [0, 0], sizes = [2, 32], strides = [1, 1]} : vector<2x128xf32> to vector<2x32xf32>
    %425 = arith.truncf %424 : vector<2x32xf32> to vector<2x32xbf16>
    %426 = vector.extract_strided_slice %422 {offsets = [0, 0], sizes = [2, 32], strides = [1, 1]} : vector<2x128xf32> to vector<2x32xf32>
    %427 = arith.truncf %426 : vector<2x32xf32> to vector<2x32xbf16>
    %428 = vector.extract_strided_slice %423 {offsets = [0, 0], sizes = [2, 32], strides = [1, 1]} : vector<2x128xf32> to vector<2x32xf32>
    %429 = arith.truncf %428 : vector<2x32xf32> to vector<2x32xbf16>
    %cst_156 = arith.constant dense<0.000000e+00> : vector<2x2xf32>
    %430 = tpu.matmul %425, %427, %cst_156 {dimension_numbers = #tpu.dot_dimension_numbers<[1], [1], [0], [0], [0, 0, 1, 0], [], []>} : vector<2x32xbf16>, vector<2x32xbf16>, vector<2x2xf32> -> vector<2x2xf32>
    %cst_157 = arith.constant dense<0xFF800000> : vector<2xf32>
    %431 = vector.multi_reduction <maximumf>, %430, %cst_157 [1] : vector<2x2xf32> to vector<2xf32>
    %432 = vector.shape_cast %431 : vector<2xf32> to vector<2x1xf32>
    %433 = vector.broadcast %432 : vector<2x1xf32> to vector<2x2xf32>
    %434 = arith.subf %430, %433 : vector<2x2xf32>
    %435 = math.exp %434 : vector<2x2xf32>
    %cst_158 = arith.constant dense<0.000000e+00> : vector<2xf32>
    %436 = vector.multi_reduction <add>, %435, %cst_158 [1] : vector<2x2xf32> to vector<2xf32>
    %437 = vector.shape_cast %436 : vector<2xf32> to vector<2x1xf32>
    %438 = tpu.reciprocal %437 {approx = true} : vector<2x1xf32> -> vector<2x1xf32>
    %439 = vector.broadcast %438 : vector<2x1xf32> to vector<2x2xf32>
    %440 = arith.mulf %435, %439 : vector<2x2xf32>
    %441 = arith.truncf %440 : vector<2x2xf32> to vector<2x2xbf16>
    %cst_159 = arith.constant dense<0.000000e+00> : vector<2x32xf32>
    %442 = tpu.matmul %441, %429, %cst_159 {dimension_numbers = #tpu.dot_dimension_numbers<[1], [0], [0], [1], [0, 0, 1, 1], [], []>} : vector<2x2xbf16>, vector<2x32xbf16>, vector<2x32xf32> -> vector<2x32xf32>
    %443 = arith.truncf %442 : vector<2x32xf32> to vector<2x32xbf16>
    %444 = vector.extract_strided_slice %390 {offsets = [0, 0], sizes = [32, 128], strides = [1, 1]} : vector<128x128xbf16> to vector<32x128xbf16>
    %cst_160 = arith.constant dense<0.000000e+00> : vector<2x128xf32>
    %445 = tpu.matmul %443, %444, %cst_160 {dimension_numbers = #tpu.dot_dimension_numbers<[1], [0], [0], [1], [0, 0, 1, 1], [], []>} : vector<2x32xbf16>, vector<32x128xbf16>, vector<2x128xf32> -> vector<2x128xf32>
    %446 = vector.extract_strided_slice %421 {offsets = [0, 32], sizes = [2, 32], strides = [1, 1]} : vector<2x128xf32> to vector<2x32xf32>
    %447 = arith.truncf %446 : vector<2x32xf32> to vector<2x32xbf16>
    %448 = vector.extract_strided_slice %422 {offsets = [0, 32], sizes = [2, 32], strides = [1, 1]} : vector<2x128xf32> to vector<2x32xf32>
    %449 = arith.truncf %448 : vector<2x32xf32> to vector<2x32xbf16>
    %450 = vector.extract_strided_slice %423 {offsets = [0, 32], sizes = [2, 32], strides = [1, 1]} : vector<2x128xf32> to vector<2x32xf32>
    %451 = arith.truncf %450 : vector<2x32xf32> to vector<2x32xbf16>
    %cst_161 = arith.constant dense<0.000000e+00> : vector<2x2xf32>
    %452 = tpu.matmul %447, %449, %cst_161 {dimension_numbers = #tpu.dot_dimension_numbers<[1], [1], [0], [0], [0, 0, 1, 0], [], []>} : vector<2x32xbf16>, vector<2x32xbf16>, vector<2x2xf32> -> vector<2x2xf32>
    %cst_162 = arith.constant dense<0xFF800000> : vector<2xf32>
    %453 = vector.multi_reduction <maximumf>, %452, %cst_162 [1] : vector<2x2xf32> to vector<2xf32>
    %454 = vector.shape_cast %453 : vector<2xf32> to vector<2x1xf32>
    %455 = vector.broadcast %454 : vector<2x1xf32> to vector<2x2xf32>
    %456 = arith.subf %452, %455 : vector<2x2xf32>
    %457 = math.exp %456 : vector<2x2xf32>
    %cst_163 = arith.constant dense<0.000000e+00> : vector<2xf32>
    %458 = vector.multi_reduction <add>, %457, %cst_163 [1] : vector<2x2xf32> to vector<2xf32>
    %459 = vector.shape_cast %458 : vector<2xf32> to vector<2x1xf32>
    %460 = tpu.reciprocal %459 {approx = true} : vector<2x1xf32> -> vector<2x1xf32>
    %461 = vector.broadcast %460 : vector<2x1xf32> to vector<2x2xf32>
    %462 = arith.mulf %457, %461 : vector<2x2xf32>
    %463 = arith.truncf %462 : vector<2x2xf32> to vector<2x2xbf16>
    %cst_164 = arith.constant dense<0.000000e+00> : vector<2x32xf32>
    %464 = tpu.matmul %463, %451, %cst_164 {dimension_numbers = #tpu.dot_dimension_numbers<[1], [0], [0], [1], [0, 0, 1, 1], [], []>} : vector<2x2xbf16>, vector<2x32xbf16>, vector<2x32xf32> -> vector<2x32xf32>
    %465 = arith.truncf %464 : vector<2x32xf32> to vector<2x32xbf16>
    %466 = vector.extract_strided_slice %390 {offsets = [32, 0], sizes = [32, 128], strides = [1, 1]} : vector<128x128xbf16> to vector<32x128xbf16>
    %cst_165 = arith.constant dense<0.000000e+00> : vector<2x128xf32>
    %467 = tpu.matmul %465, %466, %cst_165 {dimension_numbers = #tpu.dot_dimension_numbers<[1], [0], [0], [1], [0, 0, 1, 1], [], []>} : vector<2x32xbf16>, vector<32x128xbf16>, vector<2x128xf32> -> vector<2x128xf32>
    %468 = arith.addf %445, %467 : vector<2x128xf32>
    %469 = vector.extract_strided_slice %421 {offsets = [0, 64], sizes = [2, 32], strides = [1, 1]} : vector<2x128xf32> to vector<2x32xf32>
    %470 = arith.truncf %469 : vector<2x32xf32> to vector<2x32xbf16>
    %471 = vector.extract_strided_slice %422 {offsets = [0, 64], sizes = [2, 32], strides = [1, 1]} : vector<2x128xf32> to vector<2x32xf32>
    %472 = arith.truncf %471 : vector<2x32xf32> to vector<2x32xbf16>
    %473 = vector.extract_strided_slice %423 {offsets = [0, 64], sizes = [2, 32], strides = [1, 1]} : vector<2x128xf32> to vector<2x32xf32>
    %474 = arith.truncf %473 : vector<2x32xf32> to vector<2x32xbf16>
    %cst_166 = arith.constant dense<0.000000e+00> : vector<2x2xf32>
    %475 = tpu.matmul %470, %472, %cst_166 {dimension_numbers = #tpu.dot_dimension_numbers<[1], [1], [0], [0], [0, 0, 1, 0], [], []>} : vector<2x32xbf16>, vector<2x32xbf16>, vector<2x2xf32> -> vector<2x2xf32>
    %cst_167 = arith.constant dense<0xFF800000> : vector<2xf32>
    %476 = vector.multi_reduction <maximumf>, %475, %cst_167 [1] : vector<2x2xf32> to vector<2xf32>
    %477 = vector.shape_cast %476 : vector<2xf32> to vector<2x1xf32>
    %478 = vector.broadcast %477 : vector<2x1xf32> to vector<2x2xf32>
    %479 = arith.subf %475, %478 : vector<2x2xf32>
    %480 = math.exp %479 : vector<2x2xf32>
    %cst_168 = arith.constant dense<0.000000e+00> : vector<2xf32>
    %481 = vector.multi_reduction <add>, %480, %cst_168 [1] : vector<2x2xf32> to vector<2xf32>
    %482 = vector.shape_cast %481 : vector<2xf32> to vector<2x1xf32>
    %483 = tpu.reciprocal %482 {approx = true} : vector<2x1xf32> -> vector<2x1xf32>
    %484 = vector.broadcast %483 : vector<2x1xf32> to vector<2x2xf32>
    %485 = arith.mulf %480, %484 : vector<2x2xf32>
    %486 = arith.truncf %485 : vector<2x2xf32> to vector<2x2xbf16>
    %cst_169 = arith.constant dense<0.000000e+00> : vector<2x32xf32>
    %487 = tpu.matmul %486, %474, %cst_169 {dimension_numbers = #tpu.dot_dimension_numbers<[1], [0], [0], [1], [0, 0, 1, 1], [], []>} : vector<2x2xbf16>, vector<2x32xbf16>, vector<2x32xf32> -> vector<2x32xf32>
    %488 = arith.truncf %487 : vector<2x32xf32> to vector<2x32xbf16>
    %489 = vector.extract_strided_slice %390 {offsets = [64, 0], sizes = [32, 128], strides = [1, 1]} : vector<128x128xbf16> to vector<32x128xbf16>
    %cst_170 = arith.constant dense<0.000000e+00> : vector<2x128xf32>
    %490 = tpu.matmul %488, %489, %cst_170 {dimension_numbers = #tpu.dot_dimension_numbers<[1], [0], [0], [1], [0, 0, 1, 1], [], []>} : vector<2x32xbf16>, vector<32x128xbf16>, vector<2x128xf32> -> vector<2x128xf32>
    %491 = arith.addf %468, %490 : vector<2x128xf32>
    %492 = vector.extract_strided_slice %421 {offsets = [0, 96], sizes = [2, 32], strides = [1, 1]} : vector<2x128xf32> to vector<2x32xf32>
    %493 = arith.truncf %492 : vector<2x32xf32> to vector<2x32xbf16>
    %494 = vector.extract_strided_slice %422 {offsets = [0, 96], sizes = [2, 32], strides = [1, 1]} : vector<2x128xf32> to vector<2x32xf32>
    %495 = arith.truncf %494 : vector<2x32xf32> to vector<2x32xbf16>
    %496 = vector.extract_strided_slice %423 {offsets = [0, 96], sizes = [2, 32], strides = [1, 1]} : vector<2x128xf32> to vector<2x32xf32>
    %497 = arith.truncf %496 : vector<2x32xf32> to vector<2x32xbf16>
    %cst_171 = arith.constant dense<0.000000e+00> : vector<2x2xf32>
    %498 = tpu.matmul %493, %495, %cst_171 {dimension_numbers = #tpu.dot_dimension_numbers<[1], [1], [0], [0], [0, 0, 1, 0], [], []>} : vector<2x32xbf16>, vector<2x32xbf16>, vector<2x2xf32> -> vector<2x2xf32>
    %cst_172 = arith.constant dense<0xFF800000> : vector<2xf32>
    %499 = vector.multi_reduction <maximumf>, %498, %cst_172 [1] : vector<2x2xf32> to vector<2xf32>
    %500 = vector.shape_cast %499 : vector<2xf32> to vector<2x1xf32>
    %501 = vector.broadcast %500 : vector<2x1xf32> to vector<2x2xf32>
    %502 = arith.subf %498, %501 : vector<2x2xf32>
    %503 = math.exp %502 : vector<2x2xf32>
    %cst_173 = arith.constant dense<0.000000e+00> : vector<2xf32>
    %504 = vector.multi_reduction <add>, %503, %cst_173 [1] : vector<2x2xf32> to vector<2xf32>
    %505 = vector.shape_cast %504 : vector<2xf32> to vector<2x1xf32>
    %506 = tpu.reciprocal %505 {approx = true} : vector<2x1xf32> -> vector<2x1xf32>
    %507 = vector.broadcast %506 : vector<2x1xf32> to vector<2x2xf32>
    %508 = arith.mulf %503, %507 : vector<2x2xf32>
    %509 = arith.truncf %508 : vector<2x2xf32> to vector<2x2xbf16>
    %cst_174 = arith.constant dense<0.000000e+00> : vector<2x32xf32>
    %510 = tpu.matmul %509, %497, %cst_174 {dimension_numbers = #tpu.dot_dimension_numbers<[1], [0], [0], [1], [0, 0, 1, 1], [], []>} : vector<2x2xbf16>, vector<2x32xbf16>, vector<2x32xf32> -> vector<2x32xf32>
    %511 = arith.truncf %510 : vector<2x32xf32> to vector<2x32xbf16>
    %512 = vector.extract_strided_slice %390 {offsets = [96, 0], sizes = [32, 128], strides = [1, 1]} : vector<128x128xbf16> to vector<32x128xbf16>
    %cst_175 = arith.constant dense<0.000000e+00> : vector<2x128xf32>
    %513 = tpu.matmul %511, %512, %cst_175 {dimension_numbers = #tpu.dot_dimension_numbers<[1], [0], [0], [1], [0, 0, 1, 1], [], []>} : vector<2x32xbf16>, vector<32x128xbf16>, vector<2x128xf32> -> vector<2x128xf32>
    %514 = arith.addf %491, %513 : vector<2x128xf32>
    %515 = vector.broadcast %407 : vector<1x128xf32> to vector<2x128xf32>
    %516 = arith.addf %514, %515 : vector<2x128xf32>
    %517 = arith.addf %7, %516 : vector<2x128xf32>
    %cst_176 = arith.constant dense<0.000000e+00> : vector<2xf32>
    %518 = vector.multi_reduction <add>, %517, %cst_176 [1] : vector<2x128xf32> to vector<2xf32>
    %519 = vector.shape_cast %518 : vector<2xf32> to vector<2x1xf32>
    %cst_177 = arith.constant 7.812500e-03 : f32
    %520 = vector.broadcast %cst_177 : f32 to vector<2x1xf32>
    %521 = arith.mulf %519, %520 : vector<2x1xf32>
    %522 = arith.mulf %517, %517 : vector<2x128xf32>
    %cst_178 = arith.constant dense<0.000000e+00> : vector<2xf32>
    %523 = vector.multi_reduction <add>, %522, %cst_178 [1] : vector<2x128xf32> to vector<2xf32>
    %524 = vector.shape_cast %523 : vector<2xf32> to vector<2x1xf32>
    %cst_179 = arith.constant 7.812500e-03 : f32
    %525 = vector.broadcast %cst_179 : f32 to vector<2x1xf32>
    %526 = arith.mulf %524, %525 : vector<2x1xf32>
    %527 = arith.mulf %521, %521 : vector<2x1xf32>
    %528 = arith.subf %526, %527 : vector<2x1xf32>
    %529 = vector.broadcast %521 : vector<2x1xf32> to vector<2x128xf32>
    %530 = arith.subf %517, %529 : vector<2x128xf32>
    %cst_180 = arith.constant 9.99999974E-6 : f32
    %531 = vector.broadcast %cst_180 : f32 to vector<2x1xf32>
    %532 = arith.addf %528, %531 : vector<2x1xf32>
    %533 = math.rsqrt %532 : vector<2x1xf32>
    %534 = vector.broadcast %533 : vector<2x1xf32> to vector<2x128xf32>
    %535 = arith.mulf %530, %534 : vector<2x128xf32>
    %536 = vector.broadcast %411 : vector<1x128xf32> to vector<2x128xf32>
    %537 = arith.mulf %535, %536 : vector<2x128xf32>
    %538 = vector.broadcast %412 : vector<1x128xf32> to vector<2x128xf32>
    %539 = arith.addf %537, %538 : vector<2x128xf32>
    %540 = arith.truncf %539 : vector<2x128xf32> to vector<2x128xbf16>
    %cst_181 = arith.constant dense<0.000000e+00> : vector<2x128xf32>
    %541 = tpu.matmul %540, %392, %cst_181 {dimension_numbers = #tpu.dot_dimension_numbers<[1], [0], [0], [1], [0, 0, 1, 1], [], []>} : vector<2x128xbf16>, vector<128x128xbf16>, vector<2x128xf32> -> vector<2x128xf32>
    %542 = vector.broadcast %408 : vector<1x128xf32> to vector<2x128xf32>
    %543 = arith.addf %541, %542 : vector<2x128xf32>
    %544 = arith.truncf %384 : vector<2x128xf32> to vector<2x128xbf16>
    %cst_182 = arith.constant dense<0.000000e+00> : vector<2x256xf32>
    %545 = tpu.matmul %544, %394, %cst_182 {dimension_numbers = #tpu.dot_dimension_numbers<[1], [0], [0], [1], [0, 0, 1, 1], [], []>} : vector<2x128xbf16>, vector<128x256xbf16>, vector<2x256xf32> -> vector<2x256xf32>
    %546 = vector.broadcast %396 : vector<1x256xf32> to vector<2x256xf32>
    %547 = arith.addf %545, %546 : vector<2x256xf32>
    %548 = vector.extract_strided_slice %547 {offsets = [0, 0], sizes = [2, 128], strides = [1, 1]} : vector<2x256xf32> to vector<2x128xf32>
    %549 = vector.extract_strided_slice %547 {offsets = [0, 128], sizes = [2, 128], strides = [1, 1]} : vector<2x256xf32> to vector<2x128xf32>
    %550 = vector.extract_strided_slice %543 {offsets = [0, 0], sizes = [2, 32], strides = [1, 1]} : vector<2x128xf32> to vector<2x32xf32>
    %551 = arith.truncf %550 : vector<2x32xf32> to vector<2x32xbf16>
    %552 = vector.extract_strided_slice %548 {offsets = [0, 0], sizes = [2, 32], strides = [1, 1]} : vector<2x128xf32> to vector<2x32xf32>
    %553 = arith.truncf %552 : vector<2x32xf32> to vector<2x32xbf16>
    %554 = vector.extract_strided_slice %549 {offsets = [0, 0], sizes = [2, 32], strides = [1, 1]} : vector<2x128xf32> to vector<2x32xf32>
    %555 = arith.truncf %554 : vector<2x32xf32> to vector<2x32xbf16>
    %cst_183 = arith.constant dense<0.000000e+00> : vector<2x2xf32>
    %556 = tpu.matmul %551, %553, %cst_183 {dimension_numbers = #tpu.dot_dimension_numbers<[1], [1], [0], [0], [0, 0, 1, 0], [], []>} : vector<2x32xbf16>, vector<2x32xbf16>, vector<2x2xf32> -> vector<2x2xf32>
    %cst_184 = arith.constant dense<0xFF800000> : vector<2xf32>
    %557 = vector.multi_reduction <maximumf>, %556, %cst_184 [1] : vector<2x2xf32> to vector<2xf32>
    %558 = vector.shape_cast %557 : vector<2xf32> to vector<2x1xf32>
    %559 = vector.broadcast %558 : vector<2x1xf32> to vector<2x2xf32>
    %560 = arith.subf %556, %559 : vector<2x2xf32>
    %561 = math.exp %560 : vector<2x2xf32>
    %cst_185 = arith.constant dense<0.000000e+00> : vector<2xf32>
    %562 = vector.multi_reduction <add>, %561, %cst_185 [1] : vector<2x2xf32> to vector<2xf32>
    %563 = vector.shape_cast %562 : vector<2xf32> to vector<2x1xf32>
    %564 = tpu.reciprocal %563 {approx = true} : vector<2x1xf32> -> vector<2x1xf32>
    %565 = vector.broadcast %564 : vector<2x1xf32> to vector<2x2xf32>
    %566 = arith.mulf %561, %565 : vector<2x2xf32>
    %567 = arith.truncf %566 : vector<2x2xf32> to vector<2x2xbf16>
    %cst_186 = arith.constant dense<0.000000e+00> : vector<2x32xf32>
    %568 = tpu.matmul %567, %555, %cst_186 {dimension_numbers = #tpu.dot_dimension_numbers<[1], [0], [0], [1], [0, 0, 1, 1], [], []>} : vector<2x2xbf16>, vector<2x32xbf16>, vector<2x32xf32> -> vector<2x32xf32>
    %569 = arith.truncf %568 : vector<2x32xf32> to vector<2x32xbf16>
    %570 = vector.extract_strided_slice %398 {offsets = [0, 0], sizes = [32, 128], strides = [1, 1]} : vector<128x128xbf16> to vector<32x128xbf16>
    %cst_187 = arith.constant dense<0.000000e+00> : vector<2x128xf32>
    %571 = tpu.matmul %569, %570, %cst_187 {dimension_numbers = #tpu.dot_dimension_numbers<[1], [0], [0], [1], [0, 0, 1, 1], [], []>} : vector<2x32xbf16>, vector<32x128xbf16>, vector<2x128xf32> -> vector<2x128xf32>
    %572 = vector.extract_strided_slice %543 {offsets = [0, 32], sizes = [2, 32], strides = [1, 1]} : vector<2x128xf32> to vector<2x32xf32>
    %573 = arith.truncf %572 : vector<2x32xf32> to vector<2x32xbf16>
    %574 = vector.extract_strided_slice %548 {offsets = [0, 32], sizes = [2, 32], strides = [1, 1]} : vector<2x128xf32> to vector<2x32xf32>
    %575 = arith.truncf %574 : vector<2x32xf32> to vector<2x32xbf16>
    %576 = vector.extract_strided_slice %549 {offsets = [0, 32], sizes = [2, 32], strides = [1, 1]} : vector<2x128xf32> to vector<2x32xf32>
    %577 = arith.truncf %576 : vector<2x32xf32> to vector<2x32xbf16>
    %cst_188 = arith.constant dense<0.000000e+00> : vector<2x2xf32>
    %578 = tpu.matmul %573, %575, %cst_188 {dimension_numbers = #tpu.dot_dimension_numbers<[1], [1], [0], [0], [0, 0, 1, 0], [], []>} : vector<2x32xbf16>, vector<2x32xbf16>, vector<2x2xf32> -> vector<2x2xf32>
    %cst_189 = arith.constant dense<0xFF800000> : vector<2xf32>
    %579 = vector.multi_reduction <maximumf>, %578, %cst_189 [1] : vector<2x2xf32> to vector<2xf32>
    %580 = vector.shape_cast %579 : vector<2xf32> to vector<2x1xf32>
    %581 = vector.broadcast %580 : vector<2x1xf32> to vector<2x2xf32>
    %582 = arith.subf %578, %581 : vector<2x2xf32>
    %583 = math.exp %582 : vector<2x2xf32>
    %cst_190 = arith.constant dense<0.000000e+00> : vector<2xf32>
    %584 = vector.multi_reduction <add>, %583, %cst_190 [1] : vector<2x2xf32> to vector<2xf32>
    %585 = vector.shape_cast %584 : vector<2xf32> to vector<2x1xf32>
    %586 = tpu.reciprocal %585 {approx = true} : vector<2x1xf32> -> vector<2x1xf32>
    %587 = vector.broadcast %586 : vector<2x1xf32> to vector<2x2xf32>
    %588 = arith.mulf %583, %587 : vector<2x2xf32>
    %589 = arith.truncf %588 : vector<2x2xf32> to vector<2x2xbf16>
    %cst_191 = arith.constant dense<0.000000e+00> : vector<2x32xf32>
    %590 = tpu.matmul %589, %577, %cst_191 {dimension_numbers = #tpu.dot_dimension_numbers<[1], [0], [0], [1], [0, 0, 1, 1], [], []>} : vector<2x2xbf16>, vector<2x32xbf16>, vector<2x32xf32> -> vector<2x32xf32>
    %591 = arith.truncf %590 : vector<2x32xf32> to vector<2x32xbf16>
    %592 = vector.extract_strided_slice %398 {offsets = [32, 0], sizes = [32, 128], strides = [1, 1]} : vector<128x128xbf16> to vector<32x128xbf16>
    %cst_192 = arith.constant dense<0.000000e+00> : vector<2x128xf32>
    %593 = tpu.matmul %591, %592, %cst_192 {dimension_numbers = #tpu.dot_dimension_numbers<[1], [0], [0], [1], [0, 0, 1, 1], [], []>} : vector<2x32xbf16>, vector<32x128xbf16>, vector<2x128xf32> -> vector<2x128xf32>
    %594 = arith.addf %571, %593 : vector<2x128xf32>
    %595 = vector.extract_strided_slice %543 {offsets = [0, 64], sizes = [2, 32], strides = [1, 1]} : vector<2x128xf32> to vector<2x32xf32>
    %596 = arith.truncf %595 : vector<2x32xf32> to vector<2x32xbf16>
    %597 = vector.extract_strided_slice %548 {offsets = [0, 64], sizes = [2, 32], strides = [1, 1]} : vector<2x128xf32> to vector<2x32xf32>
    %598 = arith.truncf %597 : vector<2x32xf32> to vector<2x32xbf16>
    %599 = vector.extract_strided_slice %549 {offsets = [0, 64], sizes = [2, 32], strides = [1, 1]} : vector<2x128xf32> to vector<2x32xf32>
    %600 = arith.truncf %599 : vector<2x32xf32> to vector<2x32xbf16>
    %cst_193 = arith.constant dense<0.000000e+00> : vector<2x2xf32>
    %601 = tpu.matmul %596, %598, %cst_193 {dimension_numbers = #tpu.dot_dimension_numbers<[1], [1], [0], [0], [0, 0, 1, 0], [], []>} : vector<2x32xbf16>, vector<2x32xbf16>, vector<2x2xf32> -> vector<2x2xf32>
    %cst_194 = arith.constant dense<0xFF800000> : vector<2xf32>
    %602 = vector.multi_reduction <maximumf>, %601, %cst_194 [1] : vector<2x2xf32> to vector<2xf32>
    %603 = vector.shape_cast %602 : vector<2xf32> to vector<2x1xf32>
    %604 = vector.broadcast %603 : vector<2x1xf32> to vector<2x2xf32>
    %605 = arith.subf %601, %604 : vector<2x2xf32>
    %606 = math.exp %605 : vector<2x2xf32>
    %cst_195 = arith.constant dense<0.000000e+00> : vector<2xf32>
    %607 = vector.multi_reduction <add>, %606, %cst_195 [1] : vector<2x2xf32> to vector<2xf32>
    %608 = vector.shape_cast %607 : vector<2xf32> to vector<2x1xf32>
    %609 = tpu.reciprocal %608 {approx = true} : vector<2x1xf32> -> vector<2x1xf32>
    %610 = vector.broadcast %609 : vector<2x1xf32> to vector<2x2xf32>
    %611 = arith.mulf %606, %610 : vector<2x2xf32>
    %612 = arith.truncf %611 : vector<2x2xf32> to vector<2x2xbf16>
    %cst_196 = arith.constant dense<0.000000e+00> : vector<2x32xf32>
    %613 = tpu.matmul %612, %600, %cst_196 {dimension_numbers = #tpu.dot_dimension_numbers<[1], [0], [0], [1], [0, 0, 1, 1], [], []>} : vector<2x2xbf16>, vector<2x32xbf16>, vector<2x32xf32> -> vector<2x32xf32>
    %614 = arith.truncf %613 : vector<2x32xf32> to vector<2x32xbf16>
    %615 = vector.extract_strided_slice %398 {offsets = [64, 0], sizes = [32, 128], strides = [1, 1]} : vector<128x128xbf16> to vector<32x128xbf16>
    %cst_197 = arith.constant dense<0.000000e+00> : vector<2x128xf32>
    %616 = tpu.matmul %614, %615, %cst_197 {dimension_numbers = #tpu.dot_dimension_numbers<[1], [0], [0], [1], [0, 0, 1, 1], [], []>} : vector<2x32xbf16>, vector<32x128xbf16>, vector<2x128xf32> -> vector<2x128xf32>
    %617 = arith.addf %594, %616 : vector<2x128xf32>
    %618 = vector.extract_strided_slice %543 {offsets = [0, 96], sizes = [2, 32], strides = [1, 1]} : vector<2x128xf32> to vector<2x32xf32>
    %619 = arith.truncf %618 : vector<2x32xf32> to vector<2x32xbf16>
    %620 = vector.extract_strided_slice %548 {offsets = [0, 96], sizes = [2, 32], strides = [1, 1]} : vector<2x128xf32> to vector<2x32xf32>
    %621 = arith.truncf %620 : vector<2x32xf32> to vector<2x32xbf16>
    %622 = vector.extract_strided_slice %549 {offsets = [0, 96], sizes = [2, 32], strides = [1, 1]} : vector<2x128xf32> to vector<2x32xf32>
    %623 = arith.truncf %622 : vector<2x32xf32> to vector<2x32xbf16>
    %cst_198 = arith.constant dense<0.000000e+00> : vector<2x2xf32>
    %624 = tpu.matmul %619, %621, %cst_198 {dimension_numbers = #tpu.dot_dimension_numbers<[1], [1], [0], [0], [0, 0, 1, 0], [], []>} : vector<2x32xbf16>, vector<2x32xbf16>, vector<2x2xf32> -> vector<2x2xf32>
    %cst_199 = arith.constant dense<0xFF800000> : vector<2xf32>
    %625 = vector.multi_reduction <maximumf>, %624, %cst_199 [1] : vector<2x2xf32> to vector<2xf32>
    %626 = vector.shape_cast %625 : vector<2xf32> to vector<2x1xf32>
    %627 = vector.broadcast %626 : vector<2x1xf32> to vector<2x2xf32>
    %628 = arith.subf %624, %627 : vector<2x2xf32>
    %629 = math.exp %628 : vector<2x2xf32>
    %cst_200 = arith.constant dense<0.000000e+00> : vector<2xf32>
    %630 = vector.multi_reduction <add>, %629, %cst_200 [1] : vector<2x2xf32> to vector<2xf32>
    %631 = vector.shape_cast %630 : vector<2xf32> to vector<2x1xf32>
    %632 = tpu.reciprocal %631 {approx = true} : vector<2x1xf32> -> vector<2x1xf32>
    %633 = vector.broadcast %632 : vector<2x1xf32> to vector<2x2xf32>
    %634 = arith.mulf %629, %633 : vector<2x2xf32>
    %635 = arith.truncf %634 : vector<2x2xf32> to vector<2x2xbf16>
    %cst_201 = arith.constant dense<0.000000e+00> : vector<2x32xf32>
    %636 = tpu.matmul %635, %623, %cst_201 {dimension_numbers = #tpu.dot_dimension_numbers<[1], [0], [0], [1], [0, 0, 1, 1], [], []>} : vector<2x2xbf16>, vector<2x32xbf16>, vector<2x32xf32> -> vector<2x32xf32>
    %637 = arith.truncf %636 : vector<2x32xf32> to vector<2x32xbf16>
    %638 = vector.extract_strided_slice %398 {offsets = [96, 0], sizes = [32, 128], strides = [1, 1]} : vector<128x128xbf16> to vector<32x128xbf16>
    %cst_202 = arith.constant dense<0.000000e+00> : vector<2x128xf32>
    %639 = tpu.matmul %637, %638, %cst_202 {dimension_numbers = #tpu.dot_dimension_numbers<[1], [0], [0], [1], [0, 0, 1, 1], [], []>} : vector<2x32xbf16>, vector<32x128xbf16>, vector<2x128xf32> -> vector<2x128xf32>
    %640 = arith.addf %617, %639 : vector<2x128xf32>
    %641 = vector.broadcast %409 : vector<1x128xf32> to vector<2x128xf32>
    %642 = arith.addf %640, %641 : vector<2x128xf32>
    %643 = arith.addf %539, %642 : vector<2x128xf32>
    %cst_203 = arith.constant dense<0.000000e+00> : vector<2xf32>
    %644 = vector.multi_reduction <add>, %643, %cst_203 [1] : vector<2x128xf32> to vector<2xf32>
    %645 = vector.shape_cast %644 : vector<2xf32> to vector<2x1xf32>
    %cst_204 = arith.constant 7.812500e-03 : f32
    %646 = vector.broadcast %cst_204 : f32 to vector<2x1xf32>
    %647 = arith.mulf %645, %646 : vector<2x1xf32>
    %648 = arith.mulf %643, %643 : vector<2x128xf32>
    %cst_205 = arith.constant dense<0.000000e+00> : vector<2xf32>
    %649 = vector.multi_reduction <add>, %648, %cst_205 [1] : vector<2x128xf32> to vector<2xf32>
    %650 = vector.shape_cast %649 : vector<2xf32> to vector<2x1xf32>
    %cst_206 = arith.constant 7.812500e-03 : f32
    %651 = vector.broadcast %cst_206 : f32 to vector<2x1xf32>
    %652 = arith.mulf %650, %651 : vector<2x1xf32>
    %653 = arith.mulf %647, %647 : vector<2x1xf32>
    %654 = arith.subf %652, %653 : vector<2x1xf32>
    %655 = vector.broadcast %647 : vector<2x1xf32> to vector<2x128xf32>
    %656 = arith.subf %643, %655 : vector<2x128xf32>
    %cst_207 = arith.constant 9.99999974E-6 : f32
    %657 = vector.broadcast %cst_207 : f32 to vector<2x1xf32>
    %658 = arith.addf %654, %657 : vector<2x1xf32>
    %659 = math.rsqrt %658 : vector<2x1xf32>
    %660 = vector.broadcast %659 : vector<2x1xf32> to vector<2x128xf32>
    %661 = arith.mulf %656, %660 : vector<2x128xf32>
    %662 = vector.broadcast %413 : vector<1x128xf32> to vector<2x128xf32>
    %663 = arith.mulf %661, %662 : vector<2x128xf32>
    %664 = vector.broadcast %414 : vector<1x128xf32> to vector<2x128xf32>
    %665 = arith.addf %663, %664 : vector<2x128xf32>
    %666 = arith.truncf %665 : vector<2x128xf32> to vector<2x128xbf16>
    %cst_208 = arith.constant dense<0.000000e+00> : vector<2x256xf32>
    %667 = tpu.matmul %666, %400, %cst_208 {dimension_numbers = #tpu.dot_dimension_numbers<[1], [0], [0], [1], [0, 0, 1, 1], [], []>} : vector<2x128xbf16>, vector<128x256xbf16>, vector<2x256xf32> -> vector<2x256xf32>
    %668 = vector.broadcast %402 : vector<1x256xf32> to vector<2x256xf32>
    %669 = arith.addf %667, %668 : vector<2x256xf32>
    %cst_209 = arith.constant 0.000000e+00 : f32
    %670 = vector.broadcast %cst_209 : f32 to vector<2x256xf32>
    %671 = arith.maximumf %669, %670 : vector<2x256xf32>
    %672 = arith.truncf %671 : vector<2x256xf32> to vector<2x256xbf16>
    %cst_210 = arith.constant dense<0.000000e+00> : vector<2x128xf32>
    %673 = tpu.matmul %672, %404, %cst_210 {dimension_numbers = #tpu.dot_dimension_numbers<[1], [0], [0], [1], [0, 0, 1, 1], [], []>} : vector<2x256xbf16>, vector<256x128xbf16>, vector<2x128xf32> -> vector<2x128xf32>
    %674 = vector.broadcast %410 : vector<1x128xf32> to vector<2x128xf32>
    %675 = arith.addf %673, %674 : vector<2x128xf32>
    %676 = arith.addf %665, %675 : vector<2x128xf32>
    %cst_211 = arith.constant dense<0.000000e+00> : vector<2xf32>
    %677 = vector.multi_reduction <add>, %676, %cst_211 [1] : vector<2x128xf32> to vector<2xf32>
    %678 = vector.shape_cast %677 : vector<2xf32> to vector<2x1xf32>
    %cst_212 = arith.constant 7.812500e-03 : f32
    %679 = vector.broadcast %cst_212 : f32 to vector<2x1xf32>
    %680 = arith.mulf %678, %679 : vector<2x1xf32>
    %681 = arith.mulf %676, %676 : vector<2x128xf32>
    %cst_213 = arith.constant dense<0.000000e+00> : vector<2xf32>
    %682 = vector.multi_reduction <add>, %681, %cst_213 [1] : vector<2x128xf32> to vector<2xf32>
    %683 = vector.shape_cast %682 : vector<2xf32> to vector<2x1xf32>
    %cst_214 = arith.constant 7.812500e-03 : f32
    %684 = vector.broadcast %cst_214 : f32 to vector<2x1xf32>
    %685 = arith.mulf %683, %684 : vector<2x1xf32>
    %686 = arith.mulf %680, %680 : vector<2x1xf32>
    %687 = arith.subf %685, %686 : vector<2x1xf32>
    %688 = vector.broadcast %680 : vector<2x1xf32> to vector<2x128xf32>
    %689 = arith.subf %676, %688 : vector<2x128xf32>
    %cst_215 = arith.constant 9.99999974E-6 : f32
    %690 = vector.broadcast %cst_215 : f32 to vector<2x1xf32>
    %691 = arith.addf %687, %690 : vector<2x1xf32>
    %692 = math.rsqrt %691 : vector<2x1xf32>
    %693 = vector.broadcast %692 : vector<2x1xf32> to vector<2x128xf32>
    %694 = arith.mulf %689, %693 : vector<2x128xf32>
    %695 = vector.broadcast %415 : vector<1x128xf32> to vector<2x128xf32>
    %696 = arith.mulf %694, %695 : vector<2x128xf32>
    %697 = vector.broadcast %416 : vector<1x128xf32> to vector<2x128xf32>
    %698 = arith.addf %696, %697 : vector<2x128xf32>
    %c1_216 = arith.constant 1 : index
    %c0_217 = arith.constant 0 : index
    %c0_218 = arith.constant 0 : index
    %699 = vector.load %arg12[%c1_216, %c0_217, %c0_218] : memref<2x128x384xbf16, #tpu.memory_space<vmem>>, vector<1x128x384xbf16>
    %700 = vector.shape_cast %699 : vector<1x128x384xbf16> to vector<128x384xbf16>
    %c1_219 = arith.constant 1 : index
    %c0_220 = arith.constant 0 : index
    %c0_221 = arith.constant 0 : index
    %701 = vector.load %arg4[%c1_219, %c0_220, %c0_221] : memref<2x1x384xf32, #tpu.memory_space<vmem>>, vector<1x1x384xf32>
    %702 = vector.shape_cast %701 : vector<1x1x384xf32> to vector<1x384xf32>
    %c1_222 = arith.constant 1 : index
    %c0_223 = arith.constant 0 : index
    %c0_224 = arith.constant 0 : index
    %703 = vector.load %arg11[%c1_222, %c0_223, %c0_224] : memref<2x128x128xbf16, #tpu.memory_space<vmem>>, vector<1x128x128xbf16>
    %704 = vector.shape_cast %703 : vector<1x128x128xbf16> to vector<128x128xbf16>
    %c1_225 = arith.constant 1 : index
    %c0_226 = arith.constant 0 : index
    %c0_227 = arith.constant 0 : index
    %705 = vector.load %arg8[%c1_225, %c0_226, %c0_227] : memref<2x128x128xbf16, #tpu.memory_space<vmem>>, vector<1x128x128xbf16>
    %706 = vector.shape_cast %705 : vector<1x128x128xbf16> to vector<128x128xbf16>
    %c1_228 = arith.constant 1 : index
    %c0_229 = arith.constant 0 : index
    %c0_230 = arith.constant 0 : index
    %707 = vector.load %arg6[%c1_228, %c0_229, %c0_230] : memref<2x128x256xbf16, #tpu.memory_space<vmem>>, vector<1x128x256xbf16>
    %708 = vector.shape_cast %707 : vector<1x128x256xbf16> to vector<128x256xbf16>
    %c1_231 = arith.constant 1 : index
    %c0_232 = arith.constant 0 : index
    %c0_233 = arith.constant 0 : index
    %709 = vector.load %arg2[%c1_231, %c0_232, %c0_233] : memref<2x1x256xf32, #tpu.memory_space<vmem>>, vector<1x1x256xf32>
    %710 = vector.shape_cast %709 : vector<1x1x256xf32> to vector<1x256xf32>
    %c1_234 = arith.constant 1 : index
    %c0_235 = arith.constant 0 : index
    %c0_236 = arith.constant 0 : index
    %711 = vector.load %arg7[%c1_234, %c0_235, %c0_236] : memref<2x128x128xbf16, #tpu.memory_space<vmem>>, vector<1x128x128xbf16>
    %712 = vector.shape_cast %711 : vector<1x128x128xbf16> to vector<128x128xbf16>
    %c1_237 = arith.constant 1 : index
    %c0_238 = arith.constant 0 : index
    %c0_239 = arith.constant 0 : index
    %713 = vector.load %arg9[%c1_237, %c0_238, %c0_239] : memref<2x128x256xbf16, #tpu.memory_space<vmem>>, vector<1x128x256xbf16>
    %714 = vector.shape_cast %713 : vector<1x128x256xbf16> to vector<128x256xbf16>
    %c1_240 = arith.constant 1 : index
    %c0_241 = arith.constant 0 : index
    %c0_242 = arith.constant 0 : index
    %715 = vector.load %arg3[%c1_240, %c0_241, %c0_242] : memref<2x1x256xf32, #tpu.memory_space<vmem>>, vector<1x1x256xf32>
    %716 = vector.shape_cast %715 : vector<1x1x256xf32> to vector<1x256xf32>
    %c1_243 = arith.constant 1 : index
    %c0_244 = arith.constant 0 : index
    %c0_245 = arith.constant 0 : index
    %717 = vector.load %arg10[%c1_243, %c0_244, %c0_245] : memref<2x256x128xbf16, #tpu.memory_space<vmem>>, vector<1x256x128xbf16>
    %718 = vector.shape_cast %717 : vector<1x256x128xbf16> to vector<256x128xbf16>
    %c1_246 = arith.constant 1 : index
    %c0_247 = arith.constant 0 : index
    %c0_248 = arith.constant 0 : index
    %719 = vector.load %arg5[%c1_246, %c0_247, %c0_248] : memref<2x10x128xf32, #tpu.memory_space<vmem>>, vector<1x10x128xf32>
    %720 = vector.shape_cast %719 : vector<1x10x128xf32> to vector<10x128xf32>
    %721 = vector.extract_strided_slice %720 {offsets = [0, 0], sizes = [1, 128], strides = [1, 1]} : vector<10x128xf32> to vector<1x128xf32>
    %722 = vector.extract_strided_slice %720 {offsets = [1, 0], sizes = [1, 128], strides = [1, 1]} : vector<10x128xf32> to vector<1x128xf32>
    %723 = vector.extract_strided_slice %720 {offsets = [2, 0], sizes = [1, 128], strides = [1, 1]} : vector<10x128xf32> to vector<1x128xf32>
    %724 = vector.extract_strided_slice %720 {offsets = [3, 0], sizes = [1, 128], strides = [1, 1]} : vector<10x128xf32> to vector<1x128xf32>
    %725 = vector.extract_strided_slice %720 {offsets = [4, 0], sizes = [1, 128], strides = [1, 1]} : vector<10x128xf32> to vector<1x128xf32>
    %726 = vector.extract_strided_slice %720 {offsets = [5, 0], sizes = [1, 128], strides = [1, 1]} : vector<10x128xf32> to vector<1x128xf32>
    %727 = vector.extract_strided_slice %720 {offsets = [6, 0], sizes = [1, 128], strides = [1, 1]} : vector<10x128xf32> to vector<1x128xf32>
    %728 = vector.extract_strided_slice %720 {offsets = [7, 0], sizes = [1, 128], strides = [1, 1]} : vector<10x128xf32> to vector<1x128xf32>
    %729 = vector.extract_strided_slice %720 {offsets = [8, 0], sizes = [1, 128], strides = [1, 1]} : vector<10x128xf32> to vector<1x128xf32>
    %730 = vector.extract_strided_slice %720 {offsets = [9, 0], sizes = [1, 128], strides = [1, 1]} : vector<10x128xf32> to vector<1x128xf32>
    %731 = arith.truncf %698 : vector<2x128xf32> to vector<2x128xbf16>
    %cst_249 = arith.constant dense<0.000000e+00> : vector<2x384xf32>
    %732 = tpu.matmul %731, %700, %cst_249 {dimension_numbers = #tpu.dot_dimension_numbers<[1], [0], [0], [1], [0, 0, 1, 1], [], []>} : vector<2x128xbf16>, vector<128x384xbf16>, vector<2x384xf32> -> vector<2x384xf32>
    %733 = vector.broadcast %702 : vector<1x384xf32> to vector<2x384xf32>
    %734 = arith.addf %732, %733 : vector<2x384xf32>
    %735 = vector.extract_strided_slice %734 {offsets = [0, 0], sizes = [2, 128], strides = [1, 1]} : vector<2x384xf32> to vector<2x128xf32>
    %736 = vector.extract_strided_slice %734 {offsets = [0, 128], sizes = [2, 128], strides = [1, 1]} : vector<2x384xf32> to vector<2x128xf32>
    %737 = vector.extract_strided_slice %734 {offsets = [0, 256], sizes = [2, 128], strides = [1, 1]} : vector<2x384xf32> to vector<2x128xf32>
    %738 = vector.extract_strided_slice %735 {offsets = [0, 0], sizes = [2, 32], strides = [1, 1]} : vector<2x128xf32> to vector<2x32xf32>
    %739 = arith.truncf %738 : vector<2x32xf32> to vector<2x32xbf16>
    %740 = vector.extract_strided_slice %736 {offsets = [0, 0], sizes = [2, 32], strides = [1, 1]} : vector<2x128xf32> to vector<2x32xf32>
    %741 = arith.truncf %740 : vector<2x32xf32> to vector<2x32xbf16>
    %742 = vector.extract_strided_slice %737 {offsets = [0, 0], sizes = [2, 32], strides = [1, 1]} : vector<2x128xf32> to vector<2x32xf32>
    %743 = arith.truncf %742 : vector<2x32xf32> to vector<2x32xbf16>
    %cst_250 = arith.constant dense<0.000000e+00> : vector<2x2xf32>
    %744 = tpu.matmul %739, %741, %cst_250 {dimension_numbers = #tpu.dot_dimension_numbers<[1], [1], [0], [0], [0, 0, 1, 0], [], []>} : vector<2x32xbf16>, vector<2x32xbf16>, vector<2x2xf32> -> vector<2x2xf32>
    %cst_251 = arith.constant dense<0xFF800000> : vector<2xf32>
    %745 = vector.multi_reduction <maximumf>, %744, %cst_251 [1] : vector<2x2xf32> to vector<2xf32>
    %746 = vector.shape_cast %745 : vector<2xf32> to vector<2x1xf32>
    %747 = vector.broadcast %746 : vector<2x1xf32> to vector<2x2xf32>
    %748 = arith.subf %744, %747 : vector<2x2xf32>
    %749 = math.exp %748 : vector<2x2xf32>
    %cst_252 = arith.constant dense<0.000000e+00> : vector<2xf32>
    %750 = vector.multi_reduction <add>, %749, %cst_252 [1] : vector<2x2xf32> to vector<2xf32>
    %751 = vector.shape_cast %750 : vector<2xf32> to vector<2x1xf32>
    %752 = tpu.reciprocal %751 {approx = true} : vector<2x1xf32> -> vector<2x1xf32>
    %753 = vector.broadcast %752 : vector<2x1xf32> to vector<2x2xf32>
    %754 = arith.mulf %749, %753 : vector<2x2xf32>
    %755 = arith.truncf %754 : vector<2x2xf32> to vector<2x2xbf16>
    %cst_253 = arith.constant dense<0.000000e+00> : vector<2x32xf32>
    %756 = tpu.matmul %755, %743, %cst_253 {dimension_numbers = #tpu.dot_dimension_numbers<[1], [0], [0], [1], [0, 0, 1, 1], [], []>} : vector<2x2xbf16>, vector<2x32xbf16>, vector<2x32xf32> -> vector<2x32xf32>
    %757 = arith.truncf %756 : vector<2x32xf32> to vector<2x32xbf16>
    %758 = vector.extract_strided_slice %704 {offsets = [0, 0], sizes = [32, 128], strides = [1, 1]} : vector<128x128xbf16> to vector<32x128xbf16>
    %cst_254 = arith.constant dense<0.000000e+00> : vector<2x128xf32>
    %759 = tpu.matmul %757, %758, %cst_254 {dimension_numbers = #tpu.dot_dimension_numbers<[1], [0], [0], [1], [0, 0, 1, 1], [], []>} : vector<2x32xbf16>, vector<32x128xbf16>, vector<2x128xf32> -> vector<2x128xf32>
    %760 = vector.extract_strided_slice %735 {offsets = [0, 32], sizes = [2, 32], strides = [1, 1]} : vector<2x128xf32> to vector<2x32xf32>
    %761 = arith.truncf %760 : vector<2x32xf32> to vector<2x32xbf16>
    %762 = vector.extract_strided_slice %736 {offsets = [0, 32], sizes = [2, 32], strides = [1, 1]} : vector<2x128xf32> to vector<2x32xf32>
    %763 = arith.truncf %762 : vector<2x32xf32> to vector<2x32xbf16>
    %764 = vector.extract_strided_slice %737 {offsets = [0, 32], sizes = [2, 32], strides = [1, 1]} : vector<2x128xf32> to vector<2x32xf32>
    %765 = arith.truncf %764 : vector<2x32xf32> to vector<2x32xbf16>
    %cst_255 = arith.constant dense<0.000000e+00> : vector<2x2xf32>
    %766 = tpu.matmul %761, %763, %cst_255 {dimension_numbers = #tpu.dot_dimension_numbers<[1], [1], [0], [0], [0, 0, 1, 0], [], []>} : vector<2x32xbf16>, vector<2x32xbf16>, vector<2x2xf32> -> vector<2x2xf32>
    %cst_256 = arith.constant dense<0xFF800000> : vector<2xf32>
    %767 = vector.multi_reduction <maximumf>, %766, %cst_256 [1] : vector<2x2xf32> to vector<2xf32>
    %768 = vector.shape_cast %767 : vector<2xf32> to vector<2x1xf32>
    %769 = vector.broadcast %768 : vector<2x1xf32> to vector<2x2xf32>
    %770 = arith.subf %766, %769 : vector<2x2xf32>
    %771 = math.exp %770 : vector<2x2xf32>
    %cst_257 = arith.constant dense<0.000000e+00> : vector<2xf32>
    %772 = vector.multi_reduction <add>, %771, %cst_257 [1] : vector<2x2xf32> to vector<2xf32>
    %773 = vector.shape_cast %772 : vector<2xf32> to vector<2x1xf32>
    %774 = tpu.reciprocal %773 {approx = true} : vector<2x1xf32> -> vector<2x1xf32>
    %775 = vector.broadcast %774 : vector<2x1xf32> to vector<2x2xf32>
    %776 = arith.mulf %771, %775 : vector<2x2xf32>
    %777 = arith.truncf %776 : vector<2x2xf32> to vector<2x2xbf16>
    %cst_258 = arith.constant dense<0.000000e+00> : vector<2x32xf32>
    %778 = tpu.matmul %777, %765, %cst_258 {dimension_numbers = #tpu.dot_dimension_numbers<[1], [0], [0], [1], [0, 0, 1, 1], [], []>} : vector<2x2xbf16>, vector<2x32xbf16>, vector<2x32xf32> -> vector<2x32xf32>
    %779 = arith.truncf %778 : vector<2x32xf32> to vector<2x32xbf16>
    %780 = vector.extract_strided_slice %704 {offsets = [32, 0], sizes = [32, 128], strides = [1, 1]} : vector<128x128xbf16> to vector<32x128xbf16>
    %cst_259 = arith.constant dense<0.000000e+00> : vector<2x128xf32>
    %781 = tpu.matmul %779, %780, %cst_259 {dimension_numbers = #tpu.dot_dimension_numbers<[1], [0], [0], [1], [0, 0, 1, 1], [], []>} : vector<2x32xbf16>, vector<32x128xbf16>, vector<2x128xf32> -> vector<2x128xf32>
    %782 = arith.addf %759, %781 : vector<2x128xf32>
    %783 = vector.extract_strided_slice %735 {offsets = [0, 64], sizes = [2, 32], strides = [1, 1]} : vector<2x128xf32> to vector<2x32xf32>
    %784 = arith.truncf %783 : vector<2x32xf32> to vector<2x32xbf16>
    %785 = vector.extract_strided_slice %736 {offsets = [0, 64], sizes = [2, 32], strides = [1, 1]} : vector<2x128xf32> to vector<2x32xf32>
    %786 = arith.truncf %785 : vector<2x32xf32> to vector<2x32xbf16>
    %787 = vector.extract_strided_slice %737 {offsets = [0, 64], sizes = [2, 32], strides = [1, 1]} : vector<2x128xf32> to vector<2x32xf32>
    %788 = arith.truncf %787 : vector<2x32xf32> to vector<2x32xbf16>
    %cst_260 = arith.constant dense<0.000000e+00> : vector<2x2xf32>
    %789 = tpu.matmul %784, %786, %cst_260 {dimension_numbers = #tpu.dot_dimension_numbers<[1], [1], [0], [0], [0, 0, 1, 0], [], []>} : vector<2x32xbf16>, vector<2x32xbf16>, vector<2x2xf32> -> vector<2x2xf32>
    %cst_261 = arith.constant dense<0xFF800000> : vector<2xf32>
    %790 = vector.multi_reduction <maximumf>, %789, %cst_261 [1] : vector<2x2xf32> to vector<2xf32>
    %791 = vector.shape_cast %790 : vector<2xf32> to vector<2x1xf32>
    %792 = vector.broadcast %791 : vector<2x1xf32> to vector<2x2xf32>
    %793 = arith.subf %789, %792 : vector<2x2xf32>
    %794 = math.exp %793 : vector<2x2xf32>
    %cst_262 = arith.constant dense<0.000000e+00> : vector<2xf32>
    %795 = vector.multi_reduction <add>, %794, %cst_262 [1] : vector<2x2xf32> to vector<2xf32>
    %796 = vector.shape_cast %795 : vector<2xf32> to vector<2x1xf32>
    %797 = tpu.reciprocal %796 {approx = true} : vector<2x1xf32> -> vector<2x1xf32>
    %798 = vector.broadcast %797 : vector<2x1xf32> to vector<2x2xf32>
    %799 = arith.mulf %794, %798 : vector<2x2xf32>
    %800 = arith.truncf %799 : vector<2x2xf32> to vector<2x2xbf16>
    %cst_263 = arith.constant dense<0.000000e+00> : vector<2x32xf32>
    %801 = tpu.matmul %800, %788, %cst_263 {dimension_numbers = #tpu.dot_dimension_numbers<[1], [0], [0], [1], [0, 0, 1, 1], [], []>} : vector<2x2xbf16>, vector<2x32xbf16>, vector<2x32xf32> -> vector<2x32xf32>
    %802 = arith.truncf %801 : vector<2x32xf32> to vector<2x32xbf16>
    %803 = vector.extract_strided_slice %704 {offsets = [64, 0], sizes = [32, 128], strides = [1, 1]} : vector<128x128xbf16> to vector<32x128xbf16>
    %cst_264 = arith.constant dense<0.000000e+00> : vector<2x128xf32>
    %804 = tpu.matmul %802, %803, %cst_264 {dimension_numbers = #tpu.dot_dimension_numbers<[1], [0], [0], [1], [0, 0, 1, 1], [], []>} : vector<2x32xbf16>, vector<32x128xbf16>, vector<2x128xf32> -> vector<2x128xf32>
    %805 = arith.addf %782, %804 : vector<2x128xf32>
    %806 = vector.extract_strided_slice %735 {offsets = [0, 96], sizes = [2, 32], strides = [1, 1]} : vector<2x128xf32> to vector<2x32xf32>
    %807 = arith.truncf %806 : vector<2x32xf32> to vector<2x32xbf16>
    %808 = vector.extract_strided_slice %736 {offsets = [0, 96], sizes = [2, 32], strides = [1, 1]} : vector<2x128xf32> to vector<2x32xf32>
    %809 = arith.truncf %808 : vector<2x32xf32> to vector<2x32xbf16>
    %810 = vector.extract_strided_slice %737 {offsets = [0, 96], sizes = [2, 32], strides = [1, 1]} : vector<2x128xf32> to vector<2x32xf32>
    %811 = arith.truncf %810 : vector<2x32xf32> to vector<2x32xbf16>
    %cst_265 = arith.constant dense<0.000000e+00> : vector<2x2xf32>
    %812 = tpu.matmul %807, %809, %cst_265 {dimension_numbers = #tpu.dot_dimension_numbers<[1], [1], [0], [0], [0, 0, 1, 0], [], []>} : vector<2x32xbf16>, vector<2x32xbf16>, vector<2x2xf32> -> vector<2x2xf32>
    %cst_266 = arith.constant dense<0xFF800000> : vector<2xf32>
    %813 = vector.multi_reduction <maximumf>, %812, %cst_266 [1] : vector<2x2xf32> to vector<2xf32>
    %814 = vector.shape_cast %813 : vector<2xf32> to vector<2x1xf32>
    %815 = vector.broadcast %814 : vector<2x1xf32> to vector<2x2xf32>
    %816 = arith.subf %812, %815 : vector<2x2xf32>
    %817 = math.exp %816 : vector<2x2xf32>
    %cst_267 = arith.constant dense<0.000000e+00> : vector<2xf32>
    %818 = vector.multi_reduction <add>, %817, %cst_267 [1] : vector<2x2xf32> to vector<2xf32>
    %819 = vector.shape_cast %818 : vector<2xf32> to vector<2x1xf32>
    %820 = tpu.reciprocal %819 {approx = true} : vector<2x1xf32> -> vector<2x1xf32>
    %821 = vector.broadcast %820 : vector<2x1xf32> to vector<2x2xf32>
    %822 = arith.mulf %817, %821 : vector<2x2xf32>
    %823 = arith.truncf %822 : vector<2x2xf32> to vector<2x2xbf16>
    %cst_268 = arith.constant dense<0.000000e+00> : vector<2x32xf32>
    %824 = tpu.matmul %823, %811, %cst_268 {dimension_numbers = #tpu.dot_dimension_numbers<[1], [0], [0], [1], [0, 0, 1, 1], [], []>} : vector<2x2xbf16>, vector<2x32xbf16>, vector<2x32xf32> -> vector<2x32xf32>
    %825 = arith.truncf %824 : vector<2x32xf32> to vector<2x32xbf16>
    %826 = vector.extract_strided_slice %704 {offsets = [96, 0], sizes = [32, 128], strides = [1, 1]} : vector<128x128xbf16> to vector<32x128xbf16>
    %cst_269 = arith.constant dense<0.000000e+00> : vector<2x128xf32>
    %827 = tpu.matmul %825, %826, %cst_269 {dimension_numbers = #tpu.dot_dimension_numbers<[1], [0], [0], [1], [0, 0, 1, 1], [], []>} : vector<2x32xbf16>, vector<32x128xbf16>, vector<2x128xf32> -> vector<2x128xf32>
    %828 = arith.addf %805, %827 : vector<2x128xf32>
    %829 = vector.broadcast %721 : vector<1x128xf32> to vector<2x128xf32>
    %830 = arith.addf %828, %829 : vector<2x128xf32>
    %831 = arith.addf %698, %830 : vector<2x128xf32>
    %cst_270 = arith.constant dense<0.000000e+00> : vector<2xf32>
    %832 = vector.multi_reduction <add>, %831, %cst_270 [1] : vector<2x128xf32> to vector<2xf32>
    %833 = vector.shape_cast %832 : vector<2xf32> to vector<2x1xf32>
    %cst_271 = arith.constant 7.812500e-03 : f32
    %834 = vector.broadcast %cst_271 : f32 to vector<2x1xf32>
    %835 = arith.mulf %833, %834 : vector<2x1xf32>
    %836 = arith.mulf %831, %831 : vector<2x128xf32>
    %cst_272 = arith.constant dense<0.000000e+00> : vector<2xf32>
    %837 = vector.multi_reduction <add>, %836, %cst_272 [1] : vector<2x128xf32> to vector<2xf32>
    %838 = vector.shape_cast %837 : vector<2xf32> to vector<2x1xf32>
    %cst_273 = arith.constant 7.812500e-03 : f32
    %839 = vector.broadcast %cst_273 : f32 to vector<2x1xf32>
    %840 = arith.mulf %838, %839 : vector<2x1xf32>
    %841 = arith.mulf %835, %835 : vector<2x1xf32>
    %842 = arith.subf %840, %841 : vector<2x1xf32>
    %843 = vector.broadcast %835 : vector<2x1xf32> to vector<2x128xf32>
    %844 = arith.subf %831, %843 : vector<2x128xf32>
    %cst_274 = arith.constant 9.99999974E-6 : f32
    %845 = vector.broadcast %cst_274 : f32 to vector<2x1xf32>
    %846 = arith.addf %842, %845 : vector<2x1xf32>
    %847 = math.rsqrt %846 : vector<2x1xf32>
    %848 = vector.broadcast %847 : vector<2x1xf32> to vector<2x128xf32>
    %849 = arith.mulf %844, %848 : vector<2x128xf32>
    %850 = vector.broadcast %725 : vector<1x128xf32> to vector<2x128xf32>
    %851 = arith.mulf %849, %850 : vector<2x128xf32>
    %852 = vector.broadcast %726 : vector<1x128xf32> to vector<2x128xf32>
    %853 = arith.addf %851, %852 : vector<2x128xf32>
    %854 = arith.truncf %853 : vector<2x128xf32> to vector<2x128xbf16>
    %cst_275 = arith.constant dense<0.000000e+00> : vector<2x128xf32>
    %855 = tpu.matmul %854, %706, %cst_275 {dimension_numbers = #tpu.dot_dimension_numbers<[1], [0], [0], [1], [0, 0, 1, 1], [], []>} : vector<2x128xbf16>, vector<128x128xbf16>, vector<2x128xf32> -> vector<2x128xf32>
    %856 = vector.broadcast %722 : vector<1x128xf32> to vector<2x128xf32>
    %857 = arith.addf %855, %856 : vector<2x128xf32>
    %858 = arith.truncf %384 : vector<2x128xf32> to vector<2x128xbf16>
    %cst_276 = arith.constant dense<0.000000e+00> : vector<2x256xf32>
    %859 = tpu.matmul %858, %708, %cst_276 {dimension_numbers = #tpu.dot_dimension_numbers<[1], [0], [0], [1], [0, 0, 1, 1], [], []>} : vector<2x128xbf16>, vector<128x256xbf16>, vector<2x256xf32> -> vector<2x256xf32>
    %860 = vector.broadcast %710 : vector<1x256xf32> to vector<2x256xf32>
    %861 = arith.addf %859, %860 : vector<2x256xf32>
    %862 = vector.extract_strided_slice %861 {offsets = [0, 0], sizes = [2, 128], strides = [1, 1]} : vector<2x256xf32> to vector<2x128xf32>
    %863 = vector.extract_strided_slice %861 {offsets = [0, 128], sizes = [2, 128], strides = [1, 1]} : vector<2x256xf32> to vector<2x128xf32>
    %864 = vector.extract_strided_slice %857 {offsets = [0, 0], sizes = [2, 32], strides = [1, 1]} : vector<2x128xf32> to vector<2x32xf32>
    %865 = arith.truncf %864 : vector<2x32xf32> to vector<2x32xbf16>
    %866 = vector.extract_strided_slice %862 {offsets = [0, 0], sizes = [2, 32], strides = [1, 1]} : vector<2x128xf32> to vector<2x32xf32>
    %867 = arith.truncf %866 : vector<2x32xf32> to vector<2x32xbf16>
    %868 = vector.extract_strided_slice %863 {offsets = [0, 0], sizes = [2, 32], strides = [1, 1]} : vector<2x128xf32> to vector<2x32xf32>
    %869 = arith.truncf %868 : vector<2x32xf32> to vector<2x32xbf16>
    %cst_277 = arith.constant dense<0.000000e+00> : vector<2x2xf32>
    %870 = tpu.matmul %865, %867, %cst_277 {dimension_numbers = #tpu.dot_dimension_numbers<[1], [1], [0], [0], [0, 0, 1, 0], [], []>} : vector<2x32xbf16>, vector<2x32xbf16>, vector<2x2xf32> -> vector<2x2xf32>
    %cst_278 = arith.constant dense<0xFF800000> : vector<2xf32>
    %871 = vector.multi_reduction <maximumf>, %870, %cst_278 [1] : vector<2x2xf32> to vector<2xf32>
    %872 = vector.shape_cast %871 : vector<2xf32> to vector<2x1xf32>
    %873 = vector.broadcast %872 : vector<2x1xf32> to vector<2x2xf32>
    %874 = arith.subf %870, %873 : vector<2x2xf32>
    %875 = math.exp %874 : vector<2x2xf32>
    %cst_279 = arith.constant dense<0.000000e+00> : vector<2xf32>
    %876 = vector.multi_reduction <add>, %875, %cst_279 [1] : vector<2x2xf32> to vector<2xf32>
    %877 = vector.shape_cast %876 : vector<2xf32> to vector<2x1xf32>
    %878 = tpu.reciprocal %877 {approx = true} : vector<2x1xf32> -> vector<2x1xf32>
    %879 = vector.broadcast %878 : vector<2x1xf32> to vector<2x2xf32>
    %880 = arith.mulf %875, %879 : vector<2x2xf32>
    %881 = arith.truncf %880 : vector<2x2xf32> to vector<2x2xbf16>
    %cst_280 = arith.constant dense<0.000000e+00> : vector<2x32xf32>
    %882 = tpu.matmul %881, %869, %cst_280 {dimension_numbers = #tpu.dot_dimension_numbers<[1], [0], [0], [1], [0, 0, 1, 1], [], []>} : vector<2x2xbf16>, vector<2x32xbf16>, vector<2x32xf32> -> vector<2x32xf32>
    %883 = arith.truncf %882 : vector<2x32xf32> to vector<2x32xbf16>
    %884 = vector.extract_strided_slice %712 {offsets = [0, 0], sizes = [32, 128], strides = [1, 1]} : vector<128x128xbf16> to vector<32x128xbf16>
    %cst_281 = arith.constant dense<0.000000e+00> : vector<2x128xf32>
    %885 = tpu.matmul %883, %884, %cst_281 {dimension_numbers = #tpu.dot_dimension_numbers<[1], [0], [0], [1], [0, 0, 1, 1], [], []>} : vector<2x32xbf16>, vector<32x128xbf16>, vector<2x128xf32> -> vector<2x128xf32>
    %886 = vector.extract_strided_slice %857 {offsets = [0, 32], sizes = [2, 32], strides = [1, 1]} : vector<2x128xf32> to vector<2x32xf32>
    %887 = arith.truncf %886 : vector<2x32xf32> to vector<2x32xbf16>
    %888 = vector.extract_strided_slice %862 {offsets = [0, 32], sizes = [2, 32], strides = [1, 1]} : vector<2x128xf32> to vector<2x32xf32>
    %889 = arith.truncf %888 : vector<2x32xf32> to vector<2x32xbf16>
    %890 = vector.extract_strided_slice %863 {offsets = [0, 32], sizes = [2, 32], strides = [1, 1]} : vector<2x128xf32> to vector<2x32xf32>
    %891 = arith.truncf %890 : vector<2x32xf32> to vector<2x32xbf16>
    %cst_282 = arith.constant dense<0.000000e+00> : vector<2x2xf32>
    %892 = tpu.matmul %887, %889, %cst_282 {dimension_numbers = #tpu.dot_dimension_numbers<[1], [1], [0], [0], [0, 0, 1, 0], [], []>} : vector<2x32xbf16>, vector<2x32xbf16>, vector<2x2xf32> -> vector<2x2xf32>
    %cst_283 = arith.constant dense<0xFF800000> : vector<2xf32>
    %893 = vector.multi_reduction <maximumf>, %892, %cst_283 [1] : vector<2x2xf32> to vector<2xf32>
    %894 = vector.shape_cast %893 : vector<2xf32> to vector<2x1xf32>
    %895 = vector.broadcast %894 : vector<2x1xf32> to vector<2x2xf32>
    %896 = arith.subf %892, %895 : vector<2x2xf32>
    %897 = math.exp %896 : vector<2x2xf32>
    %cst_284 = arith.constant dense<0.000000e+00> : vector<2xf32>
    %898 = vector.multi_reduction <add>, %897, %cst_284 [1] : vector<2x2xf32> to vector<2xf32>
    %899 = vector.shape_cast %898 : vector<2xf32> to vector<2x1xf32>
    %900 = tpu.reciprocal %899 {approx = true} : vector<2x1xf32> -> vector<2x1xf32>
    %901 = vector.broadcast %900 : vector<2x1xf32> to vector<2x2xf32>
    %902 = arith.mulf %897, %901 : vector<2x2xf32>
    %903 = arith.truncf %902 : vector<2x2xf32> to vector<2x2xbf16>
    %cst_285 = arith.constant dense<0.000000e+00> : vector<2x32xf32>
    %904 = tpu.matmul %903, %891, %cst_285 {dimension_numbers = #tpu.dot_dimension_numbers<[1], [0], [0], [1], [0, 0, 1, 1], [], []>} : vector<2x2xbf16>, vector<2x32xbf16>, vector<2x32xf32> -> vector<2x32xf32>
    %905 = arith.truncf %904 : vector<2x32xf32> to vector<2x32xbf16>
    %906 = vector.extract_strided_slice %712 {offsets = [32, 0], sizes = [32, 128], strides = [1, 1]} : vector<128x128xbf16> to vector<32x128xbf16>
    %cst_286 = arith.constant dense<0.000000e+00> : vector<2x128xf32>
    %907 = tpu.matmul %905, %906, %cst_286 {dimension_numbers = #tpu.dot_dimension_numbers<[1], [0], [0], [1], [0, 0, 1, 1], [], []>} : vector<2x32xbf16>, vector<32x128xbf16>, vector<2x128xf32> -> vector<2x128xf32>
    %908 = arith.addf %885, %907 : vector<2x128xf32>
    %909 = vector.extract_strided_slice %857 {offsets = [0, 64], sizes = [2, 32], strides = [1, 1]} : vector<2x128xf32> to vector<2x32xf32>
    %910 = arith.truncf %909 : vector<2x32xf32> to vector<2x32xbf16>
    %911 = vector.extract_strided_slice %862 {offsets = [0, 64], sizes = [2, 32], strides = [1, 1]} : vector<2x128xf32> to vector<2x32xf32>
    %912 = arith.truncf %911 : vector<2x32xf32> to vector<2x32xbf16>
    %913 = vector.extract_strided_slice %863 {offsets = [0, 64], sizes = [2, 32], strides = [1, 1]} : vector<2x128xf32> to vector<2x32xf32>
    %914 = arith.truncf %913 : vector<2x32xf32> to vector<2x32xbf16>
    %cst_287 = arith.constant dense<0.000000e+00> : vector<2x2xf32>
    %915 = tpu.matmul %910, %912, %cst_287 {dimension_numbers = #tpu.dot_dimension_numbers<[1], [1], [0], [0], [0, 0, 1, 0], [], []>} : vector<2x32xbf16>, vector<2x32xbf16>, vector<2x2xf32> -> vector<2x2xf32>
    %cst_288 = arith.constant dense<0xFF800000> : vector<2xf32>
    %916 = vector.multi_reduction <maximumf>, %915, %cst_288 [1] : vector<2x2xf32> to vector<2xf32>
    %917 = vector.shape_cast %916 : vector<2xf32> to vector<2x1xf32>
    %918 = vector.broadcast %917 : vector<2x1xf32> to vector<2x2xf32>
    %919 = arith.subf %915, %918 : vector<2x2xf32>
    %920 = math.exp %919 : vector<2x2xf32>
    %cst_289 = arith.constant dense<0.000000e+00> : vector<2xf32>
    %921 = vector.multi_reduction <add>, %920, %cst_289 [1] : vector<2x2xf32> to vector<2xf32>
    %922 = vector.shape_cast %921 : vector<2xf32> to vector<2x1xf32>
    %923 = tpu.reciprocal %922 {approx = true} : vector<2x1xf32> -> vector<2x1xf32>
    %924 = vector.broadcast %923 : vector<2x1xf32> to vector<2x2xf32>
    %925 = arith.mulf %920, %924 : vector<2x2xf32>
    %926 = arith.truncf %925 : vector<2x2xf32> to vector<2x2xbf16>
    %cst_290 = arith.constant dense<0.000000e+00> : vector<2x32xf32>
    %927 = tpu.matmul %926, %914, %cst_290 {dimension_numbers = #tpu.dot_dimension_numbers<[1], [0], [0], [1], [0, 0, 1, 1], [], []>} : vector<2x2xbf16>, vector<2x32xbf16>, vector<2x32xf32> -> vector<2x32xf32>
    %928 = arith.truncf %927 : vector<2x32xf32> to vector<2x32xbf16>
    %929 = vector.extract_strided_slice %712 {offsets = [64, 0], sizes = [32, 128], strides = [1, 1]} : vector<128x128xbf16> to vector<32x128xbf16>
    %cst_291 = arith.constant dense<0.000000e+00> : vector<2x128xf32>
    %930 = tpu.matmul %928, %929, %cst_291 {dimension_numbers = #tpu.dot_dimension_numbers<[1], [0], [0], [1], [0, 0, 1, 1], [], []>} : vector<2x32xbf16>, vector<32x128xbf16>, vector<2x128xf32> -> vector<2x128xf32>
    %931 = arith.addf %908, %930 : vector<2x128xf32>
    %932 = vector.extract_strided_slice %857 {offsets = [0, 96], sizes = [2, 32], strides = [1, 1]} : vector<2x128xf32> to vector<2x32xf32>
    %933 = arith.truncf %932 : vector<2x32xf32> to vector<2x32xbf16>
    %934 = vector.extract_strided_slice %862 {offsets = [0, 96], sizes = [2, 32], strides = [1, 1]} : vector<2x128xf32> to vector<2x32xf32>
    %935 = arith.truncf %934 : vector<2x32xf32> to vector<2x32xbf16>
    %936 = vector.extract_strided_slice %863 {offsets = [0, 96], sizes = [2, 32], strides = [1, 1]} : vector<2x128xf32> to vector<2x32xf32>
    %937 = arith.truncf %936 : vector<2x32xf32> to vector<2x32xbf16>
    %cst_292 = arith.constant dense<0.000000e+00> : vector<2x2xf32>
    %938 = tpu.matmul %933, %935, %cst_292 {dimension_numbers = #tpu.dot_dimension_numbers<[1], [1], [0], [0], [0, 0, 1, 0], [], []>} : vector<2x32xbf16>, vector<2x32xbf16>, vector<2x2xf32> -> vector<2x2xf32>
    %cst_293 = arith.constant dense<0xFF800000> : vector<2xf32>
    %939 = vector.multi_reduction <maximumf>, %938, %cst_293 [1] : vector<2x2xf32> to vector<2xf32>
    %940 = vector.shape_cast %939 : vector<2xf32> to vector<2x1xf32>
    %941 = vector.broadcast %940 : vector<2x1xf32> to vector<2x2xf32>
    %942 = arith.subf %938, %941 : vector<2x2xf32>
    %943 = math.exp %942 : vector<2x2xf32>
    %cst_294 = arith.constant dense<0.000000e+00> : vector<2xf32>
    %944 = vector.multi_reduction <add>, %943, %cst_294 [1] : vector<2x2xf32> to vector<2xf32>
    %945 = vector.shape_cast %944 : vector<2xf32> to vector<2x1xf32>
    %946 = tpu.reciprocal %945 {approx = true} : vector<2x1xf32> -> vector<2x1xf32>
    %947 = vector.broadcast %946 : vector<2x1xf32> to vector<2x2xf32>
    %948 = arith.mulf %943, %947 : vector<2x2xf32>
    %949 = arith.truncf %948 : vector<2x2xf32> to vector<2x2xbf16>
    %cst_295 = arith.constant dense<0.000000e+00> : vector<2x32xf32>
    %950 = tpu.matmul %949, %937, %cst_295 {dimension_numbers = #tpu.dot_dimension_numbers<[1], [0], [0], [1], [0, 0, 1, 1], [], []>} : vector<2x2xbf16>, vector<2x32xbf16>, vector<2x32xf32> -> vector<2x32xf32>
    %951 = arith.truncf %950 : vector<2x32xf32> to vector<2x32xbf16>
    %952 = vector.extract_strided_slice %712 {offsets = [96, 0], sizes = [32, 128], strides = [1, 1]} : vector<128x128xbf16> to vector<32x128xbf16>
    %cst_296 = arith.constant dense<0.000000e+00> : vector<2x128xf32>
    %953 = tpu.matmul %951, %952, %cst_296 {dimension_numbers = #tpu.dot_dimension_numbers<[1], [0], [0], [1], [0, 0, 1, 1], [], []>} : vector<2x32xbf16>, vector<32x128xbf16>, vector<2x128xf32> -> vector<2x128xf32>
    %954 = arith.addf %931, %953 : vector<2x128xf32>
    %955 = vector.broadcast %723 : vector<1x128xf32> to vector<2x128xf32>
    %956 = arith.addf %954, %955 : vector<2x128xf32>
    %957 = arith.addf %853, %956 : vector<2x128xf32>
    %cst_297 = arith.constant dense<0.000000e+00> : vector<2xf32>
    %958 = vector.multi_reduction <add>, %957, %cst_297 [1] : vector<2x128xf32> to vector<2xf32>
    %959 = vector.shape_cast %958 : vector<2xf32> to vector<2x1xf32>
    %cst_298 = arith.constant 7.812500e-03 : f32
    %960 = vector.broadcast %cst_298 : f32 to vector<2x1xf32>
    %961 = arith.mulf %959, %960 : vector<2x1xf32>
    %962 = arith.mulf %957, %957 : vector<2x128xf32>
    %cst_299 = arith.constant dense<0.000000e+00> : vector<2xf32>
    %963 = vector.multi_reduction <add>, %962, %cst_299 [1] : vector<2x128xf32> to vector<2xf32>
    %964 = vector.shape_cast %963 : vector<2xf32> to vector<2x1xf32>
    %cst_300 = arith.constant 7.812500e-03 : f32
    %965 = vector.broadcast %cst_300 : f32 to vector<2x1xf32>
    %966 = arith.mulf %964, %965 : vector<2x1xf32>
    %967 = arith.mulf %961, %961 : vector<2x1xf32>
    %968 = arith.subf %966, %967 : vector<2x1xf32>
    %969 = vector.broadcast %961 : vector<2x1xf32> to vector<2x128xf32>
    %970 = arith.subf %957, %969 : vector<2x128xf32>
    %cst_301 = arith.constant 9.99999974E-6 : f32
    %971 = vector.broadcast %cst_301 : f32 to vector<2x1xf32>
    %972 = arith.addf %968, %971 : vector<2x1xf32>
    %973 = math.rsqrt %972 : vector<2x1xf32>
    %974 = vector.broadcast %973 : vector<2x1xf32> to vector<2x128xf32>
    %975 = arith.mulf %970, %974 : vector<2x128xf32>
    %976 = vector.broadcast %727 : vector<1x128xf32> to vector<2x128xf32>
    %977 = arith.mulf %975, %976 : vector<2x128xf32>
    %978 = vector.broadcast %728 : vector<1x128xf32> to vector<2x128xf32>
    %979 = arith.addf %977, %978 : vector<2x128xf32>
    %980 = arith.truncf %979 : vector<2x128xf32> to vector<2x128xbf16>
    %cst_302 = arith.constant dense<0.000000e+00> : vector<2x256xf32>
    %981 = tpu.matmul %980, %714, %cst_302 {dimension_numbers = #tpu.dot_dimension_numbers<[1], [0], [0], [1], [0, 0, 1, 1], [], []>} : vector<2x128xbf16>, vector<128x256xbf16>, vector<2x256xf32> -> vector<2x256xf32>
    %982 = vector.broadcast %716 : vector<1x256xf32> to vector<2x256xf32>
    %983 = arith.addf %981, %982 : vector<2x256xf32>
    %cst_303 = arith.constant 0.000000e+00 : f32
    %984 = vector.broadcast %cst_303 : f32 to vector<2x256xf32>
    %985 = arith.maximumf %983, %984 : vector<2x256xf32>
    %986 = arith.truncf %985 : vector<2x256xf32> to vector<2x256xbf16>
    %cst_304 = arith.constant dense<0.000000e+00> : vector<2x128xf32>
    %987 = tpu.matmul %986, %718, %cst_304 {dimension_numbers = #tpu.dot_dimension_numbers<[1], [0], [0], [1], [0, 0, 1, 1], [], []>} : vector<2x256xbf16>, vector<256x128xbf16>, vector<2x128xf32> -> vector<2x128xf32>
    %988 = vector.broadcast %724 : vector<1x128xf32> to vector<2x128xf32>
    %989 = arith.addf %987, %988 : vector<2x128xf32>
    %990 = arith.addf %979, %989 : vector<2x128xf32>
    %cst_305 = arith.constant dense<0.000000e+00> : vector<2xf32>
    %991 = vector.multi_reduction <add>, %990, %cst_305 [1] : vector<2x128xf32> to vector<2xf32>
    %992 = vector.shape_cast %991 : vector<2xf32> to vector<2x1xf32>
    %cst_306 = arith.constant 7.812500e-03 : f32
    %993 = vector.broadcast %cst_306 : f32 to vector<2x1xf32>
    %994 = arith.mulf %992, %993 : vector<2x1xf32>
    %995 = arith.mulf %990, %990 : vector<2x128xf32>
    %cst_307 = arith.constant dense<0.000000e+00> : vector<2xf32>
    %996 = vector.multi_reduction <add>, %995, %cst_307 [1] : vector<2x128xf32> to vector<2xf32>
    %997 = vector.shape_cast %996 : vector<2xf32> to vector<2x1xf32>
    %cst_308 = arith.constant 7.812500e-03 : f32
    %998 = vector.broadcast %cst_308 : f32 to vector<2x1xf32>
    %999 = arith.mulf %997, %998 : vector<2x1xf32>
    %1000 = arith.mulf %994, %994 : vector<2x1xf32>
    %1001 = arith.subf %999, %1000 : vector<2x1xf32>
    %1002 = vector.broadcast %994 : vector<2x1xf32> to vector<2x128xf32>
    %1003 = arith.subf %990, %1002 : vector<2x128xf32>
    %cst_309 = arith.constant 9.99999974E-6 : f32
    %1004 = vector.broadcast %cst_309 : f32 to vector<2x1xf32>
    %1005 = arith.addf %1001, %1004 : vector<2x1xf32>
    %1006 = math.rsqrt %1005 : vector<2x1xf32>
    %1007 = vector.broadcast %1006 : vector<2x1xf32> to vector<2x128xf32>
    %1008 = arith.mulf %1003, %1007 : vector<2x128xf32>
    %1009 = vector.broadcast %729 : vector<1x128xf32> to vector<2x128xf32>
    %1010 = arith.mulf %1008, %1009 : vector<2x128xf32>
    %1011 = vector.broadcast %730 : vector<1x128xf32> to vector<2x128xf32>
    %1012 = arith.addf %1010, %1011 : vector<2x128xf32>
    %1013 = vector.extract_strided_slice %360 {offsets = [2, 0], sizes = [1, 128], strides = [1, 1]} : vector<4x128xf32> to vector<1x128xf32>
    %1014 = vector.extract_strided_slice %360 {offsets = [3, 0], sizes = [1, 128], strides = [1, 1]} : vector<4x128xf32> to vector<1x128xf32>
    %cst_310 = arith.constant dense<0.000000e+00> : vector<2xf32>
    %1015 = vector.multi_reduction <add>, %1012, %cst_310 [1] : vector<2x128xf32> to vector<2xf32>
    %1016 = vector.shape_cast %1015 : vector<2xf32> to vector<2x1xf32>
    %cst_311 = arith.constant 7.812500e-03 : f32
    %1017 = vector.broadcast %cst_311 : f32 to vector<2x1xf32>
    %1018 = arith.mulf %1016, %1017 : vector<2x1xf32>
    %1019 = arith.mulf %1012, %1012 : vector<2x128xf32>
    %cst_312 = arith.constant dense<0.000000e+00> : vector<2xf32>
    %1020 = vector.multi_reduction <add>, %1019, %cst_312 [1] : vector<2x128xf32> to vector<2xf32>
    %1021 = vector.shape_cast %1020 : vector<2xf32> to vector<2x1xf32>
    %cst_313 = arith.constant 7.812500e-03 : f32
    %1022 = vector.broadcast %cst_313 : f32 to vector<2x1xf32>
    %1023 = arith.mulf %1021, %1022 : vector<2x1xf32>
    %1024 = arith.mulf %1018, %1018 : vector<2x1xf32>
    %1025 = arith.subf %1023, %1024 : vector<2x1xf32>
    %1026 = vector.broadcast %1018 : vector<2x1xf32> to vector<2x128xf32>
    %1027 = arith.subf %1012, %1026 : vector<2x128xf32>
    %cst_314 = arith.constant 9.99999974E-6 : f32
    %1028 = vector.broadcast %cst_314 : f32 to vector<2x1xf32>
    %1029 = arith.addf %1025, %1028 : vector<2x1xf32>
    %1030 = math.rsqrt %1029 : vector<2x1xf32>
    %1031 = vector.broadcast %1030 : vector<2x1xf32> to vector<2x128xf32>
    %1032 = arith.mulf %1027, %1031 : vector<2x128xf32>
    %1033 = vector.broadcast %1013 : vector<1x128xf32> to vector<2x128xf32>
    %1034 = arith.mulf %1032, %1033 : vector<2x128xf32>
    %1035 = vector.broadcast %1014 : vector<1x128xf32> to vector<2x128xf32>
    %1036 = arith.addf %1034, %1035 : vector<2x128xf32>
    %c0_315 = arith.constant 0 : index
    %c0_316 = arith.constant 0 : index
    %1037 = vector.load %arg23[%c0_315, %c0_316] : memref<128x10xbf16, #tpu.memory_space<vmem>>, vector<128x10xbf16>
    %c0_317 = arith.constant 0 : index
    %c0_318 = arith.constant 0 : index
    %1038 = vector.load %arg22[%c0_317, %c0_318] : memref<1x10xf32, #tpu.memory_space<vmem>>, vector<1x10xf32>
    %1039 = arith.truncf %1036 : vector<2x128xf32> to vector<2x128xbf16>
    %cst_319 = arith.constant dense<0.000000e+00> : vector<2x10xf32>
    %1040 = tpu.matmul %1039, %1037, %cst_319 {dimension_numbers = #tpu.dot_dimension_numbers<[1], [0], [0], [1], [0, 0, 1, 1], [], []>} : vector<2x128xbf16>, vector<128x10xbf16>, vector<2x10xf32> -> vector<2x10xf32>
    %1041 = vector.broadcast %1038 : vector<1x10xf32> to vector<2x10xf32>
    %1042 = arith.addf %1040, %1041 : vector<2x10xf32>
    %c0_320 = arith.constant 0 : index
    %c0_321 = arith.constant 0 : index
    %c0_322 = arith.constant 0 : index
    %1043 = vector.load %arg25[%c0_320, %c0_321, %c0_322] : memref<1x2x10xf32, #tpu.memory_space<vmem>>, vector<1x2x10xf32>
    %1044 = vector.shape_cast %1043 : vector<1x2x10xf32> to vector<2x10xf32>
    %1045 = vector.shape_cast %1042 : vector<2x10xf32> to vector<1x2x10xf32>
    tpu.vector_store %arg25[%c0_320, %c0_321, %c0_322], %1045 {strides = array<i32>} : memref<1x2x10xf32, #tpu.memory_space<vmem>>, vector<1x2x10xf32>,
    return
  }
  func.func @transform_0(%arg0: i32) -> (i32, i32, i32) {
    %c0_i32 = arith.constant 0 : i32
    %c0_i32_0 = arith.constant 0 : i32
    %c0_i32_1 = arith.constant 0 : i32
    return %arg0, %c0_i32, %c0_i32_0 : i32, i32, i32
  }
  func.func @transform_1(%arg0: i32) -> (i32, i32, i32) {
    %c0_i32 = arith.constant 0 : i32
    %c0_i32_0 = arith.constant 0 : i32
    %c0_i32_1 = arith.constant 0 : i32
    %c0_i32_2 = arith.constant 0 : i32
    return %c0_i32, %c0_i32_0, %c0_i32_1 : i32, i32, i32
  }
  func.func @transform_2(%arg0: i32) -> (i32, i32, i32) {
    %c0_i32 = arith.constant 0 : i32
    %c0_i32_0 = arith.constant 0 : i32
    %c0_i32_1 = arith.constant 0 : i32
    %c0_i32_2 = arith.constant 0 : i32
    return %c0_i32, %c0_i32_0, %c0_i32_1 : i32, i32, i32
  }
  func.func @transform_3(%arg0: i32) -> (i32, i32, i32) {
    %c0_i32 = arith.constant 0 : i32
    %c0_i32_0 = arith.constant 0 : i32
    %c0_i32_1 = arith.constant 0 : i32
    %c0_i32_2 = arith.constant 0 : i32
    return %c0_i32, %c0_i32_0, %c0_i32_1 : i32, i32, i32
  }
  func.func @transform_4(%arg0: i32) -> (i32, i32, i32) {
    %c0_i32 = arith.constant 0 : i32
    %c0_i32_0 = arith.constant 0 : i32
    %c0_i32_1 = arith.constant 0 : i32
    %c0_i32_2 = arith.constant 0 : i32
    return %c0_i32, %c0_i32_0, %c0_i32_1 : i32, i32, i32
  }
  func.func @transform_5(%arg0: i32) -> (i32, i32, i32) {
    %c0_i32 = arith.constant 0 : i32
    %c0_i32_0 = arith.constant 0 : i32
    %c0_i32_1 = arith.constant 0 : i32
    %c0_i32_2 = arith.constant 0 : i32
    return %c0_i32, %c0_i32_0, %c0_i32_1 : i32, i32, i32
  }
  func.func @transform_6(%arg0: i32) -> (i32, i32, i32) {
    %c0_i32 = arith.constant 0 : i32
    %c0_i32_0 = arith.constant 0 : i32
    %c0_i32_1 = arith.constant 0 : i32
    %c0_i32_2 = arith.constant 0 : i32
    return %c0_i32, %c0_i32_0, %c0_i32_1 : i32, i32, i32
  }
  func.func @transform_7(%arg0: i32) -> (i32, i32, i32) {
    %c0_i32 = arith.constant 0 : i32
    %c0_i32_0 = arith.constant 0 : i32
    %c0_i32_1 = arith.constant 0 : i32
    %c0_i32_2 = arith.constant 0 : i32
    return %c0_i32, %c0_i32_0, %c0_i32_1 : i32, i32, i32
  }
  func.func @transform_8(%arg0: i32) -> (i32, i32, i32) {
    %c0_i32 = arith.constant 0 : i32
    %c0_i32_0 = arith.constant 0 : i32
    %c0_i32_1 = arith.constant 0 : i32
    %c0_i32_2 = arith.constant 0 : i32
    return %c0_i32, %c0_i32_0, %c0_i32_1 : i32, i32, i32
  }
  func.func @transform_9(%arg0: i32) -> (i32, i32, i32) {
    %c0_i32 = arith.constant 0 : i32
    %c0_i32_0 = arith.constant 0 : i32
    %c0_i32_1 = arith.constant 0 : i32
    %c0_i32_2 = arith.constant 0 : i32
    return %c0_i32, %c0_i32_0, %c0_i32_1 : i32, i32, i32
  }
  func.func @transform_10(%arg0: i32) -> (i32, i32, i32) {
    %c0_i32 = arith.constant 0 : i32
    %c0_i32_0 = arith.constant 0 : i32
    %c0_i32_1 = arith.constant 0 : i32
    %c0_i32_2 = arith.constant 0 : i32
    return %c0_i32, %c0_i32_0, %c0_i32_1 : i32, i32, i32
  }
  func.func @transform_11(%arg0: i32) -> (i32, i32, i32) {
    %c0_i32 = arith.constant 0 : i32
    %c0_i32_0 = arith.constant 0 : i32
    %c0_i32_1 = arith.constant 0 : i32
    %c0_i32_2 = arith.constant 0 : i32
    return %c0_i32, %c0_i32_0, %c0_i32_1 : i32, i32, i32
  }
  func.func @transform_12(%arg0: i32) -> (i32, i32) {
    %c0_i32 = arith.constant 0 : i32
    %c0_i32_0 = arith.constant 0 : i32
    %c0_i32_1 = arith.constant 0 : i32
    return %c0_i32, %c0_i32_0 : i32, i32
  }
  func.func @transform_13(%arg0: i32) -> (i32, i32) {
    %c0_i32 = arith.constant 0 : i32
    %c0_i32_0 = arith.constant 0 : i32
    %c0_i32_1 = arith.constant 0 : i32
    return %c0_i32, %c0_i32_0 : i32, i32
  }
  func.func @transform_14(%arg0: i32) -> (i32, i32, i32) {
    %c0_i32 = arith.constant 0 : i32
    %c0_i32_0 = arith.constant 0 : i32
    %c0_i32_1 = arith.constant 0 : i32
    %c0_i32_2 = arith.constant 0 : i32
    return %c0_i32, %c0_i32_0, %c0_i32_1 : i32, i32, i32
  }
  func.func @transform_15(%arg0: i32) -> (i32, i32, i32) {
    %c0_i32 = arith.constant 0 : i32
    %c0_i32_0 = arith.constant 0 : i32
    %c0_i32_1 = arith.constant 0 : i32
    %c0_i32_2 = arith.constant 0 : i32
    return %c0_i32, %c0_i32_0, %c0_i32_1 : i32, i32, i32
  }
  func.func @transform_16(%arg0: i32) -> (i32, i32, i32) {
    %c0_i32 = arith.constant 0 : i32
    %c0_i32_0 = arith.constant 0 : i32
    %c0_i32_1 = arith.constant 0 : i32
    %c0_i32_2 = arith.constant 0 : i32
    return %c0_i32, %c0_i32_0, %c0_i32_1 : i32, i32, i32
  }
  func.func @transform_17(%arg0: i32) -> (i32, i32, i32) {
    %c0_i32 = arith.constant 0 : i32
    %c0_i32_0 = arith.constant 0 : i32
    %c0_i32_1 = arith.constant 0 : i32
    %c0_i32_2 = arith.constant 0 : i32
    return %c0_i32, %c0_i32_0, %c0_i32_1 : i32, i32, i32
  }
  func.func @transform_18(%arg0: i32) -> (i32, i32, i32) {
    %c0_i32 = arith.constant 0 : i32
    %c0_i32_0 = arith.constant 0 : i32
    %c0_i32_1 = arith.constant 0 : i32
    %c0_i32_2 = arith.constant 0 : i32
    return %c0_i32, %c0_i32_0, %c0_i32_1 : i32, i32, i32
  }
  func.func @transform_19(%arg0: i32) -> (i32, i32, i32) {
    %c0_i32 = arith.constant 0 : i32
    %c0_i32_0 = arith.constant 0 : i32
    %c0_i32_1 = arith.constant 0 : i32
    %c0_i32_2 = arith.constant 0 : i32
    return %c0_i32, %c0_i32_0, %c0_i32_1 : i32, i32, i32
  }
  func.func @transform_20(%arg0: i32) -> (i32, i32, i32) {
    %c0_i32 = arith.constant 0 : i32
    %c0_i32_0 = arith.constant 0 : i32
    %c0_i32_1 = arith.constant 0 : i32
    %c0_i32_2 = arith.constant 0 : i32
    return %c0_i32, %c0_i32_0, %c0_i32_1 : i32, i32, i32
  }
  func.func @transform_21(%arg0: i32) -> (i32, i32) {
    %c0_i32 = arith.constant 0 : i32
    %c0_i32_0 = arith.constant 0 : i32
    %c0_i32_1 = arith.constant 0 : i32
    return %c0_i32, %c0_i32_0 : i32, i32
  }
  func.func @transform_22(%arg0: i32) -> (i32, i32) {
    %c0_i32 = arith.constant 0 : i32
    %c0_i32_0 = arith.constant 0 : i32
    %c0_i32_1 = arith.constant 0 : i32
    return %c0_i32, %c0_i32_0 : i32, i32
  }
  func.func @transform_23(%arg0: i32) -> (i32, i32) {
    %c0_i32 = arith.constant 0 : i32
    %c0_i32_0 = arith.constant 0 : i32
    %c0_i32_1 = arith.constant 0 : i32
    return %c0_i32, %c0_i32_0 : i32, i32
  }
  func.func @transform_24(%arg0: i32) -> (i32, i32, i32) {
    %c0_i32 = arith.constant 0 : i32
    %c0_i32_0 = arith.constant 0 : i32
    %c0_i32_1 = arith.constant 0 : i32
    return %arg0, %c0_i32, %c0_i32_0 : i32, i32, i32
  }
}

</mosaic_0001>

<llo_original>
// kernel: tft_forward.1
$region0: #{tft_forward.1}
  #allocation0 [shape = 'u32[]', space=smem, size = 0x4, offset = 0x4, fixed_abs, tag = 'smem constant byte address 0x4 - core index']
  #allocation1 [shape = 'u32[144,128]{1,0:T(1,128)}', space=vmem, size = 0x12000, scoped, tag = 'internal scratch']
  %s0 = inlined_call_operand.vmem [shape: f32[8,2,16], index: 0, kind: input, shape index: {}]
  %s1 = inlined_call_operand.vmem [shape: f32[2,1,256], index: 1, kind: input, shape index: {}]
  %s2 = inlined_call_operand.vmem [shape: f32[2,1,256], index: 2, kind: input, shape index: {}]
  %s3 = inlined_call_operand.vmem [shape: f32[2,1,384], index: 3, kind: input, shape index: {}]
  %s4 = inlined_call_operand.vmem [shape: f32[2,10,128], index: 4, kind: input, shape index: {}]
  %s5 = inlined_call_operand.hbm [shape: bf16[2,128,256], index: 5, kind: input, shape index: {}]
  %s6 = inlined_call_operand.vmem [shape: bf16[2,128,128], index: 6, kind: input, shape index: {}]
  %s7 = inlined_call_operand.hbm [shape: bf16[2,128,128], index: 7, kind: input, shape index: {}]
  %s8 = inlined_call_operand.hbm [shape: bf16[2,128,256], index: 8, kind: input, shape index: {}]
  %s9 = inlined_call_operand.hbm [shape: bf16[2,256,128], index: 9, kind: input, shape index: {}]
  %s10 = inlined_call_operand.hbm [shape: bf16[2,128,128], index: 10, kind: input, shape index: {}]
  %s11 = inlined_call_operand.hbm [shape: bf16[2,128,384], index: 11, kind: input, shape index: {}]
  %s12 = inlined_call_operand.vmem [shape: f32[1,128], index: 12, kind: input, shape index: {}]
  %s13 = inlined_call_operand.vmem [shape: bf16[16,128], index: 13, kind: input, shape index: {}]
  %s14 = inlined_call_operand.vmem [shape: f32[2,1,256], index: 14, kind: input, shape index: {}]
  %s15 = inlined_call_operand.vmem [shape: f32[2,1,384], index: 15, kind: input, shape index: {}]
  %s16 = inlined_call_operand.vmem [shape: f32[2,6,128], index: 16, kind: input, shape index: {}]
  %s17 = inlined_call_operand.hbm [shape: bf16[2,128,256], index: 17, kind: input, shape index: {}]
  %s18 = inlined_call_operand.hbm [shape: bf16[2,256,128], index: 18, kind: input, shape index: {}]
  %s19 = inlined_call_operand.hbm [shape: bf16[2,128,128], index: 19, kind: input, shape index: {}]
  %s20 = inlined_call_operand.hbm [shape: bf16[2,128,384], index: 20, kind: input, shape index: {}]
  %s21 = inlined_call_operand.vmem [shape: f32[1,10], index: 21, kind: input, shape index: {}]
  %s22 = inlined_call_operand.vmem [shape: bf16[128,10], index: 22, kind: input, shape index: {}]
  %s23 = inlined_call_operand.vmem [shape: f32[4,128], index: 23, kind: input, shape index: {}]
  %s24 = inlined_call_operand.vmem [shape: f32[8,2,10], index: 24, kind: output, shape index: {}]
  %s25 = sld [smem:[#allocation0]]
  $region169: #{tft_forward.1} parent=0
    _
  %s27 = ssub.s32 1, %s25
  %s28 = scalar_select 0, %s27, %s25
  $region1: #{tft_forward.1} parent=0
    #allocation2 [shape = 'u8[131072]{0}', space=vmem, size = 0x20000, scoped, tag = 'input window, operand 5, single buffered']
    #allocation3 [shape = 's32[2]{0}', space=sflag, size = 0x8, scoped, tag = 'scoped memory for tft_forward.1']
    #allocation4 [shape = 'u8[65536]{0}', space=vmem, size = 0x10000, scoped, tag = 'input window, operand 7, single buffered']
    #allocation5 [shape = 's32[1]{0}', space=sflag, size = 0x4, scoped, tag = 'scoped memory for tft_forward.1']
    #allocation6 [shape = 'u8[131072]{0}', space=vmem, size = 0x20000, scoped, tag = 'input window, operand 8, single buffered']
    #allocation7 [shape = 'u8[131072]{0}', space=vmem, size = 0x20000, scoped, tag = 'input window, operand 9, single buffered']
    #allocation8 [shape = 's32[1]{0}', space=sflag, size = 0x4, scoped, tag = 'scoped memory for tft_forward.1']
    #allocation9 [shape = 'u8[65536]{0}', space=vmem, size = 0x10000, scoped, tag = 'input window, operand 10, single buffered']
    #allocation10 [shape = 'u8[196608]{0}', space=vmem, size = 0x30000, scoped, tag = 'input window, operand 11, single buffered']
    #allocation11 [shape = 's32[1]{0}', space=sflag, size = 0x4, scoped, tag = 'scoped memory for tft_forward.1']
    #allocation12 [shape = 'u8[131072]{0}', space=vmem, size = 0x20000, scoped, tag = 'input window, operand 17, single buffered']
    #allocation13 [shape = 'u8[131072]{0}', space=vmem, size = 0x20000, scoped, tag = 'input window, operand 18, single buffered']
    #allocation14 [shape = 's32[1]{0}', space=sflag, size = 0x4, scoped, tag = 'scoped memory for tft_forward.1']
    #allocation15 [shape = 'u8[65536]{0}', space=vmem, size = 0x10000, scoped, tag = 'input window, operand 19, single buffered']
    #allocation16 [shape = 'u8[196608]{0}', space=vmem, size = 0x30000, scoped, tag = 'input window, operand 20, single buffered']
    #allocation17 [shape = 's32[1]{0}', space=sflag, size = 0x4, scoped, tag = 'scoped memory for tft_forward.1']
    %29 = vsyncpa [#allocation3], 0
    %30 = vsyncpa [#allocation5], 0
    %31 = vsyncpa [#allocation8], 0
    %32 = vsyncpa [#allocation11], 0
    %33 = vsyncpa [#allocation14], 0
    %34 = vsyncpa [#allocation17], 0
    loop: start=0, step=1, limit=10
    $region2: #{tft_forward.1} parent=1 // loop_pre_header
      _
    $region3: #{tft_forward.1} parent=1 // loop_header
      %s36 = sphi 0, %s40
      %p37 = scmp.ge.s32.totalorder %s36, 10
      %s46 = sphi 0, %s48
      %s49 = sphi 0, %s46
      %s50 = sphi 0, %s49
      %s66 = sphi 0, %s50
      %s70 = sphi 0, %s70
      %s72 = sphi 0, %s70
      %s73 = sphi 0, %s72
      %s87 = sphi 0, %s73
      %s91 = sphi 0, %s91
      %s93 = sphi 0, %s91
      %s94 = sphi 0, %s93
      %s108 = sphi 0, %s94
      %s112 = sphi 0, %s112
      %s114 = sphi 0, %s112
      %s115 = sphi 0, %s114
      %s129 = sphi 0, %s115
      %s133 = sphi 0, %s133
      %s135 = sphi 0, %s133
      %s136 = sphi 0, %s135
      %s150 = sphi 0, %s136
      %s154 = sphi 0, %s154
      %s156 = sphi 0, %s154
      %s157 = sphi 0, %s156
      %s171 = sphi 0, %s157
      %s175 = sphi 0, %s175
      %s177 = sphi 0, %s175
      %s178 = sphi 0, %s177
      %s192 = sphi 0, %s178
      %s196 = sphi 0, %s196
      %s198 = sphi 0, %s196
      %s199 = sphi 0, %s198
      %s213 = sphi 0, %s199
      %s217 = sphi 0, %s217
      %s219 = sphi 0, %s217
      %s220 = sphi 0, %s219
      %s234 = sphi 0, %s220
      %s238 = sphi 0, %s238
      %s240 = sphi 0, %s238
      %s241 = sphi 0, %s240
      %s255 = sphi 0, %s241
      %s259 = sphi 0, %s259
      %s261 = sphi 0, %s259
      %s262 = sphi 0, %s261
      %s276 = sphi 0, %s262
      %s280 = sphi 0, %s280
      %s282 = sphi 0, %s280
      %s283 = sphi 0, %s282
      %s297 = sphi 0, %s283
      %s301 = sphi 0, %s301
      %s303 = sphi 0, %s301
      %s304 = sphi 0, %s303
      %s318 = sphi 0, %s304
      %s322 = sphi 0, %s322
      %s324 = sphi 0, %s322
      %s325 = sphi 0, %s324
      %s339 = sphi 0, %s325
      %s343 = sphi 0, %s343
      %s345 = sphi 0, %s343
      %s346 = sphi 0, %s345
      %s360 = sphi 0, %s346
      %s364 = sphi 0, %s364
      %s366 = sphi 0, %s364
      %s367 = sphi 0, %s366
      %s381 = sphi 0, %s367
      %s385 = sphi 0, %s385
      %s387 = sphi 0, %s385
      %s388 = sphi 0, %s387
      %s402 = sphi 0, %s388
      %s406 = sphi 0, %s406
      %s408 = sphi 0, %s406
      %s409 = sphi 0, %s408
      %s423 = sphi 0, %s409
      %s427 = sphi 0, %s427
      %s429 = sphi 0, %s427
      %s430 = sphi 0, %s429
      %s444 = sphi 0, %s430
      %s448 = sphi 0, %s448
      %s450 = sphi 0, %s448
      %s451 = sphi 0, %s450
      %s465 = sphi 0, %s451
      %s469 = sphi 0, %s469
      %s471 = sphi 0, %s469
      %s472 = sphi 0, %s471
      %s486 = sphi 0, %s472
      %s490 = sphi 0, %s490
      %s492 = sphi 0, %s490
      %s493 = sphi 0, %s492
      %s507 = sphi 0, %s493
      %s511 = sphi 0, %s511
      %s513 = sphi 0, %s511
      %s514 = sphi 0, %s513
      %s528 = sphi 0, %s514
      %s532 = sphi 0, %s532
      %s534 = sphi 0, %s532
      %s535 = sphi 0, %s534
      %s549 = sphi 0, %s535
      %s555 = sphi 0, %s557
      %s558 = sphi 0, %s555
      %s559 = sphi 0, %s558
      %s575 = sphi 0, %s559
    $region4: #{tft_forward.1} parent=1 // loop_header_branch
      %39 = sbr.rel (%p37) target = $region8
    $region5: #{tft_forward.1} parent=1 // loop_body
      %s41 = ssub.s32 %s36, 1
      %s42 = ssub.s32 %s36, 2
      %s43 = sadd.s32 %s36, 1
      %s44 = ssub.s32 %s36, %s43
      %p45 = scmp.eq.s32.totalorder %s44, 0
      %s47 = sadd.s32 %s46, 1
      %s48 = scalar_select %p45, %s46, %s47
      %p51 = pneg %p45
      %p52 = scmp.eq.s32.totalorder %s36, 7
      %p53 = por %p51, %p52
      %p54 = scmp.ne.s32.totalorder %s46, %s49
      %p55 = scmp.eq.s32.totalorder %s36, 0
      %p56 = por %p54, %p55
      %p57 = scmp.ne.s32.totalorder %s46, %s49
      %p58 = scmp.eq.s32.totalorder %s41, 7
      %p59 = por %p57, %p58
      %p60 = scmp.ne.s32.totalorder %s49, %s50
      %p61 = scmp.eq.s32.totalorder %s41, 0
      %p62 = por %p60, %p61
      %p63 = scmp.ne.s32.totalorder %s49, %s50
      %p64 = scmp.eq.s32.totalorder %s42, 7
      %p65 = por %p63, %p64
      %p67 = scmp.ne.s32.totalorder %s50, %s66
      %p68 = scmp.eq.s32.totalorder %s42, 0
      %p69 = por %p67, %p68
      %s71 = sadd.s32 %s70, 1
      %p74 = scmp.eq.s32.totalorder %s36, 7
      %p75 = scmp.ne.s32.totalorder %s70, %s72
      %p76 = scmp.eq.s32.totalorder %s36, 0
      %p77 = por %p75, %p76
      %p78 = scmp.ne.s32.totalorder %s70, %s72
      %p79 = scmp.eq.s32.totalorder %s41, 7
      %p80 = por %p78, %p79
      %p81 = scmp.ne.s32.totalorder %s72, %s73
      %p82 = scmp.eq.s32.totalorder %s41, 0
      %p83 = por %p81, %p82
      %p84 = scmp.ne.s32.totalorder %s72, %s73
      %p85 = scmp.eq.s32.totalorder %s42, 7
      %p86 = por %p84, %p85
      %p88 = scmp.ne.s32.totalorder %s73, %s87
      %p89 = scmp.eq.s32.totalorder %s42, 0
      %p90 = por %p88, %p89
      %s92 = sadd.s32 %s91, 1
      %p95 = scmp.eq.s32.totalorder %s36, 7
      %p96 = scmp.ne.s32.totalorder %s91, %s93
      %p97 = scmp.eq.s32.totalorder %s36, 0
      %p98 = por %p96, %p97
      %p99 = scmp.ne.s32.totalorder %s91, %s93
      %p100 = scmp.eq.s32.totalorder %s41, 7
      %p101 = por %p99, %p100
      %p102 = scmp.ne.s32.totalorder %s93, %s94
      %p103 = scmp.eq.s32.totalorder %s41, 0
      %p104 = por %p102, %p103
      %p105 = scmp.ne.s32.totalorder %s93, %s94
      %p106 = scmp.eq.s32.totalorder %s42, 7
      %p107 = por %p105, %p106
      %p109 = scmp.ne.s32.totalorder %s94, %s108
      %p110 = scmp.eq.s32.totalorder %s42, 0
      %p111 = por %p109, %p110
      %s113 = sadd.s32 %s112, 1
      %p116 = scmp.eq.s32.totalorder %s36, 7
      %p117 = scmp.ne.s32.totalorder %s112, %s114
      %p118 = scmp.eq.s32.totalorder %s36, 0
      %p119 = por %p117, %p118
      %p120 = scmp.ne.s32.totalorder %s112, %s114
      %p121 = scmp.eq.s32.totalorder %s41, 7
      %p122 = por %p120, %p121
      %p123 = scmp.ne.s32.totalorder %s114, %s115
      %p124 = scmp.eq.s32.totalorder %s41, 0
      %p125 = por %p123, %p124
      %p126 = scmp.ne.s32.totalorder %s114, %s115
      %p127 = scmp.eq.s32.totalorder %s42, 7
      %p128 = por %p126, %p127
      %p130 = scmp.ne.s32.totalorder %s115, %s129
      %p131 = scmp.eq.s32.totalorder %s42, 0
      %p132 = por %p130, %p131
      %s134 = sadd.s32 %s133, 1
      %p137 = scmp.eq.s32.totalorder %s36, 7
      %p138 = scmp.ne.s32.totalorder %s133, %s135
      %p139 = scmp.eq.s32.totalorder %s36, 0
      %p140 = por %p138, %p139
      %p141 = scmp.ne.s32.totalorder %s133, %s135
      %p142 = scmp.eq.s32.totalorder %s41, 7
      %p143 = por %p141, %p142
      %p144 = scmp.ne.s32.totalorder %s135, %s136
      %p145 = scmp.eq.s32.totalorder %s41, 0
      %p146 = por %p144, %p145
      %p147 = scmp.ne.s32.totalorder %s135, %s136
      %p148 = scmp.eq.s32.totalorder %s42, 7
      %p149 = por %p147, %p148
      %p151 = scmp.ne.s32.totalorder %s136, %s150
      %p152 = scmp.eq.s32.totalorder %s42, 0
      %p153 = por %p151, %p152
      %s155 = sadd.s32 %s154, 1
      %p158 = scmp.eq.s32.totalorder %s36, 7
      %p159 = scmp.ne.s32.totalorder %s154, %s156
      %p160 = scmp.eq.s32.totalorder %s36, 0
      %p161 = por %p159, %p160
      %p162 = scmp.ne.s32.totalorder %s154, %s156
      %p163 = scmp.eq.s32.totalorder %s41, 7
      %p164 = por %p162, %p163
      %p165 = scmp.ne.s32.totalorder %s156, %s157
      %p166 = scmp.eq.s32.totalorder %s41, 0
      %p167 = por %p165, %p166
      %p168 = scmp.ne.s32.totalorder %s156, %s157
      %p169 = scmp.eq.s32.totalorder %s42, 7
      %p170 = por %p168, %p169
      %p172 = scmp.ne.s32.totalorder %s157, %s171
      %p173 = scmp.eq.s32.totalorder %s42, 0
      %p174 = por %p172, %p173
      %s176 = sadd.s32 %s175, 1
      %p179 = scmp.eq.s32.totalorder %s36, 7
      %p180 = scmp.ne.s32.totalorder %s175, %s177
      %p181 = scmp.eq.s32.totalorder %s36, 0
      %p182 = por %p180, %p181
      %p183 = scmp.ne.s32.totalorder %s175, %s177
      %p184 = scmp.eq.s32.totalorder %s41, 7
      %p185 = por %p183, %p184
      %p186 = scmp.ne.s32.totalorder %s177, %s178
      %p187 = scmp.eq.s32.totalorder %s41, 0
      %p188 = por %p186, %p187
      %p189 = scmp.ne.s32.totalorder %s177, %s178
      %p190 = scmp.eq.s32.totalorder %s42, 7
      %p191 = por %p189, %p190
      %p193 = scmp.ne.s32.totalorder %s178, %s192
      %p194 = scmp.eq.s32.totalorder %s42, 0
      %p195 = por %p193, %p194
      %s197 = sadd.s32 %s196, 1
      %p200 = scmp.eq.s32.totalorder %s36, 7
      %p201 = scmp.ne.s32.totalorder %s196, %s198
      %p202 = scmp.eq.s32.totalorder %s36, 0
      %p203 = por %p201, %p202
      %p204 = scmp.ne.s32.totalorder %s196, %s198
      %p205 = scmp.eq.s32.totalorder %s41, 7
      %p206 = por %p204, %p205
      %p207 = scmp.ne.s32.totalorder %s198, %s199
      %p208 = scmp.eq.s32.totalorder %s41, 0
      %p209 = por %p207, %p208
      %p210 = scmp.ne.s32.totalorder %s198, %s199
      %p211 = scmp.eq.s32.totalorder %s42, 7
      %p212 = por %p210, %p211
      %p214 = scmp.ne.s32.totalorder %s199, %s213
      %p215 = scmp.eq.s32.totalorder %s42, 0
      %p216 = por %p214, %p215
      %s218 = sadd.s32 %s217, 1
      %p221 = scmp.eq.s32.totalorder %s36, 7
      %p222 = scmp.ne.s32.totalorder %s217, %s219
      %p223 = scmp.eq.s32.totalorder %s36, 0
      %p224 = por %p222, %p223
      %p225 = scmp.ne.s32.totalorder %s217, %s219
      %p226 = scmp.eq.s32.totalorder %s41, 7
      %p227 = por %p225, %p226
      %p228 = scmp.ne.s32.totalorder %s219, %s220
      %p229 = scmp.eq.s32.totalorder %s41, 0
      %p230 = por %p228, %p229
      %p231 = scmp.ne.s32.totalorder %s219, %s220
      %p232 = scmp.eq.s32.totalorder %s42, 7
      %p233 = por %p231, %p232
      %p235 = scmp.ne.s32.totalorder %s220, %s234
      %p236 = scmp.eq.s32.totalorder %s42, 0
      %p237 = por %p235, %p236
      %s239 = sadd.s32 %s238, 1
      %p242 = scmp.eq.s32.totalorder %s36, 7
      %p243 = scmp.ne.s32.totalorder %s238, %s240
      %p244 = scmp.eq.s32.totalorder %s36, 0
      %p245 = por %p243, %p244
      %p246 = scmp.ne.s32.totalorder %s238, %s240
      %p247 = scmp.eq.s32.totalorder %s41, 7
      %p248 = por %p246, %p247
      %p249 = scmp.ne.s32.totalorder %s240, %s241
      %p250 = scmp.eq.s32.totalorder %s41, 0
      %p251 = por %p249, %p250
      %p252 = scmp.ne.s32.totalorder %s240, %s241
      %p253 = scmp.eq.s32.totalorder %s42, 7
      %p254 = por %p252, %p253
      %p256 = scmp.ne.s32.totalorder %s241, %s255
      %p257 = scmp.eq.s32.totalorder %s42, 0
      %p258 = por %p256, %p257
      %s260 = sadd.s32 %s259, 1
      %p263 = scmp.eq.s32.totalorder %s36, 7
      %p264 = scmp.ne.s32.totalorder %s259, %s261
      %p265 = scmp.eq.s32.totalorder %s36, 0
      %p266 = por %p264, %p265
      %p267 = scmp.ne.s32.totalorder %s259, %s261
      %p268 = scmp.eq.s32.totalorder %s41, 7
      %p269 = por %p267, %p268
      %p270 = scmp.ne.s32.totalorder %s261, %s262
      %p271 = scmp.eq.s32.totalorder %s41, 0
      %p272 = por %p270, %p271
      %p273 = scmp.ne.s32.totalorder %s261, %s262
      %p274 = scmp.eq.s32.totalorder %s42, 7
      %p275 = por %p273, %p274
      %p277 = scmp.ne.s32.totalorder %s262, %s276
      %p278 = scmp.eq.s32.totalorder %s42, 0
      %p279 = por %p277, %p278
      %s281 = sadd.s32 %s280, 1
      %p284 = scmp.eq.s32.totalorder %s36, 7
      %p285 = scmp.ne.s32.totalorder %s280, %s282
      %p286 = scmp.eq.s32.totalorder %s36, 0
      %p287 = por %p285, %p286
      %p288 = scmp.ne.s32.totalorder %s280, %s282
      %p289 = scmp.eq.s32.totalorder %s41, 7
      %p290 = por %p288, %p289
      %p291 = scmp.ne.s32.totalorder %s282, %s283
      %p292 = scmp.eq.s32.totalorder %s41, 0
      %p293 = por %p291, %p292
      %p294 = scmp.ne.s32.totalorder %s282, %s283
      %p295 = scmp.eq.s32.totalorder %s42, 7
      %p296 = por %p294, %p295
      %p298 = scmp.ne.s32.totalorder %s283, %s297
      %p299 = scmp.eq.s32.totalorder %s42, 0
      %p300 = por %p298, %p299
      %s302 = sadd.s32 %s301, 1
      %p305 = scmp.eq.s32.totalorder %s36, 7
      %p306 = scmp.ne.s32.totalorder %s301, %s303
      %p307 = scmp.eq.s32.totalorder %s36, 0
      %p308 = por %p306, %p307
      %p309 = scmp.ne.s32.totalorder %s301, %s303
      %p310 = scmp.eq.s32.totalorder %s41, 7
      %p311 = por %p309, %p310
      %p312 = scmp.ne.s32.totalorder %s303, %s304
      %p313 = scmp.eq.s32.totalorder %s41, 0
      %p314 = por %p312, %p313
      %p315 = scmp.ne.s32.totalorder %s303, %s304
      %p316 = scmp.eq.s32.totalorder %s42, 7
      %p317 = por %p315, %p316
      %p319 = scmp.ne.s32.totalorder %s304, %s318
      %p320 = scmp.eq.s32.totalorder %s42, 0
      %p321 = por %p319, %p320
      %s323 = sadd.s32 %s322, 1
      %p326 = scmp.eq.s32.totalorder %s36, 7
      %p327 = scmp.ne.s32.totalorder %s322, %s324
      %p328 = scmp.eq.s32.totalorder %s36, 0
      %p329 = por %p327, %p328
      %p330 = scmp.ne.s32.totalorder %s322, %s324
      %p331 = scmp.eq.s32.totalorder %s41, 7
      %p332 = por %p330, %p331
      %p333 = scmp.ne.s32.totalorder %s324, %s325
      %p334 = scmp.eq.s32.totalorder %s41, 0
      %p335 = por %p333, %p334
      %p336 = scmp.ne.s32.totalorder %s324, %s325
      %p337 = scmp.eq.s32.totalorder %s42, 7
      %p338 = por %p336, %p337
      %p340 = scmp.ne.s32.totalorder %s325, %s339
      %p341 = scmp.eq.s32.totalorder %s42, 0
      %p342 = por %p340, %p341
      %s344 = sadd.s32 %s343, 1
      %p347 = scmp.eq.s32.totalorder %s36, 7
      %p348 = scmp.ne.s32.totalorder %s343, %s345
      %p349 = scmp.eq.s32.totalorder %s36, 0
      %p350 = por %p348, %p349
      %p351 = scmp.ne.s32.totalorder %s343, %s345
      %p352 = scmp.eq.s32.totalorder %s41, 7
      %p353 = por %p351, %p352
      %p354 = scmp.ne.s32.totalorder %s345, %s346
      %p355 = scmp.eq.s32.totalorder %s41, 0
      %p356 = por %p354, %p355
      %p357 = scmp.ne.s32.totalorder %s345, %s346
      %p358 = scmp.eq.s32.totalorder %s42, 7
      %p359 = por %p357, %p358
      %p361 = scmp.ne.s32.totalorder %s346, %s360
      %p362 = scmp.eq.s32.totalorder %s42, 0
      %p363 = por %p361, %p362
      %s365 = sadd.s32 %s364, 1
      %p368 = scmp.eq.s32.totalorder %s36, 7
      %p369 = scmp.ne.s32.totalorder %s364, %s366
      %p370 = scmp.eq.s32.totalorder %s36, 0
      %p371 = por %p369, %p370
      %p372 = scmp.ne.s32.totalorder %s364, %s366
      %p373 = scmp.eq.s32.totalorder %s41, 7
      %p374 = por %p372, %p373
      %p375 = scmp.ne.s32.totalorder %s366, %s367
      %p376 = scmp.eq.s32.totalorder %s41, 0
      %p377 = por %p375, %p376
      %p378 = scmp.ne.s32.totalorder %s366, %s367
      %p379 = scmp.eq.s32.totalorder %s42, 7
      %p380 = por %p378, %p379
      %p382 = scmp.ne.s32.totalorder %s367, %s381
      %p383 = scmp.eq.s32.totalorder %s42, 0
      %p384 = por %p382, %p383
      %s386 = sadd.s32 %s385, 1
      %p389 = scmp.eq.s32.totalorder %s36, 7
      %p390 = scmp.ne.s32.totalorder %s385, %s387
      %p391 = scmp.eq.s32.totalorder %s36, 0
      %p392 = por %p390, %p391
      %p393 = scmp.ne.s32.totalorder %s385, %s387
      %p394 = scmp.eq.s32.totalorder %s41, 7
      %p395 = por %p393, %p394
      %p396 = scmp.ne.s32.totalorder %s387, %s388
      %p397 = scmp.eq.s32.totalorder %s41, 0
      %p398 = por %p396, %p397
      %p399 = scmp.ne.s32.totalorder %s387, %s388
      %p400 = scmp.eq.s32.totalorder %s42, 7
      %p401 = por %p399, %p400
      %p403 = scmp.ne.s32.totalorder %s388, %s402
      %p404 = scmp.eq.s32.totalorder %s42, 0
      %p405 = por %p403, %p404
      %s407 = sadd.s32 %s406, 1
      %p410 = scmp.eq.s32.totalorder %s36, 7
      %p411 = scmp.ne.s32.totalorder %s406, %s408
      %p412 = scmp.eq.s32.totalorder %s36, 0
      %p413 = por %p411, %p412
      %p414 = scmp.ne.s32.totalorder %s406, %s408
      %p415 = scmp.eq.s32.totalorder %s41, 7
      %p416 = por %p414, %p415
      %p417 = scmp.ne.s32.totalorder %s408, %s409
      %p418 = scmp.eq.s32.totalorder %s41, 0
      %p419 = por %p417, %p418
      %p420 = scmp.ne.s32.totalorder %s408, %s409
      %p421 = scmp.eq.s32.totalorder %s42, 7
      %p422 = por %p420, %p421
      %p424 = scmp.ne.s32.totalorder %s409, %s423
      %p425 = scmp.eq.s32.totalorder %s42, 0
      %p426 = por %p424, %p425
      %s428 = sadd.s32 %s427, 1
      %p431 = scmp.eq.s32.totalorder %s36, 7
      %p432 = scmp.ne.s32.totalorder %s427, %s429
      %p433 = scmp.eq.s32.totalorder %s36, 0
      %p434 = por %p432, %p433
      %p435 = scmp.ne.s32.totalorder %s427, %s429
      %p436 = scmp.eq.s32.totalorder %s41, 7
      %p437 = por %p435, %p436
      %p438 = scmp.ne.s32.totalorder %s429, %s430
      %p439 = scmp.eq.s32.totalorder %s41, 0
      %p440 = por %p438, %p439
      %p441 = scmp.ne.s32.totalorder %s429, %s430
      %p442 = scmp.eq.s32.totalorder %s42, 7
      %p443 = por %p441, %p442
      %p445 = scmp.ne.s32.totalorder %s430, %s444
      %p446 = scmp.eq.s32.totalorder %s42, 0
      %p447 = por %p445, %p446
      %s449 = sadd.s32 %s448, 1
      %p452 = scmp.eq.s32.totalorder %s36, 7
      %p453 = scmp.ne.s32.totalorder %s448, %s450
      %p454 = scmp.eq.s32.totalorder %s36, 0
      %p455 = por %p453, %p454
      %p456 = scmp.ne.s32.totalorder %s448, %s450
      %p457 = scmp.eq.s32.totalorder %s41, 7
      %p458 = por %p456, %p457
      %p459 = scmp.ne.s32.totalorder %s450, %s451
      %p460 = scmp.eq.s32.totalorder %s41, 0
      %p461 = por %p459, %p460
      %p462 = scmp.ne.s32.totalorder %s450, %s451
      %p463 = scmp.eq.s32.totalorder %s42, 7
      %p464 = por %p462, %p463
      %p466 = scmp.ne.s32.totalorder %s451, %s465
      %p467 = scmp.eq.s32.totalorder %s42, 0
      %p468 = por %p466, %p467
      %s470 = sadd.s32 %s469, 1
      %p473 = scmp.eq.s32.totalorder %s36, 7
      %p474 = scmp.ne.s32.totalorder %s469, %s471
      %p475 = scmp.eq.s32.totalorder %s36, 0
      %p476 = por %p474, %p475
      %p477 = scmp.ne.s32.totalorder %s469, %s471
      %p478 = scmp.eq.s32.totalorder %s41, 7
      %p479 = por %p477, %p478
      %p480 = scmp.ne.s32.totalorder %s471, %s472
      %p481 = scmp.eq.s32.totalorder %s41, 0
      %p482 = por %p480, %p481
      %p483 = scmp.ne.s32.totalorder %s471, %s472
      %p484 = scmp.eq.s32.totalorder %s42, 7
      %p485 = por %p483, %p484
      %p487 = scmp.ne.s32.totalorder %s472, %s486
      %p488 = scmp.eq.s32.totalorder %s42, 0
      %p489 = por %p487, %p488
      %s491 = sadd.s32 %s490, 1
      %p494 = scmp.eq.s32.totalorder %s36, 7
      %p495 = scmp.ne.s32.totalorder %s490, %s492
      %p496 = scmp.eq.s32.totalorder %s36, 0
      %p497 = por %p495, %p496
      %p498 = scmp.ne.s32.totalorder %s490, %s492
      %p499 = scmp.eq.s32.totalorder %s41, 7
      %p500 = por %p498, %p499
      %p501 = scmp.ne.s32.totalorder %s492, %s493
      %p502 = scmp.eq.s32.totalorder %s41, 0
      %p503 = por %p501, %p502
      %p504 = scmp.ne.s32.totalorder %s492, %s493
      %p505 = scmp.eq.s32.totalorder %s42, 7
      %p506 = por %p504, %p505
      %p508 = scmp.ne.s32.totalorder %s493, %s507
      %p509 = scmp.eq.s32.totalorder %s42, 0
      %p510 = por %p508, %p509
      %s512 = sadd.s32 %s511, 1
      %p515 = scmp.eq.s32.totalorder %s36, 7
      %p516 = scmp.ne.s32.totalorder %s511, %s513
      %p517 = scmp.eq.s32.totalorder %s36, 0
      %p518 = por %p516, %p517
      %p519 = scmp.ne.s32.totalorder %s511, %s513
      %p520 = scmp.eq.s32.totalorder %s41, 7
      %p521 = por %p519, %p520
      %p522 = scmp.ne.s32.totalorder %s513, %s514
      %p523 = scmp.eq.s32.totalorder %s41, 0
      %p524 = por %p522, %p523
      %p525 = scmp.ne.s32.totalorder %s513, %s514
      %p526 = scmp.eq.s32.totalorder %s42, 7
      %p527 = por %p525, %p526
      %p529 = scmp.ne.s32.totalorder %s514, %s528
      %p530 = scmp.eq.s32.totalorder %s42, 0
      %p531 = por %p529, %p530
      %s533 = sadd.s32 %s532, 1
      %p536 = scmp.eq.s32.totalorder %s36, 7
      %p537 = scmp.ne.s32.totalorder %s532, %s534
      %p538 = scmp.eq.s32.totalorder %s36, 0
      %p539 = por %p537, %p538
      %p540 = scmp.ne.s32.totalorder %s532, %s534
      %p541 = scmp.eq.s32.totalorder %s41, 7
      %p542 = por %p540, %p541
      %p543 = scmp.ne.s32.totalorder %s534, %s535
      %p544 = scmp.eq.s32.totalorder %s41, 0
      %p545 = por %p543, %p544
      %p546 = scmp.ne.s32.totalorder %s534, %s535
      %p547 = scmp.eq.s32.totalorder %s42, 7
      %p548 = por %p546, %p547
      %p550 = scmp.ne.s32.totalorder %s535, %s549
      %p551 = scmp.eq.s32.totalorder %s42, 0
      %p552 = por %p550, %p551
      %s553 = ssub.s32 %s36, %s43
      %p554 = scmp.eq.s32.totalorder %s553, 0
      %s556 = sadd.s32 %s555, 1
      %s557 = scalar_select %p554, %s555, %s556
      %p560 = pneg %p554
      %p561 = scmp.eq.s32.totalorder %s36, 7
      %p562 = por %p560, %p561
      %p563 = scmp.ne.s32.totalorder %s555, %s558
      %p564 = scmp.eq.s32.totalorder %s36, 0
      %p565 = por %p563, %p564
      %p566 = scmp.ne.s32.totalorder %s555, %s558
      %p567 = scmp.eq.s32.totalorder %s41, 7
      %p568 = por %p566, %p567
      %p569 = scmp.ne.s32.totalorder %s558, %s559
      %p570 = scmp.eq.s32.totalorder %s41, 0
      %p571 = por %p569, %p570
      %p572 = scmp.ne.s32.totalorder %s558, %s559
      %p573 = scmp.eq.s32.totalorder %s42, 7
      %p574 = por %p572, %p573
      %p576 = scmp.ne.s32.totalorder %s559, %s575
      %p577 = scmp.eq.s32.totalorder %s42, 0
      %p578 = por %p576, %p577
      %p579 = scmp.le.s32.totalorder 1, %s36
      %p580 = scmp.lt.s32.totalorder %s36, 9
      %p581 = pnand %p579, %p580
      %p582 = pneg %p581
      // Predicated region
      $region9: #{tft_forward.1} parent=5 // pred_check
        _
      $region10: #{tft_forward.1} parent=5 // pred_check_branch
        %584 = sbr.rel (%p581) target = $region12
      $region11: #{tft_forward.1} parent=5 // pred_region
        %s585 = ssub.s32 %s36, 1
        // Predicated region
        $region13: #{tft_forward.1} parent=11 // pred_check
          %p586 = pneg %p83
        $region14: #{tft_forward.1} parent=11 // pred_check_branch
          %588 = sbr.rel (%p586) target = $region16
        $region15: #{tft_forward.1} parent=11 // pred_region
          _
        $region16: #{tft_forward.1} parent=11 // pred_fallthru
          _
        // Predicated region
        $region17: #{tft_forward.1} parent=11 // pred_check
          %p589 = pneg %p104
        $region18: #{tft_forward.1} parent=11 // pred_check_branch
          %591 = sbr.rel (%p589) target = $region20
        $region19: #{tft_forward.1} parent=11 // pred_region
          _
        $region20: #{tft_forward.1} parent=11 // pred_fallthru
          _
        // Predicated region
        $region21: #{tft_forward.1} parent=11 // pred_check
          %p592 = pneg %p125
        $region22: #{tft_forward.1} parent=11 // pred_check_branch
          %594 = sbr.rel (%p592) target = $region24
        $region23: #{tft_forward.1} parent=11 // pred_region
          _
        $region24: #{tft_forward.1} parent=11 // pred_fallthru
          _
        // Predicated region
        $region25: #{tft_forward.1} parent=11 // pred_check
          %p595 = pneg %p146
        $region26: #{tft_forward.1} parent=11 // pred_check_branch
          %597 = sbr.rel (%p595) target = $region28
        $region27: #{tft_forward.1} parent=11 // pred_region
          _
        $region28: #{tft_forward.1} parent=11 // pred_fallthru
          _
        // Predicated region
        $region29: #{tft_forward.1} parent=11 // pred_check
          %p598 = pneg %p167
        $region30: #{tft_forward.1} parent=11 // pred_check_branch
          %600 = sbr.rel (%p598) target = $region32
        $region31: #{tft_forward.1} parent=11 // pred_region
          %s602 = ssub.s32 4096, 4096
          %603 = vsyncadd [#allocation3], %s602
          %s604 = sshll.u32 [#allocation2], 4
          %s605 = int_to_ptr.vmem [resolvable:$true] %s604
          %610 = dma.hbm_to_vmem [thread:$0]  %s5, 4096, %s605, [#allocation3], 128, 128, 8
        $region32: #{tft_forward.1} parent=11 // pred_fallthru
          _
        // Predicated region
        $region33: #{tft_forward.1} parent=11 // pred_check
          %p611 = pneg %p188
        $region34: #{tft_forward.1} parent=11 // pred_check_branch
          %613 = sbr.rel (%p611) target = $region36
        $region35: #{tft_forward.1} parent=11 // pred_region
          _
        $region36: #{tft_forward.1} parent=11 // pred_fallthru
          _
        // Predicated region
        $region37: #{tft_forward.1} parent=11 // pred_check
          %p614 = pneg %p209
        $region38: #{tft_forward.1} parent=11 // pred_check_branch
          %616 = sbr.rel (%p614) target = $region40
        $region39: #{tft_forward.1} parent=11 // pred_region
          %s618 = ssub.s32 2048, 2048
          %619 = vsyncadd [#allocation5], %s618
          %s620 = sshll.u32 [#allocation4], 4
          %s621 = int_to_ptr.vmem [resolvable:$true] %s620
          %626 = dma.hbm_to_vmem [thread:$0]  %s7, 2048, %s621, [#allocation5], 64, 64, 4
        $region40: #{tft_forward.1} parent=11 // pred_fallthru
          _
        // Predicated region
        $region41: #{tft_forward.1} parent=11 // pred_check
          %p627 = pneg %p230
        $region42: #{tft_forward.1} parent=11 // pred_check_branch
          %629 = sbr.rel (%p627) target = $region44
        $region43: #{tft_forward.1} parent=11 // pred_region
          %s631 = ssub.s32 4096, 4096
          %632 = vsyncadd [#allocation5], %s631
          %s633 = sshll.u32 [#allocation6], 4
          %s634 = int_to_ptr.vmem [resolvable:$true] %s633
          %639 = dma.hbm_to_vmem [thread:$0]  %s8, 4096, %s634, [#allocation5], 128, 128, 8
        $region44: #{tft_forward.1} parent=11 // pred_fallthru
          _
        // Predicated region
        $region45: #{tft_forward.1} parent=11 // pred_check
          %p640 = pneg %p251
        $region46: #{tft_forward.1} parent=11 // pred_check_branch
          %642 = sbr.rel (%p640) target = $region48
        $region47: #{tft_forward.1} parent=11 // pred_region
          %s644 = ssub.s32 4096, 4096
          %645 = vsyncadd [#allocation8], %s644
          %s646 = sshll.u32 [#allocation7], 4
          %s647 = int_to_ptr.vmem [resolvable:$true] %s646
          %652 = dma.hbm_to_vmem [thread:$0]  %s9, 4096, %s647, [#allocation8], 64, 64, 4
        $region48: #{tft_forward.1} parent=11 // pred_fallthru
          _
        // Predicated region
        $region49: #{tft_forward.1} parent=11 // pred_check
          %p653 = pneg %p272
        $region50: #{tft_forward.1} parent=11 // pred_check_branch
          %655 = sbr.rel (%p653) target = $region52
        $region51: #{tft_forward.1} parent=11 // pred_region
          %s657 = ssub.s32 2048, 2048
          %658 = vsyncadd [#allocation8], %s657
          %s659 = sshll.u32 [#allocation9], 4
          %s660 = int_to_ptr.vmem [resolvable:$true] %s659
          %665 = dma.hbm_to_vmem [thread:$0]  %s10, 2048, %s660, [#allocation8], 64, 64, 4
        $region52: #{tft_forward.1} parent=11 // pred_fallthru
          _
        // Predicated region
        $region53: #{tft_forward.1} parent=11 // pred_check
          %p666 = pneg %p293
        $region54: #{tft_forward.1} parent=11 // pred_check_branch
          %668 = sbr.rel (%p666) target = $region56
        $region55: #{tft_forward.1} parent=11 // pred_region
          %s670 = ssub.s32 6144, 6144
          %671 = vsyncadd [#allocation11], %s670
          %s672 = sshll.u32 [#allocation10], 4
          %s673 = int_to_ptr.vmem [resolvable:$true] %s672
          %678 = dma.hbm_to_vmem [thread:$0]  %s11, 6144, %s673, [#allocation11], 192, 192, 12
        $region56: #{tft_forward.1} parent=11 // pred_fallthru
          _
        // Predicated region
        $region57: #{tft_forward.1} parent=11 // pred_check
          %p679 = pneg %p314
        $region58: #{tft_forward.1} parent=11 // pred_check_branch
          %681 = sbr.rel (%p679) target = $region60
        $region59: #{tft_forward.1} parent=11 // pred_region
          _
        $region60: #{tft_forward.1} parent=11 // pred_fallthru
          _
        // Predicated region
        $region61: #{tft_forward.1} parent=11 // pred_check
          %p682 = pneg %p335
        $region62: #{tft_forward.1} parent=11 // pred_check_branch
          %684 = sbr.rel (%p682) target = $region64
        $region63: #{tft_forward.1} parent=11 // pred_region
          _
        $region64: #{tft_forward.1} parent=11 // pred_fallthru
          _
        // Predicated region
        $region65: #{tft_forward.1} parent=11 // pred_check
          %p685 = pneg %p356
        $region66: #{tft_forward.1} parent=11 // pred_check_branch
          %687 = sbr.rel (%p685) target = $region68
        $region67: #{tft_forward.1} parent=11 // pred_region
          _
        $region68: #{tft_forward.1} parent=11 // pred_fallthru
          _
        // Predicated region
        $region69: #{tft_forward.1} parent=11 // pred_check
          %p688 = pneg %p377
        $region70: #{tft_forward.1} parent=11 // pred_check_branch
          %690 = sbr.rel (%p688) target = $region72
        $region71: #{tft_forward.1} parent=11 // pred_region
          _
        $region72: #{tft_forward.1} parent=11 // pred_fallthru
          _
        // Predicated region
        $region73: #{tft_forward.1} parent=11 // pred_check
          %p691 = pneg %p398
        $region74: #{tft_forward.1} parent=11 // pred_check_branch
          %693 = sbr.rel (%p691) target = $region76
        $region75: #{tft_forward.1} parent=11 // pred_region
          _
        $region76: #{tft_forward.1} parent=11 // pred_fallthru
          _
        // Predicated region
        $region77: #{tft_forward.1} parent=11 // pred_check
          %p694 = pneg %p419
        $region78: #{tft_forward.1} parent=11 // pred_check_branch
          %696 = sbr.rel (%p694) target = $region80
        $region79: #{tft_forward.1} parent=11 // pred_region
          %s698 = ssub.s32 4096, 4096
          %699 = vsyncadd [#allocation11], %s698
          %s700 = sshll.u32 [#allocation12], 4
          %s701 = int_to_ptr.vmem [resolvable:$true] %s700
          %706 = dma.hbm_to_vmem [thread:$0]  %s17, 4096, %s701, [#allocation11], 128, 128, 8
        $region80: #{tft_forward.1} parent=11 // pred_fallthru
          _
        // Predicated region
        $region81: #{tft_forward.1} parent=11 // pred_check
          %p707 = pneg %p440
        $region82: #{tft_forward.1} parent=11 // pred_check_branch
          %709 = sbr.rel (%p707) target = $region84
        $region83: #{tft_forward.1} parent=11 // pred_region
          %s711 = ssub.s32 4096, 4096
          %712 = vsyncadd [#allocation14], %s711
          %s713 = sshll.u32 [#allocation13], 4
          %s714 = int_to_ptr.vmem [resolvable:$true] %s713
          %719 = dma.hbm_to_vmem [thread:$0]  %s18, 4096, %s714, [#allocation14], 64, 64, 4
        $region84: #{tft_forward.1} parent=11 // pred_fallthru
          _
        // Predicated region
        $region85: #{tft_forward.1} parent=11 // pred_check
          %p720 = pneg %p461
        $region86: #{tft_forward.1} parent=11 // pred_check_branch
          %722 = sbr.rel (%p720) target = $region88
        $region87: #{tft_forward.1} parent=11 // pred_region
          %s724 = ssub.s32 2048, 2048
          %725 = vsyncadd [#allocation14], %s724
          %s726 = sshll.u32 [#allocation15], 4
          %s727 = int_to_ptr.vmem [resolvable:$true] %s726
          %732 = dma.hbm_to_vmem [thread:$0]  %s19, 2048, %s727, [#allocation14], 64, 64, 4
        $region88: #{tft_forward.1} parent=11 // pred_fallthru
          _
        // Predicated region
        $region89: #{tft_forward.1} parent=11 // pred_check
          %p733 = pneg %p482
        $region90: #{tft_forward.1} parent=11 // pred_check_branch
          %735 = sbr.rel (%p733) target = $region92
        $region91: #{tft_forward.1} parent=11 // pred_region
          %s737 = ssub.s32 6144, 6144
          %738 = vsyncadd [#allocation17], %s737
          %s739 = sshll.u32 [#allocation16], 4
          %s740 = int_to_ptr.vmem [resolvable:$true] %s739
          %745 = dma.hbm_to_vmem [thread:$0]  %s20, 6144, %s740, [#allocation17], 192, 192, 12
        $region92: #{tft_forward.1} parent=11 // pred_fallthru
          _
        // Predicated region
        $region93: #{tft_forward.1} parent=11 // pred_check
          %p746 = pneg %p503
        $region94: #{tft_forward.1} parent=11 // pred_check_branch
          %748 = sbr.rel (%p746) target = $region96
        $region95: #{tft_forward.1} parent=11 // pred_region
          _
        $region96: #{tft_forward.1} parent=11 // pred_fallthru
          _
        // Predicated region
        $region97: #{tft_forward.1} parent=11 // pred_check
          %p749 = pneg %p524
        $region98: #{tft_forward.1} parent=11 // pred_check_branch
          %751 = sbr.rel (%p749) target = $region100
        $region99: #{tft_forward.1} parent=11 // pred_region
          _
        $region100: #{tft_forward.1} parent=11 // pred_fallthru
          _
        // Predicated region
        $region101: #{tft_forward.1} parent=11 // pred_check
          %p752 = pneg %p545
        $region102: #{tft_forward.1} parent=11 // pred_check_branch
          %754 = sbr.rel (%p752) target = $region104
        $region103: #{tft_forward.1} parent=11 // pred_region
          _
        $region104: #{tft_forward.1} parent=11 // pred_fallthru
          _
      $region12: #{tft_forward.1} parent=5 // pred_fallthru
        _
      %p755 = scmp.lt.s32.totalorder %s36, 8
      // Predicated region
      $region105: #{tft_forward.1} parent=5 // pred_check
        %p756 = pneg %p755
      $region106: #{tft_forward.1} parent=5 // pred_check_branch
        %758 = sbr.rel (%p756) target = $region108
      $region107: #{tft_forward.1} parent=5 // pred_region
        // Predicated region
        $region109: #{tft_forward.1} parent=107 // pred_check
          %p759 = pneg %p56
        $region110: #{tft_forward.1} parent=107 // pred_check_branch
          %761 = sbr.rel (%p759) target = $region112
        $region111: #{tft_forward.1} parent=107 // pred_region
          %p762 = scmp.lt.s32.totalorder %s36, 7
          %s763 = scalar_select %p762, %s36, 7
          %s764 = smul.addr %s763, 2
          %s765 = scalar_lea.vmem %s0, %s764
        $region112: #{tft_forward.1} parent=107 // pred_fallthru
          _
      $region108: #{tft_forward.1} parent=5 // pred_fallthru
        _
      %p766 = scmp.le.s32.totalorder 1, %s36
      %p767 = scmp.lt.s32.totalorder %s36, 9
      %p768 = pnand %p766, %p767
      %p769 = pneg %p768
      // Predicated region
      $region113: #{tft_forward.1} parent=5 // pred_check
        _
      $region114: #{tft_forward.1} parent=5 // pred_check_branch
        %771 = sbr.rel (%p768) target = $region116
      $region115: #{tft_forward.1} parent=5 // pred_region
        %s772 = ssub.s32 %s36, 1
        // Predicated region
        $region117: #{tft_forward.1} parent=115 // pred_check
          %p773 = pneg %p167
        $region118: #{tft_forward.1} parent=115 // pred_check_branch
          %775 = sbr.rel (%p773) target = $region120
        $region119: #{tft_forward.1} parent=115 // pred_region
          %776 = dma.done [#allocation3], 4096
        $region120: #{tft_forward.1} parent=115 // pred_fallthru
          _
        // Predicated region
        $region121: #{tft_forward.1} parent=115 // pred_check
          %p777 = pneg %p209
        $region122: #{tft_forward.1} parent=115 // pred_check_branch
          %779 = sbr.rel (%p777) target = $region124
        $region123: #{tft_forward.1} parent=115 // pred_region
          %780 = dma.done [#allocation5], 2048
        $region124: #{tft_forward.1} parent=115 // pred_fallthru
          _
        // Predicated region
        $region125: #{tft_forward.1} parent=115 // pred_check
          %p781 = pneg %p230
        $region126: #{tft_forward.1} parent=115 // pred_check_branch
          %783 = sbr.rel (%p781) target = $region128
        $region127: #{tft_forward.1} parent=115 // pred_region
          %784 = dma.done [#allocation5], 4096
        $region128: #{tft_forward.1} parent=115 // pred_fallthru
          _
        // Predicated region
        $region129: #{tft_forward.1} parent=115 // pred_check
          %p785 = pneg %p251
        $region130: #{tft_forward.1} parent=115 // pred_check_branch
          %787 = sbr.rel (%p785) target = $region132
        $region131: #{tft_forward.1} parent=115 // pred_region
          %788 = dma.done [#allocation8], 4096
        $region132: #{tft_forward.1} parent=115 // pred_fallthru
          _
        // Predicated region
        $region133: #{tft_forward.1} parent=115 // pred_check
          %p789 = pneg %p272
        $region134: #{tft_forward.1} parent=115 // pred_check_branch
          %791 = sbr.rel (%p789) target = $region136
        $region135: #{tft_forward.1} parent=115 // pred_region
          %792 = dma.done [#allocation8], 2048
        $region136: #{tft_forward.1} parent=115 // pred_fallthru
          _
        // Predicated region
        $region137: #{tft_forward.1} parent=115 // pred_check
          %p793 = pneg %p293
        $region138: #{tft_forward.1} parent=115 // pred_check_branch
          %795 = sbr.rel (%p793) target = $region140
        $region139: #{tft_forward.1} parent=115 // pred_region
          %796 = dma.done [#allocation11], 6144
        $region140: #{tft_forward.1} parent=115 // pred_fallthru
          _
        // Predicated region
        $region141: #{tft_forward.1} parent=115 // pred_check
          %p797 = pneg %p419
        $region142: #{tft_forward.1} parent=115 // pred_check_branch
          %799 = sbr.rel (%p797) target = $region144
        $region143: #{tft_forward.1} parent=115 // pred_region
          %800 = dma.done [#allocation11], 4096
        $region144: #{tft_forward.1} parent=115 // pred_fallthru
          _
        // Predicated region
        $region145: #{tft_forward.1} parent=115 // pred_check
          %p801 = pneg %p440
        $region146: #{tft_forward.1} parent=115 // pred_check_branch
          %803 = sbr.rel (%p801) target = $region148
        $region147: #{tft_forward.1} parent=115 // pred_region
          %804 = dma.done [#allocation14], 4096
        $region148: #{tft_forward.1} parent=115 // pred_fallthru
          _
        // Predicated region
        $region149: #{tft_forward.1} parent=115 // pred_check
          %p805 = pneg %p461
        $region150: #{tft_forward.1} parent=115 // pred_check_branch
          %807 = sbr.rel (%p805) target = $region152
        $region151: #{tft_forward.1} parent=115 // pred_region
          %808 = dma.done [#allocation14], 2048
        $region152: #{tft_forward.1} parent=115 // pred_fallthru
          _
        // Predicated region
        $region153: #{tft_forward.1} parent=115 // pred_check
          %p809 = pneg %p482
        $region154: #{tft_forward.1} parent=115 // pred_check_branch
          %811 = sbr.rel (%p809) target = $region156
        $region155: #{tft_forward.1} parent=115 // pred_region
          %812 = dma.done [#allocation17], 6144
        $region156: #{tft_forward.1} parent=115 // pred_fallthru
          _
        %p813 = scmp.lt.s32.totalorder %s41, 7
        %s814 = scalar_select %p813, %s41, 7
        %s815 = smul.addr %s814, 2
        %s816 = scalar_lea.vmem %s0, %s815
        %p817 = pneg %p62
        %p818 = pneg %p59
        %p819 = pneg %p83
        %p820 = pneg %p80
        %p821 = pneg %p104
        %p822 = pneg %p101
        %p823 = pneg %p125
        %p824 = pneg %p122
        %p825 = pneg %p146
        %p826 = pneg %p143
        %p827 = pneg %p167
        %p828 = pneg %p164
        %p829 = pneg %p188
        %p830 = pneg %p185
        %p831 = pneg %p209
        %p832 = pneg %p206
        %p833 = pneg %p230
        %p834 = pneg %p227
        %p835 = pneg %p251
        %p836 = pneg %p248
        %p837 = pneg %p272
        %p838 = pneg %p269
        %p839 = pneg %p293
        %p840 = pneg %p290
        %p841 = pneg %p314
        %p842 = pneg %p311
        %p843 = pneg %p335
        %p844 = pneg %p332
        %p845 = pneg %p356
        %p846 = pneg %p353
        %p847 = pneg %p377
        %p848 = pneg %p374
        %p849 = pneg %p398
        %p850 = pneg %p395
        %p851 = pneg %p419
        %p852 = pneg %p416
        %p853 = pneg %p440
        %p854 = pneg %p437
        %p855 = pneg %p461
        %p856 = pneg %p458
        %p857 = pneg %p482
        %p858 = pneg %p479
        %p859 = pneg %p503
        %p860 = pneg %p500
        %p861 = pneg %p524
        %p862 = pneg %p521
        %p863 = pneg %p545
        %p864 = pneg %p542
        %p865 = pneg %p571
        %p866 = pneg %p568
        %p867 = scmp.lt.s32.totalorder %s41, 7
        %s868 = scalar_select %p867, %s41, 7
        %s869 = smul.addr %s868, 2
        %s870 = scalar_lea.vmem %s24, %s869
        %p871 = scmp.lt.s32.totalorder %s41, 7
        %s872 = scalar_select %p871, %s41, 7
        %s873 = smul.addr %s872, 2
        %s874 = scalar_lea.vmem %s0, %s873
        %p875 = scmp.lt.s32.totalorder %s41, 7
        %s876 = scalar_select %p875, %s41, 7
        %s877 = smul.addr %s876, 2
        %s878 = scalar_lea.vmem %s24, %s877
        %v880 = vld [vmem:[%s874] sm:$0x3]
        %v881 = vld [vmem:[%s13] sm:$0xf]
        %v882 = vld [vmem:[%s13 + $0x4] sm:$0xf]
        %v883 = vld [vmem:[%s12] sm:$0x1]
        %v884 = vpack.c.bf16 %v880, %v880
        %v886 = vlaneseq
        %v887 = vshrl.u32 %v886, 7
        %v888 = vsub.s32 0, %v887
        %v889 = vrot.slane %v883, %v888
        %v893 = vunpack.c.l.b16 %v881
        %v894 = vunpack.c.l.b16 %v882
        %v895 = vpack.c.b16 %v894, %v893
        %vm897 = vcmask 130048
        %v899 = vsel %vm897, %v884, 0
        %901 = vmatprep.subr.bf16.mxu0 0
        %902 = vmatpush1.bf16.msra.mxu0 %v895
        %903 = vmatprep.subr.bf16.mxu0 0
        %904 = vmatpush1.bf16.msra.mxu0 0
        %905 = vmatprep.subr.bf16.mxu0 0
        %906 = vmatpush1.bf16.msra.mxu0 0
        %907 = vmatprep.subr.bf16.mxu0 0
        %908 = vmatpush1.bf16.msra.mxu0 0
        %909 = vmatprep.subr.bf16.mxu0 0
        %910 = vmatpush1.bf16.msra.mxu0 0
        %911 = vmatprep.subr.bf16.mxu0 0
        %912 = vmatpush1.bf16.msra.mxu0 0
        %913 = vmatprep.subr.bf16.mxu0 0
        %914 = vmatpush1.bf16.msra.mxu0 0
        %915 = vmatprep.subr.bf16.mxu0 0
        %916 = vmatpush1.bf16.msra.mxu0 0
        %917 = vmatprep.subr.bf16.mxu0 0
        %918 = vmatpush1.bf16.msra.mxu0 0
        %919 = vmatprep.subr.bf16.mxu0 0
        %920 = vmatpush1.bf16.msra.mxu0 0
        %921 = vmatprep.subr.bf16.mxu0 0
        %922 = vmatpush1.bf16.msra.mxu0 0
        %923 = vmatprep.subr.bf16.mxu0 0
        %924 = vmatpush1.bf16.msra.mxu0 0
        %925 = vmatprep.subr.bf16.mxu0 0
        %926 = vmatpush1.bf16.msra.mxu0 0
        %927 = vmatprep.subr.bf16.mxu0 0
        %928 = vmatpush1.bf16.msra.mxu0 0
        %929 = vmatprep.subr.bf16.mxu0 0
        %930 = vmatpush1.bf16.msra.mxu0 0
        %931 = vmatprep.subr.bf16.mxu0 0
        %932 = vmatpush1.bf16.msra.mxu0 0
        %933 = vmatprep.mubr.bf16.mxu0 0
        %934 = vmatmul.mubr.bf16.gmra.mrb[0].mxu0 %v899
        %v935 = vpop.f32.mrb[0].mxu0
        %v936 = vadd.f32 %v889, %v935
        %v937 = vpop.f32.mrb[0].mxu0
        %v938 = vpop.f32.mrb[0].mxu0
        %v939 = vpop.f32.mrb[0].mxu0
        %940 = vdwg.mxu0
        %v941 = vld [vmem:[#allocation16] sm:$0xff]
        %v942 = vld [vmem:[#allocation16 + $0x8] sm:$0xf]
        %v943 = vld [vmem:[#allocation16 + $0xc] sm:$0xff]
        %v944 = vld [vmem:[#allocation16 + $0x14] sm:$0xf]
        %v945 = vld [vmem:[#allocation16 + $0x18] sm:$0xff]
        %v946 = vld [vmem:[#allocation16 + $0x20] sm:$0xf]
        %v947 = vld [vmem:[#allocation16 + $0x24] sm:$0xff]
        %v948 = vld [vmem:[#allocation16 + $0x2c] sm:$0xf]
        %v949 = vld [vmem:[#allocation16 + $0x30] sm:$0xff]
        %v950 = vld [vmem:[#allocation16 + $0x38] sm:$0xf]
        %v951 = vld [vmem:[#allocation16 + $0x3c] sm:$0xff]
        %v952 = vld [vmem:[#allocation16 + $0x44] sm:$0xf]
        %v953 = vld [vmem:[#allocation16 + $0x48] sm:$0xff]
        %v954 = vld [vmem:[#allocation16 + $0x50] sm:$0xf]
        %v955 = vld [vmem:[#allocation16 + $0x54] sm:$0xff]
        %v956 = vld [vmem:[#allocation16 + $0x5c] sm:$0xf]
        %v957 = vld [vmem:[#allocation16 + $0x60] sm:$0xff]
        %v958 = vld [vmem:[#allocation16 + $0x68] sm:$0xf]
        %v959 = vld [vmem:[#allocation16 + $0x6c] sm:$0xff]
        %v960 = vld [vmem:[#allocation16 + $0x74] sm:$0xf]
        %v961 = vld [vmem:[#allocation16 + $0x78] sm:$0xff]
        %v962 = vld [vmem:[#allocation16 + $0x80] sm:$0xf]
        %v963 = vld [vmem:[#allocation16 + $0x84] sm:$0xff]
        %v964 = vld [vmem:[#allocation16 + $0x8c] sm:$0xf]
        %v965 = vld [vmem:[#allocation16 + $0x90] sm:$0xff]
        %v966 = vld [vmem:[#allocation16 + $0x98] sm:$0xf]
        %v967 = vld [vmem:[#allocation16 + $0x9c] sm:$0xff]
        %v968 = vld [vmem:[#allocation16 + $0xa4] sm:$0xf]
        %v969 = vld [vmem:[#allocation16 + $0xa8] sm:$0xff]
        %v970 = vld [vmem:[#allocation16 + $0xb0] sm:$0xf]
        %v971 = vld [vmem:[#allocation16 + $0xb4] sm:$0xff]
        %v972 = vld [vmem:[#allocation16 + $0xbc] sm:$0xf]
        %v973 = vld [vmem:[%s15] sm:$0x7]
        %v974 = vld [vmem:[#allocation15] sm:$0xf]
        %v975 = vld [vmem:[#allocation15 + $0x4] sm:$0xf]
        %v976 = vld [vmem:[#allocation15 + $0x8] sm:$0xf]
        %v977 = vld [vmem:[#allocation15 + $0xc] sm:$0xf]
        %v978 = vld [vmem:[#allocation15 + $0x10] sm:$0xf]
        %v979 = vld [vmem:[#allocation15 + $0x14] sm:$0xf]
        %v980 = vld [vmem:[#allocation15 + $0x18] sm:$0xf]
        %v981 = vld [vmem:[#allocation15 + $0x1c] sm:$0xf]
        %v982 = vld [vmem:[#allocation15 + $0x20] sm:$0xf]
        %v983 = vld [vmem:[#allocation15 + $0x24] sm:$0xf]
        %v984 = vld [vmem:[#allocation15 + $0x28] sm:$0xf]
        %v985 = vld [vmem:[#allocation15 + $0x2c] sm:$0xf]
        %v986 = vld [vmem:[#allocation15 + $0x30] sm:$0xf]
        %v987 = vld [vmem:[#allocation15 + $0x34] sm:$0xf]
        %v988 = vld [vmem:[#allocation15 + $0x38] sm:$0xf]
        %v989 = vld [vmem:[#allocation15 + $0x3c] sm:$0xf]
        %v990 = vld [vmem:[#allocation12] sm:$0xff]
        %v991 = vld [vmem:[#allocation12 + $0x8] sm:$0xff]
        %v992 = vld [vmem:[#allocation12 + $0x10] sm:$0xff]
        %v993 = vld [vmem:[#allocation12 + $0x18] sm:$0xff]
        %v994 = vld [vmem:[#allocation12 + $0x20] sm:$0xff]
        %v995 = vld [vmem:[#allocation12 + $0x28] sm:$0xff]
        %v996 = vld [vmem:[#allocation12 + $0x30] sm:$0xff]
        %v997 = vld [vmem:[#allocation12 + $0x38] sm:$0xff]
        %v998 = vld [vmem:[#allocation12 + $0x40] sm:$0xff]
        %v999 = vld [vmem:[#allocation12 + $0x48] sm:$0xff]
        %v1000 = vld [vmem:[#allocation12 + $0x50] sm:$0xff]
        %v1001 = vld [vmem:[#allocation12 + $0x58] sm:$0xff]
        %v1002 = vld [vmem:[#allocation12 + $0x60] sm:$0xff]
        %v1003 = vld [vmem:[#allocation12 + $0x68] sm:$0xff]
        %v1004 = vld [vmem:[#allocation12 + $0x70] sm:$0xff]
        %v1005 = vld [vmem:[#allocation12 + $0x78] sm:$0xff]
        %v1006 = vld [vmem:[%s14] sm:$0x3]
        %v1007 = vld [vmem:[#allocation13] sm:$0xf]
        %v1008 = vld [vmem:[#allocation13 + $0x4] sm:$0xf]
        %v1009 = vld [vmem:[#allocation13 + $0x8] sm:$0xf]
        %v1010 = vld [vmem:[#allocation13 + $0xc] sm:$0xf]
        %v1011 = vld [vmem:[#allocation13 + $0x10] sm:$0xf]
        %v1012 = vld [vmem:[#allocation13 + $0x14] sm:$0xf]
        %v1013 = vld [vmem:[#allocation13 + $0x18] sm:$0xf]
        %v1014 = vld [vmem:[#allocation13 + $0x1c] sm:$0xf]
        %v1015 = vld [vmem:[#allocation13 + $0x20] sm:$0xf]
        %v1016 = vld [vmem:[#allocation13 + $0x24] sm:$0xf]
        %v1017 = vld [vmem:[#allocation13 + $0x28] sm:$0xf]
        %v1018 = vld [vmem:[#allocation13 + $0x2c] sm:$0xf]
        %v1019 = vld [vmem:[#allocation13 + $0x30] sm:$0xf]
        %v1020 = vld [vmem:[#allocation13 + $0x34] sm:$0xf]
        %v1021 = vld [vmem:[#allocation13 + $0x38] sm:$0xf]
        %v1022 = vld [vmem:[#allocation13 + $0x3c] sm:$0xf]
        %v1023 = vld [vmem:[#allocation13 + $0x40] sm:$0xf]
        %v1024 = vld [vmem:[#allocation13 + $0x44] sm:$0xf]
        %v1025 = vld [vmem:[#allocation13 + $0x48] sm:$0xf]
        %v1026 = vld [vmem:[#allocation13 + $0x4c] sm:$0xf]
        %v1027 = vld [vmem:[#allocation13 + $0x50] sm:$0xf]
        %v1028 = vld [vmem:[#allocation13 + $0x54] sm:$0xf]
        %v1029 = vld [vmem:[#allocation13 + $0x58] sm:$0xf]
        %v1030 = vld [vmem:[#allocation13 + $0x5c] sm:$0xf]
        %v1031 = vld [vmem:[#allocation13 + $0x60] sm:$0xf]
        %v1032 = vld [vmem:[#allocation13 + $0x64] sm:$0xf]
        %v1033 = vld [vmem:[#allocation13 + $0x68] sm:$0xf]
        %v1034 = vld [vmem:[#allocation13 + $0x6c] sm:$0xf]
        %v1035 = vld [vmem:[#allocation13 + $0x70] sm:$0xf]
        %v1036 = vld [vmem:[#allocation13 + $0x74] sm:$0xf]
        %v1037 = vld [vmem:[#allocation13 + $0x78] sm:$0xf]
        %v1038 = vld [vmem:[#allocation13 + $0x7c] sm:$0xf]
        %v1039 = vld [vmem:[%s16] sm:$0x3f]
        %v1040 = vpack.c.bf16 %v936, %v936
        %v1042 = vlaneseq
        %v1043 = vshrl.u32 %v1042, 7
        %v1044 = vsub.s32 0, %v1043
        %v1045 = vrot.slane %v973, %v1044
        %v1046 = vlaneseq
        %v1047 = vshrl.u32 %v1046, 7
        %v1048 = vsub.s32 1, %v1047
        %v1049 = vrot.slane %v973, %v1048
        %v1050 = vlaneseq
        %v1051 = vshrl.u32 %v1050, 7
        %v1052 = vsub.s32 2, %v1051
        %v1053 = vrot.slane %v973, %v1052
        %v1089 = vunpack.c.l.b16 %v941
        %v1090 = vunpack.c.h.b16 %v941
        %v1091 = vunpack.c.l.b16 %v942
        %v1092 = vunpack.c.l.b16 %v943
        %v1093 = vunpack.c.h.b16 %v943
        %v1094 = vunpack.c.l.b16 %v944
        %v1095 = vunpack.c.l.b16 %v945
        %v1096 = vunpack.c.h.b16 %v945
        %v1097 = vunpack.c.l.b16 %v946
        %v1098 = vunpack.c.l.b16 %v947
        %v1099 = vunpack.c.h.b16 %v947
        %v1100 = vunpack.c.l.b16 %v948
        %v1101 = vunpack.c.l.b16 %v949
        %v1102 = vunpack.c.h.b16 %v949
        %v1103 = vunpack.c.l.b16 %v950
        %v1104 = vunpack.c.l.b16 %v951
        %v1105 = vunpack.c.h.b16 %v951
        %v1106 = vunpack.c.l.b16 %v952
        %v1107 = vunpack.c.l.b16 %v953
        %v1108 = vunpack.c.h.b16 %v953
        %v1109 = vunpack.c.l.b16 %v954
        %v1110 = vunpack.c.l.b16 %v955
        %v1111 = vunpack.c.h.b16 %v955
        %v1112 = vunpack.c.l.b16 %v956
        %v1113 = vunpack.c.l.b16 %v957
        %v1114 = vunpack.c.h.b16 %v957
        %v1115 = vunpack.c.l.b16 %v958
        %v1116 = vunpack.c.l.b16 %v959
        %v1117 = vunpack.c.h.b16 %v959
        %v1118 = vunpack.c.l.b16 %v960
        %v1119 = vunpack.c.l.b16 %v961
        %v1120 = vunpack.c.h.b16 %v961
        %v1121 = vunpack.c.l.b16 %v962
        %v1122 = vunpack.c.l.b16 %v963
        %v1123 = vunpack.c.h.b16 %v963
        %v1124 = vunpack.c.l.b16 %v964
        %v1125 = vunpack.c.l.b16 %v965
        %v1126 = vunpack.c.h.b16 %v965
        %v1127 = vunpack.c.l.b16 %v966
        %v1128 = vunpack.c.l.b16 %v967
        %v1129 = vunpack.c.h.b16 %v967
        %v1130 = vunpack.c.l.b16 %v968
        %v1131 = vunpack.c.l.b16 %v969
        %v1132 = vunpack.c.h.b16 %v969
        %v1133 = vunpack.c.l.b16 %v970
        %v1134 = vunpack.c.l.b16 %v971
        %v1135 = vunpack.c.h.b16 %v971
        %v1136 = vunpack.c.l.b16 %v972
        %v1137 = vpack.c.b16 %v1092, %v1089
        %v1138 = vpack.c.b16 %v1093, %v1090
        %v1139 = vpack.c.b16 %v1094, %v1091
        %v1140 = vpack.c.b16 %v1098, %v1095
        %v1141 = vpack.c.b16 %v1099, %v1096
        %v1142 = vpack.c.b16 %v1100, %v1097
        %v1143 = vpack.c.b16 %v1104, %v1101
        %v1144 = vpack.c.b16 %v1105, %v1102
        %v1145 = vpack.c.b16 %v1106, %v1103
        %v1146 = vpack.c.b16 %v1110, %v1107
        %v1147 = vpack.c.b16 %v1111, %v1108
        %v1148 = vpack.c.b16 %v1112, %v1109
        %v1149 = vpack.c.b16 %v1116, %v1113
        %v1150 = vpack.c.b16 %v1117, %v1114
        %v1151 = vpack.c.b16 %v1118, %v1115
        %v1152 = vpack.c.b16 %v1122, %v1119
        %v1153 = vpack.c.b16 %v1123, %v1120
        %v1154 = vpack.c.b16 %v1124, %v1121
        %v1155 = vpack.c.b16 %v1128, %v1125
        %v1156 = vpack.c.b16 %v1129, %v1126
        %v1157 = vpack.c.b16 %v1130, %v1127
        %v1158 = vpack.c.b16 %v1134, %v1131
        %v1159 = vpack.c.b16 %v1135, %v1132
        %v1160 = vpack.c.b16 %v1136, %v1133
        %1185 = vmatprep.subr.bf16.mxu0 %v1138
        %1186 = vmatpush1.bf16.msra.mxu0 %v1137
        %1187 = vmatprep.subr.bf16.mxu0 %v1141
        %1188 = vmatpush1.bf16.msra.mxu0 %v1140
        %1189 = vmatprep.subr.bf16.mxu0 %v1144
        %1190 = vmatpush1.bf16.msra.mxu0 %v1143
        %1191 = vmatprep.subr.bf16.mxu0 %v1147
        %1192 = vmatpush1.bf16.msra.mxu0 %v1146
        %1193 = vmatprep.subr.bf16.mxu0 %v1150
        %1194 = vmatpush1.bf16.msra.mxu0 %v1149
        %1195 = vmatprep.subr.bf16.mxu0 %v1153
        %1196 = vmatpush1.bf16.msra.mxu0 %v1152
        %1197 = vmatprep.subr.bf16.mxu0 %v1156
        %1198 = vmatpush1.bf16.msra.mxu0 %v1155
        %1199 = vmatprep.subr.bf16.mxu0 %v1159
        %1200 = vmatpush1.bf16.msra.mxu0 %v1158
        %1201 = vmatprep.subr.bf16.mxu0 0
        %1202 = vmatpush1.bf16.msra.mxu0 0
        %1203 = vmatprep.subr.bf16.mxu0 0
        %1204 = vmatpush1.bf16.msra.mxu0 0
        %1205 = vmatprep.subr.bf16.mxu0 0
        %1206 = vmatpush1.bf16.msra.mxu0 0
        %1207 = vmatprep.subr.bf16.mxu0 0
        %1208 = vmatpush1.bf16.msra.mxu0 0
        %1209 = vmatprep.subr.bf16.mxu0 0
        %1210 = vmatpush1.bf16.msra.mxu0 0
        %1211 = vmatprep.subr.bf16.mxu0 0
        %1212 = vmatpush1.bf16.msra.mxu0 0
        %1213 = vmatprep.subr.bf16.mxu0 0
        %1214 = vmatpush1.bf16.msra.mxu0 0
        %1215 = vmatprep.subr.bf16.mxu0 0
        %1216 = vmatpush1.bf16.msra.mxu0 0
        %1217 = vmatprep.mubr.bf16.mxu0 0
        %1218 = vmatmul.mubr.bf16.gmra.mrb[0].mxu0 %v1040
        %v1219 = vpop.f32.mrb[0].mxu0
        %v1220 = vadd.f32 %v1045, %v1219
        %v1221 = vpop.f32.mrb[0].mxu0
        %v1222 = vadd.f32 %v1049, %v1221
        %v1223 = vpop.f32.mrb[0].mxu0
        %v1224 = vpop.f32.mrb[0].mxu0
        %1225 = vdwg.mxu0
        %1226 = vmatprep.subr.bf16.mxu0 0
        %1227 = vmatpush1.bf16.msra.mxu0 %v1139
        %1228 = vmatprep.subr.bf16.mxu0 0
        %1229 = vmatpush1.bf16.msra.mxu0 %v1142
        %1230 = vmatprep.subr.bf16.mxu0 0
        %1231 = vmatpush1.bf16.msra.mxu0 %v1145
        %1232 = vmatprep.subr.bf16.mxu0 0
        %1233 = vmatpush1.bf16.msra.mxu0 %v1148
        %1234 = vmatprep.subr.bf16.mxu0 0
        %1235 = vmatpush1.bf16.msra.mxu0 %v1151
        %1236 = vmatprep.subr.bf16.mxu0 0
        %1237 = vmatpush1.bf16.msra.mxu0 %v1154
        %1238 = vmatprep.subr.bf16.mxu0 0
        %1239 = vmatpush1.bf16.msra.mxu0 %v1157
        %1240 = vmatprep.subr.bf16.mxu0 0
        %1241 = vmatpush1.bf16.msra.mxu0 %v1160
        %1242 = vmatprep.subr.bf16.mxu0 0
        %1243 = vmatpush1.bf16.msra.mxu0 0
        %1244 = vmatprep.subr.bf16.mxu0 0
        %1245 = vmatpush1.bf16.msra.mxu0 0
        %1246 = vmatprep.subr.bf16.mxu0 0
        %1247 = vmatpush1.bf16.msra.mxu0 0
        %1248 = vmatprep.subr.bf16.mxu0 0
        %1249 = vmatpush1.bf16.msra.mxu0 0
        %1250 = vmatprep.subr.bf16.mxu0 0
        %1251 = vmatpush1.bf16.msra.mxu0 0
        %1252 = vmatprep.subr.bf16.mxu0 0
        %1253 = vmatpush1.bf16.msra.mxu0 0
        %1254 = vmatprep.subr.bf16.mxu0 0
        %1255 = vmatpush1.bf16.msra.mxu0 0
        %1256 = vmatprep.subr.bf16.mxu0 0
        %1257 = vmatpush1.bf16.msra.mxu0 0
        %1258 = vmatprep.mubr.bf16.mxu0 0
        %1259 = vmatmul.mubr.bf16.gmra.mrb[0].mxu0 %v1040
        %v1260 = vpop.f32.mrb[0].mxu0
        %v1261 = vadd.f32 %v1053, %v1260
        %v1262 = vpop.f32.mrb[0].mxu0
        %v1263 = vpop.f32.mrb[0].mxu0
        %v1264 = vpop.f32.mrb[0].mxu0
        %1265 = vdwg.mxu0
        %v1266 = vpack.c.bf16 %v1220, %v1220
        %v1267 = vpack.c.bf16 %v1222, %v1222
        %v1268 = vpack.c.bf16 %v1261, %v1261
        %vm1269 = vcmask 261120
        %v1271 = vsel %vm1269, %v1266, 0
        %v1274 = vsel %vm1269, %v1267, 0
        %1276 = vmatprep.subr.bf16.mxu0 0
        %1277 = vmatpush1.bf16.xpose.msra.mxu0 %v1274
        %1278 = vmatprep.subr.bf16.mxu0 0
        %1279 = vmatpush1.bf16.xpose.msra.mxu0 0
        %1280 = vmatprep.subr.bf16.mxu0 0
        %1281 = vmatpush1.bf16.xpose.msra.mxu0 0
        %1282 = vmatprep.subr.bf16.mxu0 0
        %1283 = vmatpush1.bf16.xpose.msra.mxu0 0
        %1284 = vmatprep.subr.bf16.mxu0 0
        %1285 = vmatpush1.bf16.xpose.msra.mxu0 0
        %1286 = vmatprep.subr.bf16.mxu0 0
        %1287 = vmatpush1.bf16.xpose.msra.mxu0 0
        %1288 = vmatprep.subr.bf16.mxu0 0
        %1289 = vmatpush1.bf16.xpose.msra.mxu0 0
        %1290 = vmatprep.subr.bf16.mxu0 0
        %1291 = vmatpush1.bf16.xpose.msra.mxu0 0
        %1292 = vmatprep.subr.bf16.mxu0 0
        %1293 = vmatpush1.bf16.xpose.msra.mxu0 0
        %1294 = vmatprep.subr.bf16.mxu0 0
        %1295 = vmatpush1.bf16.xpose.msra.mxu0 0
        %1296 = vmatprep.subr.bf16.mxu0 0
        %1297 = vmatpush1.bf16.xpose.msra.mxu0 0
        %1298 = vmatprep.subr.bf16.mxu0 0
        %1299 = vmatpush1.bf16.xpose.msra.mxu0 0
        %1300 = vmatprep.subr.bf16.mxu0 0
        %1301 = vmatpush1.bf16.xpose.msra.mxu0 0
        %1302 = vmatprep.subr.bf16.mxu0 0
        %1303 = vmatpush1.bf16.xpose.msra.mxu0 0
        %1304 = vmatprep.subr.bf16.mxu0 0
        %1305 = vmatpush1.bf16.xpose.msra.mxu0 0
        %1306 = vmatprep.subr.bf16.mxu0 0
        %1307 = vmatpush1.bf16.xpose.msra.mxu0 0
        %1308 = vmatprep.mubr.bf16.mxu0 0
        %1309 = vmatmul.mubr.bf16.gmra.mrb[0].mxu0 %v1271
        %v1310 = vpop.f32.mrb[0].mxu0
        %v1311 = vadd.f32 0.0, %v1310
        %v1312 = vpop.f32.mrb[0].mxu0
        %v1313 = vpop.f32.mrb[0].mxu0
        %v1314 = vpop.f32.mrb[0].mxu0
        %1315 = vdwg.mxu0
        %vm1316 = vcmask 9216
        %v1317 = vsel %vm1316, %v1311, -inf
        %1318 = vmax.xlane.f32.xlu0 %v1317
        %v1319 = vpop.xlane.xlu0 %1318
        %v1320 = vsub.f32 %v1311, %v1319
        %v1321 = vmul.f32 %v1320, 1.442695
        %v1322 = vpow.pop %v1321
        %v1323 = vsel %vm1316, %v1322, 0.0
        %1324 = vadd.xlane.f32.xlu0 %v1323
        %v1325 = vpop.xlane.xlu0 %1324
        %v1326 = vrcp.pop %v1325
        %v1327 = vmul.f32 %v1322, %v1326
        %v1328 = vpack.c.bf16 %v1327, %v1327
        %vm1329 = vcmask 15360
        %v1331 = vsel %vm1329, %v1328, 0
        %vm1333 = vcmask 1040384
        %v1335 = vsel %vm1333, %v1268, 0
        %1337 = vmatprep.subr.bf16.mxu0 0
        %1338 = vmatpush1.bf16.msra.mxu0 %v1335
        %1339 = vmatprep.subr.bf16.mxu0 0
        %1340 = vmatpush1.bf16.msra.mxu0 0
        %1341 = vmatprep.subr.bf16.mxu0 0
        %1342 = vmatpush1.bf16.msra.mxu0 0
        %1343 = vmatprep.subr.bf16.mxu0 0
        %1344 = vmatpush1.bf16.msra.mxu0 0
        %1345 = vmatprep.subr.bf16.mxu0 0
        %1346 = vmatpush1.bf16.msra.mxu0 0
        %1347 = vmatprep.subr.bf16.mxu0 0
        %1348 = vmatpush1.bf16.msra.mxu0 0
        %1349 = vmatprep.subr.bf16.mxu0 0
        %1350 = vmatpush1.bf16.msra.mxu0 0
        %1351 = vmatprep.subr.bf16.mxu0 0
        %1352 = vmatpush1.bf16.msra.mxu0 0
        %1353 = vmatprep.subr.bf16.mxu0 0
        %1354 = vmatpush1.bf16.msra.mxu0 0
        %1355 = vmatprep.subr.bf16.mxu0 0
        %1356 = vmatpush1.bf16.msra.mxu0 0
        %1357 = vmatprep.subr.bf16.mxu0 0
        %1358 = vmatpush1.bf16.msra.mxu0 0
        %1359 = vmatprep.subr.bf16.mxu0 0
        %1360 = vmatpush1.bf16.msra.mxu0 0
        %1361 = vmatprep.subr.bf16.mxu0 0
        %1362 = vmatpush1.bf16.msra.mxu0 0
        %1363 = vmatprep.subr.bf16.mxu0 0
        %1364 = vmatpush1.bf16.msra.mxu0 0
        %1365 = vmatprep.subr.bf16.mxu0 0
        %1366 = vmatpush1.bf16.msra.mxu0 0
        %1367 = vmatprep.subr.bf16.mxu0 0
        %1368 = vmatpush1.bf16.msra.mxu0 0
        %1369 = vmatprep.mubr.bf16.mxu0 0
        %1370 = vmatmul.mubr.bf16.gmra.mrb[0].mxu0 %v1331
        %v1371 = vpop.f32.mrb[0].mxu0
        %v1372 = vadd.f32 0.0, %v1371
        %v1373 = vpop.f32.mrb[0].mxu0
        %v1374 = vpop.f32.mrb[0].mxu0
        %v1375 = vpop.f32.mrb[0].mxu0
        %1376 = vdwg.mxu0
        %v1377 = vpack.c.bf16 %v1372, %v1372
        %1379 = vrot.lane.b32.xlu0 %v1266, 96
        %v1380 = vpop.permute.xlu0 %1379
        %1382 = vrot.lane.b32.xlu0 %v1267, 96
        %v1383 = vpop.permute.xlu0 %1382
        %v1385 = vsel %vm1269, %v1380, 0
        %v1388 = vsel %vm1269, %v1383, 0
        %1390 = vmatprep.subr.bf16.mxu0 0
        %1391 = vmatpush1.bf16.xpose.msra.mxu0 %v1388
        %1392 = vmatprep.subr.bf16.mxu0 0
        %1393 = vmatpush1.bf16.xpose.msra.mxu0 0
        %1394 = vmatprep.subr.bf16.mxu0 0
        %1395 = vmatpush1.bf16.xpose.msra.mxu0 0
        %1396 = vmatprep.subr.bf16.mxu0 0
        %1397 = vmatpush1.bf16.xpose.msra.mxu0 0
        %1398 = vmatprep.subr.bf16.mxu0 0
        %1399 = vmatpush1.bf16.xpose.msra.mxu0 0
        %1400 = vmatprep.subr.bf16.mxu0 0
        %1401 = vmatpush1.bf16.xpose.msra.mxu0 0
        %1402 = vmatprep.subr.bf16.mxu0 0
        %1403 = vmatpush1.bf16.xpose.msra.mxu0 0
        %1404 = vmatprep.subr.bf16.mxu0 0
        %1405 = vmatpush1.bf16.xpose.msra.mxu0 0
        %1406 = vmatprep.subr.bf16.mxu0 0
        %1407 = vmatpush1.bf16.xpose.msra.mxu0 0
        %1408 = vmatprep.subr.bf16.mxu0 0
        %1409 = vmatpush1.bf16.xpose.msra.mxu0 0
        %1410 = vmatprep.subr.bf16.mxu0 0
        %1411 = vmatpush1.bf16.xpose.msra.mxu0 0
        %1412 = vmatprep.subr.bf16.mxu0 0
        %1413 = vmatpush1.bf16.xpose.msra.mxu0 0
        %1414 = vmatprep.subr.bf16.mxu0 0
        %1415 = vmatpush1.bf16.xpose.msra.mxu0 0
        %1416 = vmatprep.subr.bf16.mxu0 0
        %1417 = vmatpush1.bf16.xpose.msra.mxu0 0
        %1418 = vmatprep.subr.bf16.mxu0 0
        %1419 = vmatpush1.bf16.xpose.msra.mxu0 0
        %1420 = vmatprep.subr.bf16.mxu0 0
        %1421 = vmatpush1.bf16.xpose.msra.mxu0 0
        %1422 = vmatprep.mubr.bf16.mxu0 0
        %1423 = vmatmul.mubr.bf16.gmra.mrb[0].mxu0 %v1385
        %v1424 = vpop.f32.mrb[0].mxu0
        %v1425 = vadd.f32 0.0, %v1424
        %v1426 = vpop.f32.mrb[0].mxu0
        %v1427 = vpop.f32.mrb[0].mxu0
        %v1428 = vpop.f32.mrb[0].mxu0
        %1429 = vdwg.mxu0
        %v1430 = vsel %vm1316, %v1425, -inf
        %1431 = vmax.xlane.f32.xlu0 %v1430
        %v1432 = vpop.xlane.xlu0 %1431
        %v1433 = vsub.f32 %v1425, %v1432
        %v1434 = vmul.f32 %v1433, 1.442695
        %v1435 = vpow.pop %v1434
        %v1436 = vsel %vm1316, %v1435, 0.0
        %1437 = vadd.xlane.f32.xlu0 %v1436
        %v1438 = vpop.xlane.xlu0 %1437
        %v1439 = vrcp.pop %v1438
        %v1440 = vmul.f32 %v1435, %v1439
        %v1441 = vpack.c.bf16 %v1440, %v1440
        %1443 = vrot.lane.b32.xlu0 %v1268, 96
        %v1444 = vpop.permute.xlu0 %1443
        %v1446 = vsel %vm1329, %v1441, 0
        %v1449 = vsel %vm1333, %v1444, 0
        %1451 = vmatprep.subr.bf16.mxu0 0
        %1452 = vmatpush1.bf16.msra.mxu0 %v1449
        %1453 = vmatprep.subr.bf16.mxu0 0
        %1454 = vmatpush1.bf16.msra.mxu0 0
        %1455 = vmatprep.subr.bf16.mxu0 0
        %1456 = vmatpush1.bf16.msra.mxu0 0
        %1457 = vmatprep.subr.bf16.mxu0 0
        %1458 = vmatpush1.bf16.msra.mxu0 0
        %1459 = vmatprep.subr.bf16.mxu0 0
        %1460 = vmatpush1.bf16.msra.mxu0 0
        %1461 = vmatprep.subr.bf16.mxu0 0
        %1462 = vmatpush1.bf16.msra.mxu0 0
        %1463 = vmatprep.subr.bf16.mxu0 0
        %1464 = vmatpush1.bf16.msra.mxu0 0
        %1465 = vmatprep.subr.bf16.mxu0 0
        %1466 = vmatpush1.bf16.msra.mxu0 0
        %1467 = vmatprep.subr.bf16.mxu0 0
        %1468 = vmatpush1.bf16.msra.mxu0 0
        %1469 = vmatprep.subr.bf16.mxu0 0
        %1470 = vmatpush1.bf16.msra.mxu0 0
        %1471 = vmatprep.subr.bf16.mxu0 0
        %1472 = vmatpush1.bf16.msra.mxu0 0
        %1473 = vmatprep.subr.bf16.mxu0 0
        %1474 = vmatpush1.bf16.msra.mxu0 0
        %1475 = vmatprep.subr.bf16.mxu0 0
        %1476 = vmatpush1.bf16.msra.mxu0 0
        %1477 = vmatprep.subr.bf16.mxu0 0
        %1478 = vmatpush1.bf16.msra.mxu0 0
        %1479 = vmatprep.subr.bf16.mxu0 0
        %1480 = vmatpush1.bf16.msra.mxu0 0
        %1481 = vmatprep.subr.bf16.mxu0 0
        %1482 = vmatpush1.bf16.msra.mxu0 0
        %1483 = vmatprep.mubr.bf16.mxu0 0
        %1484 = vmatmul.mubr.bf16.gmra.mrb[0].mxu0 %v1446
        %v1485 = vpop.f32.mrb[0].mxu0
        %v1486 = vadd.f32 0.0, %v1485
        %v1487 = vpop.f32.mrb[0].mxu0
        %v1488 = vpop.f32.mrb[0].mxu0
        %v1489 = vpop.f32.mrb[0].mxu0
        %1490 = vdwg.mxu0
        %v1491 = vpack.c.bf16 %v1486, %v1486
        %v1496 = vunpack.c.l.b16 %v978
        %v1497 = vunpack.c.l.b16 %v979
        %v1498 = vunpack.c.l.b16 %v980
        %v1499 = vunpack.c.l.b16 %v981
        %v1500 = vpack.c.b16 %v1497, %v1496
        %v1501 = vpack.c.b16 %v1499, %v1498
        %v1505 = vsel %vm1269, %v1491, 0
        %1507 = vmatprep.subr.bf16.mxu0 0
        %1508 = vmatpush1.bf16.msra.mxu0 %v1500
        %1509 = vmatprep.subr.bf16.mxu0 0
        %1510 = vmatpush1.bf16.msra.mxu0 %v1501
        %1511 = vmatprep.subr.bf16.mxu0 0
        %1512 = vmatpush1.bf16.msra.mxu0 0
        %1513 = vmatprep.subr.bf16.mxu0 0
        %1514 = vmatpush1.bf16.msra.mxu0 0
        %1515 = vmatprep.subr.bf16.mxu0 0
        %1516 = vmatpush1.bf16.msra.mxu0 0
        %1517 = vmatprep.subr.bf16.mxu0 0
        %1518 = vmatpush1.bf16.msra.mxu0 0
        %1519 = vmatprep.subr.bf16.mxu0 0
        %1520 = vmatpush1.bf16.msra.mxu0 0
        %1521 = vmatprep.subr.bf16.mxu0 0
        %1522 = vmatpush1.bf16.msra.mxu0 0
        %1523 = vmatprep.subr.bf16.mxu0 0
        %1524 = vmatpush1.bf16.msra.mxu0 0
        %1525 = vmatprep.subr.bf16.mxu0 0
        %1526 = vmatpush1.bf16.msra.mxu0 0
        %1527 = vmatprep.subr.bf16.mxu0 0
        %1528 = vmatpush1.bf16.msra.mxu0 0
        %1529 = vmatprep.subr.bf16.mxu0 0
        %1530 = vmatpush1.bf16.msra.mxu0 0
        %1531 = vmatprep.subr.bf16.mxu0 0
        %1532 = vmatpush1.bf16.msra.mxu0 0
        %1533 = vmatprep.subr.bf16.mxu0 0
        %1534 = vmatpush1.bf16.msra.mxu0 0
        %1535 = vmatprep.subr.bf16.mxu0 0
        %1536 = vmatpush1.bf16.msra.mxu0 0
        %1537 = vmatprep.subr.bf16.mxu0 0
        %1538 = vmatpush1.bf16.msra.mxu0 0
        %1539 = vmatprep.mubr.bf16.mxu0 0
        %1540 = vmatmul.mubr.bf16.gmra.mrb[0].mxu0 %v1505
        %v1541 = vpop.f32.mrb[0].mxu0
        %v1542 = vadd.f32 0.0, %v1541
        %v1543 = vpop.f32.mrb[0].mxu0
        %v1544 = vpop.f32.mrb[0].mxu0
        %v1545 = vpop.f32.mrb[0].mxu0
        %1546 = vdwg.mxu0
        %v1551 = vunpack.c.l.b16 %v974
        %v1552 = vunpack.c.l.b16 %v975
        %v1553 = vunpack.c.l.b16 %v976
        %v1554 = vunpack.c.l.b16 %v977
        %v1555 = vpack.c.b16 %v1552, %v1551
        %v1556 = vpack.c.b16 %v1554, %v1553
        %v1560 = vsel %vm1269, %v1377, 0
        %1562 = vmatprep.subr.bf16.mxu0 0
        %1563 = vmatpush1.bf16.msra.mxu0 %v1555
        %1564 = vmatprep.subr.bf16.mxu0 0
        %1565 = vmatpush1.bf16.msra.mxu0 %v1556
        %1566 = vmatprep.subr.bf16.mxu0 0
        %1567 = vmatpush1.bf16.msra.mxu0 0
        %1568 = vmatprep.subr.bf16.mxu0 0
        %1569 = vmatpush1.bf16.msra.mxu0 0
        %1570 = vmatprep.subr.bf16.mxu0 0
        %1571 = vmatpush1.bf16.msra.mxu0 0
        %1572 = vmatprep.subr.bf16.mxu0 0
        %1573 = vmatpush1.bf16.msra.mxu0 0
        %1574 = vmatprep.subr.bf16.mxu0 0
        %1575 = vmatpush1.bf16.msra.mxu0 0
        %1576 = vmatprep.subr.bf16.mxu0 0
        %1577 = vmatpush1.bf16.msra.mxu0 0
        %1578 = vmatprep.subr.bf16.mxu0 0
        %1579 = vmatpush1.bf16.msra.mxu0 0
        %1580 = vmatprep.subr.bf16.mxu0 0
        %1581 = vmatpush1.bf16.msra.mxu0 0
        %1582 = vmatprep.subr.bf16.mxu0 0
        %1583 = vmatpush1.bf16.msra.mxu0 0
        %1584 = vmatprep.subr.bf16.mxu0 0
        %1585 = vmatpush1.bf16.msra.mxu0 0
        %1586 = vmatprep.subr.bf16.mxu0 0
        %1587 = vmatpush1.bf16.msra.mxu0 0
        %1588 = vmatprep.subr.bf16.mxu0 0
        %1589 = vmatpush1.bf16.msra.mxu0 0
        %1590 = vmatprep.subr.bf16.mxu0 0
        %1591 = vmatpush1.bf16.msra.mxu0 0
        %1592 = vmatprep.subr.bf16.mxu0 0
        %1593 = vmatpush1.bf16.msra.mxu0 0
        %1594 = vmatprep.mubr.bf16.mxu0 0
        %1595 = vmatmul.mubr.bf16.gmra.mrb[0].mxu0 %v1560
        %v1596 = vpop.f32.mrb[0].mxu0
        %v1597 = vadd.f32 %v1542, %v1596
        %v1598 = vpop.f32.mrb[0].mxu0
        %v1599 = vpop.f32.mrb[0].mxu0
        %v1600 = vpop.f32.mrb[0].mxu0
        %1601 = vdwg.mxu0
        %1602 = vrot.lane.b32.xlu0 %v1266, 64
        %v1603 = vpop.permute.xlu0 %1602
        %1604 = vrot.lane.b32.xlu0 %v1267, 64
        %v1605 = vpop.permute.xlu0 %1604
        %v1607 = vsel %vm1269, %v1603, 0
        %v1610 = vsel %vm1269, %v1605, 0
        %1612 = vmatprep.subr.bf16.mxu0 0
        %1613 = vmatpush1.bf16.xpose.msra.mxu0 %v1610
        %1614 = vmatprep.subr.bf16.mxu0 0
        %1615 = vmatpush1.bf16.xpose.msra.mxu0 0
        %1616 = vmatprep.subr.bf16.mxu0 0
        %1617 = vmatpush1.bf16.xpose.msra.mxu0 0
        %1618 = vmatprep.subr.bf16.mxu0 0
        %1619 = vmatpush1.bf16.xpose.msra.mxu0 0
        %1620 = vmatprep.subr.bf16.mxu0 0
        %1621 = vmatpush1.bf16.xpose.msra.mxu0 0
        %1622 = vmatprep.subr.bf16.mxu0 0
        %1623 = vmatpush1.bf16.xpose.msra.mxu0 0
        %1624 = vmatprep.subr.bf16.mxu0 0
        %1625 = vmatpush1.bf16.xpose.msra.mxu0 0
        %1626 = vmatprep.subr.bf16.mxu0 0
        %1627 = vmatpush1.bf16.xpose.msra.mxu0 0
        %1628 = vmatprep.subr.bf16.mxu0 0
        %1629 = vmatpush1.bf16.xpose.msra.mxu0 0
        %1630 = vmatprep.subr.bf16.mxu0 0
        %1631 = vmatpush1.bf16.xpose.msra.mxu0 0
        %1632 = vmatprep.subr.bf16.mxu0 0
        %1633 = vmatpush1.bf16.xpose.msra.mxu0 0
        %1634 = vmatprep.subr.bf16.mxu0 0
        %1635 = vmatpush1.bf16.xpose.msra.mxu0 0
        %1636 = vmatprep.subr.bf16.mxu0 0
        %1637 = vmatpush1.bf16.xpose.msra.mxu0 0
        %1638 = vmatprep.subr.bf16.mxu0 0
        %1639 = vmatpush1.bf16.xpose.msra.mxu0 0
        %1640 = vmatprep.subr.bf16.mxu0 0
        %1641 = vmatpush1.bf16.xpose.msra.mxu0 0
        %1642 = vmatprep.subr.bf16.mxu0 0
        %1643 = vmatpush1.bf16.xpose.msra.mxu0 0
        %1644 = vmatprep.mubr.bf16.mxu0 0
        %1645 = vmatmul.mubr.bf16.gmra.mrb[0].mxu0 %v1607
        %v1646 = vpop.f32.mrb[0].mxu0
        %v1647 = vadd.f32 0.0, %v1646
        %v1648 = vpop.f32.mrb[0].mxu0
        %v1649 = vpop.f32.mrb[0].mxu0
        %v1650 = vpop.f32.mrb[0].mxu0
        %1651 = vdwg.mxu0
        %v1652 = vsel %vm1316, %v1647, -inf
        %1653 = vmax.xlane.f32.xlu0 %v1652
        %v1654 = vpop.xlane.xlu0 %1653
        %v1655 = vsub.f32 %v1647, %v1654
        %v1656 = vmul.f32 %v1655, 1.442695
        %v1657 = vpow.pop %v1656
        %v1658 = vsel %vm1316, %v1657, 0.0
        %1659 = vadd.xlane.f32.xlu0 %v1658
        %v1660 = vpop.xlane.xlu0 %1659
        %v1661 = vrcp.pop %v1660
        %v1662 = vmul.f32 %v1657, %v1661
        %v1663 = vpack.c.bf16 %v1662, %v1662
        %1664 = vrot.lane.b32.xlu0 %v1268, 64
        %v1665 = vpop.permute.xlu0 %1664
        %v1667 = vsel %vm1329, %v1663, 0
        %v1670 = vsel %vm1333, %v1665, 0
        %1672 = vmatprep.subr.bf16.mxu0 0
        %1673 = vmatpush1.bf16.msra.mxu0 %v1670
        %1674 = vmatprep.subr.bf16.mxu0 0
        %1675 = vmatpush1.bf16.msra.mxu0 0
        %1676 = vmatprep.subr.bf16.mxu0 0
        %1677 = vmatpush1.bf16.msra.mxu0 0
        %1678 = vmatprep.subr.bf16.mxu0 0
        %1679 = vmatpush1.bf16.msra.mxu0 0
        %1680 = vmatprep.subr.bf16.mxu0 0
        %1681 = vmatpush1.bf16.msra.mxu0 0
        %1682 = vmatprep.subr.bf16.mxu0 0
        %1683 = vmatpush1.bf16.msra.mxu0 0
        %1684 = vmatprep.subr.bf16.mxu0 0
        %1685 = vmatpush1.bf16.msra.mxu0 0
        %1686 = vmatprep.subr.bf16.mxu0 0
        %1687 = vmatpush1.bf16.msra.mxu0 0
        %1688 = vmatprep.subr.bf16.mxu0 0
        %1689 = vmatpush1.bf16.msra.mxu0 0
        %1690 = vmatprep.subr.bf16.mxu0 0
        %1691 = vmatpush1.bf16.msra.mxu0 0
        %1692 = vmatprep.subr.bf16.mxu0 0
        %1693 = vmatpush1.bf16.msra.mxu0 0
        %1694 = vmatprep.subr.bf16.mxu0 0
        %1695 = vmatpush1.bf16.msra.mxu0 0
        %1696 = vmatprep.subr.bf16.mxu0 0
        %1697 = vmatpush1.bf16.msra.mxu0 0
        %1698 = vmatprep.subr.bf16.mxu0 0
        %1699 = vmatpush1.bf16.msra.mxu0 0
        %1700 = vmatprep.subr.bf16.mxu0 0
        %1701 = vmatpush1.bf16.msra.mxu0 0
        %1702 = vmatprep.subr.bf16.mxu0 0
        %1703 = vmatpush1.bf16.msra.mxu0 0
        %1704 = vmatprep.mubr.bf16.mxu0 0
        %1705 = vmatmul.mubr.bf16.gmra.mrb[0].mxu0 %v1667
        %v1706 = vpop.f32.mrb[0].mxu0
        %v1707 = vadd.f32 0.0, %v1706
        %v1708 = vpop.f32.mrb[0].mxu0
        %v1709 = vpop.f32.mrb[0].mxu0
        %v1710 = vpop.f32.mrb[0].mxu0
        %1711 = vdwg.mxu0
        %v1712 = vpack.c.bf16 %v1707, %v1707
        %v1717 = vunpack.c.l.b16 %v982
        %v1718 = vunpack.c.l.b16 %v983
        %v1719 = vunpack.c.l.b16 %v984
        %v1720 = vunpack.c.l.b16 %v985
        %v1721 = vpack.c.b16 %v1718, %v1717
        %v1722 = vpack.c.b16 %v1720, %v1719
        %v1726 = vsel %vm1269, %v1712, 0
        %1728 = vmatprep.subr.bf16.mxu0 0
        %1729 = vmatpush1.bf16.msra.mxu0 %v1721
        %1730 = vmatprep.subr.bf16.mxu0 0
        %1731 = vmatpush1.bf16.msra.mxu0 %v1722
        %1732 = vmatprep.subr.bf16.mxu0 0
        %1733 = vmatpush1.bf16.msra.mxu0 0
        %1734 = vmatprep.subr.bf16.mxu0 0
        %1735 = vmatpush1.bf16.msra.mxu0 0
        %1736 = vmatprep.subr.bf16.mxu0 0
        %1737 = vmatpush1.bf16.msra.mxu0 0
        %1738 = vmatprep.subr.bf16.mxu0 0
        %1739 = vmatpush1.bf16.msra.mxu0 0
        %1740 = vmatprep.subr.bf16.mxu0 0
        %1741 = vmatpush1.bf16.msra.mxu0 0
        %1742 = vmatprep.subr.bf16.mxu0 0
        %1743 = vmatpush1.bf16.msra.mxu0 0
        %1744 = vmatprep.subr.bf16.mxu0 0
        %1745 = vmatpush1.bf16.msra.mxu0 0
        %1746 = vmatprep.subr.bf16.mxu0 0
        %1747 = vmatpush1.bf16.msra.mxu0 0
        %1748 = vmatprep.subr.bf16.mxu0 0
        %1749 = vmatpush1.bf16.msra.mxu0 0
        %1750 = vmatprep.subr.bf16.mxu0 0
        %1751 = vmatpush1.bf16.msra.mxu0 0
        %1752 = vmatprep.subr.bf16.mxu0 0
        %1753 = vmatpush1.bf16.msra.mxu0 0
        %1754 = vmatprep.subr.bf16.mxu0 0
        %1755 = vmatpush1.bf16.msra.mxu0 0
        %1756 = vmatprep.subr.bf16.mxu0 0
        %1757 = vmatpush1.bf16.msra.mxu0 0
        %1758 = vmatprep.subr.bf16.mxu0 0
        %1759 = vmatpush1.bf16.msra.mxu0 0
        %1760 = vmatprep.mubr.bf16.mxu0 0
        %1761 = vmatmul.mubr.bf16.gmra.mrb[0].mxu0 %v1726
        %v1762 = vpop.f32.mrb[0].mxu0
        %v1763 = vadd.f32 0.0, %v1762
        %v1764 = vpop.f32.mrb[0].mxu0
        %v1765 = vpop.f32.mrb[0].mxu0
        %v1766 = vpop.f32.mrb[0].mxu0
        %1767 = vdwg.mxu0
        %v1768 = vadd.f32 %v1597, %v1763
        %1769 = vrot.lane.b32.xlu0 %v1266, 32
        %v1770 = vpop.permute.xlu0 %1769
        %1771 = vrot.lane.b32.xlu0 %v1267, 32
        %v1772 = vpop.permute.xlu0 %1771
        %v1774 = vsel %vm1269, %v1770, 0
        %v1777 = vsel %vm1269, %v1772, 0
        %1779 = vmatprep.subr.bf16.mxu0 0
        %1780 = vmatpush1.bf16.xpose.msra.mxu0 %v1777
        %1781 = vmatprep.subr.bf16.mxu0 0
        %1782 = vmatpush1.bf16.xpose.msra.mxu0 0
        %1783 = vmatprep.subr.bf16.mxu0 0
        %1784 = vmatpush1.bf16.xpose.msra.mxu0 0
        %1785 = vmatprep.subr.bf16.mxu0 0
        %1786 = vmatpush1.bf16.xpose.msra.mxu0 0
        %1787 = vmatprep.subr.bf16.mxu0 0
        %1788 = vmatpush1.bf16.xpose.msra.mxu0 0
        %1789 = vmatprep.subr.bf16.mxu0 0
        %1790 = vmatpush1.bf16.xpose.msra.mxu0 0
        %1791 = vmatprep.subr.bf16.mxu0 0
        %1792 = vmatpush1.bf16.xpose.msra.mxu0 0
        %1793 = vmatprep.subr.bf16.mxu0 0
        %1794 = vmatpush1.bf16.xpose.msra.mxu0 0
        %1795 = vmatprep.subr.bf16.mxu0 0
        %1796 = vmatpush1.bf16.xpose.msra.mxu0 0
        %1797 = vmatprep.subr.bf16.mxu0 0
        %1798 = vmatpush1.bf16.xpose.msra.mxu0 0
        %1799 = vmatprep.subr.bf16.mxu0 0
        %1800 = vmatpush1.bf16.xpose.msra.mxu0 0
        %1801 = vmatprep.subr.bf16.mxu0 0
        %1802 = vmatpush1.bf16.xpose.msra.mxu0 0
        %1803 = vmatprep.subr.bf16.mxu0 0
        %1804 = vmatpush1.bf16.xpose.msra.mxu0 0
        %1805 = vmatprep.subr.bf16.mxu0 0
        %1806 = vmatpush1.bf16.xpose.msra.mxu0 0
        %1807 = vmatprep.subr.bf16.mxu0 0
        %1808 = vmatpush1.bf16.xpose.msra.mxu0 0
        %1809 = vmatprep.subr.bf16.mxu0 0
        %1810 = vmatpush1.bf16.xpose.msra.mxu0 0
        %1811 = vmatprep.mubr.bf16.mxu0 0
        %1812 = vmatmul.mubr.bf16.gmra.mrb[0].mxu0 %v1774
        %v1813 = vpop.f32.mrb[0].mxu0
        %v1814 = vadd.f32 0.0, %v1813
        %v1815 = vpop.f32.mrb[0].mxu0
        %v1816 = vpop.f32.mrb[0].mxu0
        %v1817 = vpop.f32.mrb[0].mxu0
        %1818 = vdwg.mxu0
        %v1819 = vsel %vm1316, %v1814, -inf
        %1820 = vmax.xlane.f32.xlu0 %v1819
        %v1821 = vpop.xlane.xlu0 %1820
        %v1822 = vsub.f32 %v1814, %v1821
        %v1823 = vmul.f32 %v1822, 1.442695
        %v1824 = vpow.pop %v1823
        %v1825 = vsel %vm1316, %v1824, 0.0
        %1826 = vadd.xlane.f32.xlu0 %v1825
        %v1827 = vpop.xlane.xlu0 %1826
        %v1828 = vrcp.pop %v1827
        %v1829 = vmul.f32 %v1824, %v1828
        %v1830 = vpack.c.bf16 %v1829, %v1829
        %1831 = vrot.lane.b32.xlu0 %v1268, 32
        %v1832 = vpop.permute.xlu0 %1831
        %v1834 = vsel %vm1329, %v1830, 0
        %v1837 = vsel %vm1333, %v1832, 0
        %1839 = vmatprep.subr.bf16.mxu0 0
        %1840 = vmatpush1.bf16.msra.mxu0 %v1837
        %1841 = vmatprep.subr.bf16.mxu0 0
        %1842 = vmatpush1.bf16.msra.mxu0 0
        %1843 = vmatprep.subr.bf16.mxu0 0
        %1844 = vmatpush1.bf16.msra.mxu0 0
        %1845 = vmatprep.subr.bf16.mxu0 0
        %1846 = vmatpush1.bf16.msra.mxu0 0
        %1847 = vmatprep.subr.bf16.mxu0 0
        %1848 = vmatpush1.bf16.msra.mxu0 0
        %1849 = vmatprep.subr.bf16.mxu0 0
        %1850 = vmatpush1.bf16.msra.mxu0 0
        %1851 = vmatprep.subr.bf16.mxu0 0
        %1852 = vmatpush1.bf16.msra.mxu0 0
        %1853 = vmatprep.subr.bf16.mxu0 0
        %1854 = vmatpush1.bf16.msra.mxu0 0
        %1855 = vmatprep.subr.bf16.mxu0 0
        %1856 = vmatpush1.bf16.msra.mxu0 0
        %1857 = vmatprep.subr.bf16.mxu0 0
        %1858 = vmatpush1.bf16.msra.mxu0 0
        %1859 = vmatprep.subr.bf16.mxu0 0
        %1860 = vmatpush1.bf16.msra.mxu0 0
        %1861 = vmatprep.subr.bf16.mxu0 0
        %1862 = vmatpush1.bf16.msra.mxu0 0
        %1863 = vmatprep.subr.bf16.mxu0 0
        %1864 = vmatpush1.bf16.msra.mxu0 0
        %1865 = vmatprep.subr.bf16.mxu0 0
        %1866 = vmatpush1.bf16.msra.mxu0 0
        %1867 = vmatprep.subr.bf16.mxu0 0
        %1868 = vmatpush1.bf16.msra.mxu0 0
        %1869 = vmatprep.subr.bf16.mxu0 0
        %1870 = vmatpush1.bf16.msra.mxu0 0
        %1871 = vmatprep.mubr.bf16.mxu0 0
        %1872 = vmatmul.mubr.bf16.gmra.mrb[0].mxu0 %v1834
        %v1873 = vpop.f32.mrb[0].mxu0
        %v1874 = vadd.f32 0.0, %v1873
        %v1875 = vpop.f32.mrb[0].mxu0
        %v1876 = vpop.f32.mrb[0].mxu0
        %v1877 = vpop.f32.mrb[0].mxu0
        %1878 = vdwg.mxu0
        %v1879 = vpack.c.bf16 %v1874, %v1874
        %v1884 = vunpack.c.l.b16 %v986
        %v1885 = vunpack.c.l.b16 %v987
        %v1886 = vunpack.c.l.b16 %v988
        %v1887 = vunpack.c.l.b16 %v989
        %v1888 = vpack.c.b16 %v1885, %v1884
        %v1889 = vpack.c.b16 %v1887, %v1886
        %v1893 = vsel %vm1269, %v1879, 0
        %1895 = vmatprep.subr.bf16.mxu0 0
        %1896 = vmatpush1.bf16.msra.mxu0 %v1888
        %1897 = vmatprep.subr.bf16.mxu0 0
        %1898 = vmatpush1.bf16.msra.mxu0 %v1889
        %1899 = vmatprep.subr.bf16.mxu0 0
        %1900 = vmatpush1.bf16.msra.mxu0 0
        %1901 = vmatprep.subr.bf16.mxu0 0
        %1902 = vmatpush1.bf16.msra.mxu0 0
        %1903 = vmatprep.subr.bf16.mxu0 0
        %1904 = vmatpush1.bf16.msra.mxu0 0
        %1905 = vmatprep.subr.bf16.mxu0 0
        %1906 = vmatpush1.bf16.msra.mxu0 0
        %1907 = vmatprep.subr.bf16.mxu0 0
        %1908 = vmatpush1.bf16.msra.mxu0 0
        %1909 = vmatprep.subr.bf16.mxu0 0
        %1910 = vmatpush1.bf16.msra.mxu0 0
        %1911 = vmatprep.subr.bf16.mxu0 0
        %1912 = vmatpush1.bf16.msra.mxu0 0
        %1913 = vmatprep.subr.bf16.mxu0 0
        %1914 = vmatpush1.bf16.msra.mxu0 0
        %1915 = vmatprep.subr.bf16.mxu0 0
        %1916 = vmatpush1.bf16.msra.mxu0 0
        %1917 = vmatprep.subr.bf16.mxu0 0
        %1918 = vmatpush1.bf16.msra.mxu0 0
        %1919 = vmatprep.subr.bf16.mxu0 0
        %1920 = vmatpush1.bf16.msra.mxu0 0
        %1921 = vmatprep.subr.bf16.mxu0 0
        %1922 = vmatpush1.bf16.msra.mxu0 0
        %1923 = vmatprep.subr.bf16.mxu0 0
        %1924 = vmatpush1.bf16.msra.mxu0 0
        %1925 = vmatprep.subr.bf16.mxu0 0
        %1926 = vmatpush1.bf16.msra.mxu0 0
        %1927 = vmatprep.mubr.bf16.mxu0 0
        %1928 = vmatmul.mubr.bf16.gmra.mrb[0].mxu0 %v1893
        %v1929 = vpop.f32.mrb[0].mxu0
        %v1930 = vadd.f32 0.0, %v1929
        %v1931 = vpop.f32.mrb[0].mxu0
        %v1932 = vpop.f32.mrb[0].mxu0
        %v1933 = vpop.f32.mrb[0].mxu0
        %1934 = vdwg.mxu0
        %v1935 = vadd.f32 %v1768, %v1930
        %v1936 = vlaneseq
        %v1937 = vshrl.u32 %v1936, 7
        %v1938 = vsub.s32 0, %v1937
        %v1939 = vrot.slane %v1039, %v1938
        %v1940 = vadd.f32 %v1935, %v1939
        %v1941 = vadd.f32 %v936, %v1940
        %vm1942 = vcmask 1041408
        %v1943 = vsel %vm1942, %v1941, 0.0
        %1944 = vadd.xlane.f32.xlu0 %v1943
        %v1945 = vpop.xlane.xlu0 %1944
        %v1946 = vmul.f32 %v1945, 0.0078125
        %v1947 = vmul.f32 %v1941, %v1941
        %v1948 = vsel %vm1942, %v1947, 0.0
        %1949 = vadd.xlane.f32.xlu0 %v1948
        %v1950 = vpop.xlane.xlu0 %1949
        %v1951 = vmul.f32 %v1950, 0.0078125
        %v1952 = vmul.f32 %v1946, %v1946
        %v1953 = vsub.f32 %v1951, %v1952
        %v1954 = vsub.f32 %v1941, %v1946
        %v1955 = vadd.f32 %v1953, 1e-05
        %v1956 = vrsqrt.pop %v1955
        %v1957 = vmul.f32 %v1954, %v1956
        %v1958 = vlaneseq
        %v1959 = vshrl.u32 %v1958, 7
        %v1960 = vsub.s32 2, %v1959
        %v1961 = vrot.slane %v1039, %v1960
        %v1962 = vmul.f32 %v1957, %v1961
        %v1963 = vlaneseq
        %v1964 = vshrl.u32 %v1963, 7
        %v1965 = vsub.s32 3, %v1964
        %v1966 = vrot.slane %v1039, %v1965
        %v1967 = vadd.f32 %v1962, %v1966
        %v1968 = vpack.c.bf16 %v1967, %v1967
        %v1970 = vlaneseq
        %v1971 = vshrl.u32 %v1970, 7
        %v1972 = vsub.s32 0, %v1971
        %v1973 = vrot.slane %v1006, %v1972
        %v1974 = vlaneseq
        %v1975 = vshrl.u32 %v1974, 7
        %v1976 = vsub.s32 1, %v1975
        %v1977 = vrot.slane %v1006, %v1976
        %v1996 = vunpack.c.l.b16 %v990
        %v1997 = vunpack.c.h.b16 %v990
        %v1998 = vunpack.c.l.b16 %v991
        %v1999 = vunpack.c.h.b16 %v991
        %v2000 = vunpack.c.l.b16 %v992
        %v2001 = vunpack.c.h.b16 %v992
        %v2002 = vunpack.c.l.b16 %v993
        %v2003 = vunpack.c.h.b16 %v993
        %v2004 = vunpack.c.l.b16 %v994
        %v2005 = vunpack.c.h.b16 %v994
        %v2006 = vunpack.c.l.b16 %v995
        %v2007 = vunpack.c.h.b16 %v995
        %v2008 = vunpack.c.l.b16 %v996
        %v2009 = vunpack.c.h.b16 %v996
        %v2010 = vunpack.c.l.b16 %v997
        %v2011 = vunpack.c.h.b16 %v997
        %v2012 = vunpack.c.l.b16 %v998
        %v2013 = vunpack.c.h.b16 %v998
        %v2014 = vunpack.c.l.b16 %v999
        %v2015 = vunpack.c.h.b16 %v999
        %v2016 = vunpack.c.l.b16 %v1000
        %v2017 = vunpack.c.h.b16 %v1000
        %v2018 = vunpack.c.l.b16 %v1001
        %v2019 = vunpack.c.h.b16 %v1001
        %v2020 = vunpack.c.l.b16 %v1002
        %v2021 = vunpack.c.h.b16 %v1002
        %v2022 = vunpack.c.l.b16 %v1003
        %v2023 = vunpack.c.h.b16 %v1003
        %v2024 = vunpack.c.l.b16 %v1004
        %v2025 = vunpack.c.h.b16 %v1004
        %v2026 = vunpack.c.l.b16 %v1005
        %v2027 = vunpack.c.h.b16 %v1005
        %v2028 = vpack.c.b16 %v1998, %v1996
        %v2029 = vpack.c.b16 %v1999, %v1997
        %v2030 = vpack.c.b16 %v2002, %v2000
        %v2031 = vpack.c.b16 %v2003, %v2001
        %v2032 = vpack.c.b16 %v2006, %v2004
        %v2033 = vpack.c.b16 %v2007, %v2005
        %v2034 = vpack.c.b16 %v2010, %v2008
        %v2035 = vpack.c.b16 %v2011, %v2009
        %v2036 = vpack.c.b16 %v2014, %v2012
        %v2037 = vpack.c.b16 %v2015, %v2013
        %v2038 = vpack.c.b16 %v2018, %v2016
        %v2039 = vpack.c.b16 %v2019, %v2017
        %v2040 = vpack.c.b16 %v2022, %v2020
        %v2041 = vpack.c.b16 %v2023, %v2021
        %v2042 = vpack.c.b16 %v2026, %v2024
        %v2043 = vpack.c.b16 %v2027, %v2025
        %2060 = vmatprep.subr.bf16.mxu0 %v2029
        %2061 = vmatpush1.bf16.msra.mxu0 %v2028
        %2062 = vmatprep.subr.bf16.mxu0 %v2031
        %2063 = vmatpush1.bf16.msra.mxu0 %v2030
        %2064 = vmatprep.subr.bf16.mxu0 %v2033
        %2065 = vmatpush1.bf16.msra.mxu0 %v2032
        %2066 = vmatprep.subr.bf16.mxu0 %v2035
        %2067 = vmatpush1.bf16.msra.mxu0 %v2034
        %2068 = vmatprep.subr.bf16.mxu0 %v2037
        %2069 = vmatpush1.bf16.msra.mxu0 %v2036
        %2070 = vmatprep.subr.bf16.mxu0 %v2039
        %2071 = vmatpush1.bf16.msra.mxu0 %v2038
        %2072 = vmatprep.subr.bf16.mxu0 %v2041
        %2073 = vmatpush1.bf16.msra.mxu0 %v2040
        %2074 = vmatprep.subr.bf16.mxu0 %v2043
        %2075 = vmatpush1.bf16.msra.mxu0 %v2042
        %2076 = vmatprep.subr.bf16.mxu0 0
        %2077 = vmatpush1.bf16.msra.mxu0 0
        %2078 = vmatprep.subr.bf16.mxu0 0
        %2079 = vmatpush1.bf16.msra.mxu0 0
        %2080 = vmatprep.subr.bf16.mxu0 0
        %2081 = vmatpush1.bf16.msra.mxu0 0
        %2082 = vmatprep.subr.bf16.mxu0 0
        %2083 = vmatpush1.bf16.msra.mxu0 0
        %2084 = vmatprep.subr.bf16.mxu0 0
        %2085 = vmatpush1.bf16.msra.mxu0 0
        %2086 = vmatprep.subr.bf16.mxu0 0
        %2087 = vmatpush1.bf16.msra.mxu0 0
        %2088 = vmatprep.subr.bf16.mxu0 0
        %2089 = vmatpush1.bf16.msra.mxu0 0
        %2090 = vmatprep.subr.bf16.mxu0 0
        %2091 = vmatpush1.bf16.msra.mxu0 0
        %2092 = vmatprep.mubr.bf16.mxu0 0
        %2093 = vmatmul.mubr.bf16.gmra.mrb[0].mxu0 %v1968
        %v2094 = vpop.f32.mrb[0].mxu0
        %v2095 = vadd.f32 %v1973, %v2094
        %v2096 = vpop.f32.mrb[0].mxu0
        %v2097 = vadd.f32 %v1977, %v2096
        %v2098 = vpop.f32.mrb[0].mxu0
        %v2099 = vpop.f32.mrb[0].mxu0
        %2100 = vdwg.mxu0
        %v2101 = vmax.f32 %v2095, 0.0
        %v2102 = vmax.f32 %v2097, 0.0
        %v2103 = vpack.c.bf16 %v2101, %v2101
        %v2104 = vpack.c.bf16 %v2102, %v2102
        %v2105 = vlaneseq
        %v2106 = vshrl.u32 %v2105, 7
        %v2107 = vsub.s32 1, %v2106
        %v2108 = vrot.slane %v1039, %v2107
        %v2141 = vunpack.c.l.b16 %v1007
        %v2142 = vunpack.c.l.b16 %v1008
        %v2143 = vunpack.c.l.b16 %v1009
        %v2144 = vunpack.c.l.b16 %v1010
        %v2145 = vunpack.c.l.b16 %v1011
        %v2146 = vunpack.c.l.b16 %v1012
        %v2147 = vunpack.c.l.b16 %v1013
        %v2148 = vunpack.c.l.b16 %v1014
        %v2149 = vunpack.c.l.b16 %v1015
        %v2150 = vunpack.c.l.b16 %v1016
        %v2151 = vunpack.c.l.b16 %v1017
        %v2152 = vunpack.c.l.b16 %v1018
        %v2153 = vunpack.c.l.b16 %v1019
        %v2154 = vunpack.c.l.b16 %v1020
        %v2155 = vunpack.c.l.b16 %v1021
        %v2156 = vunpack.c.l.b16 %v1022
        %v2157 = vunpack.c.l.b16 %v1023
        %v2158 = vunpack.c.l.b16 %v1024
        %v2159 = vunpack.c.l.b16 %v1025
        %v2160 = vunpack.c.l.b16 %v1026
        %v2161 = vunpack.c.l.b16 %v1027
        %v2162 = vunpack.c.l.b16 %v1028
        %v2163 = vunpack.c.l.b16 %v1029
        %v2164 = vunpack.c.l.b16 %v1030
        %v2165 = vunpack.c.l.b16 %v1031
        %v2166 = vunpack.c.l.b16 %v1032
        %v2167 = vunpack.c.l.b16 %v1033
        %v2168 = vunpack.c.l.b16 %v1034
        %v2169 = vunpack.c.l.b16 %v1035
        %v2170 = vunpack.c.l.b16 %v1036
        %v2171 = vunpack.c.l.b16 %v1037
        %v2172 = vunpack.c.l.b16 %v1038
        %v2173 = vpack.c.b16 %v2142, %v2141
        %v2174 = vpack.c.b16 %v2144, %v2143
        %v2175 = vpack.c.b16 %v2146, %v2145
        %v2176 = vpack.c.b16 %v2148, %v2147
        %v2177 = vpack.c.b16 %v2150, %v2149
        %v2178 = vpack.c.b16 %v2152, %v2151
        %v2179 = vpack.c.b16 %v2154, %v2153
        %v2180 = vpack.c.b16 %v2156, %v2155
        %v2181 = vpack.c.b16 %v2158, %v2157
        %v2182 = vpack.c.b16 %v2160, %v2159
        %v2183 = vpack.c.b16 %v2162, %v2161
        %v2184 = vpack.c.b16 %v2164, %v2163
        %v2185 = vpack.c.b16 %v2166, %v2165
        %v2186 = vpack.c.b16 %v2168, %v2167
        %v2187 = vpack.c.b16 %v2170, %v2169
        %v2188 = vpack.c.b16 %v2172, %v2171
        %2205 = vmatprep.subr.bf16.mxu0 0
        %2206 = vmatpush1.bf16.msra.mxu0 %v2173
        %2207 = vmatprep.subr.bf16.mxu0 0
        %2208 = vmatpush1.bf16.msra.mxu0 %v2174
        %2209 = vmatprep.subr.bf16.mxu0 0
        %2210 = vmatpush1.bf16.msra.mxu0 %v2175
        %2211 = vmatprep.subr.bf16.mxu0 0
        %2212 = vmatpush1.bf16.msra.mxu0 %v2176
        %2213 = vmatprep.subr.bf16.mxu0 0
        %2214 = vmatpush1.bf16.msra.mxu0 %v2177
        %2215 = vmatprep.subr.bf16.mxu0 0
        %2216 = vmatpush1.bf16.msra.mxu0 %v2178
        %2217 = vmatprep.subr.bf16.mxu0 0
        %2218 = vmatpush1.bf16.msra.mxu0 %v2179
        %2219 = vmatprep.subr.bf16.mxu0 0
        %2220 = vmatpush1.bf16.msra.mxu0 %v2180
        %2221 = vmatprep.subr.bf16.mxu0 0
        %2222 = vmatpush1.bf16.msra.mxu0 %v2181
        %2223 = vmatprep.subr.bf16.mxu0 0
        %2224 = vmatpush1.bf16.msra.mxu0 %v2182
        %2225 = vmatprep.subr.bf16.mxu0 0
        %2226 = vmatpush1.bf16.msra.mxu0 %v2183
        %2227 = vmatprep.subr.bf16.mxu0 0
        %2228 = vmatpush1.bf16.msra.mxu0 %v2184
        %2229 = vmatprep.subr.bf16.mxu0 0
        %2230 = vmatpush1.bf16.msra.mxu0 %v2185
        %2231 = vmatprep.subr.bf16.mxu0 0
        %2232 = vmatpush1.bf16.msra.mxu0 %v2186
        %2233 = vmatprep.subr.bf16.mxu0 0
        %2234 = vmatpush1.bf16.msra.mxu0 %v2187
        %2235 = vmatprep.subr.bf16.mxu0 0
        %2236 = vmatpush1.bf16.msra.mxu0 %v2188
        %2237 = vmatprep.mubr.bf16.mxu0 %v2104
        %2238 = vmatmul.mubr.bf16.gmra.mrb[0].mxu0 %v2103
        %v2239 = vpop.f32.mrb[0].mxu0
        %v2240 = vadd.f32 %v2108, %v2239
        %v2241 = vpop.f32.mrb[0].mxu0
        %v2242 = vpop.f32.mrb[0].mxu0
        %v2243 = vpop.f32.mrb[0].mxu0
        %2244 = vdwg.mxu0
        %v2245 = vadd.f32 %v1967, %v2240
        %v2246 = vsel %vm1942, %v2245, 0.0
        %2247 = vadd.xlane.f32.xlu0 %v2246
        %v2248 = vpop.xlane.xlu0 %2247
        %v2249 = vmul.f32 %v2248, 0.0078125
        %v2250 = vmul.f32 %v2245, %v2245
        %v2251 = vsel %vm1942, %v2250, 0.0
        %2252 = vadd.xlane.f32.xlu0 %v2251
        %v2253 = vpop.xlane.xlu0 %2252
        %v2254 = vmul.f32 %v2253, 0.0078125
        %v2255 = vmul.f32 %v2249, %v2249
        %v2256 = vsub.f32 %v2254, %v2255
        %v2257 = vsub.f32 %v2245, %v2249
        %v2258 = vadd.f32 %v2256, 1e-05
        %v2259 = vrsqrt.pop %v2258
        %v2260 = vmul.f32 %v2257, %v2259
        %v2261 = vlaneseq
        %v2262 = vshrl.u32 %v2261, 7
        %v2263 = vsub.s32 4, %v2262
        %v2264 = vrot.slane %v1039, %v2263
        %v2265 = vmul.f32 %v2260, %v2264
        %v2266 = vlaneseq
        %v2267 = vshrl.u32 %v2266, 7
        %v2268 = vsub.s32 5, %v2267
        %v2269 = vrot.slane %v1039, %v2268
        %v2270 = vadd.f32 %v2265, %v2269
        %s2271 = scalar_lea.vmem [#allocation16], 192
        %v2272 = vld [vmem:[%s2271] sm:$0xff]
        %v2273 = vld [vmem:[%s2271 + $0x8] sm:$0xf]
        %v2274 = vld [vmem:[%s2271 + $0xc] sm:$0xff]
        %v2275 = vld [vmem:[%s2271 + $0x14] sm:$0xf]
        %v2276 = vld [vmem:[%s2271 + $0x18] sm:$0xff]
        %v2277 = vld [vmem:[%s2271 + $0x20] sm:$0xf]
        %v2278 = vld [vmem:[%s2271 + $0x24] sm:$0xff]
        %v2279 = vld [vmem:[%s2271 + $0x2c] sm:$0xf]
        %v2280 = vld [vmem:[%s2271 + $0x30] sm:$0xff]
        %v2281 = vld [vmem:[%s2271 + $0x38] sm:$0xf]
        %v2282 = vld [vmem:[%s2271 + $0x3c] sm:$0xff]
        %v2283 = vld [vmem:[%s2271 + $0x44] sm:$0xf]
        %v2284 = vld [vmem:[%s2271 + $0x48] sm:$0xff]
        %v2285 = vld [vmem:[%s2271 + $0x50] sm:$0xf]
        %v2286 = vld [vmem:[%s2271 + $0x54] sm:$0xff]
        %v2287 = vld [vmem:[%s2271 + $0x5c] sm:$0xf]
        %v2288 = vld [vmem:[%s2271 + $0x60] sm:$0xff]
        %v2289 = vld [vmem:[%s2271 + $0x68] sm:$0xf]
        %v2290 = vld [vmem:[%s2271 + $0x6c] sm:$0xff]
        %v2291 = vld [vmem:[%s2271 + $0x74] sm:$0xf]
        %v2292 = vld [vmem:[%s2271 + $0x78] sm:$0xff]
        %v2293 = vld [vmem:[%s2271 + $0x80] sm:$0xf]
        %v2294 = vld [vmem:[%s2271 + $0x84] sm:$0xff]
        %v2295 = vld [vmem:[%s2271 + $0x8c] sm:$0xf]
        %v2296 = vld [vmem:[%s2271 + $0x90] sm:$0xff]
        %v2297 = vld [vmem:[%s2271 + $0x98] sm:$0xf]
        %v2298 = vld [vmem:[%s2271 + $0x9c] sm:$0xff]
        %v2299 = vld [vmem:[%s2271 + $0xa4] sm:$0xf]
        %v2300 = vld [vmem:[%s2271 + $0xa8] sm:$0xff]
        %v2301 = vld [vmem:[%s2271 + $0xb0] sm:$0xf]
        %v2302 = vld [vmem:[%s2271 + $0xb4] sm:$0xff]
        %v2303 = vld [vmem:[%s2271 + $0xbc] sm:$0xf]
        %s2304 = scalar_lea.vmem %s15, 3
        %v2305 = vld [vmem:[%s2304] sm:$0x7]
        %s2306 = scalar_lea.vmem [#allocation15], 64
        %v2307 = vld [vmem:[%s2306] sm:$0xf]
        %v2308 = vld [vmem:[%s2306 + $0x4] sm:$0xf]
        %v2309 = vld [vmem:[%s2306 + $0x8] sm:$0xf]
        %v2310 = vld [vmem:[%s2306 + $0xc] sm:$0xf]
        %v2311 = vld [vmem:[%s2306 + $0x10] sm:$0xf]
        %v2312 = vld [vmem:[%s2306 + $0x14] sm:$0xf]
        %v2313 = vld [vmem:[%s2306 + $0x18] sm:$0xf]
        %v2314 = vld [vmem:[%s2306 + $0x1c] sm:$0xf]
        %v2315 = vld [vmem:[%s2306 + $0x20] sm:$0xf]
        %v2316 = vld [vmem:[%s2306 + $0x24] sm:$0xf]
        %v2317 = vld [vmem:[%s2306 + $0x28] sm:$0xf]
        %v2318 = vld [vmem:[%s2306 + $0x2c] sm:$0xf]
        %v2319 = vld [vmem:[%s2306 + $0x30] sm:$0xf]
        %v2320 = vld [vmem:[%s2306 + $0x34] sm:$0xf]
        %v2321 = vld [vmem:[%s2306 + $0x38] sm:$0xf]
        %v2322 = vld [vmem:[%s2306 + $0x3c] sm:$0xf]
        %s2323 = scalar_lea.vmem [#allocation12], 128
        %v2324 = vld [vmem:[%s2323] sm:$0xff]
        %v2325 = vld [vmem:[%s2323 + $0x8] sm:$0xff]
        %v2326 = vld [vmem:[%s2323 + $0x10] sm:$0xff]
        %v2327 = vld [vmem:[%s2323 + $0x18] sm:$0xff]
        %v2328 = vld [vmem:[%s2323 + $0x20] sm:$0xff]
        %v2329 = vld [vmem:[%s2323 + $0x28] sm:$0xff]
        %v2330 = vld [vmem:[%s2323 + $0x30] sm:$0xff]
        %v2331 = vld [vmem:[%s2323 + $0x38] sm:$0xff]
        %v2332 = vld [vmem:[%s2323 + $0x40] sm:$0xff]
        %v2333 = vld [vmem:[%s2323 + $0x48] sm:$0xff]
        %v2334 = vld [vmem:[%s2323 + $0x50] sm:$0xff]
        %v2335 = vld [vmem:[%s2323 + $0x58] sm:$0xff]
        %v2336 = vld [vmem:[%s2323 + $0x60] sm:$0xff]
        %v2337 = vld [vmem:[%s2323 + $0x68] sm:$0xff]
        %v2338 = vld [vmem:[%s2323 + $0x70] sm:$0xff]
        %v2339 = vld [vmem:[%s2323 + $0x78] sm:$0xff]
        %s2340 = scalar_lea.vmem %s14, 2
        %v2341 = vld [vmem:[%s2340] sm:$0x3]
        %s2342 = scalar_lea.vmem [#allocation13], 128
        %v2343 = vld [vmem:[%s2342] sm:$0xf]
        %v2344 = vld [vmem:[%s2342 + $0x4] sm:$0xf]
        %v2345 = vld [vmem:[%s2342 + $0x8] sm:$0xf]
        %v2346 = vld [vmem:[%s2342 + $0xc] sm:$0xf]
        %v2347 = vld [vmem:[%s2342 + $0x10] sm:$0xf]
        %v2348 = vld [vmem:[%s2342 + $0x14] sm:$0xf]
        %v2349 = vld [vmem:[%s2342 + $0x18] sm:$0xf]
        %v2350 = vld [vmem:[%s2342 + $0x1c] sm:$0xf]
        %v2351 = vld [vmem:[%s2342 + $0x20] sm:$0xf]
        %v2352 = vld [vmem:[%s2342 + $0x24] sm:$0xf]
        %v2353 = vld [vmem:[%s2342 + $0x28] sm:$0xf]
        %v2354 = vld [vmem:[%s2342 + $0x2c] sm:$0xf]
        %v2355 = vld [vmem:[%s2342 + $0x30] sm:$0xf]
        %v2356 = vld [vmem:[%s2342 + $0x34] sm:$0xf]
        %v2357 = vld [vmem:[%s2342 + $0x38] sm:$0xf]
        %v2358 = vld [vmem:[%s2342 + $0x3c] sm:$0xf]
        %v2359 = vld [vmem:[%s2342 + $0x40] sm:$0xf]
        %v2360 = vld [vmem:[%s2342 + $0x44] sm:$0xf]
        %v2361 = vld [vmem:[%s2342 + $0x48] sm:$0xf]
        %v2362 = vld [vmem:[%s2342 + $0x4c] sm:$0xf]
        %v2363 = vld [vmem:[%s2342 + $0x50] sm:$0xf]
        %v2364 = vld [vmem:[%s2342 + $0x54] sm:$0xf]
        %v2365 = vld [vmem:[%s2342 + $0x58] sm:$0xf]
        %v2366 = vld [vmem:[%s2342 + $0x5c] sm:$0xf]
        %v2367 = vld [vmem:[%s2342 + $0x60] sm:$0xf]
        %v2368 = vld [vmem:[%s2342 + $0x64] sm:$0xf]
        %v2369 = vld [vmem:[%s2342 + $0x68] sm:$0xf]
        %v2370 = vld [vmem:[%s2342 + $0x6c] sm:$0xf]
        %v2371 = vld [vmem:[%s2342 + $0x70] sm:$0xf]
        %v2372 = vld [vmem:[%s2342 + $0x74] sm:$0xf]
        %v2373 = vld [vmem:[%s2342 + $0x78] sm:$0xf]
        %v2374 = vld [vmem:[%s2342 + $0x7c] sm:$0xf]
        %s2375 = scalar_lea.vmem %s16, 8
        %v2376 = vld [vmem:[%s2375] sm:$0x3f]
        %v2377 = vpack.c.bf16 %v2270, %v2270
        %v2379 = vlaneseq
        %v2380 = vshrl.u32 %v2379, 7
        %v2381 = vsub.s32 0, %v2380
        %v2382 = vrot.slane %v2305, %v2381
        %v2383 = vlaneseq
        %v2384 = vshrl.u32 %v2383, 7
        %v2385 = vsub.s32 1, %v2384
        %v2386 = vrot.slane %v2305, %v2385
        %v2387 = vlaneseq
        %v2388 = vshrl.u32 %v2387, 7
        %v2389 = vsub.s32 2, %v2388
        %v2390 = vrot.slane %v2305, %v2389
        %v2426 = vunpack.c.l.b16 %v2272
        %v2427 = vunpack.c.h.b16 %v2272
        %v2428 = vunpack.c.l.b16 %v2273
        %v2429 = vunpack.c.l.b16 %v2274
        %v2430 = vunpack.c.h.b16 %v2274
        %v2431 = vunpack.c.l.b16 %v2275
        %v2432 = vunpack.c.l.b16 %v2276
        %v2433 = vunpack.c.h.b16 %v2276
        %v2434 = vunpack.c.l.b16 %v2277
        %v2435 = vunpack.c.l.b16 %v2278
        %v2436 = vunpack.c.h.b16 %v2278
        %v2437 = vunpack.c.l.b16 %v2279
        %v2438 = vunpack.c.l.b16 %v2280
        %v2439 = vunpack.c.h.b16 %v2280
        %v2440 = vunpack.c.l.b16 %v2281
        %v2441 = vunpack.c.l.b16 %v2282
        %v2442 = vunpack.c.h.b16 %v2282
        %v2443 = vunpack.c.l.b16 %v2283
        %v2444 = vunpack.c.l.b16 %v2284
        %v2445 = vunpack.c.h.b16 %v2284
        %v2446 = vunpack.c.l.b16 %v2285
        %v2447 = vunpack.c.l.b16 %v2286
        %v2448 = vunpack.c.h.b16 %v2286
        %v2449 = vunpack.c.l.b16 %v2287
        %v2450 = vunpack.c.l.b16 %v2288
        %v2451 = vunpack.c.h.b16 %v2288
        %v2452 = vunpack.c.l.b16 %v2289
        %v2453 = vunpack.c.l.b16 %v2290
        %v2454 = vunpack.c.h.b16 %v2290
        %v2455 = vunpack.c.l.b16 %v2291
        %v2456 = vunpack.c.l.b16 %v2292
        %v2457 = vunpack.c.h.b16 %v2292
        %v2458 = vunpack.c.l.b16 %v2293
        %v2459 = vunpack.c.l.b16 %v2294
        %v2460 = vunpack.c.h.b16 %v2294
        %v2461 = vunpack.c.l.b16 %v2295
        %v2462 = vunpack.c.l.b16 %v2296
        %v2463 = vunpack.c.h.b16 %v2296
        %v2464 = vunpack.c.l.b16 %v2297
        %v2465 = vunpack.c.l.b16 %v2298
        %v2466 = vunpack.c.h.b16 %v2298
        %v2467 = vunpack.c.l.b16 %v2299
        %v2468 = vunpack.c.l.b16 %v2300
        %v2469 = vunpack.c.h.b16 %v2300
        %v2470 = vunpack.c.l.b16 %v2301
        %v2471 = vunpack.c.l.b16 %v2302
        %v2472 = vunpack.c.h.b16 %v2302
        %v2473 = vunpack.c.l.b16 %v2303
        %v2474 = vpack.c.b16 %v2429, %v2426
        %v2475 = vpack.c.b16 %v2430, %v2427
        %v2476 = vpack.c.b16 %v2431, %v2428
        %v2477 = vpack.c.b16 %v2435, %v2432
        %v2478 = vpack.c.b16 %v2436, %v2433
        %v2479 = vpack.c.b16 %v2437, %v2434
        %v2480 = vpack.c.b16 %v2441, %v2438
        %v2481 = vpack.c.b16 %v2442, %v2439
        %v2482 = vpack.c.b16 %v2443, %v2440
        %v2483 = vpack.c.b16 %v2447, %v2444
        %v2484 = vpack.c.b16 %v2448, %v2445
        %v2485 = vpack.c.b16 %v2449, %v2446
        %v2486 = vpack.c.b16 %v2453, %v2450
        %v2487 = vpack.c.b16 %v2454, %v2451
        %v2488 = vpack.c.b16 %v2455, %v2452
        %v2489 = vpack.c.b16 %v2459, %v2456
        %v2490 = vpack.c.b16 %v2460, %v2457
        %v2491 = vpack.c.b16 %v2461, %v2458
        %v2492 = vpack.c.b16 %v2465, %v2462
        %v2493 = vpack.c.b16 %v2466, %v2463
        %v2494 = vpack.c.b16 %v2467, %v2464
        %v2495 = vpack.c.b16 %v2471, %v2468
        %v2496 = vpack.c.b16 %v2472, %v2469
        %v2497 = vpack.c.b16 %v2473, %v2470
        %2522 = vmatprep.subr.bf16.mxu0 %v2475
        %2523 = vmatpush1.bf16.msra.mxu0 %v2474
        %2524 = vmatprep.subr.bf16.mxu0 %v2478
        %2525 = vmatpush1.bf16.msra.mxu0 %v2477
        %2526 = vmatprep.subr.bf16.mxu0 %v2481
        %2527 = vmatpush1.bf16.msra.mxu0 %v2480
        %2528 = vmatprep.subr.bf16.mxu0 %v2484
        %2529 = vmatpush1.bf16.msra.mxu0 %v2483
        %2530 = vmatprep.subr.bf16.mxu0 %v2487
        %2531 = vmatpush1.bf16.msra.mxu0 %v2486
        %2532 = vmatprep.subr.bf16.mxu0 %v2490
        %2533 = vmatpush1.bf16.msra.mxu0 %v2489
        %2534 = vmatprep.subr.bf16.mxu0 %v2493
        %2535 = vmatpush1.bf16.msra.mxu0 %v2492
        %2536 = vmatprep.subr.bf16.mxu0 %v2496
        %2537 = vmatpush1.bf16.msra.mxu0 %v2495
        %2538 = vmatprep.subr.bf16.mxu0 0
        %2539 = vmatpush1.bf16.msra.mxu0 0
        %2540 = vmatprep.subr.bf16.mxu0 0
        %2541 = vmatpush1.bf16.msra.mxu0 0
        %2542 = vmatprep.subr.bf16.mxu0 0
        %2543 = vmatpush1.bf16.msra.mxu0 0
        %2544 = vmatprep.subr.bf16.mxu0 0
        %2545 = vmatpush1.bf16.msra.mxu0 0
        %2546 = vmatprep.subr.bf16.mxu0 0
        %2547 = vmatpush1.bf16.msra.mxu0 0
        %2548 = vmatprep.subr.bf16.mxu0 0
        %2549 = vmatpush1.bf16.msra.mxu0 0
        %2550 = vmatprep.subr.bf16.mxu0 0
        %2551 = vmatpush1.bf16.msra.mxu0 0
        %2552 = vmatprep.subr.bf16.mxu0 0
        %2553 = vmatpush1.bf16.msra.mxu0 0
        %2554 = vmatprep.mubr.bf16.mxu0 0
        %2555 = vmatmul.mubr.bf16.gmra.mrb[0].mxu0 %v2377
        %v2556 = vpop.f32.mrb[0].mxu0
        %v2557 = vadd.f32 %v2382, %v2556
        %v2558 = vpop.f32.mrb[0].mxu0
        %v2559 = vadd.f32 %v2386, %v2558
        %v2560 = vpop.f32.mrb[0].mxu0
        %v2561 = vpop.f32.mrb[0].mxu0
        %2562 = vdwg.mxu0
        %2563 = vmatprep.subr.bf16.mxu0 0
        %2564 = vmatpush1.bf16.msra.mxu0 %v2476
        %2565 = vmatprep.subr.bf16.mxu0 0
        %2566 = vmatpush1.bf16.msra.mxu0 %v2479
        %2567 = vmatprep.subr.bf16.mxu0 0
        %2568 = vmatpush1.bf16.msra.mxu0 %v2482
        %2569 = vmatprep.subr.bf16.mxu0 0
        %2570 = vmatpush1.bf16.msra.mxu0 %v2485
        %2571 = vmatprep.subr.bf16.mxu0 0
        %2572 = vmatpush1.bf16.msra.mxu0 %v2488
        %2573 = vmatprep.subr.bf16.mxu0 0
        %2574 = vmatpush1.bf16.msra.mxu0 %v2491
        %2575 = vmatprep.subr.bf16.mxu0 0
        %2576 = vmatpush1.bf16.msra.mxu0 %v2494
        %2577 = vmatprep.subr.bf16.mxu0 0
        %2578 = vmatpush1.bf16.msra.mxu0 %v2497
        %2579 = vmatprep.subr.bf16.mxu0 0
        %2580 = vmatpush1.bf16.msra.mxu0 0
        %2581 = vmatprep.subr.bf16.mxu0 0
        %2582 = vmatpush1.bf16.msra.mxu0 0
        %2583 = vmatprep.subr.bf16.mxu0 0
        %2584 = vmatpush1.bf16.msra.mxu0 0
        %2585 = vmatprep.subr.bf16.mxu0 0
        %2586 = vmatpush1.bf16.msra.mxu0 0
        %2587 = vmatprep.subr.bf16.mxu0 0
        %2588 = vmatpush1.bf16.msra.mxu0 0
        %2589 = vmatprep.subr.bf16.mxu0 0
        %2590 = vmatpush1.bf16.msra.mxu0 0
        %2591 = vmatprep.subr.bf16.mxu0 0
        %2592 = vmatpush1.bf16.msra.mxu0 0
        %2593 = vmatprep.subr.bf16.mxu0 0
        %2594 = vmatpush1.bf16.msra.mxu0 0
        %2595 = vmatprep.mubr.bf16.mxu0 0
        %2596 = vmatmul.mubr.bf16.gmra.mrb[0].mxu0 %v2377
        %v2597 = vpop.f32.mrb[0].mxu0
        %v2598 = vadd.f32 %v2390, %v2597
        %v2599 = vpop.f32.mrb[0].mxu0
        %v2600 = vpop.f32.mrb[0].mxu0
        %v2601 = vpop.f32.mrb[0].mxu0
        %2602 = vdwg.mxu0
        %v2603 = vpack.c.bf16 %v2557, %v2557
        %v2604 = vpack.c.bf16 %v2559, %v2559
        %v2605 = vpack.c.bf16 %v2598, %v2598
        %v2607 = vsel %vm1269, %v2603, 0
        %v2610 = vsel %vm1269, %v2604, 0
        %2612 = vmatprep.subr.bf16.mxu0 0
        %2613 = vmatpush1.bf16.xpose.msra.mxu0 %v2610
        %2614 = vmatprep.subr.bf16.mxu0 0
        %2615 = vmatpush1.bf16.xpose.msra.mxu0 0
        %2616 = vmatprep.subr.bf16.mxu0 0
        %2617 = vmatpush1.bf16.xpose.msra.mxu0 0
        %2618 = vmatprep.subr.bf16.mxu0 0
        %2619 = vmatpush1.bf16.xpose.msra.mxu0 0
        %2620 = vmatprep.subr.bf16.mxu0 0
        %2621 = vmatpush1.bf16.xpose.msra.mxu0 0
        %2622 = vmatprep.subr.bf16.mxu0 0
        %2623 = vmatpush1.bf16.xpose.msra.mxu0 0
        %2624 = vmatprep.subr.bf16.mxu0 0
        %2625 = vmatpush1.bf16.xpose.msra.mxu0 0
        %2626 = vmatprep.subr.bf16.mxu0 0
        %2627 = vmatpush1.bf16.xpose.msra.mxu0 0
        %2628 = vmatprep.subr.bf16.mxu0 0
        %2629 = vmatpush1.bf16.xpose.msra.mxu0 0
        %2630 = vmatprep.subr.bf16.mxu0 0
        %2631 = vmatpush1.bf16.xpose.msra.mxu0 0
        %2632 = vmatprep.subr.bf16.mxu0 0
        %2633 = vmatpush1.bf16.xpose.msra.mxu0 0
        %2634 = vmatprep.subr.bf16.mxu0 0
        %2635 = vmatpush1.bf16.xpose.msra.mxu0 0
        %2636 = vmatprep.subr.bf16.mxu0 0
        %2637 = vmatpush1.bf16.xpose.msra.mxu0 0
        %2638 = vmatprep.subr.bf16.mxu0 0
        %2639 = vmatpush1.bf16.xpose.msra.mxu0 0
        %2640 = vmatprep.subr.bf16.mxu0 0
        %2641 = vmatpush1.bf16.xpose.msra.mxu0 0
        %2642 = vmatprep.subr.bf16.mxu0 0
        %2643 = vmatpush1.bf16.xpose.msra.mxu0 0
        %2644 = vmatprep.mubr.bf16.mxu0 0
        %2645 = vmatmul.mubr.bf16.gmra.mrb[0].mxu0 %v2607
        %v2646 = vpop.f32.mrb[0].mxu0
        %v2647 = vadd.f32 0.0, %v2646
        %v2648 = vpop.f32.mrb[0].mxu0
        %v2649 = vpop.f32.mrb[0].mxu0
        %v2650 = vpop.f32.mrb[0].mxu0
        %2651 = vdwg.mxu0
        %v2652 = vsel %vm1316, %v2647, -inf
        %2653 = vmax.xlane.f32.xlu0 %v2652
        %v2654 = vpop.xlane.xlu0 %2653
        %v2655 = vsub.f32 %v2647, %v2654
        %v2656 = vmul.f32 %v2655, 1.442695
        %v2657 = vpow.pop %v2656
        %v2658 = vsel %vm1316, %v2657, 0.0
        %2659 = vadd.xlane.f32.xlu0 %v2658
        %v2660 = vpop.xlane.xlu0 %2659
        %v2661 = vrcp.pop %v2660
        %v2662 = vmul.f32 %v2657, %v2661
        %v2663 = vpack.c.bf16 %v2662, %v2662
        %v2665 = vsel %vm1329, %v2663, 0
        %v2668 = vsel %vm1333, %v2605, 0
        %2670 = vmatprep.subr.bf16.mxu0 0
        %2671 = vmatpush1.bf16.msra.mxu0 %v2668
        %2672 = vmatprep.subr.bf16.mxu0 0
        %2673 = vmatpush1.bf16.msra.mxu0 0
        %2674 = vmatprep.subr.bf16.mxu0 0
        %2675 = vmatpush1.bf16.msra.mxu0 0
        %2676 = vmatprep.subr.bf16.mxu0 0
        %2677 = vmatpush1.bf16.msra.mxu0 0
        %2678 = vmatprep.subr.bf16.mxu0 0
        %2679 = vmatpush1.bf16.msra.mxu0 0
        %2680 = vmatprep.subr.bf16.mxu0 0
        %2681 = vmatpush1.bf16.msra.mxu0 0
        %2682 = vmatprep.subr.bf16.mxu0 0
        %2683 = vmatpush1.bf16.msra.mxu0 0
        %2684 = vmatprep.subr.bf16.mxu0 0
        %2685 = vmatpush1.bf16.msra.mxu0 0
        %2686 = vmatprep.subr.bf16.mxu0 0
        %2687 = vmatpush1.bf16.msra.mxu0 0
        %2688 = vmatprep.subr.bf16.mxu0 0
        %2689 = vmatpush1.bf16.msra.mxu0 0
        %2690 = vmatprep.subr.bf16.mxu0 0
        %2691 = vmatpush1.bf16.msra.mxu0 0
        %2692 = vmatprep.subr.bf16.mxu0 0
        %2693 = vmatpush1.bf16.msra.mxu0 0
        %2694 = vmatprep.subr.bf16.mxu0 0
        %2695 = vmatpush1.bf16.msra.mxu0 0
        %2696 = vmatprep.subr.bf16.mxu0 0
        %2697 = vmatpush1.bf16.msra.mxu0 0
        %2698 = vmatprep.subr.bf16.mxu0 0
        %2699 = vmatpush1.bf16.msra.mxu0 0
        %2700 = vmatprep.subr.bf16.mxu0 0
        %2701 = vmatpush1.bf16.msra.mxu0 0
        %2702 = vmatprep.mubr.bf16.mxu0 0
        %2703 = vmatmul.mubr.bf16.gmra.mrb[0].mxu0 %v2665
        %v2704 = vpop.f32.mrb[0].mxu0
        %v2705 = vadd.f32 0.0, %v2704
        %v2706 = vpop.f32.mrb[0].mxu0
        %v2707 = vpop.f32.mrb[0].mxu0
        %v2708 = vpop.f32.mrb[0].mxu0
        %2709 = vdwg.mxu0
        %v2710 = vpack.c.bf16 %v2705, %v2705
        %2712 = vrot.lane.b32.xlu0 %v2603, 96
        %v2713 = vpop.permute.xlu0 %2712
        %2715 = vrot.lane.b32.xlu0 %v2604, 96
        %v2716 = vpop.permute.xlu0 %2715
        %v2718 = vsel %vm1269, %v2713, 0
        %v2721 = vsel %vm1269, %v2716, 0
        %2723 = vmatprep.subr.bf16.mxu0 0
        %2724 = vmatpush1.bf16.xpose.msra.mxu0 %v2721
        %2725 = vmatprep.subr.bf16.mxu0 0
        %2726 = vmatpush1.bf16.xpose.msra.mxu0 0
        %2727 = vmatprep.subr.bf16.mxu0 0
        %2728 = vmatpush1.bf16.xpose.msra.mxu0 0
        %2729 = vmatprep.subr.bf16.mxu0 0
        %2730 = vmatpush1.bf16.xpose.msra.mxu0 0
        %2731 = vmatprep.subr.bf16.mxu0 0
        %2732 = vmatpush1.bf16.xpose.msra.mxu0 0
        %2733 = vmatprep.subr.bf16.mxu0 0
        %2734 = vmatpush1.bf16.xpose.msra.mxu0 0
        %2735 = vmatprep.subr.bf16.mxu0 0
        %2736 = vmatpush1.bf16.xpose.msra.mxu0 0
        %2737 = vmatprep.subr.bf16.mxu0 0
        %2738 = vmatpush1.bf16.xpose.msra.mxu0 0
        %2739 = vmatprep.subr.bf16.mxu0 0
        %2740 = vmatpush1.bf16.xpose.msra.mxu0 0
        %2741 = vmatprep.subr.bf16.mxu0 0
        %2742 = vmatpush1.bf16.xpose.msra.mxu0 0
        %2743 = vmatprep.subr.bf16.mxu0 0
        %2744 = vmatpush1.bf16.xpose.msra.mxu0 0
        %2745 = vmatprep.subr.bf16.mxu0 0
        %2746 = vmatpush1.bf16.xpose.msra.mxu0 0
        %2747 = vmatprep.subr.bf16.mxu0 0
        %2748 = vmatpush1.bf16.xpose.msra.mxu0 0
        %2749 = vmatprep.subr.bf16.mxu0 0
        %2750 = vmatpush1.bf16.xpose.msra.mxu0 0
        %2751 = vmatprep.subr.bf16.mxu0 0
        %2752 = vmatpush1.bf16.xpose.msra.mxu0 0
        %2753 = vmatprep.subr.bf16.mxu0 0
        %2754 = vmatpush1.bf16.xpose.msra.mxu0 0
        %2755 = vmatprep.mubr.bf16.mxu0 0
        %2756 = vmatmul.mubr.bf16.gmra.mrb[0].mxu0 %v2718
        %v2757 = vpop.f32.mrb[0].mxu0
        %v2758 = vadd.f32 0.0, %v2757
        %v2759 = vpop.f32.mrb[0].mxu0
        %v2760 = vpop.f32.mrb[0].mxu0
        %v2761 = vpop.f32.mrb[0].mxu0
        %2762 = vdwg.mxu0
        %v2763 = vsel %vm1316, %v2758, -inf
        %2764 = vmax.xlane.f32.xlu0 %v2763
        %v2765 = vpop.xlane.xlu0 %2764
        %v2766 = vsub.f32 %v2758, %v2765
        %v2767 = vmul.f32 %v2766, 1.442695
        %v2768 = vpow.pop %v2767
        %v2769 = vsel %vm1316, %v2768, 0.0
        %2770 = vadd.xlane.f32.xlu0 %v2769
        %v2771 = vpop.xlane.xlu0 %2770
        %v2772 = vrcp.pop %v2771
        %v2773 = vmul.f32 %v2768, %v2772
        %v2774 = vpack.c.bf16 %v2773, %v2773
        %2776 = vrot.lane.b32.xlu0 %v2605, 96
        %v2777 = vpop.permute.xlu0 %2776
        %v2779 = vsel %vm1329, %v2774, 0
        %v2782 = vsel %vm1333, %v2777, 0
        %2784 = vmatprep.subr.bf16.mxu0 0
        %2785 = vmatpush1.bf16.msra.mxu0 %v2782
        %2786 = vmatprep.subr.bf16.mxu0 0
        %2787 = vmatpush1.bf16.msra.mxu0 0
        %2788 = vmatprep.subr.bf16.mxu0 0
        %2789 = vmatpush1.bf16.msra.mxu0 0
        %2790 = vmatprep.subr.bf16.mxu0 0
        %2791 = vmatpush1.bf16.msra.mxu0 0
        %2792 = vmatprep.subr.bf16.mxu0 0
        %2793 = vmatpush1.bf16.msra.mxu0 0
        %2794 = vmatprep.subr.bf16.mxu0 0
        %2795 = vmatpush1.bf16.msra.mxu0 0
        %2796 = vmatprep.subr.bf16.mxu0 0
        %2797 = vmatpush1.bf16.msra.mxu0 0
        %2798 = vmatprep.subr.bf16.mxu0 0
        %2799 = vmatpush1.bf16.msra.mxu0 0
        %2800 = vmatprep.subr.bf16.mxu0 0
        %2801 = vmatpush1.bf16.msra.mxu0 0
        %2802 = vmatprep.subr.bf16.mxu0 0
        %2803 = vmatpush1.bf16.msra.mxu0 0
        %2804 = vmatprep.subr.bf16.mxu0 0
        %2805 = vmatpush1.bf16.msra.mxu0 0
        %2806 = vmatprep.subr.bf16.mxu0 0
        %2807 = vmatpush1.bf16.msra.mxu0 0
        %2808 = vmatprep.subr.bf16.mxu0 0
        %2809 = vmatpush1.bf16.msra.mxu0 0
        %2810 = vmatprep.subr.bf16.mxu0 0
        %2811 = vmatpush1.bf16.msra.mxu0 0
        %2812 = vmatprep.subr.bf16.mxu0 0
        %2813 = vmatpush1.bf16.msra.mxu0 0
        %2814 = vmatprep.subr.bf16.mxu0 0
        %2815 = vmatpush1.bf16.msra.mxu0 0
        %2816 = vmatprep.mubr.bf16.mxu0 0
        %2817 = vmatmul.mubr.bf16.gmra.mrb[0].mxu0 %v2779
        %v2818 = vpop.f32.mrb[0].mxu0
        %v2819 = vadd.f32 0.0, %v2818
        %v2820 = vpop.f32.mrb[0].mxu0
        %v2821 = vpop.f32.mrb[0].mxu0
        %v2822 = vpop.f32.mrb[0].mxu0
        %2823 = vdwg.mxu0
        %v2824 = vpack.c.bf16 %v2819, %v2819
        %v2829 = vunpack.c.l.b16 %v2311
        %v2830 = vunpack.c.l.b16 %v2312
        %v2831 = vunpack.c.l.b16 %v2313
        %v2832 = vunpack.c.l.b16 %v2314
        %v2833 = vpack.c.b16 %v2830, %v2829
        %v2834 = vpack.c.b16 %v2832, %v2831
        %v2838 = vsel %vm1269, %v2824, 0
        %2840 = vmatprep.subr.bf16.mxu0 0
        %2841 = vmatpush1.bf16.msra.mxu0 %v2833
        %2842 = vmatprep.subr.bf16.mxu0 0
        %2843 = vmatpush1.bf16.msra.mxu0 %v2834
        %2844 = vmatprep.subr.bf16.mxu0 0
        %2845 = vmatpush1.bf16.msra.mxu0 0
        %2846 = vmatprep.subr.bf16.mxu0 0
        %2847 = vmatpush1.bf16.msra.mxu0 0
        %2848 = vmatprep.subr.bf16.mxu0 0
        %2849 = vmatpush1.bf16.msra.mxu0 0
        %2850 = vmatprep.subr.bf16.mxu0 0
        %2851 = vmatpush1.bf16.msra.mxu0 0
        %2852 = vmatprep.subr.bf16.mxu0 0
        %2853 = vmatpush1.bf16.msra.mxu0 0
        %2854 = vmatprep.subr.bf16.mxu0 0
        %2855 = vmatpush1.bf16.msra.mxu0 0
        %2856 = vmatprep.subr.bf16.mxu0 0
        %2857 = vmatpush1.bf16.msra.mxu0 0
        %2858 = vmatprep.subr.bf16.mxu0 0
        %2859 = vmatpush1.bf16.msra.mxu0 0
        %2860 = vmatprep.subr.bf16.mxu0 0
        %2861 = vmatpush1.bf16.msra.mxu0 0
        %2862 = vmatprep.subr.bf16.mxu0 0
        %2863 = vmatpush1.bf16.msra.mxu0 0
        %2864 = vmatprep.subr.bf16.mxu0 0
        %2865 = vmatpush1.bf16.msra.mxu0 0
        %2866 = vmatprep.subr.bf16.mxu0 0
        %2867 = vmatpush1.bf16.msra.mxu0 0
        %2868 = vmatprep.subr.bf16.mxu0 0
        %2869 = vmatpush1.bf16.msra.mxu0 0
        %2870 = vmatprep.subr.bf16.mxu0 0
        %2871 = vmatpush1.bf16.msra.mxu0 0
        %2872 = vmatprep.mubr.bf16.mxu0 0
        %2873 = vmatmul.mubr.bf16.gmra.mrb[0].mxu0 %v2838
        %v2874 = vpop.f32.mrb[0].mxu0
        %v2875 = vadd.f32 0.0, %v2874
        %v2876 = vpop.f32.mrb[0].mxu0
        %v2877 = vpop.f32.mrb[0].mxu0
        %v2878 = vpop.f32.mrb[0].mxu0
        %2879 = vdwg.mxu0
        %v2884 = vunpack.c.l.b16 %v2307
        %v2885 = vunpack.c.l.b16 %v2308
        %v2886 = vunpack.c.l.b16 %v2309
        %v2887 = vunpack.c.l.b16 %v2310
        %v2888 = vpack.c.b16 %v2885, %v2884
        %v2889 = vpack.c.b16 %v2887, %v2886
        %v2893 = vsel %vm1269, %v2710, 0
        %2895 = vmatprep.subr.bf16.mxu0 0
        %2896 = vmatpush1.bf16.msra.mxu0 %v2888
        %2897 = vmatprep.subr.bf16.mxu0 0
        %2898 = vmatpush1.bf16.msra.mxu0 %v2889
        %2899 = vmatprep.subr.bf16.mxu0 0
        %2900 = vmatpush1.bf16.msra.mxu0 0
        %2901 = vmatprep.subr.bf16.mxu0 0
        %2902 = vmatpush1.bf16.msra.mxu0 0
        %2903 = vmatprep.subr.bf16.mxu0 0
        %2904 = vmatpush1.bf16.msra.mxu0 0
        %2905 = vmatprep.subr.bf16.mxu0 0
        %2906 = vmatpush1.bf16.msra.mxu0 0
        %2907 = vmatprep.subr.bf16.mxu0 0
        %2908 = vmatpush1.bf16.msra.mxu0 0
        %2909 = vmatprep.subr.bf16.mxu0 0
        %2910 = vmatpush1.bf16.msra.mxu0 0
        %2911 = vmatprep.subr.bf16.mxu0 0
        %2912 = vmatpush1.bf16.msra.mxu0 0
        %2913 = vmatprep.subr.bf16.mxu0 0
        %2914 = vmatpush1.bf16.msra.mxu0 0
        %2915 = vmatprep.subr.bf16.mxu0 0
        %2916 = vmatpush1.bf16.msra.mxu0 0
        %2917 = vmatprep.subr.bf16.mxu0 0
        %2918 = vmatpush1.bf16.msra.mxu0 0
        %2919 = vmatprep.subr.bf16.mxu0 0
        %2920 = vmatpush1.bf16.msra.mxu0 0
        %2921 = vmatprep.subr.bf16.mxu0 0
        %2922 = vmatpush1.bf16.msra.mxu0 0
        %2923 = vmatprep.subr.bf16.mxu0 0
        %2924 = vmatpush1.bf16.msra.mxu0 0
        %2925 = vmatprep.subr.bf16.mxu0 0
        %2926 = vmatpush1.bf16.msra.mxu0 0
        %2927 = vmatprep.mubr.bf16.mxu0 0
        %2928 = vmatmul.mubr.bf16.gmra.mrb[0].mxu0 %v2893
        %v2929 = vpop.f32.mrb[0].mxu0
        %v2930 = vadd.f32 %v2875, %v2929
        %v2931 = vpop.f32.mrb[0].mxu0
        %v2932 = vpop.f32.mrb[0].mxu0
        %v2933 = vpop.f32.mrb[0].mxu0
        %2934 = vdwg.mxu0
        %2935 = vrot.lane.b32.xlu0 %v2603, 64
        %v2936 = vpop.permute.xlu0 %2935
        %2937 = vrot.lane.b32.xlu0 %v2604, 64
        %v2938 = vpop.permute.xlu0 %2937
        %v2940 = vsel %vm1269, %v2936, 0
        %v2943 = vsel %vm1269, %v2938, 0
        %2945 = vmatprep.subr.bf16.mxu0 0
        %2946 = vmatpush1.bf16.xpose.msra.mxu0 %v2943
        %2947 = vmatprep.subr.bf16.mxu0 0
        %2948 = vmatpush1.bf16.xpose.msra.mxu0 0
        %2949 = vmatprep.subr.bf16.mxu0 0
        %2950 = vmatpush1.bf16.xpose.msra.mxu0 0
        %2951 = vmatprep.subr.bf16.mxu0 0
        %2952 = vmatpush1.bf16.xpose.msra.mxu0 0
        %2953 = vmatprep.subr.bf16.mxu0 0
        %2954 = vmatpush1.bf16.xpose.msra.mxu0 0
        %2955 = vmatprep.subr.bf16.mxu0 0
        %2956 = vmatpush1.bf16.xpose.msra.mxu0 0
        %2957 = vmatprep.subr.bf16.mxu0 0
        %2958 = vmatpush1.bf16.xpose.msra.mxu0 0
        %2959 = vmatprep.subr.bf16.mxu0 0
        %2960 = vmatpush1.bf16.xpose.msra.mxu0 0
        %2961 = vmatprep.subr.bf16.mxu0 0
        %2962 = vmatpush1.bf16.xpose.msra.mxu0 0
        %2963 = vmatprep.subr.bf16.mxu0 0
        %2964 = vmatpush1.bf16.xpose.msra.mxu0 0
        %2965 = vmatprep.subr.bf16.mxu0 0
        %2966 = vmatpush1.bf16.xpose.msra.mxu0 0
        %2967 = vmatprep.subr.bf16.mxu0 0
        %2968 = vmatpush1.bf16.xpose.msra.mxu0 0
        %2969 = vmatprep.subr.bf16.mxu0 0
        %2970 = vmatpush1.bf16.xpose.msra.mxu0 0
        %2971 = vmatprep.subr.bf16.mxu0 0
        %2972 = vmatpush1.bf16.xpose.msra.mxu0 0
        %2973 = vmatprep.subr.bf16.mxu0 0
        %2974 = vmatpush1.bf16.xpose.msra.mxu0 0
        %2975 = vmatprep.subr.bf16.mxu0 0
        %2976 = vmatpush1.bf16.xpose.msra.mxu0 0
        %2977 = vmatprep.mubr.bf16.mxu0 0
        %2978 = vmatmul.mubr.bf16.gmra.mrb[0].mxu0 %v2940
        %v2979 = vpop.f32.mrb[0].mxu0
        %v2980 = vadd.f32 0.0, %v2979
        %v2981 = vpop.f32.mrb[0].mxu0
        %v2982 = vpop.f32.mrb[0].mxu0
        %v2983 = vpop.f32.mrb[0].mxu0
        %2984 = vdwg.mxu0
        %v2985 = vsel %vm1316, %v2980, -inf
        %2986 = vmax.xlane.f32.xlu0 %v2985
        %v2987 = vpop.xlane.xlu0 %2986
        %v2988 = vsub.f32 %v2980, %v2987
        %v2989 = vmul.f32 %v2988, 1.442695
        %v2990 = vpow.pop %v2989
        %v2991 = vsel %vm1316, %v2990, 0.0
        %2992 = vadd.xlane.f32.xlu0 %v2991
        %v2993 = vpop.xlane.xlu0 %2992
        %v2994 = vrcp.pop %v2993
        %v2995 = vmul.f32 %v2990, %v2994
        %v2996 = vpack.c.bf16 %v2995, %v2995
        %2997 = vrot.lane.b32.xlu0 %v2605, 64
        %v2998 = vpop.permute.xlu0 %2997
        %v3000 = vsel %vm1329, %v2996, 0
        %v3003 = vsel %vm1333, %v2998, 0
        %3005 = vmatprep.subr.bf16.mxu0 0
        %3006 = vmatpush1.bf16.msra.mxu0 %v3003
        %3007 = vmatprep.subr.bf16.mxu0 0
        %3008 = vmatpush1.bf16.msra.mxu0 0
        %3009 = vmatprep.subr.bf16.mxu0 0
        %3010 = vmatpush1.bf16.msra.mxu0 0
        %3011 = vmatprep.subr.bf16.mxu0 0
        %3012 = vmatpush1.bf16.msra.mxu0 0
        %3013 = vmatprep.subr.bf16.mxu0 0
        %3014 = vmatpush1.bf16.msra.mxu0 0
        %3015 = vmatprep.subr.bf16.mxu0 0
        %3016 = vmatpush1.bf16.msra.mxu0 0
        %3017 = vmatprep.subr.bf16.mxu0 0
        %3018 = vmatpush1.bf16.msra.mxu0 0
        %3019 = vmatprep.subr.bf16.mxu0 0
        %3020 = vmatpush1.bf16.msra.mxu0 0
        %3021 = vmatprep.subr.bf16.mxu0 0
        %3022 = vmatpush1.bf16.msra.mxu0 0
        %3023 = vmatprep.subr.bf16.mxu0 0
        %3024 = vmatpush1.bf16.msra.mxu0 0
        %3025 = vmatprep.subr.bf16.mxu0 0
        %3026 = vmatpush1.bf16.msra.mxu0 0
        %3027 = vmatprep.subr.bf16.mxu0 0
        %3028 = vmatpush1.bf16.msra.mxu0 0
        %3029 = vmatprep.subr.bf16.mxu0 0
        %3030 = vmatpush1.bf16.msra.mxu0 0
        %3031 = vmatprep.subr.bf16.mxu0 0
        %3032 = vmatpush1.bf16.msra.mxu0 0
        %3033 = vmatprep.subr.bf16.mxu0 0
        %3034 = vmatpush1.bf16.msra.mxu0 0
        %3035 = vmatprep.subr.bf16.mxu0 0
        %3036 = vmatpush1.bf16.msra.mxu0 0
        %3037 = vmatprep.mubr.bf16.mxu0 0
        %3038 = vmatmul.mubr.bf16.gmra.mrb[0].mxu0 %v3000
        %v3039 = vpop.f32.mrb[0].mxu0
        %v3040 = vadd.f32 0.0, %v3039
        %v3041 = vpop.f32.mrb[0].mxu0
        %v3042 = vpop.f32.mrb[0].mxu0
        %v3043 = vpop.f32.mrb[0].mxu0
        %3044 = vdwg.mxu0
        %v3045 = vpack.c.bf16 %v3040, %v3040
        %v3050 = vunpack.c.l.b16 %v2315
        %v3051 = vunpack.c.l.b16 %v2316
        %v3052 = vunpack.c.l.b16 %v2317
        %v3053 = vunpack.c.l.b16 %v2318
        %v3054 = vpack.c.b16 %v3051, %v3050
        %v3055 = vpack.c.b16 %v3053, %v3052
        %v3059 = vsel %vm1269, %v3045, 0
        %3061 = vmatprep.subr.bf16.mxu0 0
        %3062 = vmatpush1.bf16.msra.mxu0 %v3054
        %3063 = vmatprep.subr.bf16.mxu0 0
        %3064 = vmatpush1.bf16.msra.mxu0 %v3055
        %3065 = vmatprep.subr.bf16.mxu0 0
        %3066 = vmatpush1.bf16.msra.mxu0 0
        %3067 = vmatprep.subr.bf16.mxu0 0
        %3068 = vmatpush1.bf16.msra.mxu0 0
        %3069 = vmatprep.subr.bf16.mxu0 0
        %3070 = vmatpush1.bf16.msra.mxu0 0
        %3071 = vmatprep.subr.bf16.mxu0 0
        %3072 = vmatpush1.bf16.msra.mxu0 0
        %3073 = vmatprep.subr.bf16.mxu0 0
        %3074 = vmatpush1.bf16.msra.mxu0 0
        %3075 = vmatprep.subr.bf16.mxu0 0
        %3076 = vmatpush1.bf16.msra.mxu0 0
        %3077 = vmatprep.subr.bf16.mxu0 0
        %3078 = vmatpush1.bf16.msra.mxu0 0
        %3079 = vmatprep.subr.bf16.mxu0 0
        %3080 = vmatpush1.bf16.msra.mxu0 0
        %3081 = vmatprep.subr.bf16.mxu0 0
        %3082 = vmatpush1.bf16.msra.mxu0 0
        %3083 = vmatprep.subr.bf16.mxu0 0
        %3084 = vmatpush1.bf16.msra.mxu0 0
        %3085 = vmatprep.subr.bf16.mxu0 0
        %3086 = vmatpush1.bf16.msra.mxu0 0
        %3087 = vmatprep.subr.bf16.mxu0 0
        %3088 = vmatpush1.bf16.msra.mxu0 0
        %3089 = vmatprep.subr.bf16.mxu0 0
        %3090 = vmatpush1.bf16.msra.mxu0 0
        %3091 = vmatprep.subr.bf16.mxu0 0
        %3092 = vmatpush1.bf16.msra.mxu0 0
        %3093 = vmatprep.mubr.bf16.mxu0 0
        %3094 = vmatmul.mubr.bf16.gmra.mrb[0].mxu0 %v3059
        %v3095 = vpop.f32.mrb[0].mxu0
        %v3096 = vadd.f32 0.0, %v3095
        %v3097 = vpop.f32.mrb[0].mxu0
        %v3098 = vpop.f32.mrb[0].mxu0
        %v3099 = vpop.f32.mrb[0].mxu0
        %3100 = vdwg.mxu0
        %v3101 = vadd.f32 %v2930, %v3096
        %3102 = vrot.lane.b32.xlu0 %v2603, 32
        %v3103 = vpop.permute.xlu0 %3102
        %3104 = vrot.lane.b32.xlu0 %v2604, 32
        %v3105 = vpop.permute.xlu0 %3104
        %v3107 = vsel %vm1269, %v3103, 0
        %v3110 = vsel %vm1269, %v3105, 0
        %3112 = vmatprep.subr.bf16.mxu0 0
        %3113 = vmatpush1.bf16.xpose.msra.mxu0 %v3110
        %3114 = vmatprep.subr.bf16.mxu0 0
        %3115 = vmatpush1.bf16.xpose.msra.mxu0 0
        %3116 = vmatprep.subr.bf16.mxu0 0
        %3117 = vmatpush1.bf16.xpose.msra.mxu0 0
        %3118 = vmatprep.subr.bf16.mxu0 0
        %3119 = vmatpush1.bf16.xpose.msra.mxu0 0
        %3120 = vmatprep.subr.bf16.mxu0 0
        %3121 = vmatpush1.bf16.xpose.msra.mxu0 0
        %3122 = vmatprep.subr.bf16.mxu0 0
        %3123 = vmatpush1.bf16.xpose.msra.mxu0 0
        %3124 = vmatprep.subr.bf16.mxu0 0
        %3125 = vmatpush1.bf16.xpose.msra.mxu0 0
        %3126 = vmatprep.subr.bf16.mxu0 0
        %3127 = vmatpush1.bf16.xpose.msra.mxu0 0
        %3128 = vmatprep.subr.bf16.mxu0 0
        %3129 = vmatpush1.bf16.xpose.msra.mxu0 0
        %3130 = vmatprep.subr.bf16.mxu0 0
        %3131 = vmatpush1.bf16.xpose.msra.mxu0 0
        %3132 = vmatprep.subr.bf16.mxu0 0
        %3133 = vmatpush1.bf16.xpose.msra.mxu0 0
        %3134 = vmatprep.subr.bf16.mxu0 0
        %3135 = vmatpush1.bf16.xpose.msra.mxu0 0
        %3136 = vmatprep.subr.bf16.mxu0 0
        %3137 = vmatpush1.bf16.xpose.msra.mxu0 0
        %3138 = vmatprep.subr.bf16.mxu0 0
        %3139 = vmatpush1.bf16.xpose.msra.mxu0 0
        %3140 = vmatprep.subr.bf16.mxu0 0
        %3141 = vmatpush1.bf16.xpose.msra.mxu0 0
        %3142 = vmatprep.subr.bf16.mxu0 0
        %3143 = vmatpush1.bf16.xpose.msra.mxu0 0
        %3144 = vmatprep.mubr.bf16.mxu0 0
        %3145 = vmatmul.mubr.bf16.gmra.mrb[0].mxu0 %v3107
        %v3146 = vpop.f32.mrb[0].mxu0
        %v3147 = vadd.f32 0.0, %v3146
        %v3148 = vpop.f32.mrb[0].mxu0
        %v3149 = vpop.f32.mrb[0].mxu0
        %v3150 = vpop.f32.mrb[0].mxu0
        %3151 = vdwg.mxu0
        %v3152 = vsel %vm1316, %v3147, -inf
        %3153 = vmax.xlane.f32.xlu0 %v3152
        %v3154 = vpop.xlane.xlu0 %3153
        %v3155 = vsub.f32 %v3147, %v3154
        %v3156 = vmul.f32 %v3155, 1.442695
        %v3157 = vpow.pop %v3156
        %v3158 = vsel %vm1316, %v3157, 0.0
        %3159 = vadd.xlane.f32.xlu0 %v3158
        %v3160 = vpop.xlane.xlu0 %3159
        %v3161 = vrcp.pop %v3160
        %v3162 = vmul.f32 %v3157, %v3161
        %v3163 = vpack.c.bf16 %v3162, %v3162
        %3164 = vrot.lane.b32.xlu0 %v2605, 32
        %v3165 = vpop.permute.xlu0 %3164
        %v3167 = vsel %vm1329, %v3163, 0
        %v3170 = vsel %vm1333, %v3165, 0
        %3172 = vmatprep.subr.bf16.mxu0 0
        %3173 = vmatpush1.bf16.msra.mxu0 %v3170
        %3174 = vmatprep.subr.bf16.mxu0 0
        %3175 = vmatpush1.bf16.msra.mxu0 0
        %3176 = vmatprep.subr.bf16.mxu0 0
        %3177 = vmatpush1.bf16.msra.mxu0 0
        %3178 = vmatprep.subr.bf16.mxu0 0
        %3179 = vmatpush1.bf16.msra.mxu0 0
        %3180 = vmatprep.subr.bf16.mxu0 0
        %3181 = vmatpush1.bf16.msra.mxu0 0
        %3182 = vmatprep.subr.bf16.mxu0 0
        %3183 = vmatpush1.bf16.msra.mxu0 0
        %3184 = vmatprep.subr.bf16.mxu0 0
        %3185 = vmatpush1.bf16.msra.mxu0 0
        %3186 = vmatprep.subr.bf16.mxu0 0
        %3187 = vmatpush1.bf16.msra.mxu0 0
        %3188 = vmatprep.subr.bf16.mxu0 0
        %3189 = vmatpush1.bf16.msra.mxu0 0
        %3190 = vmatprep.subr.bf16.mxu0 0
        %3191 = vmatpush1.bf16.msra.mxu0 0
        %3192 = vmatprep.subr.bf16.mxu0 0
        %3193 = vmatpush1.bf16.msra.mxu0 0
        %3194 = vmatprep.subr.bf16.mxu0 0
        %3195 = vmatpush1.bf16.msra.mxu0 0
        %3196 = vmatprep.subr.bf16.mxu0 0
        %3197 = vmatpush1.bf16.msra.mxu0 0
        %3198 = vmatprep.subr.bf16.mxu0 0
        %3199 = vmatpush1.bf16.msra.mxu0 0
        %3200 = vmatprep.subr.bf16.mxu0 0
        %3201 = vmatpush1.bf16.msra.mxu0 0
        %3202 = vmatprep.subr.bf16.mxu0 0
        %3203 = vmatpush1.bf16.msra.mxu0 0
        %3204 = vmatprep.mubr.bf16.mxu0 0
        %3205 = vmatmul.mubr.bf16.gmra.mrb[0].mxu0 %v3167
        %v3206 = vpop.f32.mrb[0].mxu0
        %v3207 = vadd.f32 0.0, %v3206
        %v3208 = vpop.f32.mrb[0].mxu0
        %v3209 = vpop.f32.mrb[0].mxu0
        %v3210 = vpop.f32.mrb[0].mxu0
        %3211 = vdwg.mxu0
        %v3212 = vpack.c.bf16 %v3207, %v3207
        %v3217 = vunpack.c.l.b16 %v2319
        %v3218 = vunpack.c.l.b16 %v2320
        %v3219 = vunpack.c.l.b16 %v2321
        %v3220 = vunpack.c.l.b16 %v2322
        %v3221 = vpack.c.b16 %v3218, %v3217
        %v3222 = vpack.c.b16 %v3220, %v3219
        %v3226 = vsel %vm1269, %v3212, 0
        %3228 = vmatprep.subr.bf16.mxu0 0
        %3229 = vmatpush1.bf16.msra.mxu0 %v3221
        %3230 = vmatprep.subr.bf16.mxu0 0
        %3231 = vmatpush1.bf16.msra.mxu0 %v3222
        %3232 = vmatprep.subr.bf16.mxu0 0
        %3233 = vmatpush1.bf16.msra.mxu0 0
        %3234 = vmatprep.subr.bf16.mxu0 0
        %3235 = vmatpush1.bf16.msra.mxu0 0
        %3236 = vmatprep.subr.bf16.mxu0 0
        %3237 = vmatpush1.bf16.msra.mxu0 0
        %3238 = vmatprep.subr.bf16.mxu0 0
        %3239 = vmatpush1.bf16.msra.mxu0 0
        %3240 = vmatprep.subr.bf16.mxu0 0
        %3241 = vmatpush1.bf16.msra.mxu0 0
        %3242 = vmatprep.subr.bf16.mxu0 0
        %3243 = vmatpush1.bf16.msra.mxu0 0
        %3244 = vmatprep.subr.bf16.mxu0 0
        %3245 = vmatpush1.bf16.msra.mxu0 0
        %3246 = vmatprep.subr.bf16.mxu0 0
        %3247 = vmatpush1.bf16.msra.mxu0 0
        %3248 = vmatprep.subr.bf16.mxu0 0
        %3249 = vmatpush1.bf16.msra.mxu0 0
        %3250 = vmatprep.subr.bf16.mxu0 0
        %3251 = vmatpush1.bf16.msra.mxu0 0
        %3252 = vmatprep.subr.bf16.mxu0 0
        %3253 = vmatpush1.bf16.msra.mxu0 0
        %3254 = vmatprep.subr.bf16.mxu0 0
        %3255 = vmatpush1.bf16.msra.mxu0 0
        %3256 = vmatprep.subr.bf16.mxu0 0
        %3257 = vmatpush1.bf16.msra.mxu0 0
        %3258 = vmatprep.subr.bf16.mxu0 0
        %3259 = vmatpush1.bf16.msra.mxu0 0
        %3260 = vmatprep.mubr.bf16.mxu0 0
        %3261 = vmatmul.mubr.bf16.gmra.mrb[0].mxu0 %v3226
        %v3262 = vpop.f32.mrb[0].mxu0
        %v3263 = vadd.f32 0.0, %v3262
        %v3264 = vpop.f32.mrb[0].mxu0
        %v3265 = vpop.f32.mrb[0].mxu0
        %v3266 = vpop.f32.mrb[0].mxu0
        %3267 = vdwg.mxu0
        %v3268 = vadd.f32 %v3101, %v3263
        %v3269 = vlaneseq
        %v3270 = vshrl.u32 %v3269, 7
        %v3271 = vsub.s32 0, %v3270
        %v3272 = vrot.slane %v2376, %v3271
        %v3273 = vadd.f32 %v3268, %v3272
        %v3274 = vadd.f32 %v2270, %v3273
        %v3275 = vsel %vm1942, %v3274, 0.0
        %3276 = vadd.xlane.f32.xlu0 %v3275
        %v3277 = vpop.xlane.xlu0 %3276
        %v3278 = vmul.f32 %v3277, 0.0078125
        %v3279 = vmul.f32 %v3274, %v3274
        %v3280 = vsel %vm1942, %v3279, 0.0
        %3281 = vadd.xlane.f32.xlu0 %v3280
        %v3282 = vpop.xlane.xlu0 %3281
        %v3283 = vmul.f32 %v3282, 0.0078125
        %v3284 = vmul.f32 %v3278, %v3278
        %v3285 = vsub.f32 %v3283, %v3284
        %v3286 = vsub.f32 %v3274, %v3278
        %v3287 = vadd.f32 %v3285, 1e-05
        %v3288 = vrsqrt.pop %v3287
        %v3289 = vmul.f32 %v3286, %v3288
        %v3290 = vlaneseq
        %v3291 = vshrl.u32 %v3290, 7
        %v3292 = vsub.s32 2, %v3291
        %v3293 = vrot.slane %v2376, %v3292
        %v3294 = vmul.f32 %v3289, %v3293
        %v3295 = vlaneseq
        %v3296 = vshrl.u32 %v3295, 7
        %v3297 = vsub.s32 3, %v3296
        %v3298 = vrot.slane %v2376, %v3297
        %v3299 = vadd.f32 %v3294, %v3298
        %v3300 = vpack.c.bf16 %v3299, %v3299
        %v3302 = vlaneseq
        %v3303 = vshrl.u32 %v3302, 7
        %v3304 = vsub.s32 0, %v3303
        %v3305 = vrot.slane %v2341, %v3304
        %v3306 = vlaneseq
        %v3307 = vshrl.u32 %v3306, 7
        %v3308 = vsub.s32 1, %v3307
        %v3309 = vrot.slane %v2341, %v3308
        %v3328 = vunpack.c.l.b16 %v2324
        %v3329 = vunpack.c.h.b16 %v2324
        %v3330 = vunpack.c.l.b16 %v2325
        %v3331 = vunpack.c.h.b16 %v2325
        %v3332 = vunpack.c.l.b16 %v2326
        %v3333 = vunpack.c.h.b16 %v2326
        %v3334 = vunpack.c.l.b16 %v2327
        %v3335 = vunpack.c.h.b16 %v2327
        %v3336 = vunpack.c.l.b16 %v2328
        %v3337 = vunpack.c.h.b16 %v2328
        %v3338 = vunpack.c.l.b16 %v2329
        %v3339 = vunpack.c.h.b16 %v2329
        %v3340 = vunpack.c.l.b16 %v2330
        %v3341 = vunpack.c.h.b16 %v2330
        %v3342 = vunpack.c.l.b16 %v2331
        %v3343 = vunpack.c.h.b16 %v2331
        %v3344 = vunpack.c.l.b16 %v2332
        %v3345 = vunpack.c.h.b16 %v2332
        %v3346 = vunpack.c.l.b16 %v2333
        %v3347 = vunpack.c.h.b16 %v2333
        %v3348 = vunpack.c.l.b16 %v2334
        %v3349 = vunpack.c.h.b16 %v2334
        %v3350 = vunpack.c.l.b16 %v2335
        %v3351 = vunpack.c.h.b16 %v2335
        %v3352 = vunpack.c.l.b16 %v2336
        %v3353 = vunpack.c.h.b16 %v2336
        %v3354 = vunpack.c.l.b16 %v2337
        %v3355 = vunpack.c.h.b16 %v2337
        %v3356 = vunpack.c.l.b16 %v2338
        %v3357 = vunpack.c.h.b16 %v2338
        %v3358 = vunpack.c.l.b16 %v2339
        %v3359 = vunpack.c.h.b16 %v2339
        %v3360 = vpack.c.b16 %v3330, %v3328
        %v3361 = vpack.c.b16 %v3331, %v3329
        %v3362 = vpack.c.b16 %v3334, %v3332
        %v3363 = vpack.c.b16 %v3335, %v3333
        %v3364 = vpack.c.b16 %v3338, %v3336
        %v3365 = vpack.c.b16 %v3339, %v3337
        %v3366 = vpack.c.b16 %v3342, %v3340
        %v3367 = vpack.c.b16 %v3343, %v3341
        %v3368 = vpack.c.b16 %v3346, %v3344
        %v3369 = vpack.c.b16 %v3347, %v3345
        %v3370 = vpack.c.b16 %v3350, %v3348
        %v3371 = vpack.c.b16 %v3351, %v3349
        %v3372 = vpack.c.b16 %v3354, %v3352
        %v3373 = vpack.c.b16 %v3355, %v3353
        %v3374 = vpack.c.b16 %v3358, %v3356
        %v3375 = vpack.c.b16 %v3359, %v3357
        %3392 = vmatprep.subr.bf16.mxu0 %v3361
        %3393 = vmatpush1.bf16.msra.mxu0 %v3360
        %3394 = vmatprep.subr.bf16.mxu0 %v3363
        %3395 = vmatpush1.bf16.msra.mxu0 %v3362
        %3396 = vmatprep.subr.bf16.mxu0 %v3365
        %3397 = vmatpush1.bf16.msra.mxu0 %v3364
        %3398 = vmatprep.subr.bf16.mxu0 %v3367
        %3399 = vmatpush1.bf16.msra.mxu0 %v3366
        %3400 = vmatprep.subr.bf16.mxu0 %v3369
        %3401 = vmatpush1.bf16.msra.mxu0 %v3368
        %3402 = vmatprep.subr.bf16.mxu0 %v3371
        %3403 = vmatpush1.bf16.msra.mxu0 %v3370
        %3404 = vmatprep.subr.bf16.mxu0 %v3373
        %3405 = vmatpush1.bf16.msra.mxu0 %v3372
        %3406 = vmatprep.subr.bf16.mxu0 %v3375
        %3407 = vmatpush1.bf16.msra.mxu0 %v3374
        %3408 = vmatprep.subr.bf16.mxu0 0
        %3409 = vmatpush1.bf16.msra.mxu0 0
        %3410 = vmatprep.subr.bf16.mxu0 0
        %3411 = vmatpush1.bf16.msra.mxu0 0
        %3412 = vmatprep.subr.bf16.mxu0 0
        %3413 = vmatpush1.bf16.msra.mxu0 0
        %3414 = vmatprep.subr.bf16.mxu0 0
        %3415 = vmatpush1.bf16.msra.mxu0 0
        %3416 = vmatprep.subr.bf16.mxu0 0
        %3417 = vmatpush1.bf16.msra.mxu0 0
        %3418 = vmatprep.subr.bf16.mxu0 0
        %3419 = vmatpush1.bf16.msra.mxu0 0
        %3420 = vmatprep.subr.bf16.mxu0 0
        %3421 = vmatpush1.bf16.msra.mxu0 0
        %3422 = vmatprep.subr.bf16.mxu0 0
        %3423 = vmatpush1.bf16.msra.mxu0 0
        %3424 = vmatprep.mubr.bf16.mxu0 0
        %3425 = vmatmul.mubr.bf16.gmra.mrb[0].mxu0 %v3300
        %v3426 = vpop.f32.mrb[0].mxu0
        %v3427 = vadd.f32 %v3305, %v3426
        %v3428 = vpop.f32.mrb[0].mxu0
        %v3429 = vadd.f32 %v3309, %v3428
        %v3430 = vpop.f32.mrb[0].mxu0
        %v3431 = vpop.f32.mrb[0].mxu0
        %3432 = vdwg.mxu0
        %v3433 = vmax.f32 %v3427, 0.0
        %v3434 = vmax.f32 %v3429, 0.0
        %v3435 = vpack.c.bf16 %v3433, %v3433
        %v3436 = vpack.c.bf16 %v3434, %v3434
        %v3437 = vlaneseq
        %v3438 = vshrl.u32 %v3437, 7
        %v3439 = vsub.s32 1, %v3438
        %v3440 = vrot.slane %v2376, %v3439
        %v3473 = vunpack.c.l.b16 %v2343
        %v3474 = vunpack.c.l.b16 %v2344
        %v3475 = vunpack.c.l.b16 %v2345
        %v3476 = vunpack.c.l.b16 %v2346
        %v3477 = vunpack.c.l.b16 %v2347
        %v3478 = vunpack.c.l.b16 %v2348
        %v3479 = vunpack.c.l.b16 %v2349
        %v3480 = vunpack.c.l.b16 %v2350
        %v3481 = vunpack.c.l.b16 %v2351
        %v3482 = vunpack.c.l.b16 %v2352
        %v3483 = vunpack.c.l.b16 %v2353
        %v3484 = vunpack.c.l.b16 %v2354
        %v3485 = vunpack.c.l.b16 %v2355
        %v3486 = vunpack.c.l.b16 %v2356
        %v3487 = vunpack.c.l.b16 %v2357
        %v3488 = vunpack.c.l.b16 %v2358
        %v3489 = vunpack.c.l.b16 %v2359
        %v3490 = vunpack.c.l.b16 %v2360
        %v3491 = vunpack.c.l.b16 %v2361
        %v3492 = vunpack.c.l.b16 %v2362
        %v3493 = vunpack.c.l.b16 %v2363
        %v3494 = vunpack.c.l.b16 %v2364
        %v3495 = vunpack.c.l.b16 %v2365
        %v3496 = vunpack.c.l.b16 %v2366
        %v3497 = vunpack.c.l.b16 %v2367
        %v3498 = vunpack.c.l.b16 %v2368
        %v3499 = vunpack.c.l.b16 %v2369
        %v3500 = vunpack.c.l.b16 %v2370
        %v3501 = vunpack.c.l.b16 %v2371
        %v3502 = vunpack.c.l.b16 %v2372
        %v3503 = vunpack.c.l.b16 %v2373
        %v3504 = vunpack.c.l.b16 %v2374
        %v3505 = vpack.c.b16 %v3474, %v3473
        %v3506 = vpack.c.b16 %v3476, %v3475
        %v3507 = vpack.c.b16 %v3478, %v3477
        %v3508 = vpack.c.b16 %v3480, %v3479
        %v3509 = vpack.c.b16 %v3482, %v3481
        %v3510 = vpack.c.b16 %v3484, %v3483
        %v3511 = vpack.c.b16 %v3486, %v3485
        %v3512 = vpack.c.b16 %v3488, %v3487
        %v3513 = vpack.c.b16 %v3490, %v3489
        %v3514 = vpack.c.b16 %v3492, %v3491
        %v3515 = vpack.c.b16 %v3494, %v3493
        %v3516 = vpack.c.b16 %v3496, %v3495
        %v3517 = vpack.c.b16 %v3498, %v3497
        %v3518 = vpack.c.b16 %v3500, %v3499
        %v3519 = vpack.c.b16 %v3502, %v3501
        %v3520 = vpack.c.b16 %v3504, %v3503
        %3537 = vmatprep.subr.bf16.mxu0 0
        %3538 = vmatpush1.bf16.msra.mxu0 %v3505
        %3539 = vmatprep.subr.bf16.mxu0 0
        %3540 = vmatpush1.bf16.msra.mxu0 %v3506
        %3541 = vmatprep.subr.bf16.mxu0 0
        %3542 = vmatpush1.bf16.msra.mxu0 %v3507
        %3543 = vmatprep.subr.bf16.mxu0 0
        %3544 = vmatpush1.bf16.msra.mxu0 %v3508
        %3545 = vmatprep.subr.bf16.mxu0 0
        %3546 = vmatpush1.bf16.msra.mxu0 %v3509
        %3547 = vmatprep.subr.bf16.mxu0 0
        %3548 = vmatpush1.bf16.msra.mxu0 %v3510
        %3549 = vmatprep.subr.bf16.mxu0 0
        %3550 = vmatpush1.bf16.msra.mxu0 %v3511
        %3551 = vmatprep.subr.bf16.mxu0 0
        %3552 = vmatpush1.bf16.msra.mxu0 %v3512
        %3553 = vmatprep.subr.bf16.mxu0 0
        %3554 = vmatpush1.bf16.msra.mxu0 %v3513
        %3555 = vmatprep.subr.bf16.mxu0 0
        %3556 = vmatpush1.bf16.msra.mxu0 %v3514
        %3557 = vmatprep.subr.bf16.mxu0 0
        %3558 = vmatpush1.bf16.msra.mxu0 %v3515
        %3559 = vmatprep.subr.bf16.mxu0 0
        %3560 = vmatpush1.bf16.msra.mxu0 %v3516
        %3561 = vmatprep.subr.bf16.mxu0 0
        %3562 = vmatpush1.bf16.msra.mxu0 %v3517
        %3563 = vmatprep.subr.bf16.mxu0 0
        %3564 = vmatpush1.bf16.msra.mxu0 %v3518
        %3565 = vmatprep.subr.bf16.mxu0 0
        %3566 = vmatpush1.bf16.msra.mxu0 %v3519
        %3567 = vmatprep.subr.bf16.mxu0 0
        %3568 = vmatpush1.bf16.msra.mxu0 %v3520
        %3569 = vmatprep.mubr.bf16.mxu0 %v3436
        %3570 = vmatmul.mubr.bf16.gmra.mrb[0].mxu0 %v3435
        %v3571 = vpop.f32.mrb[0].mxu0
        %v3572 = vadd.f32 %v3440, %v3571
        %v3573 = vpop.f32.mrb[0].mxu0
        %v3574 = vpop.f32.mrb[0].mxu0
        %v3575 = vpop.f32.mrb[0].mxu0
        %3576 = vdwg.mxu0
        %v3577 = vadd.f32 %v3299, %v3572
        %v3578 = vsel %vm1942, %v3577, 0.0
        %3579 = vadd.xlane.f32.xlu0 %v3578
        %v3580 = vpop.xlane.xlu0 %3579
        %v3581 = vmul.f32 %v3580, 0.0078125
        %v3582 = vmul.f32 %v3577, %v3577
        %v3583 = vsel %vm1942, %v3582, 0.0
        %3584 = vadd.xlane.f32.xlu0 %v3583
        %v3585 = vpop.xlane.xlu0 %3584
        %v3586 = vmul.f32 %v3585, 0.0078125
        %v3587 = vmul.f32 %v3581, %v3581
        %v3588 = vsub.f32 %v3586, %v3587
        %v3589 = vsub.f32 %v3577, %v3581
        %v3590 = vadd.f32 %v3588, 1e-05
        %v3591 = vrsqrt.pop %v3590
        %v3592 = vmul.f32 %v3589, %v3591
        %v3593 = vlaneseq
        %v3594 = vshrl.u32 %v3593, 7
        %v3595 = vsub.s32 4, %v3594
        %v3596 = vrot.slane %v2376, %v3595
        %v3597 = vmul.f32 %v3592, %v3596
        %v3598 = vlaneseq
        %v3599 = vshrl.u32 %v3598, 7
        %v3600 = vsub.s32 5, %v3599
        %v3601 = vrot.slane %v2376, %v3600
        %v3602 = vadd.f32 %v3597, %v3601
        %v3603 = vld [vmem:[%s23] sm:$0xf]
        %v3604 = vsel %vm1942, %v3602, 0.0
        %3605 = vadd.xlane.f32.xlu0 %v3604
        %v3606 = vpop.xlane.xlu0 %3605
        %v3607 = vmul.f32 %v3606, 0.0078125
        %v3608 = vmul.f32 %v3602, %v3602
        %v3609 = vsel %vm1942, %v3608, 0.0
        %3610 = vadd.xlane.f32.xlu0 %v3609
        %v3611 = vpop.xlane.xlu0 %3610
        %v3612 = vmul.f32 %v3611, 0.0078125
        %v3613 = vmul.f32 %v3607, %v3607
        %v3614 = vsub.f32 %v3612, %v3613
        %v3615 = vsub.f32 %v3602, %v3607
        %v3616 = vadd.f32 %v3614, 1e-05
        %v3617 = vrsqrt.pop %v3616
        %v3618 = vmul.f32 %v3615, %v3617
        %v3619 = vlaneseq
        %v3620 = vshrl.u32 %v3619, 7
        %v3621 = vsub.s32 0, %v3620
        %v3622 = vrot.slane %v3603, %v3621
        %v3623 = vmul.f32 %v3618, %v3622
        %v3624 = vlaneseq
        %v3625 = vshrl.u32 %v3624, 7
        %v3626 = vsub.s32 1, %v3625
        %v3627 = vrot.slane %v3603, %v3626
        %v3628 = vadd.f32 %v3623, %v3627
        %v3629 = vld [vmem:[#allocation10] sm:$0xff]
        %v3630 = vld [vmem:[#allocation10 + $0x8] sm:$0xf]
        %v3631 = vld [vmem:[#allocation10 + $0xc] sm:$0xff]
        %v3632 = vld [vmem:[#allocation10 + $0x14] sm:$0xf]
        %v3633 = vld [vmem:[#allocation10 + $0x18] sm:$0xff]
        %v3634 = vld [vmem:[#allocation10 + $0x20] sm:$0xf]
        %v3635 = vld [vmem:[#allocation10 + $0x24] sm:$0xff]
        %v3636 = vld [vmem:[#allocation10 + $0x2c] sm:$0xf]
        %v3637 = vld [vmem:[#allocation10 + $0x30] sm:$0xff]
        %v3638 = vld [vmem:[#allocation10 + $0x38] sm:$0xf]
        %v3639 = vld [vmem:[#allocation10 + $0x3c] sm:$0xff]
        %v3640 = vld [vmem:[#allocation10 + $0x44] sm:$0xf]
        %v3641 = vld [vmem:[#allocation10 + $0x48] sm:$0xff]
        %v3642 = vld [vmem:[#allocation10 + $0x50] sm:$0xf]
        %v3643 = vld [vmem:[#allocation10 + $0x54] sm:$0xff]
        %v3644 = vld [vmem:[#allocation10 + $0x5c] sm:$0xf]
        %v3645 = vld [vmem:[#allocation10 + $0x60] sm:$0xff]
        %v3646 = vld [vmem:[#allocation10 + $0x68] sm:$0xf]
        %v3647 = vld [vmem:[#allocation10 + $0x6c] sm:$0xff]
        %v3648 = vld [vmem:[#allocation10 + $0x74] sm:$0xf]
        %v3649 = vld [vmem:[#allocation10 + $0x78] sm:$0xff]
        %v3650 = vld [vmem:[#allocation10 + $0x80] sm:$0xf]
        %v3651 = vld [vmem:[#allocation10 + $0x84] sm:$0xff]
        %v3652 = vld [vmem:[#allocation10 + $0x8c] sm:$0xf]
        %v3653 = vld [vmem:[#allocation10 + $0x90] sm:$0xff]
        %v3654 = vld [vmem:[#allocation10 + $0x98] sm:$0xf]
        %v3655 = vld [vmem:[#allocation10 + $0x9c] sm:$0xff]
        %v3656 = vld [vmem:[#allocation10 + $0xa4] sm:$0xf]
        %v3657 = vld [vmem:[#allocation10 + $0xa8] sm:$0xff]
        %v3658 = vld [vmem:[#allocation10 + $0xb0] sm:$0xf]
        %v3659 = vld [vmem:[#allocation10 + $0xb4] sm:$0xff]
        %v3660 = vld [vmem:[#allocation10 + $0xbc] sm:$0xf]
        %v3661 = vld [vmem:[%s3] sm:$0x7]
        %v3662 = vld [vmem:[#allocation9] sm:$0xf]
        %v3663 = vld [vmem:[#allocation9 + $0x4] sm:$0xf]
        %v3664 = vld [vmem:[#allocation9 + $0x8] sm:$0xf]
        %v3665 = vld [vmem:[#allocation9 + $0xc] sm:$0xf]
        %v3666 = vld [vmem:[#allocation9 + $0x10] sm:$0xf]
        %v3667 = vld [vmem:[#allocation9 + $0x14] sm:$0xf]
        %v3668 = vld [vmem:[#allocation9 + $0x18] sm:$0xf]
        %v3669 = vld [vmem:[#allocation9 + $0x1c] sm:$0xf]
        %v3670 = vld [vmem:[#allocation9 + $0x20] sm:$0xf]
        %v3671 = vld [vmem:[#allocation9 + $0x24] sm:$0xf]
        %v3672 = vld [vmem:[#allocation9 + $0x28] sm:$0xf]
        %v3673 = vld [vmem:[#allocation9 + $0x2c] sm:$0xf]
        %v3674 = vld [vmem:[#allocation9 + $0x30] sm:$0xf]
        %v3675 = vld [vmem:[#allocation9 + $0x34] sm:$0xf]
        %v3676 = vld [vmem:[#allocation9 + $0x38] sm:$0xf]
        %v3677 = vld [vmem:[#allocation9 + $0x3c] sm:$0xf]
        %v3678 = vld [vmem:[#allocation4] sm:$0xf]
        %v3679 = vld [vmem:[#allocation4 + $0x4] sm:$0xf]
        %v3680 = vld [vmem:[#allocation4 + $0x8] sm:$0xf]
        %v3681 = vld [vmem:[#allocation4 + $0xc] sm:$0xf]
        %v3682 = vld [vmem:[#allocation4 + $0x10] sm:$0xf]
        %v3683 = vld [vmem:[#allocation4 + $0x14] sm:$0xf]
        %v3684 = vld [vmem:[#allocation4 + $0x18] sm:$0xf]
        %v3685 = vld [vmem:[#allocation4 + $0x1c] sm:$0xf]
        %v3686 = vld [vmem:[#allocation4 + $0x20] sm:$0xf]
        %v3687 = vld [vmem:[#allocation4 + $0x24] sm:$0xf]
        %v3688 = vld [vmem:[#allocation4 + $0x28] sm:$0xf]
        %v3689 = vld [vmem:[#allocation4 + $0x2c] sm:$0xf]
        %v3690 = vld [vmem:[#allocation4 + $0x30] sm:$0xf]
        %v3691 = vld [vmem:[#allocation4 + $0x34] sm:$0xf]
        %v3692 = vld [vmem:[#allocation4 + $0x38] sm:$0xf]
        %v3693 = vld [vmem:[#allocation4 + $0x3c] sm:$0xf]
        %v3694 = vld [vmem:[#allocation2] sm:$0xff]
        %v3695 = vld [vmem:[#allocation2 + $0x8] sm:$0xff]
        %v3696 = vld [vmem:[#allocation2 + $0x10] sm:$0xff]
        %v3697 = vld [vmem:[#allocation2 + $0x18] sm:$0xff]
        %v3698 = vld [vmem:[#allocation2 + $0x20] sm:$0xff]
        %v3699 = vld [vmem:[#allocation2 + $0x28] sm:$0xff]
        %v3700 = vld [vmem:[#allocation2 + $0x30] sm:$0xff]
        %v3701 = vld [vmem:[#allocation2 + $0x38] sm:$0xff]
        %v3702 = vld [vmem:[#allocation2 + $0x40] sm:$0xff]
        %v3703 = vld [vmem:[#allocation2 + $0x48] sm:$0xff]
        %v3704 = vld [vmem:[#allocation2 + $0x50] sm:$0xff]
        %v3705 = vld [vmem:[#allocation2 + $0x58] sm:$0xff]
        %v3706 = vld [vmem:[#allocation2 + $0x60] sm:$0xff]
        %v3707 = vld [vmem:[#allocation2 + $0x68] sm:$0xff]
        %v3708 = vld [vmem:[#allocation2 + $0x70] sm:$0xff]
        %v3709 = vld [vmem:[#allocation2 + $0x78] sm:$0xff]
        %v3710 = vld [vmem:[%s1] sm:$0x3]
        %v3711 = vld [vmem:[%s6] sm:$0xf]
        %v3712 = vld [vmem:[%s6 + $0x4] sm:$0xf]
        %v3713 = vld [vmem:[%s6 + $0x8] sm:$0xf]
        %v3714 = vld [vmem:[%s6 + $0xc] sm:$0xf]
        %v3715 = vld [vmem:[%s6 + $0x10] sm:$0xf]
        %v3716 = vld [vmem:[%s6 + $0x14] sm:$0xf]
        %v3717 = vld [vmem:[%s6 + $0x18] sm:$0xf]
        %v3718 = vld [vmem:[%s6 + $0x1c] sm:$0xf]
        %v3719 = vld [vmem:[%s6 + $0x20] sm:$0xf]
        %v3720 = vld [vmem:[%s6 + $0x24] sm:$0xf]
        %v3721 = vld [vmem:[%s6 + $0x28] sm:$0xf]
        %v3722 = vld [vmem:[%s6 + $0x2c] sm:$0xf]
        %v3723 = vld [vmem:[%s6 + $0x30] sm:$0xf]
        %v3724 = vld [vmem:[%s6 + $0x34] sm:$0xf]
        %v3725 = vld [vmem:[%s6 + $0x38] sm:$0xf]
        %v3726 = vld [vmem:[%s6 + $0x3c] sm:$0xf]
        %v3727 = vld [vmem:[#allocation6] sm:$0xff]
        %v3728 = vld [vmem:[#allocation6 + $0x8] sm:$0xff]
        %v3729 = vld [vmem:[#allocation6 + $0x10] sm:$0xff]
        %v3730 = vld [vmem:[#allocation6 + $0x18] sm:$0xff]
        %v3731 = vld [vmem:[#allocation6 + $0x20] sm:$0xff]
        %v3732 = vld [vmem:[#allocation6 + $0x28] sm:$0xff]
        %v3733 = vld [vmem:[#allocation6 + $0x30] sm:$0xff]
        %v3734 = vld [vmem:[#allocation6 + $0x38] sm:$0xff]
        %v3735 = vld [vmem:[#allocation6 + $0x40] sm:$0xff]
        %v3736 = vld [vmem:[#allocation6 + $0x48] sm:$0xff]
        %v3737 = vld [vmem:[#allocation6 + $0x50] sm:$0xff]
        %v3738 = vld [vmem:[#allocation6 + $0x58] sm:$0xff]
        %v3739 = vld [vmem:[#allocation6 + $0x60] sm:$0xff]
        %v3740 = vld [vmem:[#allocation6 + $0x68] sm:$0xff]
        %v3741 = vld [vmem:[#allocation6 + $0x70] sm:$0xff]
        %v3742 = vld [vmem:[#allocation6 + $0x78] sm:$0xff]
        %v3743 = vld [vmem:[%s2] sm:$0x3]
        %v3744 = vld [vmem:[#allocation7] sm:$0xf]
        %v3745 = vld [vmem:[#allocation7 + $0x4] sm:$0xf]
        %v3746 = vld [vmem:[#allocation7 + $0x8] sm:$0xf]
        %v3747 = vld [vmem:[#allocation7 + $0xc] sm:$0xf]
        %v3748 = vld [vmem:[#allocation7 + $0x10] sm:$0xf]
        %v3749 = vld [vmem:[#allocation7 + $0x14] sm:$0xf]
        %v3750 = vld [vmem:[#allocation7 + $0x18] sm:$0xf]
        %v3751 = vld [vmem:[#allocation7 + $0x1c] sm:$0xf]
        %v3752 = vld [vmem:[#allocation7 + $0x20] sm:$0xf]
        %v3753 = vld [vmem:[#allocation7 + $0x24] sm:$0xf]
        %v3754 = vld [vmem:[#allocation7 + $0x28] sm:$0xf]
        %v3755 = vld [vmem:[#allocation7 + $0x2c] sm:$0xf]
        %v3756 = vld [vmem:[#allocation7 + $0x30] sm:$0xf]
        %v3757 = vld [vmem:[#allocation7 + $0x34] sm:$0xf]
        %v3758 = vld [vmem:[#allocation7 + $0x38] sm:$0xf]
        %v3759 = vld [vmem:[#allocation7 + $0x3c] sm:$0xf]
        %v3760 = vld [vmem:[#allocation7 + $0x40] sm:$0xf]
        %v3761 = vld [vmem:[#allocation7 + $0x44] sm:$0xf]
        %v3762 = vld [vmem:[#allocation7 + $0x48] sm:$0xf]
        %v3763 = vld [vmem:[#allocation7 + $0x4c] sm:$0xf]
        %v3764 = vld [vmem:[#allocation7 + $0x50] sm:$0xf]
        %v3765 = vld [vmem:[#allocation7 + $0x54] sm:$0xf]
        %v3766 = vld [vmem:[#allocation7 + $0x58] sm:$0xf]
        %v3767 = vld [vmem:[#allocation7 + $0x5c] sm:$0xf]
        %v3768 = vld [vmem:[#allocation7 + $0x60] sm:$0xf]
        %v3769 = vld [vmem:[#allocation7 + $0x64] sm:$0xf]
        %v3770 = vld [vmem:[#allocation7 + $0x68] sm:$0xf]
        %v3771 = vld [vmem:[#allocation7 + $0x6c] sm:$0xf]
        %v3772 = vld [vmem:[#allocation7 + $0x70] sm:$0xf]
        %v3773 = vld [vmem:[#allocation7 + $0x74] sm:$0xf]
        %v3774 = vld [vmem:[#allocation7 + $0x78] sm:$0xf]
        %v3775 = vld [vmem:[#allocation7 + $0x7c] sm:$0xf]
        %v3776 = vld [vmem:[%s4] sm:$0xff]
        %v3777 = vld [vmem:[%s4 + $0x8] sm:$0x3]
        %v3779 = vlaneseq
        %v3780 = vshrl.u32 %v3779, 7
        %v3781 = vsub.s32 0, %v3780
        %v3782 = vrot.slane %v3661, %v3781
        %v3783 = vlaneseq
        %v3784 = vshrl.u32 %v3783, 7
        %v3785 = vsub.s32 1, %v3784
        %v3786 = vrot.slane %v3661, %v3785
        %v3787 = vlaneseq
        %v3788 = vshrl.u32 %v3787, 7
        %v3789 = vsub.s32 2, %v3788
        %v3790 = vrot.slane %v3661, %v3789
        %v3826 = vunpack.c.l.b16 %v3629
        %v3827 = vunpack.c.h.b16 %v3629
        %v3828 = vunpack.c.l.b16 %v3630
        %v3829 = vunpack.c.l.b16 %v3631
        %v3830 = vunpack.c.h.b16 %v3631
        %v3831 = vunpack.c.l.b16 %v3632
        %v3832 = vunpack.c.l.b16 %v3633
        %v3833 = vunpack.c.h.b16 %v3633
        %v3834 = vunpack.c.l.b16 %v3634
        %v3835 = vunpack.c.l.b16 %v3635
        %v3836 = vunpack.c.h.b16 %v3635
        %v3837 = vunpack.c.l.b16 %v3636
        %v3838 = vunpack.c.l.b16 %v3637
        %v3839 = vunpack.c.h.b16 %v3637
        %v3840 = vunpack.c.l.b16 %v3638
        %v3841 = vunpack.c.l.b16 %v3639
        %v3842 = vunpack.c.h.b16 %v3639
        %v3843 = vunpack.c.l.b16 %v3640
        %v3844 = vunpack.c.l.b16 %v3641
        %v3845 = vunpack.c.h.b16 %v3641
        %v3846 = vunpack.c.l.b16 %v3642
        %v3847 = vunpack.c.l.b16 %v3643
        %v3848 = vunpack.c.h.b16 %v3643
        %v3849 = vunpack.c.l.b16 %v3644
        %v3850 = vunpack.c.l.b16 %v3645
        %v3851 = vunpack.c.h.b16 %v3645
        %v3852 = vunpack.c.l.b16 %v3646
        %v3853 = vunpack.c.l.b16 %v3647
        %v3854 = vunpack.c.h.b16 %v3647
        %v3855 = vunpack.c.l.b16 %v3648
        %v3856 = vunpack.c.l.b16 %v3649
        %v3857 = vunpack.c.h.b16 %v3649
        %v3858 = vunpack.c.l.b16 %v3650
        %v3859 = vunpack.c.l.b16 %v3651
        %v3860 = vunpack.c.h.b16 %v3651
        %v3861 = vunpack.c.l.b16 %v3652
        %v3862 = vunpack.c.l.b16 %v3653
        %v3863 = vunpack.c.h.b16 %v3653
        %v3864 = vunpack.c.l.b16 %v3654
        %v3865 = vunpack.c.l.b16 %v3655
        %v3866 = vunpack.c.h.b16 %v3655
        %v3867 = vunpack.c.l.b16 %v3656
        %v3868 = vunpack.c.l.b16 %v3657
        %v3869 = vunpack.c.h.b16 %v3657
        %v3870 = vunpack.c.l.b16 %v3658
        %v3871 = vunpack.c.l.b16 %v3659
        %v3872 = vunpack.c.h.b16 %v3659
        %v3873 = vunpack.c.l.b16 %v3660
        %v3874 = vpack.c.b16 %v3829, %v3826
        %v3875 = vpack.c.b16 %v3830, %v3827
        %v3876 = vpack.c.b16 %v3831, %v3828
        %v3877 = vpack.c.b16 %v3835, %v3832
        %v3878 = vpack.c.b16 %v3836, %v3833
        %v3879 = vpack.c.b16 %v3837, %v3834
        %v3880 = vpack.c.b16 %v3841, %v3838
        %v3881 = vpack.c.b16 %v3842, %v3839
        %v3882 = vpack.c.b16 %v3843, %v3840
        %v3883 = vpack.c.b16 %v3847, %v3844
        %v3884 = vpack.c.b16 %v3848, %v3845
        %v3885 = vpack.c.b16 %v3849, %v3846
        %v3886 = vpack.c.b16 %v3853, %v3850
        %v3887 = vpack.c.b16 %v3854, %v3851
        %v3888 = vpack.c.b16 %v3855, %v3852
        %v3889 = vpack.c.b16 %v3859, %v3856
        %v3890 = vpack.c.b16 %v3860, %v3857
        %v3891 = vpack.c.b16 %v3861, %v3858
        %v3892 = vpack.c.b16 %v3865, %v3862
        %v3893 = vpack.c.b16 %v3866, %v3863
        %v3894 = vpack.c.b16 %v3867, %v3864
        %v3895 = vpack.c.b16 %v3871, %v3868
        %v3896 = vpack.c.b16 %v3872, %v3869
        %v3897 = vpack.c.b16 %v3873, %v3870
        %3922 = vmatprep.subr.bf16.mxu0 %v3875
        %3923 = vmatpush1.bf16.msra.mxu0 %v3874
        %3924 = vmatprep.subr.bf16.mxu0 %v3878
        %3925 = vmatpush1.bf16.msra.mxu0 %v3877
        %3926 = vmatprep.subr.bf16.mxu0 %v3881
        %3927 = vmatpush1.bf16.msra.mxu0 %v3880
        %3928 = vmatprep.subr.bf16.mxu0 %v3884
        %3929 = vmatpush1.bf16.msra.mxu0 %v3883
        %3930 = vmatprep.subr.bf16.mxu0 %v3887
        %3931 = vmatpush1.bf16.msra.mxu0 %v3886
        %3932 = vmatprep.subr.bf16.mxu0 %v3890
        %3933 = vmatpush1.bf16.msra.mxu0 %v3889
        %3934 = vmatprep.subr.bf16.mxu0 %v3893
        %3935 = vmatpush1.bf16.msra.mxu0 %v3892
        %3936 = vmatprep.subr.bf16.mxu0 %v3896
        %3937 = vmatpush1.bf16.msra.mxu0 %v3895
        %3938 = vmatprep.subr.bf16.mxu0 0
        %3939 = vmatpush1.bf16.msra.mxu0 0
        %3940 = vmatprep.subr.bf16.mxu0 0
        %3941 = vmatpush1.bf16.msra.mxu0 0
        %3942 = vmatprep.subr.bf16.mxu0 0
        %3943 = vmatpush1.bf16.msra.mxu0 0
        %3944 = vmatprep.subr.bf16.mxu0 0
        %3945 = vmatpush1.bf16.msra.mxu0 0
        %3946 = vmatprep.subr.bf16.mxu0 0
        %3947 = vmatpush1.bf16.msra.mxu0 0
        %3948 = vmatprep.subr.bf16.mxu0 0
        %3949 = vmatpush1.bf16.msra.mxu0 0
        %3950 = vmatprep.subr.bf16.mxu0 0
        %3951 = vmatpush1.bf16.msra.mxu0 0
        %3952 = vmatprep.subr.bf16.mxu0 0
        %3953 = vmatpush1.bf16.msra.mxu0 0
        %3954 = vmatprep.mubr.bf16.mxu0 0
        %3955 = vmatmul.mubr.bf16.gmra.mrb[0].mxu0 %v1040
        %v3956 = vpop.f32.mrb[0].mxu0
        %v3957 = vadd.f32 %v3782, %v3956
        %v3958 = vpop.f32.mrb[0].mxu0
        %v3959 = vadd.f32 %v3786, %v3958
        %v3960 = vpop.f32.mrb[0].mxu0
        %v3961 = vpop.f32.mrb[0].mxu0
        %3962 = vdwg.mxu0
        %3963 = vmatprep.subr.bf16.mxu0 0
        %3964 = vmatpush1.bf16.msra.mxu0 %v3876
        %3965 = vmatprep.subr.bf16.mxu0 0
        %3966 = vmatpush1.bf16.msra.mxu0 %v3879
        %3967 = vmatprep.subr.bf16.mxu0 0
        %3968 = vmatpush1.bf16.msra.mxu0 %v3882
        %3969 = vmatprep.subr.bf16.mxu0 0
        %3970 = vmatpush1.bf16.msra.mxu0 %v3885
        %3971 = vmatprep.subr.bf16.mxu0 0
        %3972 = vmatpush1.bf16.msra.mxu0 %v3888
        %3973 = vmatprep.subr.bf16.mxu0 0
        %3974 = vmatpush1.bf16.msra.mxu0 %v3891
        %3975 = vmatprep.subr.bf16.mxu0 0
        %3976 = vmatpush1.bf16.msra.mxu0 %v3894
        %3977 = vmatprep.subr.bf16.mxu0 0
        %3978 = vmatpush1.bf16.msra.mxu0 %v3897
        %3979 = vmatprep.subr.bf16.mxu0 0
        %3980 = vmatpush1.bf16.msra.mxu0 0
        %3981 = vmatprep.subr.bf16.mxu0 0
        %3982 = vmatpush1.bf16.msra.mxu0 0
        %3983 = vmatprep.subr.bf16.mxu0 0
        %3984 = vmatpush1.bf16.msra.mxu0 0
        %3985 = vmatprep.subr.bf16.mxu0 0
        %3986 = vmatpush1.bf16.msra.mxu0 0
        %3987 = vmatprep.subr.bf16.mxu0 0
        %3988 = vmatpush1.bf16.msra.mxu0 0
        %3989 = vmatprep.subr.bf16.mxu0 0
        %3990 = vmatpush1.bf16.msra.mxu0 0
        %3991 = vmatprep.subr.bf16.mxu0 0
        %3992 = vmatpush1.bf16.msra.mxu0 0
        %3993 = vmatprep.subr.bf16.mxu0 0
        %3994 = vmatpush1.bf16.msra.mxu0 0
        %3995 = vmatprep.mubr.bf16.mxu0 0
        %3996 = vmatmul.mubr.bf16.gmra.mrb[0].mxu0 %v1040
        %v3997 = vpop.f32.mrb[0].mxu0
        %v3998 = vadd.f32 %v3790, %v3997
        %v3999 = vpop.f32.mrb[0].mxu0
        %v4000 = vpop.f32.mrb[0].mxu0
        %v4001 = vpop.f32.mrb[0].mxu0
        %4002 = vdwg.mxu0
        %v4003 = vpack.c.bf16 %v3957, %v3957
        %v4004 = vpack.c.bf16 %v3959, %v3959
        %v4005 = vpack.c.bf16 %v3998, %v3998
        %v4007 = vsel %vm1269, %v4003, 0
        %v4010 = vsel %vm1269, %v4004, 0
        %4012 = vmatprep.subr.bf16.mxu0 0
        %4013 = vmatpush1.bf16.xpose.msra.mxu0 %v4010
        %4014 = vmatprep.subr.bf16.mxu0 0
        %4015 = vmatpush1.bf16.xpose.msra.mxu0 0
        %4016 = vmatprep.subr.bf16.mxu0 0
        %4017 = vmatpush1.bf16.xpose.msra.mxu0 0
        %4018 = vmatprep.subr.bf16.mxu0 0
        %4019 = vmatpush1.bf16.xpose.msra.mxu0 0
        %4020 = vmatprep.subr.bf16.mxu0 0
        %4021 = vmatpush1.bf16.xpose.msra.mxu0 0
        %4022 = vmatprep.subr.bf16.mxu0 0
        %4023 = vmatpush1.bf16.xpose.msra.mxu0 0
        %4024 = vmatprep.subr.bf16.mxu0 0
        %4025 = vmatpush1.bf16.xpose.msra.mxu0 0
        %4026 = vmatprep.subr.bf16.mxu0 0
        %4027 = vmatpush1.bf16.xpose.msra.mxu0 0
        %4028 = vmatprep.subr.bf16.mxu0 0
        %4029 = vmatpush1.bf16.xpose.msra.mxu0 0
        %4030 = vmatprep.subr.bf16.mxu0 0
        %4031 = vmatpush1.bf16.xpose.msra.mxu0 0
        %4032 = vmatprep.subr.bf16.mxu0 0
        %4033 = vmatpush1.bf16.xpose.msra.mxu0 0
        %4034 = vmatprep.subr.bf16.mxu0 0
        %4035 = vmatpush1.bf16.xpose.msra.mxu0 0
        %4036 = vmatprep.subr.bf16.mxu0 0
        %4037 = vmatpush1.bf16.xpose.msra.mxu0 0
        %4038 = vmatprep.subr.bf16.mxu0 0
        %4039 = vmatpush1.bf16.xpose.msra.mxu0 0
        %4040 = vmatprep.subr.bf16.mxu0 0
        %4041 = vmatpush1.bf16.xpose.msra.mxu0 0
        %4042 = vmatprep.subr.bf16.mxu0 0
        %4043 = vmatpush1.bf16.xpose.msra.mxu0 0
        %4044 = vmatprep.mubr.bf16.mxu0 0
        %4045 = vmatmul.mubr.bf16.gmra.mrb[0].mxu0 %v4007
        %v4046 = vpop.f32.mrb[0].mxu0
        %v4047 = vadd.f32 0.0, %v4046
        %v4048 = vpop.f32.mrb[0].mxu0
        %v4049 = vpop.f32.mrb[0].mxu0
        %v4050 = vpop.f32.mrb[0].mxu0
        %4051 = vdwg.mxu0
        %v4052 = vsel %vm1316, %v4047, -inf
        %4053 = vmax.xlane.f32.xlu0 %v4052
        %v4054 = vpop.xlane.xlu0 %4053
        %v4055 = vsub.f32 %v4047, %v4054
        %v4056 = vmul.f32 %v4055, 1.442695
        %v4057 = vpow.pop %v4056
        %v4058 = vsel %vm1316, %v4057, 0.0
        %4059 = vadd.xlane.f32.xlu0 %v4058
        %v4060 = vpop.xlane.xlu0 %4059
        %v4061 = vrcp.pop %v4060
        %v4062 = vmul.f32 %v4057, %v4061
        %v4063 = vpack.c.bf16 %v4062, %v4062
        %v4065 = vsel %vm1329, %v4063, 0
        %v4068 = vsel %vm1333, %v4005, 0
        %4070 = vmatprep.subr.bf16.mxu0 0
        %4071 = vmatpush1.bf16.msra.mxu0 %v4068
        %4072 = vmatprep.subr.bf16.mxu0 0
        %4073 = vmatpush1.bf16.msra.mxu0 0
        %4074 = vmatprep.subr.bf16.mxu0 0
        %4075 = vmatpush1.bf16.msra.mxu0 0
        %4076 = vmatprep.subr.bf16.mxu0 0
        %4077 = vmatpush1.bf16.msra.mxu0 0
        %4078 = vmatprep.subr.bf16.mxu0 0
        %4079 = vmatpush1.bf16.msra.mxu0 0
        %4080 = vmatprep.subr.bf16.mxu0 0
        %4081 = vmatpush1.bf16.msra.mxu0 0
        %4082 = vmatprep.subr.bf16.mxu0 0
        %4083 = vmatpush1.bf16.msra.mxu0 0
        %4084 = vmatprep.subr.bf16.mxu0 0
        %4085 = vmatpush1.bf16.msra.mxu0 0
        %4086 = vmatprep.subr.bf16.mxu0 0
        %4087 = vmatpush1.bf16.msra.mxu0 0
        %4088 = vmatprep.subr.bf16.mxu0 0
        %4089 = vmatpush1.bf16.msra.mxu0 0
        %4090 = vmatprep.subr.bf16.mxu0 0
        %4091 = vmatpush1.bf16.msra.mxu0 0
        %4092 = vmatprep.subr.bf16.mxu0 0
        %4093 = vmatpush1.bf16.msra.mxu0 0
        %4094 = vmatprep.subr.bf16.mxu0 0
        %4095 = vmatpush1.bf16.msra.mxu0 0
        %4096 = vmatprep.subr.bf16.mxu0 0
        %4097 = vmatpush1.bf16.msra.mxu0 0
        %4098 = vmatprep.subr.bf16.mxu0 0
        %4099 = vmatpush1.bf16.msra.mxu0 0
        %4100 = vmatprep.subr.bf16.mxu0 0
        %4101 = vmatpush1.bf16.msra.mxu0 0
        %4102 = vmatprep.mubr.bf16.mxu0 0
        %4103 = vmatmul.mubr.bf16.gmra.mrb[0].mxu0 %v4065
        %v4104 = vpop.f32.mrb[0].mxu0
        %v4105 = vadd.f32 0.0, %v4104
        %v4106 = vpop.f32.mrb[0].mxu0
        %v4107 = vpop.f32.mrb[0].mxu0
        %v4108 = vpop.f32.mrb[0].mxu0
        %4109 = vdwg.mxu0
        %v4110 = vpack.c.bf16 %v4105, %v4105
        %4112 = vrot.lane.b32.xlu0 %v4003, 96
        %v4113 = vpop.permute.xlu0 %4112
        %4115 = vrot.lane.b32.xlu0 %v4004, 96
        %v4116 = vpop.permute.xlu0 %4115
        %v4118 = vsel %vm1269, %v4113, 0
        %v4121 = vsel %vm1269, %v4116, 0
        %4123 = vmatprep.subr.bf16.mxu0 0
        %4124 = vmatpush1.bf16.xpose.msra.mxu0 %v4121
        %4125 = vmatprep.subr.bf16.mxu0 0
        %4126 = vmatpush1.bf16.xpose.msra.mxu0 0
        %4127 = vmatprep.subr.bf16.mxu0 0
        %4128 = vmatpush1.bf16.xpose.msra.mxu0 0
        %4129 = vmatprep.subr.bf16.mxu0 0
        %4130 = vmatpush1.bf16.xpose.msra.mxu0 0
        %4131 = vmatprep.subr.bf16.mxu0 0
        %4132 = vmatpush1.bf16.xpose.msra.mxu0 0
        %4133 = vmatprep.subr.bf16.mxu0 0
        %4134 = vmatpush1.bf16.xpose.msra.mxu0 0
        %4135 = vmatprep.subr.bf16.mxu0 0
        %4136 = vmatpush1.bf16.xpose.msra.mxu0 0
        %4137 = vmatprep.subr.bf16.mxu0 0
        %4138 = vmatpush1.bf16.xpose.msra.mxu0 0
        %4139 = vmatprep.subr.bf16.mxu0 0
        %4140 = vmatpush1.bf16.xpose.msra.mxu0 0
        %4141 = vmatprep.subr.bf16.mxu0 0
        %4142 = vmatpush1.bf16.xpose.msra.mxu0 0
        %4143 = vmatprep.subr.bf16.mxu0 0
        %4144 = vmatpush1.bf16.xpose.msra.mxu0 0
        %4145 = vmatprep.subr.bf16.mxu0 0
        %4146 = vmatpush1.bf16.xpose.msra.mxu0 0
        %4147 = vmatprep.subr.bf16.mxu0 0
        %4148 = vmatpush1.bf16.xpose.msra.mxu0 0
        %4149 = vmatprep.subr.bf16.mxu0 0
        %4150 = vmatpush1.bf16.xpose.msra.mxu0 0
        %4151 = vmatprep.subr.bf16.mxu0 0
        %4152 = vmatpush1.bf16.xpose.msra.mxu0 0
        %4153 = vmatprep.subr.bf16.mxu0 0
        %4154 = vmatpush1.bf16.xpose.msra.mxu0 0
        %4155 = vmatprep.mubr.bf16.mxu0 0
        %4156 = vmatmul.mubr.bf16.gmra.mrb[0].mxu0 %v4118
        %v4157 = vpop.f32.mrb[0].mxu0
        %v4158 = vadd.f32 0.0, %v4157
        %v4159 = vpop.f32.mrb[0].mxu0
        %v4160 = vpop.f32.mrb[0].mxu0
        %v4161 = vpop.f32.mrb[0].mxu0
        %4162 = vdwg.mxu0
        %v4163 = vsel %vm1316, %v4158, -inf
        %4164 = vmax.xlane.f32.xlu0 %v4163
        %v4165 = vpop.xlane.xlu0 %4164
        %v4166 = vsub.f32 %v4158, %v4165
        %v4167 = vmul.f32 %v4166, 1.442695
        %v4168 = vpow.pop %v4167
        %v4169 = vsel %vm1316, %v4168, 0.0
        %4170 = vadd.xlane.f32.xlu0 %v4169
        %v4171 = vpop.xlane.xlu0 %4170
        %v4172 = vrcp.pop %v4171
        %v4173 = vmul.f32 %v4168, %v4172
        %v4174 = vpack.c.bf16 %v4173, %v4173
        %4176 = vrot.lane.b32.xlu0 %v4005, 96
        %v4177 = vpop.permute.xlu0 %4176
        %v4179 = vsel %vm1329, %v4174, 0
        %v4182 = vsel %vm1333, %v4177, 0
        %4184 = vmatprep.subr.bf16.mxu0 0
        %4185 = vmatpush1.bf16.msra.mxu0 %v4182
        %4186 = vmatprep.subr.bf16.mxu0 0
        %4187 = vmatpush1.bf16.msra.mxu0 0
        %4188 = vmatprep.subr.bf16.mxu0 0
        %4189 = vmatpush1.bf16.msra.mxu0 0
        %4190 = vmatprep.subr.bf16.mxu0 0
        %4191 = vmatpush1.bf16.msra.mxu0 0
        %4192 = vmatprep.subr.bf16.mxu0 0
        %4193 = vmatpush1.bf16.msra.mxu0 0
        %4194 = vmatprep.subr.bf16.mxu0 0
        %4195 = vmatpush1.bf16.msra.mxu0 0
        %4196 = vmatprep.subr.bf16.mxu0 0
        %4197 = vmatpush1.bf16.msra.mxu0 0
        %4198 = vmatprep.subr.bf16.mxu0 0
        %4199 = vmatpush1.bf16.msra.mxu0 0
        %4200 = vmatprep.subr.bf16.mxu0 0
        %4201 = vmatpush1.bf16.msra.mxu0 0
        %4202 = vmatprep.subr.bf16.mxu0 0
        %4203 = vmatpush1.bf16.msra.mxu0 0
        %4204 = vmatprep.subr.bf16.mxu0 0
        %4205 = vmatpush1.bf16.msra.mxu0 0
        %4206 = vmatprep.subr.bf16.mxu0 0
        %4207 = vmatpush1.bf16.msra.mxu0 0
        %4208 = vmatprep.subr.bf16.mxu0 0
        %4209 = vmatpush1.bf16.msra.mxu0 0
        %4210 = vmatprep.subr.bf16.mxu0 0
        %4211 = vmatpush1.bf16.msra.mxu0 0
        %4212 = vmatprep.subr.bf16.mxu0 0
        %4213 = vmatpush1.bf16.msra.mxu0 0
        %4214 = vmatprep.subr.bf16.mxu0 0
        %4215 = vmatpush1.bf16.msra.mxu0 0
        %4216 = vmatprep.mubr.bf16.mxu0 0
        %4217 = vmatmul.mubr.bf16.gmra.mrb[0].mxu0 %v4179
        %v4218 = vpop.f32.mrb[0].mxu0
        %v4219 = vadd.f32 0.0, %v4218
        %v4220 = vpop.f32.mrb[0].mxu0
        %v4221 = vpop.f32.mrb[0].mxu0
        %v4222 = vpop.f32.mrb[0].mxu0
        %4223 = vdwg.mxu0
        %v4224 = vpack.c.bf16 %v4219, %v4219
        %v4229 = vunpack.c.l.b16 %v3666
        %v4230 = vunpack.c.l.b16 %v3667
        %v4231 = vunpack.c.l.b16 %v3668
        %v4232 = vunpack.c.l.b16 %v3669
        %v4233 = vpack.c.b16 %v4230, %v4229
        %v4234 = vpack.c.b16 %v4232, %v4231
        %v4238 = vsel %vm1269, %v4224, 0
        %4240 = vmatprep.subr.bf16.mxu0 0
        %4241 = vmatpush1.bf16.msra.mxu0 %v4233
        %4242 = vmatprep.subr.bf16.mxu0 0
        %4243 = vmatpush1.bf16.msra.mxu0 %v4234
        %4244 = vmatprep.subr.bf16.mxu0 0
        %4245 = vmatpush1.bf16.msra.mxu0 0
        %4246 = vmatprep.subr.bf16.mxu0 0
        %4247 = vmatpush1.bf16.msra.mxu0 0
        %4248 = vmatprep.subr.bf16.mxu0 0
        %4249 = vmatpush1.bf16.msra.mxu0 0
        %4250 = vmatprep.subr.bf16.mxu0 0
        %4251 = vmatpush1.bf16.msra.mxu0 0
        %4252 = vmatprep.subr.bf16.mxu0 0
        %4253 = vmatpush1.bf16.msra.mxu0 0
        %4254 = vmatprep.subr.bf16.mxu0 0
        %4255 = vmatpush1.bf16.msra.mxu0 0
        %4256 = vmatprep.subr.bf16.mxu0 0
        %4257 = vmatpush1.bf16.msra.mxu0 0
        %4258 = vmatprep.subr.bf16.mxu0 0
        %4259 = vmatpush1.bf16.msra.mxu0 0
        %4260 = vmatprep.subr.bf16.mxu0 0
        %4261 = vmatpush1.bf16.msra.mxu0 0
        %4262 = vmatprep.subr.bf16.mxu0 0
        %4263 = vmatpush1.bf16.msra.mxu0 0
        %4264 = vmatprep.subr.bf16.mxu0 0
        %4265 = vmatpush1.bf16.msra.mxu0 0
        %4266 = vmatprep.subr.bf16.mxu0 0
        %4267 = vmatpush1.bf16.msra.mxu0 0
        %4268 = vmatprep.subr.bf16.mxu0 0
        %4269 = vmatpush1.bf16.msra.mxu0 0
        %4270 = vmatprep.subr.bf16.mxu0 0
        %4271 = vmatpush1.bf16.msra.mxu0 0
        %4272 = vmatprep.mubr.bf16.mxu0 0
        %4273 = vmatmul.mubr.bf16.gmra.mrb[0].mxu0 %v4238
        %v4274 = vpop.f32.mrb[0].mxu0
        %v4275 = vadd.f32 0.0, %v4274
        %v4276 = vpop.f32.mrb[0].mxu0
        %v4277 = vpop.f32.mrb[0].mxu0
        %v4278 = vpop.f32.mrb[0].mxu0
        %4279 = vdwg.mxu0
        %v4284 = vunpack.c.l.b16 %v3662
        %v4285 = vunpack.c.l.b16 %v3663
        %v4286 = vunpack.c.l.b16 %v3664
        %v4287 = vunpack.c.l.b16 %v3665
        %v4288 = vpack.c.b16 %v4285, %v4284
        %v4289 = vpack.c.b16 %v4287, %v4286
        %v4293 = vsel %vm1269, %v4110, 0
        %4295 = vmatprep.subr.bf16.mxu0 0
        %4296 = vmatpush1.bf16.msra.mxu0 %v4288
        %4297 = vmatprep.subr.bf16.mxu0 0
        %4298 = vmatpush1.bf16.msra.mxu0 %v4289
        %4299 = vmatprep.subr.bf16.mxu0 0
        %4300 = vmatpush1.bf16.msra.mxu0 0
        %4301 = vmatprep.subr.bf16.mxu0 0
        %4302 = vmatpush1.bf16.msra.mxu0 0
        %4303 = vmatprep.subr.bf16.mxu0 0
        %4304 = vmatpush1.bf16.msra.mxu0 0
        %4305 = vmatprep.subr.bf16.mxu0 0
        %4306 = vmatpush1.bf16.msra.mxu0 0
        %4307 = vmatprep.subr.bf16.mxu0 0
        %4308 = vmatpush1.bf16.msra.mxu0 0
        %4309 = vmatprep.subr.bf16.mxu0 0
        %4310 = vmatpush1.bf16.msra.mxu0 0
        %4311 = vmatprep.subr.bf16.mxu0 0
        %4312 = vmatpush1.bf16.msra.mxu0 0
        %4313 = vmatprep.subr.bf16.mxu0 0
        %4314 = vmatpush1.bf16.msra.mxu0 0
        %4315 = vmatprep.subr.bf16.mxu0 0
        %4316 = vmatpush1.bf16.msra.mxu0 0
        %4317 = vmatprep.subr.bf16.mxu0 0
        %4318 = vmatpush1.bf16.msra.mxu0 0
        %4319 = vmatprep.subr.bf16.mxu0 0
        %4320 = vmatpush1.bf16.msra.mxu0 0
        %4321 = vmatprep.subr.bf16.mxu0 0
        %4322 = vmatpush1.bf16.msra.mxu0 0
        %4323 = vmatprep.subr.bf16.mxu0 0
        %4324 = vmatpush1.bf16.msra.mxu0 0
        %4325 = vmatprep.subr.bf16.mxu0 0
        %4326 = vmatpush1.bf16.msra.mxu0 0
        %4327 = vmatprep.mubr.bf16.mxu0 0
        %4328 = vmatmul.mubr.bf16.gmra.mrb[0].mxu0 %v4293
        %v4329 = vpop.f32.mrb[0].mxu0
        %v4330 = vadd.f32 %v4275, %v4329
        %v4331 = vpop.f32.mrb[0].mxu0
        %v4332 = vpop.f32.mrb[0].mxu0
        %v4333 = vpop.f32.mrb[0].mxu0
        %4334 = vdwg.mxu0
        %4335 = vrot.lane.b32.xlu0 %v4003, 64
        %v4336 = vpop.permute.xlu0 %4335
        %4337 = vrot.lane.b32.xlu0 %v4004, 64
        %v4338 = vpop.permute.xlu0 %4337
        %v4340 = vsel %vm1269, %v4336, 0
        %v4343 = vsel %vm1269, %v4338, 0
        %4345 = vmatprep.subr.bf16.mxu0 0
        %4346 = vmatpush1.bf16.xpose.msra.mxu0 %v4343
        %4347 = vmatprep.subr.bf16.mxu0 0
        %4348 = vmatpush1.bf16.xpose.msra.mxu0 0
        %4349 = vmatprep.subr.bf16.mxu0 0
        %4350 = vmatpush1.bf16.xpose.msra.mxu0 0
        %4351 = vmatprep.subr.bf16.mxu0 0
        %4352 = vmatpush1.bf16.xpose.msra.mxu0 0
        %4353 = vmatprep.subr.bf16.mxu0 0
        %4354 = vmatpush1.bf16.xpose.msra.mxu0 0
        %4355 = vmatprep.subr.bf16.mxu0 0
        %4356 = vmatpush1.bf16.xpose.msra.mxu0 0
        %4357 = vmatprep.subr.bf16.mxu0 0
        %4358 = vmatpush1.bf16.xpose.msra.mxu0 0
        %4359 = vmatprep.subr.bf16.mxu0 0
        %4360 = vmatpush1.bf16.xpose.msra.mxu0 0
        %4361 = vmatprep.subr.bf16.mxu0 0
        %4362 = vmatpush1.bf16.xpose.msra.mxu0 0
        %4363 = vmatprep.subr.bf16.mxu0 0
        %4364 = vmatpush1.bf16.xpose.msra.mxu0 0
        %4365 = vmatprep.subr.bf16.mxu0 0
        %4366 = vmatpush1.bf16.xpose.msra.mxu0 0
        %4367 = vmatprep.subr.bf16.mxu0 0
        %4368 = vmatpush1.bf16.xpose.msra.mxu0 0
        %4369 = vmatprep.subr.bf16.mxu0 0
        %4370 = vmatpush1.bf16.xpose.msra.mxu0 0
        %4371 = vmatprep.subr.bf16.mxu0 0
        %4372 = vmatpush1.bf16.xpose.msra.mxu0 0
        %4373 = vmatprep.subr.bf16.mxu0 0
        %4374 = vmatpush1.bf16.xpose.msra.mxu0 0
        %4375 = vmatprep.subr.bf16.mxu0 0
        %4376 = vmatpush1.bf16.xpose.msra.mxu0 0
        %4377 = vmatprep.mubr.bf16.mxu0 0
        %4378 = vmatmul.mubr.bf16.gmra.mrb[0].mxu0 %v4340
        %v4379 = vpop.f32.mrb[0].mxu0
        %v4380 = vadd.f32 0.0, %v4379
        %v4381 = vpop.f32.mrb[0].mxu0
        %v4382 = vpop.f32.mrb[0].mxu0
        %v4383 = vpop.f32.mrb[0].mxu0
        %4384 = vdwg.mxu0
        %v4385 = vsel %vm1316, %v4380, -inf
        %4386 = vmax.xlane.f32.xlu0 %v4385
        %v4387 = vpop.xlane.xlu0 %4386
        %v4388 = vsub.f32 %v4380, %v4387
        %v4389 = vmul.f32 %v4388, 1.442695
        %v4390 = vpow.pop %v4389
        %v4391 = vsel %vm1316, %v4390, 0.0
        %4392 = vadd.xlane.f32.xlu0 %v4391
        %v4393 = vpop.xlane.xlu0 %4392
        %v4394 = vrcp.pop %v4393
        %v4395 = vmul.f32 %v4390, %v4394
        %v4396 = vpack.c.bf16 %v4395, %v4395
        %4397 = vrot.lane.b32.xlu0 %v4005, 64
        %v4398 = vpop.permute.xlu0 %4397
        %v4400 = vsel %vm1329, %v4396, 0
        %v4403 = vsel %vm1333, %v4398, 0
        %4405 = vmatprep.subr.bf16.mxu0 0
        %4406 = vmatpush1.bf16.msra.mxu0 %v4403
        %4407 = vmatprep.subr.bf16.mxu0 0
        %4408 = vmatpush1.bf16.msra.mxu0 0
        %4409 = vmatprep.subr.bf16.mxu0 0
        %4410 = vmatpush1.bf16.msra.mxu0 0
        %4411 = vmatprep.subr.bf16.mxu0 0
        %4412 = vmatpush1.bf16.msra.mxu0 0
        %4413 = vmatprep.subr.bf16.mxu0 0
        %4414 = vmatpush1.bf16.msra.mxu0 0
        %4415 = vmatprep.subr.bf16.mxu0 0
        %4416 = vmatpush1.bf16.msra.mxu0 0
        %4417 = vmatprep.subr.bf16.mxu0 0
        %4418 = vmatpush1.bf16.msra.mxu0 0
        %4419 = vmatprep.subr.bf16.mxu0 0
        %4420 = vmatpush1.bf16.msra.mxu0 0
        %4421 = vmatprep.subr.bf16.mxu0 0
        %4422 = vmatpush1.bf16.msra.mxu0 0
        %4423 = vmatprep.subr.bf16.mxu0 0
        %4424 = vmatpush1.bf16.msra.mxu0 0
        %4425 = vmatprep.subr.bf16.mxu0 0
        %4426 = vmatpush1.bf16.msra.mxu0 0
        %4427 = vmatprep.subr.bf16.mxu0 0
        %4428 = vmatpush1.bf16.msra.mxu0 0
        %4429 = vmatprep.subr.bf16.mxu0 0
        %4430 = vmatpush1.bf16.msra.mxu0 0
        %4431 = vmatprep.subr.bf16.mxu0 0
        %4432 = vmatpush1.bf16.msra.mxu0 0
        %4433 = vmatprep.subr.bf16.mxu0 0
        %4434 = vmatpush1.bf16.msra.mxu0 0
        %4435 = vmatprep.subr.bf16.mxu0 0
        %4436 = vmatpush1.bf16.msra.mxu0 0
        %4437 = vmatprep.mubr.bf16.mxu0 0
        %4438 = vmatmul.mubr.bf16.gmra.mrb[0].mxu0 %v4400
        %v4439 = vpop.f32.mrb[0].mxu0
        %v4440 = vadd.f32 0.0, %v4439
        %v4441 = vpop.f32.mrb[0].mxu0
        %v4442 = vpop.f32.mrb[0].mxu0
        %v4443 = vpop.f32.mrb[0].mxu0
        %4444 = vdwg.mxu0
        %v4445 = vpack.c.bf16 %v4440, %v4440
        %v4450 = vunpack.c.l.b16 %v3670
        %v4451 = vunpack.c.l.b16 %v3671
        %v4452 = vunpack.c.l.b16 %v3672
        %v4453 = vunpack.c.l.b16 %v3673
        %v4454 = vpack.c.b16 %v4451, %v4450
        %v4455 = vpack.c.b16 %v4453, %v4452
        %v4459 = vsel %vm1269, %v4445, 0
        %4461 = vmatprep.subr.bf16.mxu0 0
        %4462 = vmatpush1.bf16.msra.mxu0 %v4454
        %4463 = vmatprep.subr.bf16.mxu0 0
        %4464 = vmatpush1.bf16.msra.mxu0 %v4455
        %4465 = vmatprep.subr.bf16.mxu0 0
        %4466 = vmatpush1.bf16.msra.mxu0 0
        %4467 = vmatprep.subr.bf16.mxu0 0
        %4468 = vmatpush1.bf16.msra.mxu0 0
        %4469 = vmatprep.subr.bf16.mxu0 0
        %4470 = vmatpush1.bf16.msra.mxu0 0
        %4471 = vmatprep.subr.bf16.mxu0 0
        %4472 = vmatpush1.bf16.msra.mxu0 0
        %4473 = vmatprep.subr.bf16.mxu0 0
        %4474 = vmatpush1.bf16.msra.mxu0 0
        %4475 = vmatprep.subr.bf16.mxu0 0
        %4476 = vmatpush1.bf16.msra.mxu0 0
        %4477 = vmatprep.subr.bf16.mxu0 0
        %4478 = vmatpush1.bf16.msra.mxu0 0
        %4479 = vmatprep.subr.bf16.mxu0 0
        %4480 = vmatpush1.bf16.msra.mxu0 0
        %4481 = vmatprep.subr.bf16.mxu0 0
        %4482 = vmatpush1.bf16.msra.mxu0 0
        %4483 = vmatprep.subr.bf16.mxu0 0
        %4484 = vmatpush1.bf16.msra.mxu0 0
        %4485 = vmatprep.subr.bf16.mxu0 0
        %4486 = vmatpush1.bf16.msra.mxu0 0
        %4487 = vmatprep.subr.bf16.mxu0 0
        %4488 = vmatpush1.bf16.msra.mxu0 0
        %4489 = vmatprep.subr.bf16.mxu0 0
        %4490 = vmatpush1.bf16.msra.mxu0 0
        %4491 = vmatprep.subr.bf16.mxu0 0
        %4492 = vmatpush1.bf16.msra.mxu0 0
        %4493 = vmatprep.mubr.bf16.mxu0 0
        %4494 = vmatmul.mubr.bf16.gmra.mrb[0].mxu0 %v4459
        %v4495 = vpop.f32.mrb[0].mxu0
        %v4496 = vadd.f32 0.0, %v4495
        %v4497 = vpop.f32.mrb[0].mxu0
        %v4498 = vpop.f32.mrb[0].mxu0
        %v4499 = vpop.f32.mrb[0].mxu0
        %4500 = vdwg.mxu0
        %v4501 = vadd.f32 %v4330, %v4496
        %4502 = vrot.lane.b32.xlu0 %v4003, 32
        %v4503 = vpop.permute.xlu0 %4502
        %4504 = vrot.lane.b32.xlu0 %v4004, 32
        %v4505 = vpop.permute.xlu0 %4504
        %v4507 = vsel %vm1269, %v4503, 0
        %v4510 = vsel %vm1269, %v4505, 0
        %4512 = vmatprep.subr.bf16.mxu0 0
        %4513 = vmatpush1.bf16.xpose.msra.mxu0 %v4510
        %4514 = vmatprep.subr.bf16.mxu0 0
        %4515 = vmatpush1.bf16.xpose.msra.mxu0 0
        %4516 = vmatprep.subr.bf16.mxu0 0
        %4517 = vmatpush1.bf16.xpose.msra.mxu0 0
        %4518 = vmatprep.subr.bf16.mxu0 0
        %4519 = vmatpush1.bf16.xpose.msra.mxu0 0
        %4520 = vmatprep.subr.bf16.mxu0 0
        %4521 = vmatpush1.bf16.xpose.msra.mxu0 0
        %4522 = vmatprep.subr.bf16.mxu0 0
        %4523 = vmatpush1.bf16.xpose.msra.mxu0 0
        %4524 = vmatprep.subr.bf16.mxu0 0
        %4525 = vmatpush1.bf16.xpose.msra.mxu0 0
        %4526 = vmatprep.subr.bf16.mxu0 0
        %4527 = vmatpush1.bf16.xpose.msra.mxu0 0
        %4528 = vmatprep.subr.bf16.mxu0 0
        %4529 = vmatpush1.bf16.xpose.msra.mxu0 0
        %4530 = vmatprep.subr.bf16.mxu0 0
        %4531 = vmatpush1.bf16.xpose.msra.mxu0 0
        %4532 = vmatprep.subr.bf16.mxu0 0
        %4533 = vmatpush1.bf16.xpose.msra.mxu0 0
        %4534 = vmatprep.subr.bf16.mxu0 0
        %4535 = vmatpush1.bf16.xpose.msra.mxu0 0
        %4536 = vmatprep.subr.bf16.mxu0 0
        %4537 = vmatpush1.bf16.xpose.msra.mxu0 0
        %4538 = vmatprep.subr.bf16.mxu0 0
        %4539 = vmatpush1.bf16.xpose.msra.mxu0 0
        %4540 = vmatprep.subr.bf16.mxu0 0
        %4541 = vmatpush1.bf16.xpose.msra.mxu0 0
        %4542 = vmatprep.subr.bf16.mxu0 0
        %4543 = vmatpush1.bf16.xpose.msra.mxu0 0
        %4544 = vmatprep.mubr.bf16.mxu0 0
        %4545 = vmatmul.mubr.bf16.gmra.mrb[0].mxu0 %v4507
        %v4546 = vpop.f32.mrb[0].mxu0
        %v4547 = vadd.f32 0.0, %v4546
        %v4548 = vpop.f32.mrb[0].mxu0
        %v4549 = vpop.f32.mrb[0].mxu0
        %v4550 = vpop.f32.mrb[0].mxu0
        %4551 = vdwg.mxu0
        %v4552 = vsel %vm1316, %v4547, -inf
        %4553 = vmax.xlane.f32.xlu0 %v4552
        %v4554 = vpop.xlane.xlu0 %4553
        %v4555 = vsub.f32 %v4547, %v4554
        %v4556 = vmul.f32 %v4555, 1.442695
        %v4557 = vpow.pop %v4556
        %v4558 = vsel %vm1316, %v4557, 0.0
        %4559 = vadd.xlane.f32.xlu0 %v4558
        %v4560 = vpop.xlane.xlu0 %4559
        %v4561 = vrcp.pop %v4560
        %v4562 = vmul.f32 %v4557, %v4561
        %v4563 = vpack.c.bf16 %v4562, %v4562
        %4564 = vrot.lane.b32.xlu0 %v4005, 32
        %v4565 = vpop.permute.xlu0 %4564
        %v4567 = vsel %vm1329, %v4563, 0
        %v4570 = vsel %vm1333, %v4565, 0
        %4572 = vmatprep.subr.bf16.mxu0 0
        %4573 = vmatpush1.bf16.msra.mxu0 %v4570
        %4574 = vmatprep.subr.bf16.mxu0 0
        %4575 = vmatpush1.bf16.msra.mxu0 0
        %4576 = vmatprep.subr.bf16.mxu0 0
        %4577 = vmatpush1.bf16.msra.mxu0 0
        %4578 = vmatprep.subr.bf16.mxu0 0
        %4579 = vmatpush1.bf16.msra.mxu0 0
        %4580 = vmatprep.subr.bf16.mxu0 0
        %4581 = vmatpush1.bf16.msra.mxu0 0
        %4582 = vmatprep.subr.bf16.mxu0 0
        %4583 = vmatpush1.bf16.msra.mxu0 0
        %4584 = vmatprep.subr.bf16.mxu0 0
        %4585 = vmatpush1.bf16.msra.mxu0 0
        %4586 = vmatprep.subr.bf16.mxu0 0
        %4587 = vmatpush1.bf16.msra.mxu0 0
        %4588 = vmatprep.subr.bf16.mxu0 0
        %4589 = vmatpush1.bf16.msra.mxu0 0
        %4590 = vmatprep.subr.bf16.mxu0 0
        %4591 = vmatpush1.bf16.msra.mxu0 0
        %4592 = vmatprep.subr.bf16.mxu0 0
        %4593 = vmatpush1.bf16.msra.mxu0 0
        %4594 = vmatprep.subr.bf16.mxu0 0
        %4595 = vmatpush1.bf16.msra.mxu0 0
        %4596 = vmatprep.subr.bf16.mxu0 0
        %4597 = vmatpush1.bf16.msra.mxu0 0
        %4598 = vmatprep.subr.bf16.mxu0 0
        %4599 = vmatpush1.bf16.msra.mxu0 0
        %4600 = vmatprep.subr.bf16.mxu0 0
        %4601 = vmatpush1.bf16.msra.mxu0 0
        %4602 = vmatprep.subr.bf16.mxu0 0
        %4603 = vmatpush1.bf16.msra.mxu0 0
        %4604 = vmatprep.mubr.bf16.mxu0 0
        %4605 = vmatmul.mubr.bf16.gmra.mrb[0].mxu0 %v4567
        %v4606 = vpop.f32.mrb[0].mxu0
        %v4607 = vadd.f32 0.0, %v4606
        %v4608 = vpop.f32.mrb[0].mxu0
        %v4609 = vpop.f32.mrb[0].mxu0
        %v4610 = vpop.f32.mrb[0].mxu0
        %4611 = vdwg.mxu0
        %v4612 = vpack.c.bf16 %v4607, %v4607
        %v4617 = vunpack.c.l.b16 %v3674
        %v4618 = vunpack.c.l.b16 %v3675
        %v4619 = vunpack.c.l.b16 %v3676
        %v4620 = vunpack.c.l.b16 %v3677
        %v4621 = vpack.c.b16 %v4618, %v4617
        %v4622 = vpack.c.b16 %v4620, %v4619
        %v4626 = vsel %vm1269, %v4612, 0
        %4628 = vmatprep.subr.bf16.mxu0 0
        %4629 = vmatpush1.bf16.msra.mxu0 %v4621
        %4630 = vmatprep.subr.bf16.mxu0 0
        %4631 = vmatpush1.bf16.msra.mxu0 %v4622
        %4632 = vmatprep.subr.bf16.mxu0 0
        %4633 = vmatpush1.bf16.msra.mxu0 0
        %4634 = vmatprep.subr.bf16.mxu0 0
        %4635 = vmatpush1.bf16.msra.mxu0 0
        %4636 = vmatprep.subr.bf16.mxu0 0
        %4637 = vmatpush1.bf16.msra.mxu0 0
        %4638 = vmatprep.subr.bf16.mxu0 0
        %4639 = vmatpush1.bf16.msra.mxu0 0
        %4640 = vmatprep.subr.bf16.mxu0 0
        %4641 = vmatpush1.bf16.msra.mxu0 0
        %4642 = vmatprep.subr.bf16.mxu0 0
        %4643 = vmatpush1.bf16.msra.mxu0 0
        %4644 = vmatprep.subr.bf16.mxu0 0
        %4645 = vmatpush1.bf16.msra.mxu0 0
        %4646 = vmatprep.subr.bf16.mxu0 0
        %4647 = vmatpush1.bf16.msra.mxu0 0
        %4648 = vmatprep.subr.bf16.mxu0 0
        %4649 = vmatpush1.bf16.msra.mxu0 0
        %4650 = vmatprep.subr.bf16.mxu0 0
        %4651 = vmatpush1.bf16.msra.mxu0 0
        %4652 = vmatprep.subr.bf16.mxu0 0
        %4653 = vmatpush1.bf16.msra.mxu0 0
        %4654 = vmatprep.subr.bf16.mxu0 0
        %4655 = vmatpush1.bf16.msra.mxu0 0
        %4656 = vmatprep.subr.bf16.mxu0 0
        %4657 = vmatpush1.bf16.msra.mxu0 0
        %4658 = vmatprep.subr.bf16.mxu0 0
        %4659 = vmatpush1.bf16.msra.mxu0 0
        %4660 = vmatprep.mubr.bf16.mxu0 0
        %4661 = vmatmul.mubr.bf16.gmra.mrb[0].mxu0 %v4626
        %v4662 = vpop.f32.mrb[0].mxu0
        %v4663 = vadd.f32 0.0, %v4662
        %v4664 = vpop.f32.mrb[0].mxu0
        %v4665 = vpop.f32.mrb[0].mxu0
        %v4666 = vpop.f32.mrb[0].mxu0
        %4667 = vdwg.mxu0
        %v4668 = vadd.f32 %v4501, %v4663
        %v4669 = vlaneseq
        %v4670 = vshrl.u32 %v4669, 7
        %v4671 = vsub.s32 0, %v4670
        %v4672 = vrot.slane %v3776, %v4671
        %v4673 = vadd.f32 %v4668, %v4672
        %v4674 = vadd.f32 %v936, %v4673
        %v4675 = vsel %vm1942, %v4674, 0.0
        %4676 = vadd.xlane.f32.xlu0 %v4675
        %v4677 = vpop.xlane.xlu0 %4676
        %v4678 = vmul.f32 %v4677, 0.0078125
        %v4679 = vmul.f32 %v4674, %v4674
        %v4680 = vsel %vm1942, %v4679, 0.0
        %4681 = vadd.xlane.f32.xlu0 %v4680
        %v4682 = vpop.xlane.xlu0 %4681
        %v4683 = vmul.f32 %v4682, 0.0078125
        %v4684 = vmul.f32 %v4678, %v4678
        %v4685 = vsub.f32 %v4683, %v4684
        %v4686 = vsub.f32 %v4674, %v4678
        %v4687 = vadd.f32 %v4685, 1e-05
        %v4688 = vrsqrt.pop %v4687
        %v4689 = vmul.f32 %v4686, %v4688
        %v4690 = vlaneseq
        %v4691 = vshrl.u32 %v4690, 7
        %v4692 = vsub.s32 4, %v4691
        %v4693 = vrot.slane %v3776, %v4692
        %v4694 = vmul.f32 %v4689, %v4693
        %v4695 = vlaneseq
        %v4696 = vshrl.u32 %v4695, 7
        %v4697 = vsub.s32 5, %v4696
        %v4698 = vrot.slane %v3776, %v4697
        %v4699 = vadd.f32 %v4694, %v4698
        %v4700 = vpack.c.bf16 %v4699, %v4699
        %v4701 = vlaneseq
        %v4702 = vshrl.u32 %v4701, 7
        %v4703 = vsub.s32 1, %v4702
        %v4704 = vrot.slane %v3776, %v4703
        %v4721 = vunpack.c.l.b16 %v3678
        %v4722 = vunpack.c.l.b16 %v3679
        %v4723 = vunpack.c.l.b16 %v3680
        %v4724 = vunpack.c.l.b16 %v3681
        %v4725 = vunpack.c.l.b16 %v3682
        %v4726 = vunpack.c.l.b16 %v3683
        %v4727 = vunpack.c.l.b16 %v3684
        %v4728 = vunpack.c.l.b16 %v3685
        %v4729 = vunpack.c.l.b16 %v3686
        %v4730 = vunpack.c.l.b16 %v3687
        %v4731 = vunpack.c.l.b16 %v3688
        %v4732 = vunpack.c.l.b16 %v3689
        %v4733 = vunpack.c.l.b16 %v3690
        %v4734 = vunpack.c.l.b16 %v3691
        %v4735 = vunpack.c.l.b16 %v3692
        %v4736 = vunpack.c.l.b16 %v3693
        %v4737 = vpack.c.b16 %v4722, %v4721
        %v4738 = vpack.c.b16 %v4724, %v4723
        %v4739 = vpack.c.b16 %v4726, %v4725
        %v4740 = vpack.c.b16 %v4728, %v4727
        %v4741 = vpack.c.b16 %v4730, %v4729
        %v4742 = vpack.c.b16 %v4732, %v4731
        %v4743 = vpack.c.b16 %v4734, %v4733
        %v4744 = vpack.c.b16 %v4736, %v4735
        %4753 = vmatprep.subr.bf16.mxu0 0
        %4754 = vmatpush1.bf16.msra.mxu0 %v4737
        %4755 = vmatprep.subr.bf16.mxu0 0
        %4756 = vmatpush1.bf16.msra.mxu0 %v4738
        %4757 = vmatprep.subr.bf16.mxu0 0
        %4758 = vmatpush1.bf16.msra.mxu0 %v4739
        %4759 = vmatprep.subr.bf16.mxu0 0
        %4760 = vmatpush1.bf16.msra.mxu0 %v4740
        %4761 = vmatprep.subr.bf16.mxu0 0
        %4762 = vmatpush1.bf16.msra.mxu0 %v4741
        %4763 = vmatprep.subr.bf16.mxu0 0
        %4764 = vmatpush1.bf16.msra.mxu0 %v4742
        %4765 = vmatprep.subr.bf16.mxu0 0
        %4766 = vmatpush1.bf16.msra.mxu0 %v4743
        %4767 = vmatprep.subr.bf16.mxu0 0
        %4768 = vmatpush1.bf16.msra.mxu0 %v4744
        %4769 = vmatprep.subr.bf16.mxu0 0
        %4770 = vmatpush1.bf16.msra.mxu0 0
        %4771 = vmatprep.subr.bf16.mxu0 0
        %4772 = vmatpush1.bf16.msra.mxu0 0
        %4773 = vmatprep.subr.bf16.mxu0 0
        %4774 = vmatpush1.bf16.msra.mxu0 0
        %4775 = vmatprep.subr.bf16.mxu0 0
        %4776 = vmatpush1.bf16.msra.mxu0 0
        %4777 = vmatprep.subr.bf16.mxu0 0
        %4778 = vmatpush1.bf16.msra.mxu0 0
        %4779 = vmatprep.subr.bf16.mxu0 0
        %4780 = vmatpush1.bf16.msra.mxu0 0
        %4781 = vmatprep.subr.bf16.mxu0 0
        %4782 = vmatpush1.bf16.msra.mxu0 0
        %4783 = vmatprep.subr.bf16.mxu0 0
        %4784 = vmatpush1.bf16.msra.mxu0 0
        %4785 = vmatprep.mubr.bf16.mxu0 0
        %4786 = vmatmul.mubr.bf16.gmra.mrb[0].mxu0 %v4700
        %v4787 = vpop.f32.mrb[0].mxu0
        %v4788 = vadd.f32 %v4704, %v4787
        %v4789 = vpop.f32.mrb[0].mxu0
        %v4790 = vpop.f32.mrb[0].mxu0
        %v4791 = vpop.f32.mrb[0].mxu0
        %4792 = vdwg.mxu0
        %v4793 = vpack.c.bf16 %v3628, %v3628
        %v4795 = vlaneseq
        %v4796 = vshrl.u32 %v4795, 7
        %v4797 = vsub.s32 0, %v4796
        %v4798 = vrot.slane %v3710, %v4797
        %v4799 = vlaneseq
        %v4800 = vshrl.u32 %v4799, 7
        %v4801 = vsub.s32 1, %v4800
        %v4802 = vrot.slane %v3710, %v4801
        %v4821 = vunpack.c.l.b16 %v3694
        %v4822 = vunpack.c.h.b16 %v3694
        %v4823 = vunpack.c.l.b16 %v3695
        %v4824 = vunpack.c.h.b16 %v3695
        %v4825 = vunpack.c.l.b16 %v3696
        %v4826 = vunpack.c.h.b16 %v3696
        %v4827 = vunpack.c.l.b16 %v3697
        %v4828 = vunpack.c.h.b16 %v3697
        %v4829 = vunpack.c.l.b16 %v3698
        %v4830 = vunpack.c.h.b16 %v3698
        %v4831 = vunpack.c.l.b16 %v3699
        %v4832 = vunpack.c.h.b16 %v3699
        %v4833 = vunpack.c.l.b16 %v3700
        %v4834 = vunpack.c.h.b16 %v3700
        %v4835 = vunpack.c.l.b16 %v3701
        %v4836 = vunpack.c.h.b16 %v3701
        %v4837 = vunpack.c.l.b16 %v3702
        %v4838 = vunpack.c.h.b16 %v3702
        %v4839 = vunpack.c.l.b16 %v3703
        %v4840 = vunpack.c.h.b16 %v3703
        %v4841 = vunpack.c.l.b16 %v3704
        %v4842 = vunpack.c.h.b16 %v3704
        %v4843 = vunpack.c.l.b16 %v3705
        %v4844 = vunpack.c.h.b16 %v3705
        %v4845 = vunpack.c.l.b16 %v3706
        %v4846 = vunpack.c.h.b16 %v3706
        %v4847 = vunpack.c.l.b16 %v3707
        %v4848 = vunpack.c.h.b16 %v3707
        %v4849 = vunpack.c.l.b16 %v3708
        %v4850 = vunpack.c.h.b16 %v3708
        %v4851 = vunpack.c.l.b16 %v3709
        %v4852 = vunpack.c.h.b16 %v3709
        %v4853 = vpack.c.b16 %v4823, %v4821
        %v4854 = vpack.c.b16 %v4824, %v4822
        %v4855 = vpack.c.b16 %v4827, %v4825
        %v4856 = vpack.c.b16 %v4828, %v4826
        %v4857 = vpack.c.b16 %v4831, %v4829
        %v4858 = vpack.c.b16 %v4832, %v4830
        %v4859 = vpack.c.b16 %v4835, %v4833
        %v4860 = vpack.c.b16 %v4836, %v4834
        %v4861 = vpack.c.b16 %v4839, %v4837
        %v4862 = vpack.c.b16 %v4840, %v4838
        %v4863 = vpack.c.b16 %v4843, %v4841
        %v4864 = vpack.c.b16 %v4844, %v4842
        %v4865 = vpack.c.b16 %v4847, %v4845
        %v4866 = vpack.c.b16 %v4848, %v4846
        %v4867 = vpack.c.b16 %v4851, %v4849
        %v4868 = vpack.c.b16 %v4852, %v4850
        %4885 = vmatprep.subr.bf16.mxu0 %v4854
        %4886 = vmatpush1.bf16.msra.mxu0 %v4853
        %4887 = vmatprep.subr.bf16.mxu0 %v4856
        %4888 = vmatpush1.bf16.msra.mxu0 %v4855
        %4889 = vmatprep.subr.bf16.mxu0 %v4858
        %4890 = vmatpush1.bf16.msra.mxu0 %v4857
        %4891 = vmatprep.subr.bf16.mxu0 %v4860
        %4892 = vmatpush1.bf16.msra.mxu0 %v4859
        %4893 = vmatprep.subr.bf16.mxu0 %v4862
        %4894 = vmatpush1.bf16.msra.mxu0 %v4861
        %4895 = vmatprep.subr.bf16.mxu0 %v4864
        %4896 = vmatpush1.bf16.msra.mxu0 %v4863
        %4897 = vmatprep.subr.bf16.mxu0 %v4866
        %4898 = vmatpush1.bf16.msra.mxu0 %v4865
        %4899 = vmatprep.subr.bf16.mxu0 %v4868
        %4900 = vmatpush1.bf16.msra.mxu0 %v4867
        %4901 = vmatprep.subr.bf16.mxu0 0
        %4902 = vmatpush1.bf16.msra.mxu0 0
        %4903 = vmatprep.subr.bf16.mxu0 0
        %4904 = vmatpush1.bf16.msra.mxu0 0
        %4905 = vmatprep.subr.bf16.mxu0 0
        %4906 = vmatpush1.bf16.msra.mxu0 0
        %4907 = vmatprep.subr.bf16.mxu0 0
        %4908 = vmatpush1.bf16.msra.mxu0 0
        %4909 = vmatprep.subr.bf16.mxu0 0
        %4910 = vmatpush1.bf16.msra.mxu0 0
        %4911 = vmatprep.subr.bf16.mxu0 0
        %4912 = vmatpush1.bf16.msra.mxu0 0
        %4913 = vmatprep.subr.bf16.mxu0 0
        %4914 = vmatpush1.bf16.msra.mxu0 0
        %4915 = vmatprep.subr.bf16.mxu0 0
        %4916 = vmatpush1.bf16.msra.mxu0 0
        %4917 = vmatprep.mubr.bf16.mxu0 0
        %4918 = vmatmul.mubr.bf16.gmra.mrb[0].mxu0 %v4793
        %v4919 = vpop.f32.mrb[0].mxu0
        %v4920 = vadd.f32 %v4798, %v4919
        %v4921 = vpop.f32.mrb[0].mxu0
        %v4922 = vadd.f32 %v4802, %v4921
        %v4923 = vpop.f32.mrb[0].mxu0
        %v4924 = vpop.f32.mrb[0].mxu0
        %4925 = vdwg.mxu0
        %v4926 = vpack.c.bf16 %v4788, %v4788
        %v4927 = vpack.c.bf16 %v4920, %v4920
        %v4928 = vpack.c.bf16 %v4922, %v4922
        %v4930 = vsel %vm1269, %v4926, 0
        %v4933 = vsel %vm1269, %v4927, 0
        %4935 = vmatprep.subr.bf16.mxu0 0
        %4936 = vmatpush1.bf16.xpose.msra.mxu0 %v4933
        %4937 = vmatprep.subr.bf16.mxu0 0
        %4938 = vmatpush1.bf16.xpose.msra.mxu0 0
        %4939 = vmatprep.subr.bf16.mxu0 0
        %4940 = vmatpush1.bf16.xpose.msra.mxu0 0
        %4941 = vmatprep.subr.bf16.mxu0 0
        %4942 = vmatpush1.bf16.xpose.msra.mxu0 0
        %4943 = vmatprep.subr.bf16.mxu0 0
        %4944 = vmatpush1.bf16.xpose.msra.mxu0 0
        %4945 = vmatprep.subr.bf16.mxu0 0
        %4946 = vmatpush1.bf16.xpose.msra.mxu0 0
        %4947 = vmatprep.subr.bf16.mxu0 0
        %4948 = vmatpush1.bf16.xpose.msra.mxu0 0
        %4949 = vmatprep.subr.bf16.mxu0 0
        %4950 = vmatpush1.bf16.xpose.msra.mxu0 0
        %4951 = vmatprep.subr.bf16.mxu0 0
        %4952 = vmatpush1.bf16.xpose.msra.mxu0 0
        %4953 = vmatprep.subr.bf16.mxu0 0
        %4954 = vmatpush1.bf16.xpose.msra.mxu0 0
        %4955 = vmatprep.subr.bf16.mxu0 0
        %4956 = vmatpush1.bf16.xpose.msra.mxu0 0
        %4957 = vmatprep.subr.bf16.mxu0 0
        %4958 = vmatpush1.bf16.xpose.msra.mxu0 0
        %4959 = vmatprep.subr.bf16.mxu0 0
        %4960 = vmatpush1.bf16.xpose.msra.mxu0 0
        %4961 = vmatprep.subr.bf16.mxu0 0
        %4962 = vmatpush1.bf16.xpose.msra.mxu0 0
        %4963 = vmatprep.subr.bf16.mxu0 0
        %4964 = vmatpush1.bf16.xpose.msra.mxu0 0
        %4965 = vmatprep.subr.bf16.mxu0 0
        %4966 = vmatpush1.bf16.xpose.msra.mxu0 0
        %4967 = vmatprep.mubr.bf16.mxu0 0
        %4968 = vmatmul.mubr.bf16.gmra.mrb[0].mxu0 %v4930
        %v4969 = vpop.f32.mrb[0].mxu0
        %v4970 = vadd.f32 0.0, %v4969
        %v4971 = vpop.f32.mrb[0].mxu0
        %v4972 = vpop.f32.mrb[0].mxu0
        %v4973 = vpop.f32.mrb[0].mxu0
        %4974 = vdwg.mxu0
        %v4975 = vsel %vm1316, %v4970, -inf
        %4976 = vmax.xlane.f32.xlu0 %v4975
        %v4977 = vpop.xlane.xlu0 %4976
        %v4978 = vsub.f32 %v4970, %v4977
        %v4979 = vmul.f32 %v4978, 1.442695
        %v4980 = vpow.pop %v4979
        %v4981 = vsel %vm1316, %v4980, 0.0
        %4982 = vadd.xlane.f32.xlu0 %v4981
        %v4983 = vpop.xlane.xlu0 %4982
        %v4984 = vrcp.pop %v4983
        %v4985 = vmul.f32 %v4980, %v4984
        %v4986 = vpack.c.bf16 %v4985, %v4985
        %v4988 = vsel %vm1329, %v4986, 0
        %v4991 = vsel %vm1333, %v4928, 0
        %4993 = vmatprep.subr.bf16.mxu0 0
        %4994 = vmatpush1.bf16.msra.mxu0 %v4991
        %4995 = vmatprep.subr.bf16.mxu0 0
        %4996 = vmatpush1.bf16.msra.mxu0 0
        %4997 = vmatprep.subr.bf16.mxu0 0
        %4998 = vmatpush1.bf16.msra.mxu0 0
        %4999 = vmatprep.subr.bf16.mxu0 0
        %5000 = vmatpush1.bf16.msra.mxu0 0
        %5001 = vmatprep.subr.bf16.mxu0 0
        %5002 = vmatpush1.bf16.msra.mxu0 0
        %5003 = vmatprep.subr.bf16.mxu0 0
        %5004 = vmatpush1.bf16.msra.mxu0 0
        %5005 = vmatprep.subr.bf16.mxu0 0
        %5006 = vmatpush1.bf16.msra.mxu0 0
        %5007 = vmatprep.subr.bf16.mxu0 0
        %5008 = vmatpush1.bf16.msra.mxu0 0
        %5009 = vmatprep.subr.bf16.mxu0 0
        %5010 = vmatpush1.bf16.msra.mxu0 0
        %5011 = vmatprep.subr.bf16.mxu0 0
        %5012 = vmatpush1.bf16.msra.mxu0 0
        %5013 = vmatprep.subr.bf16.mxu0 0
        %5014 = vmatpush1.bf16.msra.mxu0 0
        %5015 = vmatprep.subr.bf16.mxu0 0
        %5016 = vmatpush1.bf16.msra.mxu0 0
        %5017 = vmatprep.subr.bf16.mxu0 0
        %5018 = vmatpush1.bf16.msra.mxu0 0
        %5019 = vmatprep.subr.bf16.mxu0 0
        %5020 = vmatpush1.bf16.msra.mxu0 0
        %5021 = vmatprep.subr.bf16.mxu0 0
        %5022 = vmatpush1.bf16.msra.mxu0 0
        %5023 = vmatprep.subr.bf16.mxu0 0
        %5024 = vmatpush1.bf16.msra.mxu0 0
        %5025 = vmatprep.mubr.bf16.mxu0 0
        %5026 = vmatmul.mubr.bf16.gmra.mrb[0].mxu0 %v4988
        %v5027 = vpop.f32.mrb[0].mxu0
        %v5028 = vadd.f32 0.0, %v5027
        %v5029 = vpop.f32.mrb[0].mxu0
        %v5030 = vpop.f32.mrb[0].mxu0
        %v5031 = vpop.f32.mrb[0].mxu0
        %5032 = vdwg.mxu0
        %v5033 = vpack.c.bf16 %v5028, %v5028
        %5035 = vrot.lane.b32.xlu0 %v4926, 96
        %v5036 = vpop.permute.xlu0 %5035
        %5038 = vrot.lane.b32.xlu0 %v4927, 96
        %v5039 = vpop.permute.xlu0 %5038
        %v5041 = vsel %vm1269, %v5036, 0
        %v5044 = vsel %vm1269, %v5039, 0
        %5046 = vmatprep.subr.bf16.mxu0 0
        %5047 = vmatpush1.bf16.xpose.msra.mxu0 %v5044
        %5048 = vmatprep.subr.bf16.mxu0 0
        %5049 = vmatpush1.bf16.xpose.msra.mxu0 0
        %5050 = vmatprep.subr.bf16.mxu0 0
        %5051 = vmatpush1.bf16.xpose.msra.mxu0 0
        %5052 = vmatprep.subr.bf16.mxu0 0
        %5053 = vmatpush1.bf16.xpose.msra.mxu0 0
        %5054 = vmatprep.subr.bf16.mxu0 0
        %5055 = vmatpush1.bf16.xpose.msra.mxu0 0
        %5056 = vmatprep.subr.bf16.mxu0 0
        %5057 = vmatpush1.bf16.xpose.msra.mxu0 0
        %5058 = vmatprep.subr.bf16.mxu0 0
        %5059 = vmatpush1.bf16.xpose.msra.mxu0 0
        %5060 = vmatprep.subr.bf16.mxu0 0
        %5061 = vmatpush1.bf16.xpose.msra.mxu0 0
        %5062 = vmatprep.subr.bf16.mxu0 0
        %5063 = vmatpush1.bf16.xpose.msra.mxu0 0
        %5064 = vmatprep.subr.bf16.mxu0 0
        %5065 = vmatpush1.bf16.xpose.msra.mxu0 0
        %5066 = vmatprep.subr.bf16.mxu0 0
        %5067 = vmatpush1.bf16.xpose.msra.mxu0 0
        %5068 = vmatprep.subr.bf16.mxu0 0
        %5069 = vmatpush1.bf16.xpose.msra.mxu0 0
        %5070 = vmatprep.subr.bf16.mxu0 0
        %5071 = vmatpush1.bf16.xpose.msra.mxu0 0
        %5072 = vmatprep.subr.bf16.mxu0 0
        %5073 = vmatpush1.bf16.xpose.msra.mxu0 0
        %5074 = vmatprep.subr.bf16.mxu0 0
        %5075 = vmatpush1.bf16.xpose.msra.mxu0 0
        %5076 = vmatprep.subr.bf16.mxu0 0
        %5077 = vmatpush1.bf16.xpose.msra.mxu0 0
        %5078 = vmatprep.mubr.bf16.mxu0 0
        %5079 = vmatmul.mubr.bf16.gmra.mrb[0].mxu0 %v5041
        %v5080 = vpop.f32.mrb[0].mxu0
        %v5081 = vadd.f32 0.0, %v5080
        %v5082 = vpop.f32.mrb[0].mxu0
        %v5083 = vpop.f32.mrb[0].mxu0
        %v5084 = vpop.f32.mrb[0].mxu0
        %5085 = vdwg.mxu0
        %v5086 = vsel %vm1316, %v5081, -inf
        %5087 = vmax.xlane.f32.xlu0 %v5086
        %v5088 = vpop.xlane.xlu0 %5087
        %v5089 = vsub.f32 %v5081, %v5088
        %v5090 = vmul.f32 %v5089, 1.442695
        %v5091 = vpow.pop %v5090
        %v5092 = vsel %vm1316, %v5091, 0.0
        %5093 = vadd.xlane.f32.xlu0 %v5092
        %v5094 = vpop.xlane.xlu0 %5093
        %v5095 = vrcp.pop %v5094
        %v5096 = vmul.f32 %v5091, %v5095
        %v5097 = vpack.c.bf16 %v5096, %v5096
        %5099 = vrot.lane.b32.xlu0 %v4928, 96
        %v5100 = vpop.permute.xlu0 %5099
        %v5102 = vsel %vm1329, %v5097, 0
        %v5105 = vsel %vm1333, %v5100, 0
        %5107 = vmatprep.subr.bf16.mxu0 0
        %5108 = vmatpush1.bf16.msra.mxu0 %v5105
        %5109 = vmatprep.subr.bf16.mxu0 0
        %5110 = vmatpush1.bf16.msra.mxu0 0
        %5111 = vmatprep.subr.bf16.mxu0 0
        %5112 = vmatpush1.bf16.msra.mxu0 0
        %5113 = vmatprep.subr.bf16.mxu0 0
        %5114 = vmatpush1.bf16.msra.mxu0 0
        %5115 = vmatprep.subr.bf16.mxu0 0
        %5116 = vmatpush1.bf16.msra.mxu0 0
        %5117 = vmatprep.subr.bf16.mxu0 0
        %5118 = vmatpush1.bf16.msra.mxu0 0
        %5119 = vmatprep.subr.bf16.mxu0 0
        %5120 = vmatpush1.bf16.msra.mxu0 0
        %5121 = vmatprep.subr.bf16.mxu0 0
        %5122 = vmatpush1.bf16.msra.mxu0 0
        %5123 = vmatprep.subr.bf16.mxu0 0
        %5124 = vmatpush1.bf16.msra.mxu0 0
        %5125 = vmatprep.subr.bf16.mxu0 0
        %5126 = vmatpush1.bf16.msra.mxu0 0
        %5127 = vmatprep.subr.bf16.mxu0 0
        %5128 = vmatpush1.bf16.msra.mxu0 0
        %5129 = vmatprep.subr.bf16.mxu0 0
        %5130 = vmatpush1.bf16.msra.mxu0 0
        %5131 = vmatprep.subr.bf16.mxu0 0
        %5132 = vmatpush1.bf16.msra.mxu0 0
        %5133 = vmatprep.subr.bf16.mxu0 0
        %5134 = vmatpush1.bf16.msra.mxu0 0
        %5135 = vmatprep.subr.bf16.mxu0 0
        %5136 = vmatpush1.bf16.msra.mxu0 0
        %5137 = vmatprep.subr.bf16.mxu0 0
        %5138 = vmatpush1.bf16.msra.mxu0 0
        %5139 = vmatprep.mubr.bf16.mxu0 0
        %5140 = vmatmul.mubr.bf16.gmra.mrb[0].mxu0 %v5102
        %v5141 = vpop.f32.mrb[0].mxu0
        %v5142 = vadd.f32 0.0, %v5141
        %v5143 = vpop.f32.mrb[0].mxu0
        %v5144 = vpop.f32.mrb[0].mxu0
        %v5145 = vpop.f32.mrb[0].mxu0
        %5146 = vdwg.mxu0
        %v5147 = vpack.c.bf16 %v5142, %v5142
        %v5152 = vunpack.c.l.b16 %v3715
        %v5153 = vunpack.c.l.b16 %v3716
        %v5154 = vunpack.c.l.b16 %v3717
        %v5155 = vunpack.c.l.b16 %v3718
        %v5156 = vpack.c.b16 %v5153, %v5152
        %v5157 = vpack.c.b16 %v5155, %v5154
        %v5161 = vsel %vm1269, %v5147, 0
        %5163 = vmatprep.subr.bf16.mxu0 0
        %5164 = vmatpush1.bf16.msra.mxu0 %v5156
        %5165 = vmatprep.subr.bf16.mxu0 0
        %5166 = vmatpush1.bf16.msra.mxu0 %v5157
        %5167 = vmatprep.subr.bf16.mxu0 0
        %5168 = vmatpush1.bf16.msra.mxu0 0
        %5169 = vmatprep.subr.bf16.mxu0 0
        %5170 = vmatpush1.bf16.msra.mxu0 0
        %5171 = vmatprep.subr.bf16.mxu0 0
        %5172 = vmatpush1.bf16.msra.mxu0 0
        %5173 = vmatprep.subr.bf16.mxu0 0
        %5174 = vmatpush1.bf16.msra.mxu0 0
        %5175 = vmatprep.subr.bf16.mxu0 0
        %5176 = vmatpush1.bf16.msra.mxu0 0
        %5177 = vmatprep.subr.bf16.mxu0 0
        %5178 = vmatpush1.bf16.msra.mxu0 0
        %5179 = vmatprep.subr.bf16.mxu0 0
        %5180 = vmatpush1.bf16.msra.mxu0 0
        %5181 = vmatprep.subr.bf16.mxu0 0
        %5182 = vmatpush1.bf16.msra.mxu0 0
        %5183 = vmatprep.subr.bf16.mxu0 0
        %5184 = vmatpush1.bf16.msra.mxu0 0
        %5185 = vmatprep.subr.bf16.mxu0 0
        %5186 = vmatpush1.bf16.msra.mxu0 0
        %5187 = vmatprep.subr.bf16.mxu0 0
        %5188 = vmatpush1.bf16.msra.mxu0 0
        %5189 = vmatprep.subr.bf16.mxu0 0
        %5190 = vmatpush1.bf16.msra.mxu0 0
        %5191 = vmatprep.subr.bf16.mxu0 0
        %5192 = vmatpush1.bf16.msra.mxu0 0
        %5193 = vmatprep.subr.bf16.mxu0 0
        %5194 = vmatpush1.bf16.msra.mxu0 0
        %5195 = vmatprep.mubr.bf16.mxu0 0
        %5196 = vmatmul.mubr.bf16.gmra.mrb[0].mxu0 %v5161
        %v5197 = vpop.f32.mrb[0].mxu0
        %v5198 = vadd.f32 0.0, %v5197
        %v5199 = vpop.f32.mrb[0].mxu0
        %v5200 = vpop.f32.mrb[0].mxu0
        %v5201 = vpop.f32.mrb[0].mxu0
        %5202 = vdwg.mxu0
        %v5207 = vunpack.c.l.b16 %v3711
        %v5208 = vunpack.c.l.b16 %v3712
        %v5209 = vunpack.c.l.b16 %v3713
        %v5210 = vunpack.c.l.b16 %v3714
        %v5211 = vpack.c.b16 %v5208, %v5207
        %v5212 = vpack.c.b16 %v5210, %v5209
        %v5216 = vsel %vm1269, %v5033, 0
        %5218 = vmatprep.subr.bf16.mxu0 0
        %5219 = vmatpush1.bf16.msra.mxu0 %v5211
        %5220 = vmatprep.subr.bf16.mxu0 0
        %5221 = vmatpush1.bf16.msra.mxu0 %v5212
        %5222 = vmatprep.subr.bf16.mxu0 0
        %5223 = vmatpush1.bf16.msra.mxu0 0
        %5224 = vmatprep.subr.bf16.mxu0 0
        %5225 = vmatpush1.bf16.msra.mxu0 0
        %5226 = vmatprep.subr.bf16.mxu0 0
        %5227 = vmatpush1.bf16.msra.mxu0 0
        %5228 = vmatprep.subr.bf16.mxu0 0
        %5229 = vmatpush1.bf16.msra.mxu0 0
        %5230 = vmatprep.subr.bf16.mxu0 0
        %5231 = vmatpush1.bf16.msra.mxu0 0
        %5232 = vmatprep.subr.bf16.mxu0 0
        %5233 = vmatpush1.bf16.msra.mxu0 0
        %5234 = vmatprep.subr.bf16.mxu0 0
        %5235 = vmatpush1.bf16.msra.mxu0 0
        %5236 = vmatprep.subr.bf16.mxu0 0
        %5237 = vmatpush1.bf16.msra.mxu0 0
        %5238 = vmatprep.subr.bf16.mxu0 0
        %5239 = vmatpush1.bf16.msra.mxu0 0
        %5240 = vmatprep.subr.bf16.mxu0 0
        %5241 = vmatpush1.bf16.msra.mxu0 0
        %5242 = vmatprep.subr.bf16.mxu0 0
        %5243 = vmatpush1.bf16.msra.mxu0 0
        %5244 = vmatprep.subr.bf16.mxu0 0
        %5245 = vmatpush1.bf16.msra.mxu0 0
        %5246 = vmatprep.subr.bf16.mxu0 0
        %5247 = vmatpush1.bf16.msra.mxu0 0
        %5248 = vmatprep.subr.bf16.mxu0 0
        %5249 = vmatpush1.bf16.msra.mxu0 0
        %5250 = vmatprep.mubr.bf16.mxu0 0
        %5251 = vmatmul.mubr.bf16.gmra.mrb[0].mxu0 %v5216
        %v5252 = vpop.f32.mrb[0].mxu0
        %v5253 = vadd.f32 %v5198, %v5252
        %v5254 = vpop.f32.mrb[0].mxu0
        %v5255 = vpop.f32.mrb[0].mxu0
        %v5256 = vpop.f32.mrb[0].mxu0
        %5257 = vdwg.mxu0
        %5258 = vrot.lane.b32.xlu0 %v4926, 64
        %v5259 = vpop.permute.xlu0 %5258
        %5260 = vrot.lane.b32.xlu0 %v4927, 64
        %v5261 = vpop.permute.xlu0 %5260
        %v5263 = vsel %vm1269, %v5259, 0
        %v5266 = vsel %vm1269, %v5261, 0
        %5268 = vmatprep.subr.bf16.mxu0 0
        %5269 = vmatpush1.bf16.xpose.msra.mxu0 %v5266
        %5270 = vmatprep.subr.bf16.mxu0 0
        %5271 = vmatpush1.bf16.xpose.msra.mxu0 0
        %5272 = vmatprep.subr.bf16.mxu0 0
        %5273 = vmatpush1.bf16.xpose.msra.mxu0 0
        %5274 = vmatprep.subr.bf16.mxu0 0
        %5275 = vmatpush1.bf16.xpose.msra.mxu0 0
        %5276 = vmatprep.subr.bf16.mxu0 0
        %5277 = vmatpush1.bf16.xpose.msra.mxu0 0
        %5278 = vmatprep.subr.bf16.mxu0 0
        %5279 = vmatpush1.bf16.xpose.msra.mxu0 0
        %5280 = vmatprep.subr.bf16.mxu0 0
        %5281 = vmatpush1.bf16.xpose.msra.mxu0 0
        %5282 = vmatprep.subr.bf16.mxu0 0
        %5283 = vmatpush1.bf16.xpose.msra.mxu0 0
        %5284 = vmatprep.subr.bf16.mxu0 0
        %5285 = vmatpush1.bf16.xpose.msra.mxu0 0
        %5286 = vmatprep.subr.bf16.mxu0 0
        %5287 = vmatpush1.bf16.xpose.msra.mxu0 0
        %5288 = vmatprep.subr.bf16.mxu0 0
        %5289 = vmatpush1.bf16.xpose.msra.mxu0 0
        %5290 = vmatprep.subr.bf16.mxu0 0
        %5291 = vmatpush1.bf16.xpose.msra.mxu0 0
        %5292 = vmatprep.subr.bf16.mxu0 0
        %5293 = vmatpush1.bf16.xpose.msra.mxu0 0
        %5294 = vmatprep.subr.bf16.mxu0 0
        %5295 = vmatpush1.bf16.xpose.msra.mxu0 0
        %5296 = vmatprep.subr.bf16.mxu0 0
        %5297 = vmatpush1.bf16.xpose.msra.mxu0 0
        %5298 = vmatprep.subr.bf16.mxu0 0
        %5299 = vmatpush1.bf16.xpose.msra.mxu0 0
        %5300 = vmatprep.mubr.bf16.mxu0 0
        %5301 = vmatmul.mubr.bf16.gmra.mrb[0].mxu0 %v5263
        %v5302 = vpop.f32.mrb[0].mxu0
        %v5303 = vadd.f32 0.0, %v5302
        %v5304 = vpop.f32.mrb[0].mxu0
        %v5305 = vpop.f32.mrb[0].mxu0
        %v5306 = vpop.f32.mrb[0].mxu0
        %5307 = vdwg.mxu0
        %v5308 = vsel %vm1316, %v5303, -inf
        %5309 = vmax.xlane.f32.xlu0 %v5308
        %v5310 = vpop.xlane.xlu0 %5309
        %v5311 = vsub.f32 %v5303, %v5310
        %v5312 = vmul.f32 %v5311, 1.442695
        %v5313 = vpow.pop %v5312
        %v5314 = vsel %vm1316, %v5313, 0.0
        %5315 = vadd.xlane.f32.xlu0 %v5314
        %v5316 = vpop.xlane.xlu0 %5315
        %v5317 = vrcp.pop %v5316
        %v5318 = vmul.f32 %v5313, %v5317
        %v5319 = vpack.c.bf16 %v5318, %v5318
        %5320 = vrot.lane.b32.xlu0 %v4928, 64
        %v5321 = vpop.permute.xlu0 %5320
        %v5323 = vsel %vm1329, %v5319, 0
        %v5326 = vsel %vm1333, %v5321, 0
        %5328 = vmatprep.subr.bf16.mxu0 0
        %5329 = vmatpush1.bf16.msra.mxu0 %v5326
        %5330 = vmatprep.subr.bf16.mxu0 0
        %5331 = vmatpush1.bf16.msra.mxu0 0
        %5332 = vmatprep.subr.bf16.mxu0 0
        %5333 = vmatpush1.bf16.msra.mxu0 0
        %5334 = vmatprep.subr.bf16.mxu0 0
        %5335 = vmatpush1.bf16.msra.mxu0 0
        %5336 = vmatprep.subr.bf16.mxu0 0
        %5337 = vmatpush1.bf16.msra.mxu0 0
        %5338 = vmatprep.subr.bf16.mxu0 0
        %5339 = vmatpush1.bf16.msra.mxu0 0
        %5340 = vmatprep.subr.bf16.mxu0 0
        %5341 = vmatpush1.bf16.msra.mxu0 0
        %5342 = vmatprep.subr.bf16.mxu0 0
        %5343 = vmatpush1.bf16.msra.mxu0 0
        %5344 = vmatprep.subr.bf16.mxu0 0
        %5345 = vmatpush1.bf16.msra.mxu0 0
        %5346 = vmatprep.subr.bf16.mxu0 0
        %5347 = vmatpush1.bf16.msra.mxu0 0
        %5348 = vmatprep.subr.bf16.mxu0 0
        %5349 = vmatpush1.bf16.msra.mxu0 0
        %5350 = vmatprep.subr.bf16.mxu0 0
        %5351 = vmatpush1.bf16.msra.mxu0 0
        %5352 = vmatprep.subr.bf16.mxu0 0
        %5353 = vmatpush1.bf16.msra.mxu0 0
        %5354 = vmatprep.subr.bf16.mxu0 0
        %5355 = vmatpush1.bf16.msra.mxu0 0
        %5356 = vmatprep.subr.bf16.mxu0 0
        %5357 = vmatpush1.bf16.msra.mxu0 0
        %5358 = vmatprep.subr.bf16.mxu0 0
        %5359 = vmatpush1.bf16.msra.mxu0 0
        %5360 = vmatprep.mubr.bf16.mxu0 0
        %5361 = vmatmul.mubr.bf16.gmra.mrb[0].mxu0 %v5323
        %v5362 = vpop.f32.mrb[0].mxu0
        %v5363 = vadd.f32 0.0, %v5362
        %v5364 = vpop.f32.mrb[0].mxu0
        %v5365 = vpop.f32.mrb[0].mxu0
        %v5366 = vpop.f32.mrb[0].mxu0
        %5367 = vdwg.mxu0
        %v5368 = vpack.c.bf16 %v5363, %v5363
        %v5373 = vunpack.c.l.b16 %v3719
        %v5374 = vunpack.c.l.b16 %v3720
        %v5375 = vunpack.c.l.b16 %v3721
        %v5376 = vunpack.c.l.b16 %v3722
        %v5377 = vpack.c.b16 %v5374, %v5373
        %v5378 = vpack.c.b16 %v5376, %v5375
        %v5382 = vsel %vm1269, %v5368, 0
        %5384 = vmatprep.subr.bf16.mxu0 0
        %5385 = vmatpush1.bf16.msra.mxu0 %v5377
        %5386 = vmatprep.subr.bf16.mxu0 0
        %5387 = vmatpush1.bf16.msra.mxu0 %v5378
        %5388 = vmatprep.subr.bf16.mxu0 0
        %5389 = vmatpush1.bf16.msra.mxu0 0
        %5390 = vmatprep.subr.bf16.mxu0 0
        %5391 = vmatpush1.bf16.msra.mxu0 0
        %5392 = vmatprep.subr.bf16.mxu0 0
        %5393 = vmatpush1.bf16.msra.mxu0 0
        %5394 = vmatprep.subr.bf16.mxu0 0
        %5395 = vmatpush1.bf16.msra.mxu0 0
        %5396 = vmatprep.subr.bf16.mxu0 0
        %5397 = vmatpush1.bf16.msra.mxu0 0
        %5398 = vmatprep.subr.bf16.mxu0 0
        %5399 = vmatpush1.bf16.msra.mxu0 0
        %5400 = vmatprep.subr.bf16.mxu0 0
        %5401 = vmatpush1.bf16.msra.mxu0 0
        %5402 = vmatprep.subr.bf16.mxu0 0
        %5403 = vmatpush1.bf16.msra.mxu0 0
        %5404 = vmatprep.subr.bf16.mxu0 0
        %5405 = vmatpush1.bf16.msra.mxu0 0
        %5406 = vmatprep.subr.bf16.mxu0 0
        %5407 = vmatpush1.bf16.msra.mxu0 0
        %5408 = vmatprep.subr.bf16.mxu0 0
        %5409 = vmatpush1.bf16.msra.mxu0 0
        %5410 = vmatprep.subr.bf16.mxu0 0
        %5411 = vmatpush1.bf16.msra.mxu0 0
        %5412 = vmatprep.subr.bf16.mxu0 0
        %5413 = vmatpush1.bf16.msra.mxu0 0
        %5414 = vmatprep.subr.bf16.mxu0 0
        %5415 = vmatpush1.bf16.msra.mxu0 0
        %5416 = vmatprep.mubr.bf16.mxu0 0
        %5417 = vmatmul.mubr.bf16.gmra.mrb[0].mxu0 %v5382
        %v5418 = vpop.f32.mrb[0].mxu0
        %v5419 = vadd.f32 0.0, %v5418
        %v5420 = vpop.f32.mrb[0].mxu0
        %v5421 = vpop.f32.mrb[0].mxu0
        %v5422 = vpop.f32.mrb[0].mxu0
        %5423 = vdwg.mxu0
        %v5424 = vadd.f32 %v5253, %v5419
        %5425 = vrot.lane.b32.xlu0 %v4926, 32
        %v5426 = vpop.permute.xlu0 %5425
        %5427 = vrot.lane.b32.xlu0 %v4927, 32
        %v5428 = vpop.permute.xlu0 %5427
        %v5430 = vsel %vm1269, %v5426, 0
        %v5433 = vsel %vm1269, %v5428, 0
        %5435 = vmatprep.subr.bf16.mxu0 0
        %5436 = vmatpush1.bf16.xpose.msra.mxu0 %v5433
        %5437 = vmatprep.subr.bf16.mxu0 0
        %5438 = vmatpush1.bf16.xpose.msra.mxu0 0
        %5439 = vmatprep.subr.bf16.mxu0 0
        %5440 = vmatpush1.bf16.xpose.msra.mxu0 0
        %5441 = vmatprep.subr.bf16.mxu0 0
        %5442 = vmatpush1.bf16.xpose.msra.mxu0 0
        %5443 = vmatprep.subr.bf16.mxu0 0
        %5444 = vmatpush1.bf16.xpose.msra.mxu0 0
        %5445 = vmatprep.subr.bf16.mxu0 0
        %5446 = vmatpush1.bf16.xpose.msra.mxu0 0
        %5447 = vmatprep.subr.bf16.mxu0 0
        %5448 = vmatpush1.bf16.xpose.msra.mxu0 0
        %5449 = vmatprep.subr.bf16.mxu0 0
        %5450 = vmatpush1.bf16.xpose.msra.mxu0 0
        %5451 = vmatprep.subr.bf16.mxu0 0
        %5452 = vmatpush1.bf16.xpose.msra.mxu0 0
        %5453 = vmatprep.subr.bf16.mxu0 0
        %5454 = vmatpush1.bf16.xpose.msra.mxu0 0
        %5455 = vmatprep.subr.bf16.mxu0 0
        %5456 = vmatpush1.bf16.xpose.msra.mxu0 0
        %5457 = vmatprep.subr.bf16.mxu0 0
        %5458 = vmatpush1.bf16.xpose.msra.mxu0 0
        %5459 = vmatprep.subr.bf16.mxu0 0
        %5460 = vmatpush1.bf16.xpose.msra.mxu0 0
        %5461 = vmatprep.subr.bf16.mxu0 0
        %5462 = vmatpush1.bf16.xpose.msra.mxu0 0
        %5463 = vmatprep.subr.bf16.mxu0 0
        %5464 = vmatpush1.bf16.xpose.msra.mxu0 0
        %5465 = vmatprep.subr.bf16.mxu0 0
        %5466 = vmatpush1.bf16.xpose.msra.mxu0 0
        %5467 = vmatprep.mubr.bf16.mxu0 0
        %5468 = vmatmul.mubr.bf16.gmra.mrb[0].mxu0 %v5430
        %v5469 = vpop.f32.mrb[0].mxu0
        %v5470 = vadd.f32 0.0, %v5469
        %v5471 = vpop.f32.mrb[0].mxu0
        %v5472 = vpop.f32.mrb[0].mxu0
        %v5473 = vpop.f32.mrb[0].mxu0
        %5474 = vdwg.mxu0
        %v5475 = vsel %vm1316, %v5470, -inf
        %5476 = vmax.xlane.f32.xlu0 %v5475
        %v5477 = vpop.xlane.xlu0 %5476
        %v5478 = vsub.f32 %v5470, %v5477
        %v5479 = vmul.f32 %v5478, 1.442695
        %v5480 = vpow.pop %v5479
        %v5481 = vsel %vm1316, %v5480, 0.0
        %5482 = vadd.xlane.f32.xlu0 %v5481
        %v5483 = vpop.xlane.xlu0 %5482
        %v5484 = vrcp.pop %v5483
        %v5485 = vmul.f32 %v5480, %v5484
        %v5486 = vpack.c.bf16 %v5485, %v5485
        %5487 = vrot.lane.b32.xlu0 %v4928, 32
        %v5488 = vpop.permute.xlu0 %5487
        %v5490 = vsel %vm1329, %v5486, 0
        %v5493 = vsel %vm1333, %v5488, 0
        %5495 = vmatprep.subr.bf16.mxu0 0
        %5496 = vmatpush1.bf16.msra.mxu0 %v5493
        %5497 = vmatprep.subr.bf16.mxu0 0
        %5498 = vmatpush1.bf16.msra.mxu0 0
        %5499 = vmatprep.subr.bf16.mxu0 0
        %5500 = vmatpush1.bf16.msra.mxu0 0
        %5501 = vmatprep.subr.bf16.mxu0 0
        %5502 = vmatpush1.bf16.msra.mxu0 0
        %5503 = vmatprep.subr.bf16.mxu0 0
        %5504 = vmatpush1.bf16.msra.mxu0 0
        %5505 = vmatprep.subr.bf16.mxu0 0
        %5506 = vmatpush1.bf16.msra.mxu0 0
        %5507 = vmatprep.subr.bf16.mxu0 0
        %5508 = vmatpush1.bf16.msra.mxu0 0
        %5509 = vmatprep.subr.bf16.mxu0 0
        %5510 = vmatpush1.bf16.msra.mxu0 0
        %5511 = vmatprep.subr.bf16.mxu0 0
        %5512 = vmatpush1.bf16.msra.mxu0 0
        %5513 = vmatprep.subr.bf16.mxu0 0
        %5514 = vmatpush1.bf16.msra.mxu0 0
        %5515 = vmatprep.subr.bf16.mxu0 0
        %5516 = vmatpush1.bf16.msra.mxu0 0
        %5517 = vmatprep.subr.bf16.mxu0 0
        %5518 = vmatpush1.bf16.msra.mxu0 0
        %5519 = vmatprep.subr.bf16.mxu0 0
        %5520 = vmatpush1.bf16.msra.mxu0 0
        %5521 = vmatprep.subr.bf16.mxu0 0
        %5522 = vmatpush1.bf16.msra.mxu0 0
        %5523 = vmatprep.subr.bf16.mxu0 0
        %5524 = vmatpush1.bf16.msra.mxu0 0
        %5525 = vmatprep.subr.bf16.mxu0 0
        %5526 = vmatpush1.bf16.msra.mxu0 0
        %5527 = vmatprep.mubr.bf16.mxu0 0
        %5528 = vmatmul.mubr.bf16.gmra.mrb[0].mxu0 %v5490
        %v5529 = vpop.f32.mrb[0].mxu0
        %v5530 = vadd.f32 0.0, %v5529
        %v5531 = vpop.f32.mrb[0].mxu0
        %v5532 = vpop.f32.mrb[0].mxu0
        %v5533 = vpop.f32.mrb[0].mxu0
        %5534 = vdwg.mxu0
        %v5535 = vpack.c.bf16 %v5530, %v5530
        %v5540 = vunpack.c.l.b16 %v3723
        %v5541 = vunpack.c.l.b16 %v3724
        %v5542 = vunpack.c.l.b16 %v3725
        %v5543 = vunpack.c.l.b16 %v3726
        %v5544 = vpack.c.b16 %v5541, %v5540
        %v5545 = vpack.c.b16 %v5543, %v5542
        %v5549 = vsel %vm1269, %v5535, 0
        %5551 = vmatprep.subr.bf16.mxu0 0
        %5552 = vmatpush1.bf16.msra.mxu0 %v5544
        %5553 = vmatprep.subr.bf16.mxu0 0
        %5554 = vmatpush1.bf16.msra.mxu0 %v5545
        %5555 = vmatprep.subr.bf16.mxu0 0
        %5556 = vmatpush1.bf16.msra.mxu0 0
        %5557 = vmatprep.subr.bf16.mxu0 0
        %5558 = vmatpush1.bf16.msra.mxu0 0
        %5559 = vmatprep.subr.bf16.mxu0 0
        %5560 = vmatpush1.bf16.msra.mxu0 0
        %5561 = vmatprep.subr.bf16.mxu0 0
        %5562 = vmatpush1.bf16.msra.mxu0 0
        %5563 = vmatprep.subr.bf16.mxu0 0
        %5564 = vmatpush1.bf16.msra.mxu0 0
        %5565 = vmatprep.subr.bf16.mxu0 0
        %5566 = vmatpush1.bf16.msra.mxu0 0
        %5567 = vmatprep.subr.bf16.mxu0 0
        %5568 = vmatpush1.bf16.msra.mxu0 0
        %5569 = vmatprep.subr.bf16.mxu0 0
        %5570 = vmatpush1.bf16.msra.mxu0 0
        %5571 = vmatprep.subr.bf16.mxu0 0
        %5572 = vmatpush1.bf16.msra.mxu0 0
        %5573 = vmatprep.subr.bf16.mxu0 0
        %5574 = vmatpush1.bf16.msra.mxu0 0
        %5575 = vmatprep.subr.bf16.mxu0 0
        %5576 = vmatpush1.bf16.msra.mxu0 0
        %5577 = vmatprep.subr.bf16.mxu0 0
        %5578 = vmatpush1.bf16.msra.mxu0 0
        %5579 = vmatprep.subr.bf16.mxu0 0
        %5580 = vmatpush1.bf16.msra.mxu0 0
        %5581 = vmatprep.subr.bf16.mxu0 0
        %5582 = vmatpush1.bf16.msra.mxu0 0
        %5583 = vmatprep.mubr.bf16.mxu0 0
        %5584 = vmatmul.mubr.bf16.gmra.mrb[0].mxu0 %v5549
        %v5585 = vpop.f32.mrb[0].mxu0
        %v5586 = vadd.f32 0.0, %v5585
        %v5587 = vpop.f32.mrb[0].mxu0
        %v5588 = vpop.f32.mrb[0].mxu0
        %v5589 = vpop.f32.mrb[0].mxu0
        %5590 = vdwg.mxu0
        %v5591 = vadd.f32 %v5424, %v5586
        %v5592 = vlaneseq
        %v5593 = vshrl.u32 %v5592, 7
        %v5594 = vsub.s32 2, %v5593
        %v5595 = vrot.slane %v3776, %v5594
        %v5596 = vadd.f32 %v5591, %v5595
        %v5597 = vadd.f32 %v4699, %v5596
        %v5598 = vsel %vm1942, %v5597, 0.0
        %5599 = vadd.xlane.f32.xlu0 %v5598
        %v5600 = vpop.xlane.xlu0 %5599
        %v5601 = vmul.f32 %v5600, 0.0078125
        %v5602 = vmul.f32 %v5597, %v5597
        %v5603 = vsel %vm1942, %v5602, 0.0
        %5604 = vadd.xlane.f32.xlu0 %v5603
        %v5605 = vpop.xlane.xlu0 %5604
        %v5606 = vmul.f32 %v5605, 0.0078125
        %v5607 = vmul.f32 %v5601, %v5601
        %v5608 = vsub.f32 %v5606, %v5607
        %v5609 = vsub.f32 %v5597, %v5601
        %v5610 = vadd.f32 %v5608, 1e-05
        %v5611 = vrsqrt.pop %v5610
        %v5612 = vmul.f32 %v5609, %v5611
        %v5613 = vlaneseq
        %v5614 = vshrl.u32 %v5613, 7
        %v5615 = vsub.s32 6, %v5614
        %v5616 = vrot.slane %v3776, %v5615
        %v5617 = vmul.f32 %v5612, %v5616
        %v5618 = vlaneseq
        %v5619 = vshrl.u32 %v5618, 7
        %v5620 = vsub.s32 7, %v5619
        %v5621 = vrot.slane %v3776, %v5620
        %v5622 = vadd.f32 %v5617, %v5621
        %v5623 = vpack.c.bf16 %v5622, %v5622
        %v5625 = vlaneseq
        %v5626 = vshrl.u32 %v5625, 7
        %v5627 = vsub.s32 0, %v5626
        %v5628 = vrot.slane %v3743, %v5627
        %v5629 = vlaneseq
        %v5630 = vshrl.u32 %v5629, 7
        %v5631 = vsub.s32 1, %v5630
        %v5632 = vrot.slane %v3743, %v5631
        %v5651 = vunpack.c.l.b16 %v3727
        %v5652 = vunpack.c.h.b16 %v3727
        %v5653 = vunpack.c.l.b16 %v3728
        %v5654 = vunpack.c.h.b16 %v3728
        %v5655 = vunpack.c.l.b16 %v3729
        %v5656 = vunpack.c.h.b16 %v3729
        %v5657 = vunpack.c.l.b16 %v3730
        %v5658 = vunpack.c.h.b16 %v3730
        %v5659 = vunpack.c.l.b16 %v3731
        %v5660 = vunpack.c.h.b16 %v3731
        %v5661 = vunpack.c.l.b16 %v3732
        %v5662 = vunpack.c.h.b16 %v3732
        %v5663 = vunpack.c.l.b16 %v3733
        %v5664 = vunpack.c.h.b16 %v3733
        %v5665 = vunpack.c.l.b16 %v3734
        %v5666 = vunpack.c.h.b16 %v3734
        %v5667 = vunpack.c.l.b16 %v3735
        %v5668 = vunpack.c.h.b16 %v3735
        %v5669 = vunpack.c.l.b16 %v3736
        %v5670 = vunpack.c.h.b16 %v3736
        %v5671 = vunpack.c.l.b16 %v3737
        %v5672 = vunpack.c.h.b16 %v3737
        %v5673 = vunpack.c.l.b16 %v3738
        %v5674 = vunpack.c.h.b16 %v3738
        %v5675 = vunpack.c.l.b16 %v3739
        %v5676 = vunpack.c.h.b16 %v3739
        %v5677 = vunpack.c.l.b16 %v3740
        %v5678 = vunpack.c.h.b16 %v3740
        %v5679 = vunpack.c.l.b16 %v3741
        %v5680 = vunpack.c.h.b16 %v3741
        %v5681 = vunpack.c.l.b16 %v3742
        %v5682 = vunpack.c.h.b16 %v3742
        %v5683 = vpack.c.b16 %v5653, %v5651
        %v5684 = vpack.c.b16 %v5654, %v5652
        %v5685 = vpack.c.b16 %v5657, %v5655
        %v5686 = vpack.c.b16 %v5658, %v5656
        %v5687 = vpack.c.b16 %v5661, %v5659
        %v5688 = vpack.c.b16 %v5662, %v5660
        %v5689 = vpack.c.b16 %v5665, %v5663
        %v5690 = vpack.c.b16 %v5666, %v5664
        %v5691 = vpack.c.b16 %v5669, %v5667
        %v5692 = vpack.c.b16 %v5670, %v5668
        %v5693 = vpack.c.b16 %v5673, %v5671
        %v5694 = vpack.c.b16 %v5674, %v5672
        %v5695 = vpack.c.b16 %v5677, %v5675
        %v5696 = vpack.c.b16 %v5678, %v5676
        %v5697 = vpack.c.b16 %v5681, %v5679
        %v5698 = vpack.c.b16 %v5682, %v5680
        %5715 = vmatprep.subr.bf16.mxu0 %v5684
        %5716 = vmatpush1.bf16.msra.mxu0 %v5683
        %5717 = vmatprep.subr.bf16.mxu0 %v5686
        %5718 = vmatpush1.bf16.msra.mxu0 %v5685
        %5719 = vmatprep.subr.bf16.mxu0 %v5688
        %5720 = vmatpush1.bf16.msra.mxu0 %v5687
        %5721 = vmatprep.subr.bf16.mxu0 %v5690
        %5722 = vmatpush1.bf16.msra.mxu0 %v5689
        %5723 = vmatprep.subr.bf16.mxu0 %v5692
        %5724 = vmatpush1.bf16.msra.mxu0 %v5691
        %5725 = vmatprep.subr.bf16.mxu0 %v5694
        %5726 = vmatpush1.bf16.msra.mxu0 %v5693
        %5727 = vmatprep.subr.bf16.mxu0 %v5696
        %5728 = vmatpush1.bf16.msra.mxu0 %v5695
        %5729 = vmatprep.subr.bf16.mxu0 %v5698
        %5730 = vmatpush1.bf16.msra.mxu0 %v5697
        %5731 = vmatprep.subr.bf16.mxu0 0
        %5732 = vmatpush1.bf16.msra.mxu0 0
        %5733 = vmatprep.subr.bf16.mxu0 0
        %5734 = vmatpush1.bf16.msra.mxu0 0
        %5735 = vmatprep.subr.bf16.mxu0 0
        %5736 = vmatpush1.bf16.msra.mxu0 0
        %5737 = vmatprep.subr.bf16.mxu0 0
        %5738 = vmatpush1.bf16.msra.mxu0 0
        %5739 = vmatprep.subr.bf16.mxu0 0
        %5740 = vmatpush1.bf16.msra.mxu0 0
        %5741 = vmatprep.subr.bf16.mxu0 0
        %5742 = vmatpush1.bf16.msra.mxu0 0
        %5743 = vmatprep.subr.bf16.mxu0 0
        %5744 = vmatpush1.bf16.msra.mxu0 0
        %5745 = vmatprep.subr.bf16.mxu0 0
        %5746 = vmatpush1.bf16.msra.mxu0 0
        %5747 = vmatprep.mubr.bf16.mxu0 0
        %5748 = vmatmul.mubr.bf16.gmra.mrb[0].mxu0 %v5623
        %v5749 = vpop.f32.mrb[0].mxu0
        %v5750 = vadd.f32 %v5628, %v5749
        %v5751 = vpop.f32.mrb[0].mxu0
        %v5752 = vadd.f32 %v5632, %v5751
        %v5753 = vpop.f32.mrb[0].mxu0
        %v5754 = vpop.f32.mrb[0].mxu0
        %5755 = vdwg.mxu0
        %v5756 = vmax.f32 %v5750, 0.0
        %v5757 = vmax.f32 %v5752, 0.0
        %v5758 = vpack.c.bf16 %v5756, %v5756
        %v5759 = vpack.c.bf16 %v5757, %v5757
        %v5760 = vlaneseq
        %v5761 = vshrl.u32 %v5760, 7
        %v5762 = vsub.s32 3, %v5761
        %v5763 = vrot.slane %v3776, %v5762
        %v5796 = vunpack.c.l.b16 %v3744
        %v5797 = vunpack.c.l.b16 %v3745
        %v5798 = vunpack.c.l.b16 %v3746
        %v5799 = vunpack.c.l.b16 %v3747
        %v5800 = vunpack.c.l.b16 %v3748
        %v5801 = vunpack.c.l.b16 %v3749
        %v5802 = vunpack.c.l.b16 %v3750
        %v5803 = vunpack.c.l.b16 %v3751
        %v5804 = vunpack.c.l.b16 %v3752
        %v5805 = vunpack.c.l.b16 %v3753
        %v5806 = vunpack.c.l.b16 %v3754
        %v5807 = vunpack.c.l.b16 %v3755
        %v5808 = vunpack.c.l.b16 %v3756
        %v5809 = vunpack.c.l.b16 %v3757
        %v5810 = vunpack.c.l.b16 %v3758
        %v5811 = vunpack.c.l.b16 %v3759
        %v5812 = vunpack.c.l.b16 %v3760
        %v5813 = vunpack.c.l.b16 %v3761
        %v5814 = vunpack.c.l.b16 %v3762
        %v5815 = vunpack.c.l.b16 %v3763
        %v5816 = vunpack.c.l.b16 %v3764
        %v5817 = vunpack.c.l.b16 %v3765
        %v5818 = vunpack.c.l.b16 %v3766
        %v5819 = vunpack.c.l.b16 %v3767
        %v5820 = vunpack.c.l.b16 %v3768
        %v5821 = vunpack.c.l.b16 %v3769
        %v5822 = vunpack.c.l.b16 %v3770
        %v5823 = vunpack.c.l.b16 %v3771
        %v5824 = vunpack.c.l.b16 %v3772
        %v5825 = vunpack.c.l.b16 %v3773
        %v5826 = vunpack.c.l.b16 %v3774
        %v5827 = vunpack.c.l.b16 %v3775
        %v5828 = vpack.c.b16 %v5797, %v5796
        %v5829 = vpack.c.b16 %v5799, %v5798
        %v5830 = vpack.c.b16 %v5801, %v5800
        %v5831 = vpack.c.b16 %v5803, %v5802
        %v5832 = vpack.c.b16 %v5805, %v5804
        %v5833 = vpack.c.b16 %v5807, %v5806
        %v5834 = vpack.c.b16 %v5809, %v5808
        %v5835 = vpack.c.b16 %v5811, %v5810
        %v5836 = vpack.c.b16 %v5813, %v5812
        %v5837 = vpack.c.b16 %v5815, %v5814
        %v5838 = vpack.c.b16 %v5817, %v5816
        %v5839 = vpack.c.b16 %v5819, %v5818
        %v5840 = vpack.c.b16 %v5821, %v5820
        %v5841 = vpack.c.b16 %v5823, %v5822
        %v5842 = vpack.c.b16 %v5825, %v5824
        %v5843 = vpack.c.b16 %v5827, %v5826
        %5860 = vmatprep.subr.bf16.mxu0 0
        %5861 = vmatpush1.bf16.msra.mxu0 %v5828
        %5862 = vmatprep.subr.bf16.mxu0 0
        %5863 = vmatpush1.bf16.msra.mxu0 %v5829
        %5864 = vmatprep.subr.bf16.mxu0 0
        %5865 = vmatpush1.bf16.msra.mxu0 %v5830
        %5866 = vmatprep.subr.bf16.mxu0 0
        %5867 = vmatpush1.bf16.msra.mxu0 %v5831
        %5868 = vmatprep.subr.bf16.mxu0 0
        %5869 = vmatpush1.bf16.msra.mxu0 %v5832
        %5870 = vmatprep.subr.bf16.mxu0 0
        %5871 = vmatpush1.bf16.msra.mxu0 %v5833
        %5872 = vmatprep.subr.bf16.mxu0 0
        %5873 = vmatpush1.bf16.msra.mxu0 %v5834
        %5874 = vmatprep.subr.bf16.mxu0 0
        %5875 = vmatpush1.bf16.msra.mxu0 %v5835
        %5876 = vmatprep.subr.bf16.mxu0 0
        %5877 = vmatpush1.bf16.msra.mxu0 %v5836
        %5878 = vmatprep.subr.bf16.mxu0 0
        %5879 = vmatpush1.bf16.msra.mxu0 %v5837
        %5880 = vmatprep.subr.bf16.mxu0 0
        %5881 = vmatpush1.bf16.msra.mxu0 %v5838
        %5882 = vmatprep.subr.bf16.mxu0 0
        %5883 = vmatpush1.bf16.msra.mxu0 %v5839
        %5884 = vmatprep.subr.bf16.mxu0 0
        %5885 = vmatpush1.bf16.msra.mxu0 %v5840
        %5886 = vmatprep.subr.bf16.mxu0 0
        %5887 = vmatpush1.bf16.msra.mxu0 %v5841
        %5888 = vmatprep.subr.bf16.mxu0 0
        %5889 = vmatpush1.bf16.msra.mxu0 %v5842
        %5890 = vmatprep.subr.bf16.mxu0 0
        %5891 = vmatpush1.bf16.msra.mxu0 %v5843
        %5892 = vmatprep.mubr.bf16.mxu0 %v5759
        %5893 = vmatmul.mubr.bf16.gmra.mrb[0].mxu0 %v5758
        %v5894 = vpop.f32.mrb[0].mxu0
        %v5895 = vadd.f32 %v5763, %v5894
        %v5896 = vpop.f32.mrb[0].mxu0
        %v5897 = vpop.f32.mrb[0].mxu0
        %v5898 = vpop.f32.mrb[0].mxu0
        %5899 = vdwg.mxu0
        %v5900 = vadd.f32 %v5622, %v5895
        %v5901 = vsel %vm1942, %v5900, 0.0
        %5902 = vadd.xlane.f32.xlu0 %v5901
        %v5903 = vpop.xlane.xlu0 %5902
        %v5904 = vmul.f32 %v5903, 0.0078125
        %v5905 = vmul.f32 %v5900, %v5900
        %v5906 = vsel %vm1942, %v5905, 0.0
        %5907 = vadd.xlane.f32.xlu0 %v5906
        %v5908 = vpop.xlane.xlu0 %5907
        %v5909 = vmul.f32 %v5908, 0.0078125
        %v5910 = vmul.f32 %v5904, %v5904
        %v5911 = vsub.f32 %v5909, %v5910
        %v5912 = vsub.f32 %v5900, %v5904
        %v5913 = vadd.f32 %v5911, 1e-05
        %v5914 = vrsqrt.pop %v5913
        %v5915 = vmul.f32 %v5912, %v5914
        %v5916 = vlaneseq
        %v5917 = vshrl.u32 %v5916, 7
        %v5918 = vsub.s32 0, %v5917
        %v5919 = vrot.slane %v3777, %v5918
        %v5920 = vmul.f32 %v5915, %v5919
        %v5921 = vlaneseq
        %v5922 = vshrl.u32 %v5921, 7
        %v5923 = vsub.s32 1, %v5922
        %v5924 = vrot.slane %v3777, %v5923
        %v5925 = vadd.f32 %v5920, %v5924
        %s5926 = scalar_lea.vmem [#allocation10], 192
        %v5927 = vld [vmem:[%s5926] sm:$0xff]
        %v5928 = vld [vmem:[%s5926 + $0x8] sm:$0xf]
        %v5929 = vld [vmem:[%s5926 + $0xc] sm:$0xff]
        %v5930 = vld [vmem:[%s5926 + $0x14] sm:$0xf]
        %v5931 = vld [vmem:[%s5926 + $0x18] sm:$0xff]
        %v5932 = vld [vmem:[%s5926 + $0x20] sm:$0xf]
        %v5933 = vld [vmem:[%s5926 + $0x24] sm:$0xff]
        %v5934 = vld [vmem:[%s5926 + $0x2c] sm:$0xf]
        %v5935 = vld [vmem:[%s5926 + $0x30] sm:$0xff]
        %v5936 = vld [vmem:[%s5926 + $0x38] sm:$0xf]
        %v5937 = vld [vmem:[%s5926 + $0x3c] sm:$0xff]
        %v5938 = vld [vmem:[%s5926 + $0x44] sm:$0xf]
        %v5939 = vld [vmem:[%s5926 + $0x48] sm:$0xff]
        %v5940 = vld [vmem:[%s5926 + $0x50] sm:$0xf]
        %v5941 = vld [vmem:[%s5926 + $0x54] sm:$0xff]
        %v5942 = vld [vmem:[%s5926 + $0x5c] sm:$0xf]
        %v5943 = vld [vmem:[%s5926 + $0x60] sm:$0xff]
        %v5944 = vld [vmem:[%s5926 + $0x68] sm:$0xf]
        %v5945 = vld [vmem:[%s5926 + $0x6c] sm:$0xff]
        %v5946 = vld [vmem:[%s5926 + $0x74] sm:$0xf]
        %v5947 = vld [vmem:[%s5926 + $0x78] sm:$0xff]
        %v5948 = vld [vmem:[%s5926 + $0x80] sm:$0xf]
        %v5949 = vld [vmem:[%s5926 + $0x84] sm:$0xff]
        %v5950 = vld [vmem:[%s5926 + $0x8c] sm:$0xf]
        %v5951 = vld [vmem:[%s5926 + $0x90] sm:$0xff]
        %v5952 = vld [vmem:[%s5926 + $0x98] sm:$0xf]
        %v5953 = vld [vmem:[%s5926 + $0x9c] sm:$0xff]
        %v5954 = vld [vmem:[%s5926 + $0xa4] sm:$0xf]
        %v5955 = vld [vmem:[%s5926 + $0xa8] sm:$0xff]
        %v5956 = vld [vmem:[%s5926 + $0xb0] sm:$0xf]
        %v5957 = vld [vmem:[%s5926 + $0xb4] sm:$0xff]
        %v5958 = vld [vmem:[%s5926 + $0xbc] sm:$0xf]
        %s5959 = scalar_lea.vmem %s3, 3
        %v5960 = vld [vmem:[%s5959] sm:$0x7]
        %s5961 = scalar_lea.vmem [#allocation9], 64
        %v5962 = vld [vmem:[%s5961] sm:$0xf]
        %v5963 = vld [vmem:[%s5961 + $0x4] sm:$0xf]
        %v5964 = vld [vmem:[%s5961 + $0x8] sm:$0xf]
        %v5965 = vld [vmem:[%s5961 + $0xc] sm:$0xf]
        %v5966 = vld [vmem:[%s5961 + $0x10] sm:$0xf]
        %v5967 = vld [vmem:[%s5961 + $0x14] sm:$0xf]
        %v5968 = vld [vmem:[%s5961 + $0x18] sm:$0xf]
        %v5969 = vld [vmem:[%s5961 + $0x1c] sm:$0xf]
        %v5970 = vld [vmem:[%s5961 + $0x20] sm:$0xf]
        %v5971 = vld [vmem:[%s5961 + $0x24] sm:$0xf]
        %v5972 = vld [vmem:[%s5961 + $0x28] sm:$0xf]
        %v5973 = vld [vmem:[%s5961 + $0x2c] sm:$0xf]
        %v5974 = vld [vmem:[%s5961 + $0x30] sm:$0xf]
        %v5975 = vld [vmem:[%s5961 + $0x34] sm:$0xf]
        %v5976 = vld [vmem:[%s5961 + $0x38] sm:$0xf]
        %v5977 = vld [vmem:[%s5961 + $0x3c] sm:$0xf]
        %s5978 = scalar_lea.vmem [#allocation4], 64
        %v5979 = vld [vmem:[%s5978] sm:$0xf]
        %v5980 = vld [vmem:[%s5978 + $0x4] sm:$0xf]
        %v5981 = vld [vmem:[%s5978 + $0x8] sm:$0xf]
        %v5982 = vld [vmem:[%s5978 + $0xc] sm:$0xf]
        %v5983 = vld [vmem:[%s5978 + $0x10] sm:$0xf]
        %v5984 = vld [vmem:[%s5978 + $0x14] sm:$0xf]
        %v5985 = vld [vmem:[%s5978 + $0x18] sm:$0xf]
        %v5986 = vld [vmem:[%s5978 + $0x1c] sm:$0xf]
        %v5987 = vld [vmem:[%s5978 + $0x20] sm:$0xf]
        %v5988 = vld [vmem:[%s5978 + $0x24] sm:$0xf]
        %v5989 = vld [vmem:[%s5978 + $0x28] sm:$0xf]
        %v5990 = vld [vmem:[%s5978 + $0x2c] sm:$0xf]
        %v5991 = vld [vmem:[%s5978 + $0x30] sm:$0xf]
        %v5992 = vld [vmem:[%s5978 + $0x34] sm:$0xf]
        %v5993 = vld [vmem:[%s5978 + $0x38] sm:$0xf]
        %v5994 = vld [vmem:[%s5978 + $0x3c] sm:$0xf]
        %s5995 = scalar_lea.vmem [#allocation2], 128
        %v5996 = vld [vmem:[%s5995] sm:$0xff]
        %v5997 = vld [vmem:[%s5995 + $0x8] sm:$0xff]
        %v5998 = vld [vmem:[%s5995 + $0x10] sm:$0xff]
        %v5999 = vld [vmem:[%s5995 + $0x18] sm:$0xff]
        %v6000 = vld [vmem:[%s5995 + $0x20] sm:$0xff]
        %v6001 = vld [vmem:[%s5995 + $0x28] sm:$0xff]
        %v6002 = vld [vmem:[%s5995 + $0x30] sm:$0xff]
        %v6003 = vld [vmem:[%s5995 + $0x38] sm:$0xff]
        %v6004 = vld [vmem:[%s5995 + $0x40] sm:$0xff]
        %v6005 = vld [vmem:[%s5995 + $0x48] sm:$0xff]
        %v6006 = vld [vmem:[%s5995 + $0x50] sm:$0xff]
        %v6007 = vld [vmem:[%s5995 + $0x58] sm:$0xff]
        %v6008 = vld [vmem:[%s5995 + $0x60] sm:$0xff]
        %v6009 = vld [vmem:[%s5995 + $0x68] sm:$0xff]
        %v6010 = vld [vmem:[%s5995 + $0x70] sm:$0xff]
        %v6011 = vld [vmem:[%s5995 + $0x78] sm:$0xff]
        %s6012 = scalar_lea.vmem %s1, 2
        %v6013 = vld [vmem:[%s6012] sm:$0x3]
        %s6014 = scalar_lea.vmem %s6, 64
        %v6015 = vld [vmem:[%s6014] sm:$0xf]
        %v6016 = vld [vmem:[%s6014 + $0x4] sm:$0xf]
        %v6017 = vld [vmem:[%s6014 + $0x8] sm:$0xf]
        %v6018 = vld [vmem:[%s6014 + $0xc] sm:$0xf]
        %v6019 = vld [vmem:[%s6014 + $0x10] sm:$0xf]
        %v6020 = vld [vmem:[%s6014 + $0x14] sm:$0xf]
        %v6021 = vld [vmem:[%s6014 + $0x18] sm:$0xf]
        %v6022 = vld [vmem:[%s6014 + $0x1c] sm:$0xf]
        %v6023 = vld [vmem:[%s6014 + $0x20] sm:$0xf]
        %v6024 = vld [vmem:[%s6014 + $0x24] sm:$0xf]
        %v6025 = vld [vmem:[%s6014 + $0x28] sm:$0xf]
        %v6026 = vld [vmem:[%s6014 + $0x2c] sm:$0xf]
        %v6027 = vld [vmem:[%s6014 + $0x30] sm:$0xf]
        %v6028 = vld [vmem:[%s6014 + $0x34] sm:$0xf]
        %v6029 = vld [vmem:[%s6014 + $0x38] sm:$0xf]
        %v6030 = vld [vmem:[%s6014 + $0x3c] sm:$0xf]
        %s6031 = scalar_lea.vmem [#allocation6], 128
        %v6032 = vld [vmem:[%s6031] sm:$0xff]
        %v6033 = vld [vmem:[%s6031 + $0x8] sm:$0xff]
        %v6034 = vld [vmem:[%s6031 + $0x10] sm:$0xff]
        %v6035 = vld [vmem:[%s6031 + $0x18] sm:$0xff]
        %v6036 = vld [vmem:[%s6031 + $0x20] sm:$0xff]
        %v6037 = vld [vmem:[%s6031 + $0x28] sm:$0xff]
        %v6038 = vld [vmem:[%s6031 + $0x30] sm:$0xff]
        %v6039 = vld [vmem:[%s6031 + $0x38] sm:$0xff]
        %v6040 = vld [vmem:[%s6031 + $0x40] sm:$0xff]
        %v6041 = vld [vmem:[%s6031 + $0x48] sm:$0xff]
        %v6042 = vld [vmem:[%s6031 + $0x50] sm:$0xff]
        %v6043 = vld [vmem:[%s6031 + $0x58] sm:$0xff]
        %v6044 = vld [vmem:[%s6031 + $0x60] sm:$0xff]
        %v6045 = vld [vmem:[%s6031 + $0x68] sm:$0xff]
        %v6046 = vld [vmem:[%s6031 + $0x70] sm:$0xff]
        %v6047 = vld [vmem:[%s6031 + $0x78] sm:$0xff]
        %s6048 = scalar_lea.vmem %s2, 2
        %v6049 = vld [vmem:[%s6048] sm:$0x3]
        %s6050 = scalar_lea.vmem [#allocation7], 128
        %v6051 = vld [vmem:[%s6050] sm:$0xf]
        %v6052 = vld [vmem:[%s6050 + $0x4] sm:$0xf]
        %v6053 = vld [vmem:[%s6050 + $0x8] sm:$0xf]
        %v6054 = vld [vmem:[%s6050 + $0xc] sm:$0xf]
        %v6055 = vld [vmem:[%s6050 + $0x10] sm:$0xf]
        %v6056 = vld [vmem:[%s6050 + $0x14] sm:$0xf]
        %v6057 = vld [vmem:[%s6050 + $0x18] sm:$0xf]
        %v6058 = vld [vmem:[%s6050 + $0x1c] sm:$0xf]
        %v6059 = vld [vmem:[%s6050 + $0x20] sm:$0xf]
        %v6060 = vld [vmem:[%s6050 + $0x24] sm:$0xf]
        %v6061 = vld [vmem:[%s6050 + $0x28] sm:$0xf]
        %v6062 = vld [vmem:[%s6050 + $0x2c] sm:$0xf]
        %v6063 = vld [vmem:[%s6050 + $0x30] sm:$0xf]
        %v6064 = vld [vmem:[%s6050 + $0x34] sm:$0xf]
        %v6065 = vld [vmem:[%s6050 + $0x38] sm:$0xf]
        %v6066 = vld [vmem:[%s6050 + $0x3c] sm:$0xf]
        %v6067 = vld [vmem:[%s6050 + $0x40] sm:$0xf]
        %v6068 = vld [vmem:[%s6050 + $0x44] sm:$0xf]
        %v6069 = vld [vmem:[%s6050 + $0x48] sm:$0xf]
        %v6070 = vld [vmem:[%s6050 + $0x4c] sm:$0xf]
        %v6071 = vld [vmem:[%s6050 + $0x50] sm:$0xf]
        %v6072 = vld [vmem:[%s6050 + $0x54] sm:$0xf]
        %v6073 = vld [vmem:[%s6050 + $0x58] sm:$0xf]
        %v6074 = vld [vmem:[%s6050 + $0x5c] sm:$0xf]
        %v6075 = vld [vmem:[%s6050 + $0x60] sm:$0xf]
        %v6076 = vld [vmem:[%s6050 + $0x64] sm:$0xf]
        %v6077 = vld [vmem:[%s6050 + $0x68] sm:$0xf]
        %v6078 = vld [vmem:[%s6050 + $0x6c] sm:$0xf]
        %v6079 = vld [vmem:[%s6050 + $0x70] sm:$0xf]
        %v6080 = vld [vmem:[%s6050 + $0x74] sm:$0xf]
        %v6081 = vld [vmem:[%s6050 + $0x78] sm:$0xf]
        %v6082 = vld [vmem:[%s6050 + $0x7c] sm:$0xf]
        %s6083 = scalar_lea.vmem %s4, 16
        %v6084 = vld [vmem:[%s6083] sm:$0xff]
        %v6085 = vld [vmem:[%s6083 + $0x8] sm:$0x3]
        %v6086 = vpack.c.bf16 %v5925, %v5925
        %v6088 = vlaneseq
        %v6089 = vshrl.u32 %v6088, 7
        %v6090 = vsub.s32 0, %v6089
        %v6091 = vrot.slane %v5960, %v6090
        %v6092 = vlaneseq
        %v6093 = vshrl.u32 %v6092, 7
        %v6094 = vsub.s32 1, %v6093
        %v6095 = vrot.slane %v5960, %v6094
        %v6096 = vlaneseq
        %v6097 = vshrl.u32 %v6096, 7
        %v6098 = vsub.s32 2, %v6097
        %v6099 = vrot.slane %v5960, %v6098
        %v6135 = vunpack.c.l.b16 %v5927
        %v6136 = vunpack.c.h.b16 %v5927
        %v6137 = vunpack.c.l.b16 %v5928
        %v6138 = vunpack.c.l.b16 %v5929
        %v6139 = vunpack.c.h.b16 %v5929
        %v6140 = vunpack.c.l.b16 %v5930
        %v6141 = vunpack.c.l.b16 %v5931
        %v6142 = vunpack.c.h.b16 %v5931
        %v6143 = vunpack.c.l.b16 %v5932
        %v6144 = vunpack.c.l.b16 %v5933
        %v6145 = vunpack.c.h.b16 %v5933
        %v6146 = vunpack.c.l.b16 %v5934
        %v6147 = vunpack.c.l.b16 %v5935
        %v6148 = vunpack.c.h.b16 %v5935
        %v6149 = vunpack.c.l.b16 %v5936
        %v6150 = vunpack.c.l.b16 %v5937
        %v6151 = vunpack.c.h.b16 %v5937
        %v6152 = vunpack.c.l.b16 %v5938
        %v6153 = vunpack.c.l.b16 %v5939
        %v6154 = vunpack.c.h.b16 %v5939
        %v6155 = vunpack.c.l.b16 %v5940
        %v6156 = vunpack.c.l.b16 %v5941
        %v6157 = vunpack.c.h.b16 %v5941
        %v6158 = vunpack.c.l.b16 %v5942
        %v6159 = vunpack.c.l.b16 %v5943
        %v6160 = vunpack.c.h.b16 %v5943
        %v6161 = vunpack.c.l.b16 %v5944
        %v6162 = vunpack.c.l.b16 %v5945
        %v6163 = vunpack.c.h.b16 %v5945
        %v6164 = vunpack.c.l.b16 %v5946
        %v6165 = vunpack.c.l.b16 %v5947
        %v6166 = vunpack.c.h.b16 %v5947
        %v6167 = vunpack.c.l.b16 %v5948
        %v6168 = vunpack.c.l.b16 %v5949
        %v6169 = vunpack.c.h.b16 %v5949
        %v6170 = vunpack.c.l.b16 %v5950
        %v6171 = vunpack.c.l.b16 %v5951
        %v6172 = vunpack.c.h.b16 %v5951
        %v6173 = vunpack.c.l.b16 %v5952
        %v6174 = vunpack.c.l.b16 %v5953
        %v6175 = vunpack.c.h.b16 %v5953
        %v6176 = vunpack.c.l.b16 %v5954
        %v6177 = vunpack.c.l.b16 %v5955
        %v6178 = vunpack.c.h.b16 %v5955
        %v6179 = vunpack.c.l.b16 %v5956
        %v6180 = vunpack.c.l.b16 %v5957
        %v6181 = vunpack.c.h.b16 %v5957
        %v6182 = vunpack.c.l.b16 %v5958
        %v6183 = vpack.c.b16 %v6138, %v6135
        %v6184 = vpack.c.b16 %v6139, %v6136
        %v6185 = vpack.c.b16 %v6140, %v6137
        %v6186 = vpack.c.b16 %v6144, %v6141
        %v6187 = vpack.c.b16 %v6145, %v6142
        %v6188 = vpack.c.b16 %v6146, %v6143
        %v6189 = vpack.c.b16 %v6150, %v6147
        %v6190 = vpack.c.b16 %v6151, %v6148
        %v6191 = vpack.c.b16 %v6152, %v6149
        %v6192 = vpack.c.b16 %v6156, %v6153
        %v6193 = vpack.c.b16 %v6157, %v6154
        %v6194 = vpack.c.b16 %v6158, %v6155
        %v6195 = vpack.c.b16 %v6162, %v6159
        %v6196 = vpack.c.b16 %v6163, %v6160
        %v6197 = vpack.c.b16 %v6164, %v6161
        %v6198 = vpack.c.b16 %v6168, %v6165
        %v6199 = vpack.c.b16 %v6169, %v6166
        %v6200 = vpack.c.b16 %v6170, %v6167
        %v6201 = vpack.c.b16 %v6174, %v6171
        %v6202 = vpack.c.b16 %v6175, %v6172
        %v6203 = vpack.c.b16 %v6176, %v6173
        %v6204 = vpack.c.b16 %v6180, %v6177
        %v6205 = vpack.c.b16 %v6181, %v6178
        %v6206 = vpack.c.b16 %v6182, %v6179
        %6231 = vmatprep.subr.bf16.mxu0 %v6184
        %6232 = vmatpush1.bf16.msra.mxu0 %v6183
        %6233 = vmatprep.subr.bf16.mxu0 %v6187
        %6234 = vmatpush1.bf16.msra.mxu0 %v6186
        %6235 = vmatprep.subr.bf16.mxu0 %v6190
        %6236 = vmatpush1.bf16.msra.mxu0 %v6189
        %6237 = vmatprep.subr.bf16.mxu0 %v6193
        %6238 = vmatpush1.bf16.msra.mxu0 %v6192
        %6239 = vmatprep.subr.bf16.mxu0 %v6196
        %6240 = vmatpush1.bf16.msra.mxu0 %v6195
        %6241 = vmatprep.subr.bf16.mxu0 %v6199
        %6242 = vmatpush1.bf16.msra.mxu0 %v6198
        %6243 = vmatprep.subr.bf16.mxu0 %v6202
        %6244 = vmatpush1.bf16.msra.mxu0 %v6201
        %6245 = vmatprep.subr.bf16.mxu0 %v6205
        %6246 = vmatpush1.bf16.msra.mxu0 %v6204
        %6247 = vmatprep.subr.bf16.mxu0 0
        %6248 = vmatpush1.bf16.msra.mxu0 0
        %6249 = vmatprep.subr.bf16.mxu0 0
        %6250 = vmatpush1.bf16.msra.mxu0 0
        %6251 = vmatprep.subr.bf16.mxu0 0
        %6252 = vmatpush1.bf16.msra.mxu0 0
        %6253 = vmatprep.subr.bf16.mxu0 0
        %6254 = vmatpush1.bf16.msra.mxu0 0
        %6255 = vmatprep.subr.bf16.mxu0 0
        %6256 = vmatpush1.bf16.msra.mxu0 0
        %6257 = vmatprep.subr.bf16.mxu0 0
        %6258 = vmatpush1.bf16.msra.mxu0 0
        %6259 = vmatprep.subr.bf16.mxu0 0
        %6260 = vmatpush1.bf16.msra.mxu0 0
        %6261 = vmatprep.subr.bf16.mxu0 0
        %6262 = vmatpush1.bf16.msra.mxu0 0
        %6263 = vmatprep.mubr.bf16.mxu0 0
        %6264 = vmatmul.mubr.bf16.gmra.mrb[0].mxu0 %v6086
        %v6265 = vpop.f32.mrb[0].mxu0
        %v6266 = vadd.f32 %v6091, %v6265
        %v6267 = vpop.f32.mrb[0].mxu0
        %v6268 = vadd.f32 %v6095, %v6267
        %v6269 = vpop.f32.mrb[0].mxu0
        %v6270 = vpop.f32.mrb[0].mxu0
        %6271 = vdwg.mxu0
        %6272 = vmatprep.subr.bf16.mxu0 0
        %6273 = vmatpush1.bf16.msra.mxu0 %v6185
        %6274 = vmatprep.subr.bf16.mxu0 0
        %6275 = vmatpush1.bf16.msra.mxu0 %v6188
        %6276 = vmatprep.subr.bf16.mxu0 0
        %6277 = vmatpush1.bf16.msra.mxu0 %v6191
        %6278 = vmatprep.subr.bf16.mxu0 0
        %6279 = vmatpush1.bf16.msra.mxu0 %v6194
        %6280 = vmatprep.subr.bf16.mxu0 0
        %6281 = vmatpush1.bf16.msra.mxu0 %v6197
        %6282 = vmatprep.subr.bf16.mxu0 0
        %6283 = vmatpush1.bf16.msra.mxu0 %v6200
        %6284 = vmatprep.subr.bf16.mxu0 0
        %6285 = vmatpush1.bf16.msra.mxu0 %v6203
        %6286 = vmatprep.subr.bf16.mxu0 0
        %6287 = vmatpush1.bf16.msra.mxu0 %v6206
        %6288 = vmatprep.subr.bf16.mxu0 0
        %6289 = vmatpush1.bf16.msra.mxu0 0
        %6290 = vmatprep.subr.bf16.mxu0 0
        %6291 = vmatpush1.bf16.msra.mxu0 0
        %6292 = vmatprep.subr.bf16.mxu0 0
        %6293 = vmatpush1.bf16.msra.mxu0 0
        %6294 = vmatprep.subr.bf16.mxu0 0
        %6295 = vmatpush1.bf16.msra.mxu0 0
        %6296 = vmatprep.subr.bf16.mxu0 0
        %6297 = vmatpush1.bf16.msra.mxu0 0
        %6298 = vmatprep.subr.bf16.mxu0 0
        %6299 = vmatpush1.bf16.msra.mxu0 0
        %6300 = vmatprep.subr.bf16.mxu0 0
        %6301 = vmatpush1.bf16.msra.mxu0 0
        %6302 = vmatprep.subr.bf16.mxu0 0
        %6303 = vmatpush1.bf16.msra.mxu0 0
        %6304 = vmatprep.mubr.bf16.mxu0 0
        %6305 = vmatmul.mubr.bf16.gmra.mrb[0].mxu0 %v6086
        %v6306 = vpop.f32.mrb[0].mxu0
        %v6307 = vadd.f32 %v6099, %v6306
        %v6308 = vpop.f32.mrb[0].mxu0
        %v6309 = vpop.f32.mrb[0].mxu0
        %v6310 = vpop.f32.mrb[0].mxu0
        %6311 = vdwg.mxu0
        %v6312 = vpack.c.bf16 %v6266, %v6266
        %v6313 = vpack.c.bf16 %v6268, %v6268
        %v6314 = vpack.c.bf16 %v6307, %v6307
        %v6316 = vsel %vm1269, %v6312, 0
        %v6319 = vsel %vm1269, %v6313, 0
        %6321 = vmatprep.subr.bf16.mxu0 0
        %6322 = vmatpush1.bf16.xpose.msra.mxu0 %v6319
        %6323 = vmatprep.subr.bf16.mxu0 0
        %6324 = vmatpush1.bf16.xpose.msra.mxu0 0
        %6325 = vmatprep.subr.bf16.mxu0 0
        %6326 = vmatpush1.bf16.xpose.msra.mxu0 0
        %6327 = vmatprep.subr.bf16.mxu0 0
        %6328 = vmatpush1.bf16.xpose.msra.mxu0 0
        %6329 = vmatprep.subr.bf16.mxu0 0
        %6330 = vmatpush1.bf16.xpose.msra.mxu0 0
        %6331 = vmatprep.subr.bf16.mxu0 0
        %6332 = vmatpush1.bf16.xpose.msra.mxu0 0
        %6333 = vmatprep.subr.bf16.mxu0 0
        %6334 = vmatpush1.bf16.xpose.msra.mxu0 0
        %6335 = vmatprep.subr.bf16.mxu0 0
        %6336 = vmatpush1.bf16.xpose.msra.mxu0 0
        %6337 = vmatprep.subr.bf16.mxu0 0
        %6338 = vmatpush1.bf16.xpose.msra.mxu0 0
        %6339 = vmatprep.subr.bf16.mxu0 0
        %6340 = vmatpush1.bf16.xpose.msra.mxu0 0
        %6341 = vmatprep.subr.bf16.mxu0 0
        %6342 = vmatpush1.bf16.xpose.msra.mxu0 0
        %6343 = vmatprep.subr.bf16.mxu0 0
        %6344 = vmatpush1.bf16.xpose.msra.mxu0 0
        %6345 = vmatprep.subr.bf16.mxu0 0
        %6346 = vmatpush1.bf16.xpose.msra.mxu0 0
        %6347 = vmatprep.subr.bf16.mxu0 0
        %6348 = vmatpush1.bf16.xpose.msra.mxu0 0
        %6349 = vmatprep.subr.bf16.mxu0 0
        %6350 = vmatpush1.bf16.xpose.msra.mxu0 0
        %6351 = vmatprep.subr.bf16.mxu0 0
        %6352 = vmatpush1.bf16.xpose.msra.mxu0 0
        %6353 = vmatprep.mubr.bf16.mxu0 0
        %6354 = vmatmul.mubr.bf16.gmra.mrb[0].mxu0 %v6316
        %v6355 = vpop.f32.mrb[0].mxu0
        %v6356 = vadd.f32 0.0, %v6355
        %v6357 = vpop.f32.mrb[0].mxu0
        %v6358 = vpop.f32.mrb[0].mxu0
        %v6359 = vpop.f32.mrb[0].mxu0
        %6360 = vdwg.mxu0
        %v6361 = vsel %vm1316, %v6356, -inf
        %6362 = vmax.xlane.f32.xlu0 %v6361
        %v6363 = vpop.xlane.xlu0 %6362
        %v6364 = vsub.f32 %v6356, %v6363
        %v6365 = vmul.f32 %v6364, 1.442695
        %v6366 = vpow.pop %v6365
        %v6367 = vsel %vm1316, %v6366, 0.0
        %6368 = vadd.xlane.f32.xlu0 %v6367
        %v6369 = vpop.xlane.xlu0 %6368
        %v6370 = vrcp.pop %v6369
        %v6371 = vmul.f32 %v6366, %v6370
        %v6372 = vpack.c.bf16 %v6371, %v6371
        %v6374 = vsel %vm1329, %v6372, 0
        %v6377 = vsel %vm1333, %v6314, 0
        %6379 = vmatprep.subr.bf16.mxu0 0
        %6380 = vmatpush1.bf16.msra.mxu0 %v6377
        %6381 = vmatprep.subr.bf16.mxu0 0
        %6382 = vmatpush1.bf16.msra.mxu0 0
        %6383 = vmatprep.subr.bf16.mxu0 0
        %6384 = vmatpush1.bf16.msra.mxu0 0
        %6385 = vmatprep.subr.bf16.mxu0 0
        %6386 = vmatpush1.bf16.msra.mxu0 0
        %6387 = vmatprep.subr.bf16.mxu0 0
        %6388 = vmatpush1.bf16.msra.mxu0 0
        %6389 = vmatprep.subr.bf16.mxu0 0
        %6390 = vmatpush1.bf16.msra.mxu0 0
        %6391 = vmatprep.subr.bf16.mxu0 0
        %6392 = vmatpush1.bf16.msra.mxu0 0
        %6393 = vmatprep.subr.bf16.mxu0 0
        %6394 = vmatpush1.bf16.msra.mxu0 0
        %6395 = vmatprep.subr.bf16.mxu0 0
        %6396 = vmatpush1.bf16.msra.mxu0 0
        %6397 = vmatprep.subr.bf16.mxu0 0
        %6398 = vmatpush1.bf16.msra.mxu0 0
        %6399 = vmatprep.subr.bf16.mxu0 0
        %6400 = vmatpush1.bf16.msra.mxu0 0
        %6401 = vmatprep.subr.bf16.mxu0 0
        %6402 = vmatpush1.bf16.msra.mxu0 0
        %6403 = vmatprep.subr.bf16.mxu0 0
        %6404 = vmatpush1.bf16.msra.mxu0 0
        %6405 = vmatprep.subr.bf16.mxu0 0
        %6406 = vmatpush1.bf16.msra.mxu0 0
        %6407 = vmatprep.subr.bf16.mxu0 0
        %6408 = vmatpush1.bf16.msra.mxu0 0
        %6409 = vmatprep.subr.bf16.mxu0 0
        %6410 = vmatpush1.bf16.msra.mxu0 0
        %6411 = vmatprep.mubr.bf16.mxu0 0
        %6412 = vmatmul.mubr.bf16.gmra.mrb[0].mxu0 %v6374
        %v6413 = vpop.f32.mrb[0].mxu0
        %v6414 = vadd.f32 0.0, %v6413
        %v6415 = vpop.f32.mrb[0].mxu0
        %v6416 = vpop.f32.mrb[0].mxu0
        %v6417 = vpop.f32.mrb[0].mxu0
        %6418 = vdwg.mxu0
        %v6419 = vpack.c.bf16 %v6414, %v6414
        %6421 = vrot.lane.b32.xlu0 %v6312, 96
        %v6422 = vpop.permute.xlu0 %6421
        %6424 = vrot.lane.b32.xlu0 %v6313, 96
        %v6425 = vpop.permute.xlu0 %6424
        %v6427 = vsel %vm1269, %v6422, 0
        %v6430 = vsel %vm1269, %v6425, 0
        %6432 = vmatprep.subr.bf16.mxu0 0
        %6433 = vmatpush1.bf16.xpose.msra.mxu0 %v6430
        %6434 = vmatprep.subr.bf16.mxu0 0
        %6435 = vmatpush1.bf16.xpose.msra.mxu0 0
        %6436 = vmatprep.subr.bf16.mxu0 0
        %6437 = vmatpush1.bf16.xpose.msra.mxu0 0
        %6438 = vmatprep.subr.bf16.mxu0 0
        %6439 = vmatpush1.bf16.xpose.msra.mxu0 0
        %6440 = vmatprep.subr.bf16.mxu0 0
        %6441 = vmatpush1.bf16.xpose.msra.mxu0 0
        %6442 = vmatprep.subr.bf16.mxu0 0
        %6443 = vmatpush1.bf16.xpose.msra.mxu0 0
        %6444 = vmatprep.subr.bf16.mxu0 0
        %6445 = vmatpush1.bf16.xpose.msra.mxu0 0
        %6446 = vmatprep.subr.bf16.mxu0 0
        %6447 = vmatpush1.bf16.xpose.msra.mxu0 0
        %6448 = vmatprep.subr.bf16.mxu0 0
        %6449 = vmatpush1.bf16.xpose.msra.mxu0 0
        %6450 = vmatprep.subr.bf16.mxu0 0
        %6451 = vmatpush1.bf16.xpose.msra.mxu0 0
        %6452 = vmatprep.subr.bf16.mxu0 0
        %6453 = vmatpush1.bf16.xpose.msra.mxu0 0
        %6454 = vmatprep.subr.bf16.mxu0 0
        %6455 = vmatpush1.bf16.xpose.msra.mxu0 0
        %6456 = vmatprep.subr.bf16.mxu0 0
        %6457 = vmatpush1.bf16.xpose.msra.mxu0 0
        %6458 = vmatprep.subr.bf16.mxu0 0
        %6459 = vmatpush1.bf16.xpose.msra.mxu0 0
        %6460 = vmatprep.subr.bf16.mxu0 0
        %6461 = vmatpush1.bf16.xpose.msra.mxu0 0
        %6462 = vmatprep.subr.bf16.mxu0 0
        %6463 = vmatpush1.bf16.xpose.msra.mxu0 0
        %6464 = vmatprep.mubr.bf16.mxu0 0
        %6465 = vmatmul.mubr.bf16.gmra.mrb[0].mxu0 %v6427
        %v6466 = vpop.f32.mrb[0].mxu0
        %v6467 = vadd.f32 0.0, %v6466
        %v6468 = vpop.f32.mrb[0].mxu0
        %v6469 = vpop.f32.mrb[0].mxu0
        %v6470 = vpop.f32.mrb[0].mxu0
        %6471 = vdwg.mxu0
        %v6472 = vsel %vm1316, %v6467, -inf
        %6473 = vmax.xlane.f32.xlu0 %v6472
        %v6474 = vpop.xlane.xlu0 %6473
        %v6475 = vsub.f32 %v6467, %v6474
        %v6476 = vmul.f32 %v6475, 1.442695
        %v6477 = vpow.pop %v6476
        %v6478 = vsel %vm1316, %v6477, 0.0
        %6479 = vadd.xlane.f32.xlu0 %v6478
        %v6480 = vpop.xlane.xlu0 %6479
        %v6481 = vrcp.pop %v6480
        %v6482 = vmul.f32 %v6477, %v6481
        %v6483 = vpack.c.bf16 %v6482, %v6482
        %6485 = vrot.lane.b32.xlu0 %v6314, 96
        %v6486 = vpop.permute.xlu0 %6485
        %v6488 = vsel %vm1329, %v6483, 0
        %v6491 = vsel %vm1333, %v6486, 0
        %6493 = vmatprep.subr.bf16.mxu0 0
        %6494 = vmatpush1.bf16.msra.mxu0 %v6491
        %6495 = vmatprep.subr.bf16.mxu0 0
        %6496 = vmatpush1.bf16.msra.mxu0 0
        %6497 = vmatprep.subr.bf16.mxu0 0
        %6498 = vmatpush1.bf16.msra.mxu0 0
        %6499 = vmatprep.subr.bf16.mxu0 0
        %6500 = vmatpush1.bf16.msra.mxu0 0
        %6501 = vmatprep.subr.bf16.mxu0 0
        %6502 = vmatpush1.bf16.msra.mxu0 0
        %6503 = vmatprep.subr.bf16.mxu0 0
        %6504 = vmatpush1.bf16.msra.mxu0 0
        %6505 = vmatprep.subr.bf16.mxu0 0
        %6506 = vmatpush1.bf16.msra.mxu0 0
        %6507 = vmatprep.subr.bf16.mxu0 0
        %6508 = vmatpush1.bf16.msra.mxu0 0
        %6509 = vmatprep.subr.bf16.mxu0 0
        %6510 = vmatpush1.bf16.msra.mxu0 0
        %6511 = vmatprep.subr.bf16.mxu0 0
        %6512 = vmatpush1.bf16.msra.mxu0 0
        %6513 = vmatprep.subr.bf16.mxu0 0
        %6514 = vmatpush1.bf16.msra.mxu0 0
        %6515 = vmatprep.subr.bf16.mxu0 0
        %6516 = vmatpush1.bf16.msra.mxu0 0
        %6517 = vmatprep.subr.bf16.mxu0 0
        %6518 = vmatpush1.bf16.msra.mxu0 0
        %6519 = vmatprep.subr.bf16.mxu0 0
        %6520 = vmatpush1.bf16.msra.mxu0 0
        %6521 = vmatprep.subr.bf16.mxu0 0
        %6522 = vmatpush1.bf16.msra.mxu0 0
        %6523 = vmatprep.subr.bf16.mxu0 0
        %6524 = vmatpush1.bf16.msra.mxu0 0
        %6525 = vmatprep.mubr.bf16.mxu0 0
        %6526 = vmatmul.mubr.bf16.gmra.mrb[0].mxu0 %v6488
        %v6527 = vpop.f32.mrb[0].mxu0
        %v6528 = vadd.f32 0.0, %v6527
        %v6529 = vpop.f32.mrb[0].mxu0
        %v6530 = vpop.f32.mrb[0].mxu0
        %v6531 = vpop.f32.mrb[0].mxu0
        %6532 = vdwg.mxu0
        %v6533 = vpack.c.bf16 %v6528, %v6528
        %v6538 = vunpack.c.l.b16 %v5966
        %v6539 = vunpack.c.l.b16 %v5967
        %v6540 = vunpack.c.l.b16 %v5968
        %v6541 = vunpack.c.l.b16 %v5969
        %v6542 = vpack.c.b16 %v6539, %v6538
        %v6543 = vpack.c.b16 %v6541, %v6540
        %v6547 = vsel %vm1269, %v6533, 0
        %6549 = vmatprep.subr.bf16.mxu0 0
        %6550 = vmatpush1.bf16.msra.mxu0 %v6542
        %6551 = vmatprep.subr.bf16.mxu0 0
        %6552 = vmatpush1.bf16.msra.mxu0 %v6543
        %6553 = vmatprep.subr.bf16.mxu0 0
        %6554 = vmatpush1.bf16.msra.mxu0 0
        %6555 = vmatprep.subr.bf16.mxu0 0
        %6556 = vmatpush1.bf16.msra.mxu0 0
        %6557 = vmatprep.subr.bf16.mxu0 0
        %6558 = vmatpush1.bf16.msra.mxu0 0
        %6559 = vmatprep.subr.bf16.mxu0 0
        %6560 = vmatpush1.bf16.msra.mxu0 0
        %6561 = vmatprep.subr.bf16.mxu0 0
        %6562 = vmatpush1.bf16.msra.mxu0 0
        %6563 = vmatprep.subr.bf16.mxu0 0
        %6564 = vmatpush1.bf16.msra.mxu0 0
        %6565 = vmatprep.subr.bf16.mxu0 0
        %6566 = vmatpush1.bf16.msra.mxu0 0
        %6567 = vmatprep.subr.bf16.mxu0 0
        %6568 = vmatpush1.bf16.msra.mxu0 0
        %6569 = vmatprep.subr.bf16.mxu0 0
        %6570 = vmatpush1.bf16.msra.mxu0 0
        %6571 = vmatprep.subr.bf16.mxu0 0
        %6572 = vmatpush1.bf16.msra.mxu0 0
        %6573 = vmatprep.subr.bf16.mxu0 0
        %6574 = vmatpush1.bf16.msra.mxu0 0
        %6575 = vmatprep.subr.bf16.mxu0 0
        %6576 = vmatpush1.bf16.msra.mxu0 0
        %6577 = vmatprep.subr.bf16.mxu0 0
        %6578 = vmatpush1.bf16.msra.mxu0 0
        %6579 = vmatprep.subr.bf16.mxu0 0
        %6580 = vmatpush1.bf16.msra.mxu0 0
        %6581 = vmatprep.mubr.bf16.mxu0 0
        %6582 = vmatmul.mubr.bf16.gmra.mrb[0].mxu0 %v6547
        %v6583 = vpop.f32.mrb[0].mxu0
        %v6584 = vadd.f32 0.0, %v6583
        %v6585 = vpop.f32.mrb[0].mxu0
        %v6586 = vpop.f32.mrb[0].mxu0
        %v6587 = vpop.f32.mrb[0].mxu0
        %6588 = vdwg.mxu0
        %v6593 = vunpack.c.l.b16 %v5962
        %v6594 = vunpack.c.l.b16 %v5963
        %v6595 = vunpack.c.l.b16 %v5964
        %v6596 = vunpack.c.l.b16 %v5965
        %v6597 = vpack.c.b16 %v6594, %v6593
        %v6598 = vpack.c.b16 %v6596, %v6595
        %v6602 = vsel %vm1269, %v6419, 0
        %6604 = vmatprep.subr.bf16.mxu0 0
        %6605 = vmatpush1.bf16.msra.mxu0 %v6597
        %6606 = vmatprep.subr.bf16.mxu0 0
        %6607 = vmatpush1.bf16.msra.mxu0 %v6598
        %6608 = vmatprep.subr.bf16.mxu0 0
        %6609 = vmatpush1.bf16.msra.mxu0 0
        %6610 = vmatprep.subr.bf16.mxu0 0
        %6611 = vmatpush1.bf16.msra.mxu0 0
        %6612 = vmatprep.subr.bf16.mxu0 0
        %6613 = vmatpush1.bf16.msra.mxu0 0
        %6614 = vmatprep.subr.bf16.mxu0 0
        %6615 = vmatpush1.bf16.msra.mxu0 0
        %6616 = vmatprep.subr.bf16.mxu0 0
        %6617 = vmatpush1.bf16.msra.mxu0 0
        %6618 = vmatprep.subr.bf16.mxu0 0
        %6619 = vmatpush1.bf16.msra.mxu0 0
        %6620 = vmatprep.subr.bf16.mxu0 0
        %6621 = vmatpush1.bf16.msra.mxu0 0
        %6622 = vmatprep.subr.bf16.mxu0 0
        %6623 = vmatpush1.bf16.msra.mxu0 0
        %6624 = vmatprep.subr.bf16.mxu0 0
        %6625 = vmatpush1.bf16.msra.mxu0 0
        %6626 = vmatprep.subr.bf16.mxu0 0
        %6627 = vmatpush1.bf16.msra.mxu0 0
        %6628 = vmatprep.subr.bf16.mxu0 0
        %6629 = vmatpush1.bf16.msra.mxu0 0
        %6630 = vmatprep.subr.bf16.mxu0 0
        %6631 = vmatpush1.bf16.msra.mxu0 0
        %6632 = vmatprep.subr.bf16.mxu0 0
        %6633 = vmatpush1.bf16.msra.mxu0 0
        %6634 = vmatprep.subr.bf16.mxu0 0
        %6635 = vmatpush1.bf16.msra.mxu0 0
        %6636 = vmatprep.mubr.bf16.mxu0 0
        %6637 = vmatmul.mubr.bf16.gmra.mrb[0].mxu0 %v6602
        %v6638 = vpop.f32.mrb[0].mxu0
        %v6639 = vadd.f32 %v6584, %v6638
        %v6640 = vpop.f32.mrb[0].mxu0
        %v6641 = vpop.f32.mrb[0].mxu0
        %v6642 = vpop.f32.mrb[0].mxu0
        %6643 = vdwg.mxu0
        %6644 = vrot.lane.b32.xlu0 %v6312, 64
        %v6645 = vpop.permute.xlu0 %6644
        %6646 = vrot.lane.b32.xlu0 %v6313, 64
        %v6647 = vpop.permute.xlu0 %6646
        %v6649 = vsel %vm1269, %v6645, 0
        %v6652 = vsel %vm1269, %v6647, 0
        %6654 = vmatprep.subr.bf16.mxu0 0
        %6655 = vmatpush1.bf16.xpose.msra.mxu0 %v6652
        %6656 = vmatprep.subr.bf16.mxu0 0
        %6657 = vmatpush1.bf16.xpose.msra.mxu0 0
        %6658 = vmatprep.subr.bf16.mxu0 0
        %6659 = vmatpush1.bf16.xpose.msra.mxu0 0
        %6660 = vmatprep.subr.bf16.mxu0 0
        %6661 = vmatpush1.bf16.xpose.msra.mxu0 0
        %6662 = vmatprep.subr.bf16.mxu0 0
        %6663 = vmatpush1.bf16.xpose.msra.mxu0 0
        %6664 = vmatprep.subr.bf16.mxu0 0
        %6665 = vmatpush1.bf16.xpose.msra.mxu0 0
        %6666 = vmatprep.subr.bf16.mxu0 0
        %6667 = vmatpush1.bf16.xpose.msra.mxu0 0
        %6668 = vmatprep.subr.bf16.mxu0 0
        %6669 = vmatpush1.bf16.xpose.msra.mxu0 0
        %6670 = vmatprep.subr.bf16.mxu0 0
        %6671 = vmatpush1.bf16.xpose.msra.mxu0 0
        %6672 = vmatprep.subr.bf16.mxu0 0
        %6673 = vmatpush1.bf16.xpose.msra.mxu0 0
        %6674 = vmatprep.subr.bf16.mxu0 0
        %6675 = vmatpush1.bf16.xpose.msra.mxu0 0
        %6676 = vmatprep.subr.bf16.mxu0 0
        %6677 = vmatpush1.bf16.xpose.msra.mxu0 0
        %6678 = vmatprep.subr.bf16.mxu0 0
        %6679 = vmatpush1.bf16.xpose.msra.mxu0 0
        %6680 = vmatprep.subr.bf16.mxu0 0
        %6681 = vmatpush1.bf16.xpose.msra.mxu0 0
        %6682 = vmatprep.subr.bf16.mxu0 0
        %6683 = vmatpush1.bf16.xpose.msra.mxu0 0
        %6684 = vmatprep.subr.bf16.mxu0 0
        %6685 = vmatpush1.bf16.xpose.msra.mxu0 0
        %6686 = vmatprep.mubr.bf16.mxu0 0
        %6687 = vmatmul.mubr.bf16.gmra.mrb[0].mxu0 %v6649
        %v6688 = vpop.f32.mrb[0].mxu0
        %v6689 = vadd.f32 0.0, %v6688
        %v6690 = vpop.f32.mrb[0].mxu0
        %v6691 = vpop.f32.mrb[0].mxu0
        %v6692 = vpop.f32.mrb[0].mxu0
        %6693 = vdwg.mxu0
        %v6694 = vsel %vm1316, %v6689, -inf
        %6695 = vmax.xlane.f32.xlu0 %v6694
        %v6696 = vpop.xlane.xlu0 %6695
        %v6697 = vsub.f32 %v6689, %v6696
        %v6698 = vmul.f32 %v6697, 1.442695
        %v6699 = vpow.pop %v6698
        %v6700 = vsel %vm1316, %v6699, 0.0
        %6701 = vadd.xlane.f32.xlu0 %v6700
        %v6702 = vpop.xlane.xlu0 %6701
        %v6703 = vrcp.pop %v6702
        %v6704 = vmul.f32 %v6699, %v6703
        %v6705 = vpack.c.bf16 %v6704, %v6704
        %6706 = vrot.lane.b32.xlu0 %v6314, 64
        %v6707 = vpop.permute.xlu0 %6706
        %v6709 = vsel %vm1329, %v6705, 0
        %v6712 = vsel %vm1333, %v6707, 0
        %6714 = vmatprep.subr.bf16.mxu0 0
        %6715 = vmatpush1.bf16.msra.mxu0 %v6712
        %6716 = vmatprep.subr.bf16.mxu0 0
        %6717 = vmatpush1.bf16.msra.mxu0 0
        %6718 = vmatprep.subr.bf16.mxu0 0
        %6719 = vmatpush1.bf16.msra.mxu0 0
        %6720 = vmatprep.subr.bf16.mxu0 0
        %6721 = vmatpush1.bf16.msra.mxu0 0
        %6722 = vmatprep.subr.bf16.mxu0 0
        %6723 = vmatpush1.bf16.msra.mxu0 0
        %6724 = vmatprep.subr.bf16.mxu0 0
        %6725 = vmatpush1.bf16.msra.mxu0 0
        %6726 = vmatprep.subr.bf16.mxu0 0
        %6727 = vmatpush1.bf16.msra.mxu0 0
        %6728 = vmatprep.subr.bf16.mxu0 0
        %6729 = vmatpush1.bf16.msra.mxu0 0
        %6730 = vmatprep.subr.bf16.mxu0 0
        %6731 = vmatpush1.bf16.msra.mxu0 0
        %6732 = vmatprep.subr.bf16.mxu0 0
        %6733 = vmatpush1.bf16.msra.mxu0 0
        %6734 = vmatprep.subr.bf16.mxu0 0
        %6735 = vmatpush1.bf16.msra.mxu0 0
        %6736 = vmatprep.subr.bf16.mxu0 0
        %6737 = vmatpush1.bf16.msra.mxu0 0
        %6738 = vmatprep.subr.bf16.mxu0 0
        %6739 = vmatpush1.bf16.msra.mxu0 0
        %6740 = vmatprep.subr.bf16.mxu0 0
        %6741 = vmatpush1.bf16.msra.mxu0 0
        %6742 = vmatprep.subr.bf16.mxu0 0
        %6743 = vmatpush1.bf16.msra.mxu0 0
        %6744 = vmatprep.subr.bf16.mxu0 0
        %6745 = vmatpush1.bf16.msra.mxu0 0
        %6746 = vmatprep.mubr.bf16.mxu0 0
        %6747 = vmatmul.mubr.bf16.gmra.mrb[0].mxu0 %v6709
        %v6748 = vpop.f32.mrb[0].mxu0
        %v6749 = vadd.f32 0.0, %v6748
        %v6750 = vpop.f32.mrb[0].mxu0
        %v6751 = vpop.f32.mrb[0].mxu0
        %v6752 = vpop.f32.mrb[0].mxu0
        %6753 = vdwg.mxu0
        %v6754 = vpack.c.bf16 %v6749, %v6749
        %v6759 = vunpack.c.l.b16 %v5970
        %v6760 = vunpack.c.l.b16 %v5971
        %v6761 = vunpack.c.l.b16 %v5972
        %v6762 = vunpack.c.l.b16 %v5973
        %v6763 = vpack.c.b16 %v6760, %v6759
        %v6764 = vpack.c.b16 %v6762, %v6761
        %v6768 = vsel %vm1269, %v6754, 0
        %6770 = vmatprep.subr.bf16.mxu0 0
        %6771 = vmatpush1.bf16.msra.mxu0 %v6763
        %6772 = vmatprep.subr.bf16.mxu0 0
        %6773 = vmatpush1.bf16.msra.mxu0 %v6764
        %6774 = vmatprep.subr.bf16.mxu0 0
        %6775 = vmatpush1.bf16.msra.mxu0 0
        %6776 = vmatprep.subr.bf16.mxu0 0
        %6777 = vmatpush1.bf16.msra.mxu0 0
        %6778 = vmatprep.subr.bf16.mxu0 0
        %6779 = vmatpush1.bf16.msra.mxu0 0
        %6780 = vmatprep.subr.bf16.mxu0 0
        %6781 = vmatpush1.bf16.msra.mxu0 0
        %6782 = vmatprep.subr.bf16.mxu0 0
        %6783 = vmatpush1.bf16.msra.mxu0 0
        %6784 = vmatprep.subr.bf16.mxu0 0
        %6785 = vmatpush1.bf16.msra.mxu0 0
        %6786 = vmatprep.subr.bf16.mxu0 0
        %6787 = vmatpush1.bf16.msra.mxu0 0
        %6788 = vmatprep.subr.bf16.mxu0 0
        %6789 = vmatpush1.bf16.msra.mxu0 0
        %6790 = vmatprep.subr.bf16.mxu0 0
        %6791 = vmatpush1.bf16.msra.mxu0 0
        %6792 = vmatprep.subr.bf16.mxu0 0
        %6793 = vmatpush1.bf16.msra.mxu0 0
        %6794 = vmatprep.subr.bf16.mxu0 0
        %6795 = vmatpush1.bf16.msra.mxu0 0
        %6796 = vmatprep.subr.bf16.mxu0 0
        %6797 = vmatpush1.bf16.msra.mxu0 0
        %6798 = vmatprep.subr.bf16.mxu0 0
        %6799 = vmatpush1.bf16.msra.mxu0 0
        %6800 = vmatprep.subr.bf16.mxu0 0
        %6801 = vmatpush1.bf16.msra.mxu0 0
        %6802 = vmatprep.mubr.bf16.mxu0 0
        %6803 = vmatmul.mubr.bf16.gmra.mrb[0].mxu0 %v6768
        %v6804 = vpop.f32.mrb[0].mxu0
        %v6805 = vadd.f32 0.0, %v6804
        %v6806 = vpop.f32.mrb[0].mxu0
        %v6807 = vpop.f32.mrb[0].mxu0
        %v6808 = vpop.f32.mrb[0].mxu0
        %6809 = vdwg.mxu0
        %v6810 = vadd.f32 %v6639, %v6805
        %6811 = vrot.lane.b32.xlu0 %v6312, 32
        %v6812 = vpop.permute.xlu0 %6811
        %6813 = vrot.lane.b32.xlu0 %v6313, 32
        %v6814 = vpop.permute.xlu0 %6813
        %v6816 = vsel %vm1269, %v6812, 0
        %v6819 = vsel %vm1269, %v6814, 0
        %6821 = vmatprep.subr.bf16.mxu0 0
        %6822 = vmatpush1.bf16.xpose.msra.mxu0 %v6819
        %6823 = vmatprep.subr.bf16.mxu0 0
        %6824 = vmatpush1.bf16.xpose.msra.mxu0 0
        %6825 = vmatprep.subr.bf16.mxu0 0
        %6826 = vmatpush1.bf16.xpose.msra.mxu0 0
        %6827 = vmatprep.subr.bf16.mxu0 0
        %6828 = vmatpush1.bf16.xpose.msra.mxu0 0
        %6829 = vmatprep.subr.bf16.mxu0 0
        %6830 = vmatpush1.bf16.xpose.msra.mxu0 0
        %6831 = vmatprep.subr.bf16.mxu0 0
        %6832 = vmatpush1.bf16.xpose.msra.mxu0 0
        %6833 = vmatprep.subr.bf16.mxu0 0
        %6834 = vmatpush1.bf16.xpose.msra.mxu0 0
        %6835 = vmatprep.subr.bf16.mxu0 0
        %6836 = vmatpush1.bf16.xpose.msra.mxu0 0
        %6837 = vmatprep.subr.bf16.mxu0 0
        %6838 = vmatpush1.bf16.xpose.msra.mxu0 0
        %6839 = vmatprep.subr.bf16.mxu0 0
        %6840 = vmatpush1.bf16.xpose.msra.mxu0 0
        %6841 = vmatprep.subr.bf16.mxu0 0
        %6842 = vmatpush1.bf16.xpose.msra.mxu0 0
        %6843 = vmatprep.subr.bf16.mxu0 0
        %6844 = vmatpush1.bf16.xpose.msra.mxu0 0
        %6845 = vmatprep.subr.bf16.mxu0 0
        %6846 = vmatpush1.bf16.xpose.msra.mxu0 0
        %6847 = vmatprep.subr.bf16.mxu0 0
        %6848 = vmatpush1.bf16.xpose.msra.mxu0 0
        %6849 = vmatprep.subr.bf16.mxu0 0
        %6850 = vmatpush1.bf16.xpose.msra.mxu0 0
        %6851 = vmatprep.subr.bf16.mxu0 0
        %6852 = vmatpush1.bf16.xpose.msra.mxu0 0
        %6853 = vmatprep.mubr.bf16.mxu0 0
        %6854 = vmatmul.mubr.bf16.gmra.mrb[0].mxu0 %v6816
        %v6855 = vpop.f32.mrb[0].mxu0
        %v6856 = vadd.f32 0.0, %v6855
        %v6857 = vpop.f32.mrb[0].mxu0
        %v6858 = vpop.f32.mrb[0].mxu0
        %v6859 = vpop.f32.mrb[0].mxu0
        %6860 = vdwg.mxu0
        %v6861 = vsel %vm1316, %v6856, -inf
        %6862 = vmax.xlane.f32.xlu0 %v6861
        %v6863 = vpop.xlane.xlu0 %6862
        %v6864 = vsub.f32 %v6856, %v6863
        %v6865 = vmul.f32 %v6864, 1.442695
        %v6866 = vpow.pop %v6865
        %v6867 = vsel %vm1316, %v6866, 0.0
        %6868 = vadd.xlane.f32.xlu0 %v6867
        %v6869 = vpop.xlane.xlu0 %6868
        %v6870 = vrcp.pop %v6869
        %v6871 = vmul.f32 %v6866, %v6870
        %v6872 = vpack.c.bf16 %v6871, %v6871
        %6873 = vrot.lane.b32.xlu0 %v6314, 32
        %v6874 = vpop.permute.xlu0 %6873
        %v6876 = vsel %vm1329, %v6872, 0
        %v6879 = vsel %vm1333, %v6874, 0
        %6881 = vmatprep.subr.bf16.mxu0 0
        %6882 = vmatpush1.bf16.msra.mxu0 %v6879
        %6883 = vmatprep.subr.bf16.mxu0 0
        %6884 = vmatpush1.bf16.msra.mxu0 0
        %6885 = vmatprep.subr.bf16.mxu0 0
        %6886 = vmatpush1.bf16.msra.mxu0 0
        %6887 = vmatprep.subr.bf16.mxu0 0
        %6888 = vmatpush1.bf16.msra.mxu0 0
        %6889 = vmatprep.subr.bf16.mxu0 0
        %6890 = vmatpush1.bf16.msra.mxu0 0
        %6891 = vmatprep.subr.bf16.mxu0 0
        %6892 = vmatpush1.bf16.msra.mxu0 0
        %6893 = vmatprep.subr.bf16.mxu0 0
        %6894 = vmatpush1.bf16.msra.mxu0 0
        %6895 = vmatprep.subr.bf16.mxu0 0
        %6896 = vmatpush1.bf16.msra.mxu0 0
        %6897 = vmatprep.subr.bf16.mxu0 0
        %6898 = vmatpush1.bf16.msra.mxu0 0
        %6899 = vmatprep.subr.bf16.mxu0 0
        %6900 = vmatpush1.bf16.msra.mxu0 0
        %6901 = vmatprep.subr.bf16.mxu0 0
        %6902 = vmatpush1.bf16.msra.mxu0 0
        %6903 = vmatprep.subr.bf16.mxu0 0
        %6904 = vmatpush1.bf16.msra.mxu0 0
        %6905 = vmatprep.subr.bf16.mxu0 0
        %6906 = vmatpush1.bf16.msra.mxu0 0
        %6907 = vmatprep.subr.bf16.mxu0 0
        %6908 = vmatpush1.bf16.msra.mxu0 0
        %6909 = vmatprep.subr.bf16.mxu0 0
        %6910 = vmatpush1.bf16.msra.mxu0 0
        %6911 = vmatprep.subr.bf16.mxu0 0
        %6912 = vmatpush1.bf16.msra.mxu0 0
        %6913 = vmatprep.mubr.bf16.mxu0 0
        %6914 = vmatmul.mubr.bf16.gmra.mrb[0].mxu0 %v6876
        %v6915 = vpop.f32.mrb[0].mxu0
        %v6916 = vadd.f32 0.0, %v6915
        %v6917 = vpop.f32.mrb[0].mxu0
        %v6918 = vpop.f32.mrb[0].mxu0
        %v6919 = vpop.f32.mrb[0].mxu0
        %6920 = vdwg.mxu0
        %v6921 = vpack.c.bf16 %v6916, %v6916
        %v6926 = vunpack.c.l.b16 %v5974
        %v6927 = vunpack.c.l.b16 %v5975
        %v6928 = vunpack.c.l.b16 %v5976
        %v6929 = vunpack.c.l.b16 %v5977
        %v6930 = vpack.c.b16 %v6927, %v6926
        %v6931 = vpack.c.b16 %v6929, %v6928
        %v6935 = vsel %vm1269, %v6921, 0
        %6937 = vmatprep.subr.bf16.mxu0 0
        %6938 = vmatpush1.bf16.msra.mxu0 %v6930
        %6939 = vmatprep.subr.bf16.mxu0 0
        %6940 = vmatpush1.bf16.msra.mxu0 %v6931
        %6941 = vmatprep.subr.bf16.mxu0 0
        %6942 = vmatpush1.bf16.msra.mxu0 0
        %6943 = vmatprep.subr.bf16.mxu0 0
        %6944 = vmatpush1.bf16.msra.mxu0 0
        %6945 = vmatprep.subr.bf16.mxu0 0
        %6946 = vmatpush1.bf16.msra.mxu0 0
        %6947 = vmatprep.subr.bf16.mxu0 0
        %6948 = vmatpush1.bf16.msra.mxu0 0
        %6949 = vmatprep.subr.bf16.mxu0 0
        %6950 = vmatpush1.bf16.msra.mxu0 0
        %6951 = vmatprep.subr.bf16.mxu0 0
        %6952 = vmatpush1.bf16.msra.mxu0 0
        %6953 = vmatprep.subr.bf16.mxu0 0
        %6954 = vmatpush1.bf16.msra.mxu0 0
        %6955 = vmatprep.subr.bf16.mxu0 0
        %6956 = vmatpush1.bf16.msra.mxu0 0
        %6957 = vmatprep.subr.bf16.mxu0 0
        %6958 = vmatpush1.bf16.msra.mxu0 0
        %6959 = vmatprep.subr.bf16.mxu0 0
        %6960 = vmatpush1.bf16.msra.mxu0 0
        %6961 = vmatprep.subr.bf16.mxu0 0
        %6962 = vmatpush1.bf16.msra.mxu0 0
        %6963 = vmatprep.subr.bf16.mxu0 0
        %6964 = vmatpush1.bf16.msra.mxu0 0
        %6965 = vmatprep.subr.bf16.mxu0 0
        %6966 = vmatpush1.bf16.msra.mxu0 0
        %6967 = vmatprep.subr.bf16.mxu0 0
        %6968 = vmatpush1.bf16.msra.mxu0 0
        %6969 = vmatprep.mubr.bf16.mxu0 0
        %6970 = vmatmul.mubr.bf16.gmra.mrb[0].mxu0 %v6935
        %v6971 = vpop.f32.mrb[0].mxu0
        %v6972 = vadd.f32 0.0, %v6971
        %v6973 = vpop.f32.mrb[0].mxu0
        %v6974 = vpop.f32.mrb[0].mxu0
        %v6975 = vpop.f32.mrb[0].mxu0
        %6976 = vdwg.mxu0
        %v6977 = vadd.f32 %v6810, %v6972
        %v6978 = vlaneseq
        %v6979 = vshrl.u32 %v6978, 7
        %v6980 = vsub.s32 0, %v6979
        %v6981 = vrot.slane %v6084, %v6980
        %v6982 = vadd.f32 %v6977, %v6981
        %v6983 = vadd.f32 %v5925, %v6982
        %v6984 = vsel %vm1942, %v6983, 0.0
        %6985 = vadd.xlane.f32.xlu0 %v6984
        %v6986 = vpop.xlane.xlu0 %6985
        %v6987 = vmul.f32 %v6986, 0.0078125
        %v6988 = vmul.f32 %v6983, %v6983
        %v6989 = vsel %vm1942, %v6988, 0.0
        %6990 = vadd.xlane.f32.xlu0 %v6989
        %v6991 = vpop.xlane.xlu0 %6990
        %v6992 = vmul.f32 %v6991, 0.0078125
        %v6993 = vmul.f32 %v6987, %v6987
        %v6994 = vsub.f32 %v6992, %v6993
        %v6995 = vsub.f32 %v6983, %v6987
        %v6996 = vadd.f32 %v6994, 1e-05
        %v6997 = vrsqrt.pop %v6996
        %v6998 = vmul.f32 %v6995, %v6997
        %v6999 = vlaneseq
        %v7000 = vshrl.u32 %v6999, 7
        %v7001 = vsub.s32 4, %v7000
        %v7002 = vrot.slane %v6084, %v7001
        %v7003 = vmul.f32 %v6998, %v7002
        %v7004 = vlaneseq
        %v7005 = vshrl.u32 %v7004, 7
        %v7006 = vsub.s32 5, %v7005
        %v7007 = vrot.slane %v6084, %v7006
        %v7008 = vadd.f32 %v7003, %v7007
        %v7009 = vpack.c.bf16 %v7008, %v7008
        %v7010 = vlaneseq
        %v7011 = vshrl.u32 %v7010, 7
        %v7012 = vsub.s32 1, %v7011
        %v7013 = vrot.slane %v6084, %v7012
        %v7030 = vunpack.c.l.b16 %v5979
        %v7031 = vunpack.c.l.b16 %v5980
        %v7032 = vunpack.c.l.b16 %v5981
        %v7033 = vunpack.c.l.b16 %v5982
        %v7034 = vunpack.c.l.b16 %v5983
        %v7035 = vunpack.c.l.b16 %v5984
        %v7036 = vunpack.c.l.b16 %v5985
        %v7037 = vunpack.c.l.b16 %v5986
        %v7038 = vunpack.c.l.b16 %v5987
        %v7039 = vunpack.c.l.b16 %v5988
        %v7040 = vunpack.c.l.b16 %v5989
        %v7041 = vunpack.c.l.b16 %v5990
        %v7042 = vunpack.c.l.b16 %v5991
        %v7043 = vunpack.c.l.b16 %v5992
        %v7044 = vunpack.c.l.b16 %v5993
        %v7045 = vunpack.c.l.b16 %v5994
        %v7046 = vpack.c.b16 %v7031, %v7030
        %v7047 = vpack.c.b16 %v7033, %v7032
        %v7048 = vpack.c.b16 %v7035, %v7034
        %v7049 = vpack.c.b16 %v7037, %v7036
        %v7050 = vpack.c.b16 %v7039, %v7038
        %v7051 = vpack.c.b16 %v7041, %v7040
        %v7052 = vpack.c.b16 %v7043, %v7042
        %v7053 = vpack.c.b16 %v7045, %v7044
        %7062 = vmatprep.subr.bf16.mxu0 0
        %7063 = vmatpush1.bf16.msra.mxu0 %v7046
        %7064 = vmatprep.subr.bf16.mxu0 0
        %7065 = vmatpush1.bf16.msra.mxu0 %v7047
        %7066 = vmatprep.subr.bf16.mxu0 0
        %7067 = vmatpush1.bf16.msra.mxu0 %v7048
        %7068 = vmatprep.subr.bf16.mxu0 0
        %7069 = vmatpush1.bf16.msra.mxu0 %v7049
        %7070 = vmatprep.subr.bf16.mxu0 0
        %7071 = vmatpush1.bf16.msra.mxu0 %v7050
        %7072 = vmatprep.subr.bf16.mxu0 0
        %7073 = vmatpush1.bf16.msra.mxu0 %v7051
        %7074 = vmatprep.subr.bf16.mxu0 0
        %7075 = vmatpush1.bf16.msra.mxu0 %v7052
        %7076 = vmatprep.subr.bf16.mxu0 0
        %7077 = vmatpush1.bf16.msra.mxu0 %v7053
        %7078 = vmatprep.subr.bf16.mxu0 0
        %7079 = vmatpush1.bf16.msra.mxu0 0
        %7080 = vmatprep.subr.bf16.mxu0 0
        %7081 = vmatpush1.bf16.msra.mxu0 0
        %7082 = vmatprep.subr.bf16.mxu0 0
        %7083 = vmatpush1.bf16.msra.mxu0 0
        %7084 = vmatprep.subr.bf16.mxu0 0
        %7085 = vmatpush1.bf16.msra.mxu0 0
        %7086 = vmatprep.subr.bf16.mxu0 0
        %7087 = vmatpush1.bf16.msra.mxu0 0
        %7088 = vmatprep.subr.bf16.mxu0 0
        %7089 = vmatpush1.bf16.msra.mxu0 0
        %7090 = vmatprep.subr.bf16.mxu0 0
        %7091 = vmatpush1.bf16.msra.mxu0 0
        %7092 = vmatprep.subr.bf16.mxu0 0
        %7093 = vmatpush1.bf16.msra.mxu0 0
        %7094 = vmatprep.mubr.bf16.mxu0 0
        %7095 = vmatmul.mubr.bf16.gmra.mrb[0].mxu0 %v7009
        %v7096 = vpop.f32.mrb[0].mxu0
        %v7097 = vadd.f32 %v7013, %v7096
        %v7098 = vpop.f32.mrb[0].mxu0
        %v7099 = vpop.f32.mrb[0].mxu0
        %v7100 = vpop.f32.mrb[0].mxu0
        %7101 = vdwg.mxu0
        %v7103 = vlaneseq
        %v7104 = vshrl.u32 %v7103, 7
        %v7105 = vsub.s32 0, %v7104
        %v7106 = vrot.slane %v6013, %v7105
        %v7107 = vlaneseq
        %v7108 = vshrl.u32 %v7107, 7
        %v7109 = vsub.s32 1, %v7108
        %v7110 = vrot.slane %v6013, %v7109
        %v7129 = vunpack.c.l.b16 %v5996
        %v7130 = vunpack.c.h.b16 %v5996
        %v7131 = vunpack.c.l.b16 %v5997
        %v7132 = vunpack.c.h.b16 %v5997
        %v7133 = vunpack.c.l.b16 %v5998
        %v7134 = vunpack.c.h.b16 %v5998
        %v7135 = vunpack.c.l.b16 %v5999
        %v7136 = vunpack.c.h.b16 %v5999
        %v7137 = vunpack.c.l.b16 %v6000
        %v7138 = vunpack.c.h.b16 %v6000
        %v7139 = vunpack.c.l.b16 %v6001
        %v7140 = vunpack.c.h.b16 %v6001
        %v7141 = vunpack.c.l.b16 %v6002
        %v7142 = vunpack.c.h.b16 %v6002
        %v7143 = vunpack.c.l.b16 %v6003
        %v7144 = vunpack.c.h.b16 %v6003
        %v7145 = vunpack.c.l.b16 %v6004
        %v7146 = vunpack.c.h.b16 %v6004
        %v7147 = vunpack.c.l.b16 %v6005
        %v7148 = vunpack.c.h.b16 %v6005
        %v7149 = vunpack.c.l.b16 %v6006
        %v7150 = vunpack.c.h.b16 %v6006
        %v7151 = vunpack.c.l.b16 %v6007
        %v7152 = vunpack.c.h.b16 %v6007
        %v7153 = vunpack.c.l.b16 %v6008
        %v7154 = vunpack.c.h.b16 %v6008
        %v7155 = vunpack.c.l.b16 %v6009
        %v7156 = vunpack.c.h.b16 %v6009
        %v7157 = vunpack.c.l.b16 %v6010
        %v7158 = vunpack.c.h.b16 %v6010
        %v7159 = vunpack.c.l.b16 %v6011
        %v7160 = vunpack.c.h.b16 %v6011
        %v7161 = vpack.c.b16 %v7131, %v7129
        %v7162 = vpack.c.b16 %v7132, %v7130
        %v7163 = vpack.c.b16 %v7135, %v7133
        %v7164 = vpack.c.b16 %v7136, %v7134
        %v7165 = vpack.c.b16 %v7139, %v7137
        %v7166 = vpack.c.b16 %v7140, %v7138
        %v7167 = vpack.c.b16 %v7143, %v7141
        %v7168 = vpack.c.b16 %v7144, %v7142
        %v7169 = vpack.c.b16 %v7147, %v7145
        %v7170 = vpack.c.b16 %v7148, %v7146
        %v7171 = vpack.c.b16 %v7151, %v7149
        %v7172 = vpack.c.b16 %v7152, %v7150
        %v7173 = vpack.c.b16 %v7155, %v7153
        %v7174 = vpack.c.b16 %v7156, %v7154
        %v7175 = vpack.c.b16 %v7159, %v7157
        %v7176 = vpack.c.b16 %v7160, %v7158
        %7193 = vmatprep.subr.bf16.mxu0 %v7162
        %7194 = vmatpush1.bf16.msra.mxu0 %v7161
        %7195 = vmatprep.subr.bf16.mxu0 %v7164
        %7196 = vmatpush1.bf16.msra.mxu0 %v7163
        %7197 = vmatprep.subr.bf16.mxu0 %v7166
        %7198 = vmatpush1.bf16.msra.mxu0 %v7165
        %7199 = vmatprep.subr.bf16.mxu0 %v7168
        %7200 = vmatpush1.bf16.msra.mxu0 %v7167
        %7201 = vmatprep.subr.bf16.mxu0 %v7170
        %7202 = vmatpush1.bf16.msra.mxu0 %v7169
        %7203 = vmatprep.subr.bf16.mxu0 %v7172
        %7204 = vmatpush1.bf16.msra.mxu0 %v7171
        %7205 = vmatprep.subr.bf16.mxu0 %v7174
        %7206 = vmatpush1.bf16.msra.mxu0 %v7173
        %7207 = vmatprep.subr.bf16.mxu0 %v7176
        %7208 = vmatpush1.bf16.msra.mxu0 %v7175
        %7209 = vmatprep.subr.bf16.mxu0 0
        %7210 = vmatpush1.bf16.msra.mxu0 0
        %7211 = vmatprep.subr.bf16.mxu0 0
        %7212 = vmatpush1.bf16.msra.mxu0 0
        %7213 = vmatprep.subr.bf16.mxu0 0
        %7214 = vmatpush1.bf16.msra.mxu0 0
        %7215 = vmatprep.subr.bf16.mxu0 0
        %7216 = vmatpush1.bf16.msra.mxu0 0
        %7217 = vmatprep.subr.bf16.mxu0 0
        %7218 = vmatpush1.bf16.msra.mxu0 0
        %7219 = vmatprep.subr.bf16.mxu0 0
        %7220 = vmatpush1.bf16.msra.mxu0 0
        %7221 = vmatprep.subr.bf16.mxu0 0
        %7222 = vmatpush1.bf16.msra.mxu0 0
        %7223 = vmatprep.subr.bf16.mxu0 0
        %7224 = vmatpush1.bf16.msra.mxu0 0
        %7225 = vmatprep.mubr.bf16.mxu0 0
        %7226 = vmatmul.mubr.bf16.gmra.mrb[0].mxu0 %v4793
        %v7227 = vpop.f32.mrb[0].mxu0
        %v7228 = vadd.f32 %v7106, %v7227
        %v7229 = vpop.f32.mrb[0].mxu0
        %v7230 = vadd.f32 %v7110, %v7229
        %v7231 = vpop.f32.mrb[0].mxu0
        %v7232 = vpop.f32.mrb[0].mxu0
        %7233 = vdwg.mxu0
        %v7234 = vpack.c.bf16 %v7097, %v7097
        %v7235 = vpack.c.bf16 %v7228, %v7228
        %v7236 = vpack.c.bf16 %v7230, %v7230
        %v7238 = vsel %vm1269, %v7234, 0
        %v7241 = vsel %vm1269, %v7235, 0
        %7243 = vmatprep.subr.bf16.mxu0 0
        %7244 = vmatpush1.bf16.xpose.msra.mxu0 %v7241
        %7245 = vmatprep.subr.bf16.mxu0 0
        %7246 = vmatpush1.bf16.xpose.msra.mxu0 0
        %7247 = vmatprep.subr.bf16.mxu0 0
        %7248 = vmatpush1.bf16.xpose.msra.mxu0 0
        %7249 = vmatprep.subr.bf16.mxu0 0
        %7250 = vmatpush1.bf16.xpose.msra.mxu0 0
        %7251 = vmatprep.subr.bf16.mxu0 0
        %7252 = vmatpush1.bf16.xpose.msra.mxu0 0
        %7253 = vmatprep.subr.bf16.mxu0 0
        %7254 = vmatpush1.bf16.xpose.msra.mxu0 0
        %7255 = vmatprep.subr.bf16.mxu0 0
        %7256 = vmatpush1.bf16.xpose.msra.mxu0 0
        %7257 = vmatprep.subr.bf16.mxu0 0
        %7258 = vmatpush1.bf16.xpose.msra.mxu0 0
        %7259 = vmatprep.subr.bf16.mxu0 0
        %7260 = vmatpush1.bf16.xpose.msra.mxu0 0
        %7261 = vmatprep.subr.bf16.mxu0 0
        %7262 = vmatpush1.bf16.xpose.msra.mxu0 0
        %7263 = vmatprep.subr.bf16.mxu0 0
        %7264 = vmatpush1.bf16.xpose.msra.mxu0 0
        %7265 = vmatprep.subr.bf16.mxu0 0
        %7266 = vmatpush1.bf16.xpose.msra.mxu0 0
        %7267 = vmatprep.subr.bf16.mxu0 0
        %7268 = vmatpush1.bf16.xpose.msra.mxu0 0
        %7269 = vmatprep.subr.bf16.mxu0 0
        %7270 = vmatpush1.bf16.xpose.msra.mxu0 0
        %7271 = vmatprep.subr.bf16.mxu0 0
        %7272 = vmatpush1.bf16.xpose.msra.mxu0 0
        %7273 = vmatprep.subr.bf16.mxu0 0
        %7274 = vmatpush1.bf16.xpose.msra.mxu0 0
        %7275 = vmatprep.mubr.bf16.mxu0 0
        %7276 = vmatmul.mubr.bf16.gmra.mrb[0].mxu0 %v7238
        %v7277 = vpop.f32.mrb[0].mxu0
        %v7278 = vadd.f32 0.0, %v7277
        %v7279 = vpop.f32.mrb[0].mxu0
        %v7280 = vpop.f32.mrb[0].mxu0
        %v7281 = vpop.f32.mrb[0].mxu0
        %7282 = vdwg.mxu0
        %v7283 = vsel %vm1316, %v7278, -inf
        %7284 = vmax.xlane.f32.xlu0 %v7283
        %v7285 = vpop.xlane.xlu0 %7284
        %v7286 = vsub.f32 %v7278, %v7285
        %v7287 = vmul.f32 %v7286, 1.442695
        %v7288 = vpow.pop %v7287
        %v7289 = vsel %vm1316, %v7288, 0.0
        %7290 = vadd.xlane.f32.xlu0 %v7289
        %v7291 = vpop.xlane.xlu0 %7290
        %v7292 = vrcp.pop %v7291
        %v7293 = vmul.f32 %v7288, %v7292
        %v7294 = vpack.c.bf16 %v7293, %v7293
        %v7296 = vsel %vm1329, %v7294, 0
        %v7299 = vsel %vm1333, %v7236, 0
        %7301 = vmatprep.subr.bf16.mxu0 0
        %7302 = vmatpush1.bf16.msra.mxu0 %v7299
        %7303 = vmatprep.subr.bf16.mxu0 0
        %7304 = vmatpush1.bf16.msra.mxu0 0
        %7305 = vmatprep.subr.bf16.mxu0 0
        %7306 = vmatpush1.bf16.msra.mxu0 0
        %7307 = vmatprep.subr.bf16.mxu0 0
        %7308 = vmatpush1.bf16.msra.mxu0 0
        %7309 = vmatprep.subr.bf16.mxu0 0
        %7310 = vmatpush1.bf16.msra.mxu0 0
        %7311 = vmatprep.subr.bf16.mxu0 0
        %7312 = vmatpush1.bf16.msra.mxu0 0
        %7313 = vmatprep.subr.bf16.mxu0 0
        %7314 = vmatpush1.bf16.msra.mxu0 0
        %7315 = vmatprep.subr.bf16.mxu0 0
        %7316 = vmatpush1.bf16.msra.mxu0 0
        %7317 = vmatprep.subr.bf16.mxu0 0
        %7318 = vmatpush1.bf16.msra.mxu0 0
        %7319 = vmatprep.subr.bf16.mxu0 0
        %7320 = vmatpush1.bf16.msra.mxu0 0
        %7321 = vmatprep.subr.bf16.mxu0 0
        %7322 = vmatpush1.bf16.msra.mxu0 0
        %7323 = vmatprep.subr.bf16.mxu0 0
        %7324 = vmatpush1.bf16.msra.mxu0 0
        %7325 = vmatprep.subr.bf16.mxu0 0
        %7326 = vmatpush1.bf16.msra.mxu0 0
        %7327 = vmatprep.subr.bf16.mxu0 0
        %7328 = vmatpush1.bf16.msra.mxu0 0
        %7329 = vmatprep.subr.bf16.mxu0 0
        %7330 = vmatpush1.bf16.msra.mxu0 0
        %7331 = vmatprep.subr.bf16.mxu0 0
        %7332 = vmatpush1.bf16.msra.mxu0 0
        %7333 = vmatprep.mubr.bf16.mxu0 0
        %7334 = vmatmul.mubr.bf16.gmra.mrb[0].mxu0 %v7296
        %v7335 = vpop.f32.mrb[0].mxu0
        %v7336 = vadd.f32 0.0, %v7335
        %v7337 = vpop.f32.mrb[0].mxu0
        %v7338 = vpop.f32.mrb[0].mxu0
        %v7339 = vpop.f32.mrb[0].mxu0
        %7340 = vdwg.mxu0
        %v7341 = vpack.c.bf16 %v7336, %v7336
        %7343 = vrot.lane.b32.xlu0 %v7234, 96
        %v7344 = vpop.permute.xlu0 %7343
        %7346 = vrot.lane.b32.xlu0 %v7235, 96
        %v7347 = vpop.permute.xlu0 %7346
        %v7349 = vsel %vm1269, %v7344, 0
        %v7352 = vsel %vm1269, %v7347, 0
        %7354 = vmatprep.subr.bf16.mxu0 0
        %7355 = vmatpush1.bf16.xpose.msra.mxu0 %v7352
        %7356 = vmatprep.subr.bf16.mxu0 0
        %7357 = vmatpush1.bf16.xpose.msra.mxu0 0
        %7358 = vmatprep.subr.bf16.mxu0 0
        %7359 = vmatpush1.bf16.xpose.msra.mxu0 0
        %7360 = vmatprep.subr.bf16.mxu0 0
        %7361 = vmatpush1.bf16.xpose.msra.mxu0 0
        %7362 = vmatprep.subr.bf16.mxu0 0
        %7363 = vmatpush1.bf16.xpose.msra.mxu0 0
        %7364 = vmatprep.subr.bf16.mxu0 0
        %7365 = vmatpush1.bf16.xpose.msra.mxu0 0
        %7366 = vmatprep.subr.bf16.mxu0 0
        %7367 = vmatpush1.bf16.xpose.msra.mxu0 0
        %7368 = vmatprep.subr.bf16.mxu0 0
        %7369 = vmatpush1.bf16.xpose.msra.mxu0 0
        %7370 = vmatprep.subr.bf16.mxu0 0
        %7371 = vmatpush1.bf16.xpose.msra.mxu0 0
        %7372 = vmatprep.subr.bf16.mxu0 0
        %7373 = vmatpush1.bf16.xpose.msra.mxu0 0
        %7374 = vmatprep.subr.bf16.mxu0 0
        %7375 = vmatpush1.bf16.xpose.msra.mxu0 0
        %7376 = vmatprep.subr.bf16.mxu0 0
        %7377 = vmatpush1.bf16.xpose.msra.mxu0 0
        %7378 = vmatprep.subr.bf16.mxu0 0
        %7379 = vmatpush1.bf16.xpose.msra.mxu0 0
        %7380 = vmatprep.subr.bf16.mxu0 0
        %7381 = vmatpush1.bf16.xpose.msra.mxu0 0
        %7382 = vmatprep.subr.bf16.mxu0 0
        %7383 = vmatpush1.bf16.xpose.msra.mxu0 0
        %7384 = vmatprep.subr.bf16.mxu0 0
        %7385 = vmatpush1.bf16.xpose.msra.mxu0 0
        %7386 = vmatprep.mubr.bf16.mxu0 0
        %7387 = vmatmul.mubr.bf16.gmra.mrb[0].mxu0 %v7349
        %v7388 = vpop.f32.mrb[0].mxu0
        %v7389 = vadd.f32 0.0, %v7388
        %v7390 = vpop.f32.mrb[0].mxu0
        %v7391 = vpop.f32.mrb[0].mxu0
        %v7392 = vpop.f32.mrb[0].mxu0
        %7393 = vdwg.mxu0
        %v7394 = vsel %vm1316, %v7389, -inf
        %7395 = vmax.xlane.f32.xlu0 %v7394
        %v7396 = vpop.xlane.xlu0 %7395
        %v7397 = vsub.f32 %v7389, %v7396
        %v7398 = vmul.f32 %v7397, 1.442695
        %v7399 = vpow.pop %v7398
        %v7400 = vsel %vm1316, %v7399, 0.0
        %7401 = vadd.xlane.f32.xlu0 %v7400
        %v7402 = vpop.xlane.xlu0 %7401
        %v7403 = vrcp.pop %v7402
        %v7404 = vmul.f32 %v7399, %v7403
        %v7405 = vpack.c.bf16 %v7404, %v7404
        %7407 = vrot.lane.b32.xlu0 %v7236, 96
        %v7408 = vpop.permute.xlu0 %7407
        %v7410 = vsel %vm1329, %v7405, 0
        %v7413 = vsel %vm1333, %v7408, 0
        %7415 = vmatprep.subr.bf16.mxu0 0
        %7416 = vmatpush1.bf16.msra.mxu0 %v7413
        %7417 = vmatprep.subr.bf16.mxu0 0
        %7418 = vmatpush1.bf16.msra.mxu0 0
        %7419 = vmatprep.subr.bf16.mxu0 0
        %7420 = vmatpush1.bf16.msra.mxu0 0
        %7421 = vmatprep.subr.bf16.mxu0 0
        %7422 = vmatpush1.bf16.msra.mxu0 0
        %7423 = vmatprep.subr.bf16.mxu0 0
        %7424 = vmatpush1.bf16.msra.mxu0 0
        %7425 = vmatprep.subr.bf16.mxu0 0
        %7426 = vmatpush1.bf16.msra.mxu0 0
        %7427 = vmatprep.subr.bf16.mxu0 0
        %7428 = vmatpush1.bf16.msra.mxu0 0
        %7429 = vmatprep.subr.bf16.mxu0 0
        %7430 = vmatpush1.bf16.msra.mxu0 0
        %7431 = vmatprep.subr.bf16.mxu0 0
        %7432 = vmatpush1.bf16.msra.mxu0 0
        %7433 = vmatprep.subr.bf16.mxu0 0
        %7434 = vmatpush1.bf16.msra.mxu0 0
        %7435 = vmatprep.subr.bf16.mxu0 0
        %7436 = vmatpush1.bf16.msra.mxu0 0
        %7437 = vmatprep.subr.bf16.mxu0 0
        %7438 = vmatpush1.bf16.msra.mxu0 0
        %7439 = vmatprep.subr.bf16.mxu0 0
        %7440 = vmatpush1.bf16.msra.mxu0 0
        %7441 = vmatprep.subr.bf16.mxu0 0
        %7442 = vmatpush1.bf16.msra.mxu0 0
        %7443 = vmatprep.subr.bf16.mxu0 0
        %7444 = vmatpush1.bf16.msra.mxu0 0
        %7445 = vmatprep.subr.bf16.mxu0 0
        %7446 = vmatpush1.bf16.msra.mxu0 0
        %7447 = vmatprep.mubr.bf16.mxu0 0
        %7448 = vmatmul.mubr.bf16.gmra.mrb[0].mxu0 %v7410
        %v7449 = vpop.f32.mrb[0].mxu0
        %v7450 = vadd.f32 0.0, %v7449
        %v7451 = vpop.f32.mrb[0].mxu0
        %v7452 = vpop.f32.mrb[0].mxu0
        %v7453 = vpop.f32.mrb[0].mxu0
        %7454 = vdwg.mxu0
        %v7455 = vpack.c.bf16 %v7450, %v7450
        %v7460 = vunpack.c.l.b16 %v6019
        %v7461 = vunpack.c.l.b16 %v6020
        %v7462 = vunpack.c.l.b16 %v6021
        %v7463 = vunpack.c.l.b16 %v6022
        %v7464 = vpack.c.b16 %v7461, %v7460
        %v7465 = vpack.c.b16 %v7463, %v7462
        %v7469 = vsel %vm1269, %v7455, 0
        %7471 = vmatprep.subr.bf16.mxu0 0
        %7472 = vmatpush1.bf16.msra.mxu0 %v7464
        %7473 = vmatprep.subr.bf16.mxu0 0
        %7474 = vmatpush1.bf16.msra.mxu0 %v7465
        %7475 = vmatprep.subr.bf16.mxu0 0
        %7476 = vmatpush1.bf16.msra.mxu0 0
        %7477 = vmatprep.subr.bf16.mxu0 0
        %7478 = vmatpush1.bf16.msra.mxu0 0
        %7479 = vmatprep.subr.bf16.mxu0 0
        %7480 = vmatpush1.bf16.msra.mxu0 0
        %7481 = vmatprep.subr.bf16.mxu0 0
        %7482 = vmatpush1.bf16.msra.mxu0 0
        %7483 = vmatprep.subr.bf16.mxu0 0
        %7484 = vmatpush1.bf16.msra.mxu0 0
        %7485 = vmatprep.subr.bf16.mxu0 0
        %7486 = vmatpush1.bf16.msra.mxu0 0
        %7487 = vmatprep.subr.bf16.mxu0 0
        %7488 = vmatpush1.bf16.msra.mxu0 0
        %7489 = vmatprep.subr.bf16.mxu0 0
        %7490 = vmatpush1.bf16.msra.mxu0 0
        %7491 = vmatprep.subr.bf16.mxu0 0
        %7492 = vmatpush1.bf16.msra.mxu0 0
        %7493 = vmatprep.subr.bf16.mxu0 0
        %7494 = vmatpush1.bf16.msra.mxu0 0
        %7495 = vmatprep.subr.bf16.mxu0 0
        %7496 = vmatpush1.bf16.msra.mxu0 0
        %7497 = vmatprep.subr.bf16.mxu0 0
        %7498 = vmatpush1.bf16.msra.mxu0 0
        %7499 = vmatprep.subr.bf16.mxu0 0
        %7500 = vmatpush1.bf16.msra.mxu0 0
        %7501 = vmatprep.subr.bf16.mxu0 0
        %7502 = vmatpush1.bf16.msra.mxu0 0
        %7503 = vmatprep.mubr.bf16.mxu0 0
        %7504 = vmatmul.mubr.bf16.gmra.mrb[0].mxu0 %v7469
        %v7505 = vpop.f32.mrb[0].mxu0
        %v7506 = vadd.f32 0.0, %v7505
        %v7507 = vpop.f32.mrb[0].mxu0
        %v7508 = vpop.f32.mrb[0].mxu0
        %v7509 = vpop.f32.mrb[0].mxu0
        %7510 = vdwg.mxu0
        %v7515 = vunpack.c.l.b16 %v6015
        %v7516 = vunpack.c.l.b16 %v6016
        %v7517 = vunpack.c.l.b16 %v6017
        %v7518 = vunpack.c.l.b16 %v6018
        %v7519 = vpack.c.b16 %v7516, %v7515
        %v7520 = vpack.c.b16 %v7518, %v7517
        %v7524 = vsel %vm1269, %v7341, 0
        %7526 = vmatprep.subr.bf16.mxu0 0
        %7527 = vmatpush1.bf16.msra.mxu0 %v7519
        %7528 = vmatprep.subr.bf16.mxu0 0
        %7529 = vmatpush1.bf16.msra.mxu0 %v7520
        %7530 = vmatprep.subr.bf16.mxu0 0
        %7531 = vmatpush1.bf16.msra.mxu0 0
        %7532 = vmatprep.subr.bf16.mxu0 0
        %7533 = vmatpush1.bf16.msra.mxu0 0
        %7534 = vmatprep.subr.bf16.mxu0 0
        %7535 = vmatpush1.bf16.msra.mxu0 0
        %7536 = vmatprep.subr.bf16.mxu0 0
        %7537 = vmatpush1.bf16.msra.mxu0 0
        %7538 = vmatprep.subr.bf16.mxu0 0
        %7539 = vmatpush1.bf16.msra.mxu0 0
        %7540 = vmatprep.subr.bf16.mxu0 0
        %7541 = vmatpush1.bf16.msra.mxu0 0
        %7542 = vmatprep.subr.bf16.mxu0 0
        %7543 = vmatpush1.bf16.msra.mxu0 0
        %7544 = vmatprep.subr.bf16.mxu0 0
        %7545 = vmatpush1.bf16.msra.mxu0 0
        %7546 = vmatprep.subr.bf16.mxu0 0
        %7547 = vmatpush1.bf16.msra.mxu0 0
        %7548 = vmatprep.subr.bf16.mxu0 0
        %7549 = vmatpush1.bf16.msra.mxu0 0
        %7550 = vmatprep.subr.bf16.mxu0 0
        %7551 = vmatpush1.bf16.msra.mxu0 0
        %7552 = vmatprep.subr.bf16.mxu0 0
        %7553 = vmatpush1.bf16.msra.mxu0 0
        %7554 = vmatprep.subr.bf16.mxu0 0
        %7555 = vmatpush1.bf16.msra.mxu0 0
        %7556 = vmatprep.subr.bf16.mxu0 0
        %7557 = vmatpush1.bf16.msra.mxu0 0
        %7558 = vmatprep.mubr.bf16.mxu0 0
        %7559 = vmatmul.mubr.bf16.gmra.mrb[0].mxu0 %v7524
        %v7560 = vpop.f32.mrb[0].mxu0
        %v7561 = vadd.f32 %v7506, %v7560
        %v7562 = vpop.f32.mrb[0].mxu0
        %v7563 = vpop.f32.mrb[0].mxu0
        %v7564 = vpop.f32.mrb[0].mxu0
        %7565 = vdwg.mxu0
        %7566 = vrot.lane.b32.xlu0 %v7234, 64
        %v7567 = vpop.permute.xlu0 %7566
        %7568 = vrot.lane.b32.xlu0 %v7235, 64
        %v7569 = vpop.permute.xlu0 %7568
        %v7571 = vsel %vm1269, %v7567, 0
        %v7574 = vsel %vm1269, %v7569, 0
        %7576 = vmatprep.subr.bf16.mxu0 0
        %7577 = vmatpush1.bf16.xpose.msra.mxu0 %v7574
        %7578 = vmatprep.subr.bf16.mxu0 0
        %7579 = vmatpush1.bf16.xpose.msra.mxu0 0
        %7580 = vmatprep.subr.bf16.mxu0 0
        %7581 = vmatpush1.bf16.xpose.msra.mxu0 0
        %7582 = vmatprep.subr.bf16.mxu0 0
        %7583 = vmatpush1.bf16.xpose.msra.mxu0 0
        %7584 = vmatprep.subr.bf16.mxu0 0
        %7585 = vmatpush1.bf16.xpose.msra.mxu0 0
        %7586 = vmatprep.subr.bf16.mxu0 0
        %7587 = vmatpush1.bf16.xpose.msra.mxu0 0
        %7588 = vmatprep.subr.bf16.mxu0 0
        %7589 = vmatpush1.bf16.xpose.msra.mxu0 0
        %7590 = vmatprep.subr.bf16.mxu0 0
        %7591 = vmatpush1.bf16.xpose.msra.mxu0 0
        %7592 = vmatprep.subr.bf16.mxu0 0
        %7593 = vmatpush1.bf16.xpose.msra.mxu0 0
        %7594 = vmatprep.subr.bf16.mxu0 0
        %7595 = vmatpush1.bf16.xpose.msra.mxu0 0
        %7596 = vmatprep.subr.bf16.mxu0 0
        %7597 = vmatpush1.bf16.xpose.msra.mxu0 0
        %7598 = vmatprep.subr.bf16.mxu0 0
        %7599 = vmatpush1.bf16.xpose.msra.mxu0 0
        %7600 = vmatprep.subr.bf16.mxu0 0
        %7601 = vmatpush1.bf16.xpose.msra.mxu0 0
        %7602 = vmatprep.subr.bf16.mxu0 0
        %7603 = vmatpush1.bf16.xpose.msra.mxu0 0
        %7604 = vmatprep.subr.bf16.mxu0 0
        %7605 = vmatpush1.bf16.xpose.msra.mxu0 0
        %7606 = vmatprep.subr.bf16.mxu0 0
        %7607 = vmatpush1.bf16.xpose.msra.mxu0 0
        %7608 = vmatprep.mubr.bf16.mxu0 0
        %7609 = vmatmul.mubr.bf16.gmra.mrb[0].mxu0 %v7571
        %v7610 = vpop.f32.mrb[0].mxu0
        %v7611 = vadd.f32 0.0, %v7610
        %v7612 = vpop.f32.mrb[0].mxu0
        %v7613 = vpop.f32.mrb[0].mxu0
        %v7614 = vpop.f32.mrb[0].mxu0
        %7615 = vdwg.mxu0
        %v7616 = vsel %vm1316, %v7611, -inf
        %7617 = vmax.xlane.f32.xlu0 %v7616
        %v7618 = vpop.xlane.xlu0 %7617
        %v7619 = vsub.f32 %v7611, %v7618
        %v7620 = vmul.f32 %v7619, 1.442695
        %v7621 = vpow.pop %v7620
        %v7622 = vsel %vm1316, %v7621, 0.0
        %7623 = vadd.xlane.f32.xlu0 %v7622
        %v7624 = vpop.xlane.xlu0 %7623
        %v7625 = vrcp.pop %v7624
        %v7626 = vmul.f32 %v7621, %v7625
        %v7627 = vpack.c.bf16 %v7626, %v7626
        %7628 = vrot.lane.b32.xlu0 %v7236, 64
        %v7629 = vpop.permute.xlu0 %7628
        %v7631 = vsel %vm1329, %v7627, 0
        %v7634 = vsel %vm1333, %v7629, 0
        %7636 = vmatprep.subr.bf16.mxu0 0
        %7637 = vmatpush1.bf16.msra.mxu0 %v7634
        %7638 = vmatprep.subr.bf16.mxu0 0
        %7639 = vmatpush1.bf16.msra.mxu0 0
        %7640 = vmatprep.subr.bf16.mxu0 0
        %7641 = vmatpush1.bf16.msra.mxu0 0
        %7642 = vmatprep.subr.bf16.mxu0 0
        %7643 = vmatpush1.bf16.msra.mxu0 0
        %7644 = vmatprep.subr.bf16.mxu0 0
        %7645 = vmatpush1.bf16.msra.mxu0 0
        %7646 = vmatprep.subr.bf16.mxu0 0
        %7647 = vmatpush1.bf16.msra.mxu0 0
        %7648 = vmatprep.subr.bf16.mxu0 0
        %7649 = vmatpush1.bf16.msra.mxu0 0
        %7650 = vmatprep.subr.bf16.mxu0 0
        %7651 = vmatpush1.bf16.msra.mxu0 0
        %7652 = vmatprep.subr.bf16.mxu0 0
        %7653 = vmatpush1.bf16.msra.mxu0 0
        %7654 = vmatprep.subr.bf16.mxu0 0
        %7655 = vmatpush1.bf16.msra.mxu0 0
        %7656 = vmatprep.subr.bf16.mxu0 0
        %7657 = vmatpush1.bf16.msra.mxu0 0
        %7658 = vmatprep.subr.bf16.mxu0 0
        %7659 = vmatpush1.bf16.msra.mxu0 0
        %7660 = vmatprep.subr.bf16.mxu0 0
        %7661 = vmatpush1.bf16.msra.mxu0 0
        %7662 = vmatprep.subr.bf16.mxu0 0
        %7663 = vmatpush1.bf16.msra.mxu0 0
        %7664 = vmatprep.subr.bf16.mxu0 0
        %7665 = vmatpush1.bf16.msra.mxu0 0
        %7666 = vmatprep.subr.bf16.mxu0 0
        %7667 = vmatpush1.bf16.msra.mxu0 0
        %7668 = vmatprep.mubr.bf16.mxu0 0
        %7669 = vmatmul.mubr.bf16.gmra.mrb[0].mxu0 %v7631
        %v7670 = vpop.f32.mrb[0].mxu0
        %v7671 = vadd.f32 0.0, %v7670
        %v7672 = vpop.f32.mrb[0].mxu0
        %v7673 = vpop.f32.mrb[0].mxu0
        %v7674 = vpop.f32.mrb[0].mxu0
        %7675 = vdwg.mxu0
        %v7676 = vpack.c.bf16 %v7671, %v7671
        %v7681 = vunpack.c.l.b16 %v6023
        %v7682 = vunpack.c.l.b16 %v6024
        %v7683 = vunpack.c.l.b16 %v6025
        %v7684 = vunpack.c.l.b16 %v6026
        %v7685 = vpack.c.b16 %v7682, %v7681
        %v7686 = vpack.c.b16 %v7684, %v7683
        %v7690 = vsel %vm1269, %v7676, 0
        %7692 = vmatprep.subr.bf16.mxu0 0
        %7693 = vmatpush1.bf16.msra.mxu0 %v7685
        %7694 = vmatprep.subr.bf16.mxu0 0
        %7695 = vmatpush1.bf16.msra.mxu0 %v7686
        %7696 = vmatprep.subr.bf16.mxu0 0
        %7697 = vmatpush1.bf16.msra.mxu0 0
        %7698 = vmatprep.subr.bf16.mxu0 0
        %7699 = vmatpush1.bf16.msra.mxu0 0
        %7700 = vmatprep.subr.bf16.mxu0 0
        %7701 = vmatpush1.bf16.msra.mxu0 0
        %7702 = vmatprep.subr.bf16.mxu0 0
        %7703 = vmatpush1.bf16.msra.mxu0 0
        %7704 = vmatprep.subr.bf16.mxu0 0
        %7705 = vmatpush1.bf16.msra.mxu0 0
        %7706 = vmatprep.subr.bf16.mxu0 0
        %7707 = vmatpush1.bf16.msra.mxu0 0
        %7708 = vmatprep.subr.bf16.mxu0 0
        %7709 = vmatpush1.bf16.msra.mxu0 0
        %7710 = vmatprep.subr.bf16.mxu0 0
        %7711 = vmatpush1.bf16.msra.mxu0 0
        %7712 = vmatprep.subr.bf16.mxu0 0
        %7713 = vmatpush1.bf16.msra.mxu0 0
        %7714 = vmatprep.subr.bf16.mxu0 0
        %7715 = vmatpush1.bf16.msra.mxu0 0
        %7716 = vmatprep.subr.bf16.mxu0 0
        %7717 = vmatpush1.bf16.msra.mxu0 0
        %7718 = vmatprep.subr.bf16.mxu0 0
        %7719 = vmatpush1.bf16.msra.mxu0 0
        %7720 = vmatprep.subr.bf16.mxu0 0
        %7721 = vmatpush1.bf16.msra.mxu0 0
        %7722 = vmatprep.subr.bf16.mxu0 0
        %7723 = vmatpush1.bf16.msra.mxu0 0
        %7724 = vmatprep.mubr.bf16.mxu0 0
        %7725 = vmatmul.mubr.bf16.gmra.mrb[0].mxu0 %v7690
        %v7726 = vpop.f32.mrb[0].mxu0
        %v7727 = vadd.f32 0.0, %v7726
        %v7728 = vpop.f32.mrb[0].mxu0
        %v7729 = vpop.f32.mrb[0].mxu0
        %v7730 = vpop.f32.mrb[0].mxu0
        %7731 = vdwg.mxu0
        %v7732 = vadd.f32 %v7561, %v7727
        %7733 = vrot.lane.b32.xlu0 %v7234, 32
        %v7734 = vpop.permute.xlu0 %7733
        %7735 = vrot.lane.b32.xlu0 %v7235, 32
        %v7736 = vpop.permute.xlu0 %7735
        %v7738 = vsel %vm1269, %v7734, 0
        %v7741 = vsel %vm1269, %v7736, 0
        %7743 = vmatprep.subr.bf16.mxu0 0
        %7744 = vmatpush1.bf16.xpose.msra.mxu0 %v7741
        %7745 = vmatprep.subr.bf16.mxu0 0
        %7746 = vmatpush1.bf16.xpose.msra.mxu0 0
        %7747 = vmatprep.subr.bf16.mxu0 0
        %7748 = vmatpush1.bf16.xpose.msra.mxu0 0
        %7749 = vmatprep.subr.bf16.mxu0 0
        %7750 = vmatpush1.bf16.xpose.msra.mxu0 0
        %7751 = vmatprep.subr.bf16.mxu0 0
        %7752 = vmatpush1.bf16.xpose.msra.mxu0 0
        %7753 = vmatprep.subr.bf16.mxu0 0
        %7754 = vmatpush1.bf16.xpose.msra.mxu0 0
        %7755 = vmatprep.subr.bf16.mxu0 0
        %7756 = vmatpush1.bf16.xpose.msra.mxu0 0
        %7757 = vmatprep.subr.bf16.mxu0 0
        %7758 = vmatpush1.bf16.xpose.msra.mxu0 0
        %7759 = vmatprep.subr.bf16.mxu0 0
        %7760 = vmatpush1.bf16.xpose.msra.mxu0 0
        %7761 = vmatprep.subr.bf16.mxu0 0
        %7762 = vmatpush1.bf16.xpose.msra.mxu0 0
        %7763 = vmatprep.subr.bf16.mxu0 0
        %7764 = vmatpush1.bf16.xpose.msra.mxu0 0
        %7765 = vmatprep.subr.bf16.mxu0 0
        %7766 = vmatpush1.bf16.xpose.msra.mxu0 0
        %7767 = vmatprep.subr.bf16.mxu0 0
        %7768 = vmatpush1.bf16.xpose.msra.mxu0 0
        %7769 = vmatprep.subr.bf16.mxu0 0
        %7770 = vmatpush1.bf16.xpose.msra.mxu0 0
        %7771 = vmatprep.subr.bf16.mxu0 0
        %7772 = vmatpush1.bf16.xpose.msra.mxu0 0
        %7773 = vmatprep.subr.bf16.mxu0 0
        %7774 = vmatpush1.bf16.xpose.msra.mxu0 0
        %7775 = vmatprep.mubr.bf16.mxu0 0
        %7776 = vmatmul.mubr.bf16.gmra.mrb[0].mxu0 %v7738
        %v7777 = vpop.f32.mrb[0].mxu0
        %v7778 = vadd.f32 0.0, %v7777
        %v7779 = vpop.f32.mrb[0].mxu0
        %v7780 = vpop.f32.mrb[0].mxu0
        %v7781 = vpop.f32.mrb[0].mxu0
        %7782 = vdwg.mxu0
        %v7783 = vsel %vm1316, %v7778, -inf
        %7784 = vmax.xlane.f32.xlu0 %v7783
        %v7785 = vpop.xlane.xlu0 %7784
        %v7786 = vsub.f32 %v7778, %v7785
        %v7787 = vmul.f32 %v7786, 1.442695
        %v7788 = vpow.pop %v7787
        %v7789 = vsel %vm1316, %v7788, 0.0
        %7790 = vadd.xlane.f32.xlu0 %v7789
        %v7791 = vpop.xlane.xlu0 %7790
        %v7792 = vrcp.pop %v7791
        %v7793 = vmul.f32 %v7788, %v7792
        %v7794 = vpack.c.bf16 %v7793, %v7793
        %7795 = vrot.lane.b32.xlu0 %v7236, 32
        %v7796 = vpop.permute.xlu0 %7795
        %v7798 = vsel %vm1329, %v7794, 0
        %v7801 = vsel %vm1333, %v7796, 0
        %7803 = vmatprep.subr.bf16.mxu0 0
        %7804 = vmatpush1.bf16.msra.mxu0 %v7801
        %7805 = vmatprep.subr.bf16.mxu0 0
        %7806 = vmatpush1.bf16.msra.mxu0 0
        %7807 = vmatprep.subr.bf16.mxu0 0
        %7808 = vmatpush1.bf16.msra.mxu0 0
        %7809 = vmatprep.subr.bf16.mxu0 0
        %7810 = vmatpush1.bf16.msra.mxu0 0
        %7811 = vmatprep.subr.bf16.mxu0 0
        %7812 = vmatpush1.bf16.msra.mxu0 0
        %7813 = vmatprep.subr.bf16.mxu0 0
        %7814 = vmatpush1.bf16.msra.mxu0 0
        %7815 = vmatprep.subr.bf16.mxu0 0
        %7816 = vmatpush1.bf16.msra.mxu0 0
        %7817 = vmatprep.subr.bf16.mxu0 0
        %7818 = vmatpush1.bf16.msra.mxu0 0
        %7819 = vmatprep.subr.bf16.mxu0 0
        %7820 = vmatpush1.bf16.msra.mxu0 0
        %7821 = vmatprep.subr.bf16.mxu0 0
        %7822 = vmatpush1.bf16.msra.mxu0 0
        %7823 = vmatprep.subr.bf16.mxu0 0
        %7824 = vmatpush1.bf16.msra.mxu0 0
        %7825 = vmatprep.subr.bf16.mxu0 0
        %7826 = vmatpush1.bf16.msra.mxu0 0
        %7827 = vmatprep.subr.bf16.mxu0 0
        %7828 = vmatpush1.bf16.msra.mxu0 0
        %7829 = vmatprep.subr.bf16.mxu0 0
        %7830 = vmatpush1.bf16.msra.mxu0 0
        %7831 = vmatprep.subr.bf16.mxu0 0
        %7832 = vmatpush1.bf16.msra.mxu0 0
        %7833 = vmatprep.subr.bf16.mxu0 0
        %7834 = vmatpush1.bf16.msra.mxu0 0
        %7835 = vmatprep.mubr.bf16.mxu0 0
        %7836 = vmatmul.mubr.bf16.gmra.mrb[0].mxu0 %v7798
        %v7837 = vpop.f32.mrb[0].mxu0
        %v7838 = vadd.f32 0.0, %v7837
        %v7839 = vpop.f32.mrb[0].mxu0
        %v7840 = vpop.f32.mrb[0].mxu0
        %v7841 = vpop.f32.mrb[0].mxu0
        %7842 = vdwg.mxu0
        %v7843 = vpack.c.bf16 %v7838, %v7838
        %v7848 = vunpack.c.l.b16 %v6027
        %v7849 = vunpack.c.l.b16 %v6028
        %v7850 = vunpack.c.l.b16 %v6029
        %v7851 = vunpack.c.l.b16 %v6030
        %v7852 = vpack.c.b16 %v7849, %v7848
        %v7853 = vpack.c.b16 %v7851, %v7850
        %v7857 = vsel %vm1269, %v7843, 0
        %7859 = vmatprep.subr.bf16.mxu0 0
        %7860 = vmatpush1.bf16.msra.mxu0 %v7852
        %7861 = vmatprep.subr.bf16.mxu0 0
        %7862 = vmatpush1.bf16.msra.mxu0 %v7853
        %7863 = vmatprep.subr.bf16.mxu0 0
        %7864 = vmatpush1.bf16.msra.mxu0 0
        %7865 = vmatprep.subr.bf16.mxu0 0
        %7866 = vmatpush1.bf16.msra.mxu0 0
        %7867 = vmatprep.subr.bf16.mxu0 0
        %7868 = vmatpush1.bf16.msra.mxu0 0
        %7869 = vmatprep.subr.bf16.mxu0 0
        %7870 = vmatpush1.bf16.msra.mxu0 0
        %7871 = vmatprep.subr.bf16.mxu0 0
        %7872 = vmatpush1.bf16.msra.mxu0 0
        %7873 = vmatprep.subr.bf16.mxu0 0
        %7874 = vmatpush1.bf16.msra.mxu0 0
        %7875 = vmatprep.subr.bf16.mxu0 0
        %7876 = vmatpush1.bf16.msra.mxu0 0
        %7877 = vmatprep.subr.bf16.mxu0 0
        %7878 = vmatpush1.bf16.msra.mxu0 0
        %7879 = vmatprep.subr.bf16.mxu0 0
        %7880 = vmatpush1.bf16.msra.mxu0 0
        %7881 = vmatprep.subr.bf16.mxu0 0
        %7882 = vmatpush1.bf16.msra.mxu0 0
        %7883 = vmatprep.subr.bf16.mxu0 0
        %7884 = vmatpush1.bf16.msra.mxu0 0
        %7885 = vmatprep.subr.bf16.mxu0 0
        %7886 = vmatpush1.bf16.msra.mxu0 0
        %7887 = vmatprep.subr.bf16.mxu0 0
        %7888 = vmatpush1.bf16.msra.mxu0 0
        %7889 = vmatprep.subr.bf16.mxu0 0
        %7890 = vmatpush1.bf16.msra.mxu0 0
        %7891 = vmatprep.mubr.bf16.mxu0 0
        %7892 = vmatmul.mubr.bf16.gmra.mrb[0].mxu0 %v7857
        %v7893 = vpop.f32.mrb[0].mxu0
        %v7894 = vadd.f32 0.0, %v7893
        %v7895 = vpop.f32.mrb[0].mxu0
        %v7896 = vpop.f32.mrb[0].mxu0
        %v7897 = vpop.f32.mrb[0].mxu0
        %7898 = vdwg.mxu0
        %v7899 = vadd.f32 %v7732, %v7894
        %v7900 = vlaneseq
        %v7901 = vshrl.u32 %v7900, 7
        %v7902 = vsub.s32 2, %v7901
        %v7903 = vrot.slane %v6084, %v7902
        %v7904 = vadd.f32 %v7899, %v7903
        %v7905 = vadd.f32 %v7008, %v7904
        %v7906 = vsel %vm1942, %v7905, 0.0
        %7907 = vadd.xlane.f32.xlu0 %v7906
        %v7908 = vpop.xlane.xlu0 %7907
        %v7909 = vmul.f32 %v7908, 0.0078125
        %v7910 = vmul.f32 %v7905, %v7905
        %v7911 = vsel %vm1942, %v7910, 0.0
        %7912 = vadd.xlane.f32.xlu0 %v7911
        %v7913 = vpop.xlane.xlu0 %7912
        %v7914 = vmul.f32 %v7913, 0.0078125
        %v7915 = vmul.f32 %v7909, %v7909
        %v7916 = vsub.f32 %v7914, %v7915
        %v7917 = vsub.f32 %v7905, %v7909
        %v7918 = vadd.f32 %v7916, 1e-05
        %v7919 = vrsqrt.pop %v7918
        %v7920 = vmul.f32 %v7917, %v7919
        %v7921 = vlaneseq
        %v7922 = vshrl.u32 %v7921, 7
        %v7923 = vsub.s32 6, %v7922
        %v7924 = vrot.slane %v6084, %v7923
        %v7925 = vmul.f32 %v7920, %v7924
        %v7926 = vlaneseq
        %v7927 = vshrl.u32 %v7926, 7
        %v7928 = vsub.s32 7, %v7927
        %v7929 = vrot.slane %v6084, %v7928
        %v7930 = vadd.f32 %v7925, %v7929
        %v7931 = vpack.c.bf16 %v7930, %v7930
        %v7933 = vlaneseq
        %v7934 = vshrl.u32 %v7933, 7
        %v7935 = vsub.s32 0, %v7934
        %v7936 = vrot.slane %v6049, %v7935
        %v7937 = vlaneseq
        %v7938 = vshrl.u32 %v7937, 7
        %v7939 = vsub.s32 1, %v7938
        %v7940 = vrot.slane %v6049, %v7939
        %v7959 = vunpack.c.l.b16 %v6032
        %v7960 = vunpack.c.h.b16 %v6032
        %v7961 = vunpack.c.l.b16 %v6033
        %v7962 = vunpack.c.h.b16 %v6033
        %v7963 = vunpack.c.l.b16 %v6034
        %v7964 = vunpack.c.h.b16 %v6034
        %v7965 = vunpack.c.l.b16 %v6035
        %v7966 = vunpack.c.h.b16 %v6035
        %v7967 = vunpack.c.l.b16 %v6036
        %v7968 = vunpack.c.h.b16 %v6036
        %v7969 = vunpack.c.l.b16 %v6037
        %v7970 = vunpack.c.h.b16 %v6037
        %v7971 = vunpack.c.l.b16 %v6038
        %v7972 = vunpack.c.h.b16 %v6038
        %v7973 = vunpack.c.l.b16 %v6039
        %v7974 = vunpack.c.h.b16 %v6039
        %v7975 = vunpack.c.l.b16 %v6040
        %v7976 = vunpack.c.h.b16 %v6040
        %v7977 = vunpack.c.l.b16 %v6041
        %v7978 = vunpack.c.h.b16 %v6041
        %v7979 = vunpack.c.l.b16 %v6042
        %v7980 = vunpack.c.h.b16 %v6042
        %v7981 = vunpack.c.l.b16 %v6043
        %v7982 = vunpack.c.h.b16 %v6043
        %v7983 = vunpack.c.l.b16 %v6044
        %v7984 = vunpack.c.h.b16 %v6044
        %v7985 = vunpack.c.l.b16 %v6045
        %v7986 = vunpack.c.h.b16 %v6045
        %v7987 = vunpack.c.l.b16 %v6046
        %v7988 = vunpack.c.h.b16 %v6046
        %v7989 = vunpack.c.l.b16 %v6047
        %v7990 = vunpack.c.h.b16 %v6047
        %v7991 = vpack.c.b16 %v7961, %v7959
        %v7992 = vpack.c.b16 %v7962, %v7960
        %v7993 = vpack.c.b16 %v7965, %v7963
        %v7994 = vpack.c.b16 %v7966, %v7964
        %v7995 = vpack.c.b16 %v7969, %v7967
        %v7996 = vpack.c.b16 %v7970, %v7968
        %v7997 = vpack.c.b16 %v7973, %v7971
        %v7998 = vpack.c.b16 %v7974, %v7972
        %v7999 = vpack.c.b16 %v7977, %v7975
        %v8000 = vpack.c.b16 %v7978, %v7976
        %v8001 = vpack.c.b16 %v7981, %v7979
        %v8002 = vpack.c.b16 %v7982, %v7980
        %v8003 = vpack.c.b16 %v7985, %v7983
        %v8004 = vpack.c.b16 %v7986, %v7984
        %v8005 = vpack.c.b16 %v7989, %v7987
        %v8006 = vpack.c.b16 %v7990, %v7988
        %8023 = vmatprep.subr.bf16.mxu0 %v7992
        %8024 = vmatpush1.bf16.msra.mxu0 %v7991
        %8025 = vmatprep.subr.bf16.mxu0 %v7994
        %8026 = vmatpush1.bf16.msra.mxu0 %v7993
        %8027 = vmatprep.subr.bf16.mxu0 %v7996
        %8028 = vmatpush1.bf16.msra.mxu0 %v7995
        %8029 = vmatprep.subr.bf16.mxu0 %v7998
        %8030 = vmatpush1.bf16.msra.mxu0 %v7997
        %8031 = vmatprep.subr.bf16.mxu0 %v8000
        %8032 = vmatpush1.bf16.msra.mxu0 %v7999
        %8033 = vmatprep.subr.bf16.mxu0 %v8002
        %8034 = vmatpush1.bf16.msra.mxu0 %v8001
        %8035 = vmatprep.subr.bf16.mxu0 %v8004
        %8036 = vmatpush1.bf16.msra.mxu0 %v8003
        %8037 = vmatprep.subr.bf16.mxu0 %v8006
        %8038 = vmatpush1.bf16.msra.mxu0 %v8005
        %8039 = vmatprep.subr.bf16.mxu0 0
        %8040 = vmatpush1.bf16.msra.mxu0 0
        %8041 = vmatprep.subr.bf16.mxu0 0
        %8042 = vmatpush1.bf16.msra.mxu0 0
        %8043 = vmatprep.subr.bf16.mxu0 0
        %8044 = vmatpush1.bf16.msra.mxu0 0
        %8045 = vmatprep.subr.bf16.mxu0 0
        %8046 = vmatpush1.bf16.msra.mxu0 0
        %8047 = vmatprep.subr.bf16.mxu0 0
        %8048 = vmatpush1.bf16.msra.mxu0 0
        %8049 = vmatprep.subr.bf16.mxu0 0
        %8050 = vmatpush1.bf16.msra.mxu0 0
        %8051 = vmatprep.subr.bf16.mxu0 0
        %8052 = vmatpush1.bf16.msra.mxu0 0
        %8053 = vmatprep.subr.bf16.mxu0 0
        %8054 = vmatpush1.bf16.msra.mxu0 0
        %8055 = vmatprep.mubr.bf16.mxu0 0
        %8056 = vmatmul.mubr.bf16.gmra.mrb[0].mxu0 %v7931
        %v8057 = vpop.f32.mrb[0].mxu0
        %v8058 = vadd.f32 %v7936, %v8057
        %v8059 = vpop.f32.mrb[0].mxu0
        %v8060 = vadd.f32 %v7940, %v8059
        %v8061 = vpop.f32.mrb[0].mxu0
        %v8062 = vpop.f32.mrb[0].mxu0
        %8063 = vdwg.mxu0
        %v8064 = vmax.f32 %v8058, 0.0
        %v8065 = vmax.f32 %v8060, 0.0
        %v8066 = vpack.c.bf16 %v8064, %v8064
        %v8067 = vpack.c.bf16 %v8065, %v8065
        %v8068 = vlaneseq
        %v8069 = vshrl.u32 %v8068, 7
        %v8070 = vsub.s32 3, %v8069
        %v8071 = vrot.slane %v6084, %v8070
        %v8104 = vunpack.c.l.b16 %v6051
        %v8105 = vunpack.c.l.b16 %v6052
        %v8106 = vunpack.c.l.b16 %v6053
        %v8107 = vunpack.c.l.b16 %v6054
        %v8108 = vunpack.c.l.b16 %v6055
        %v8109 = vunpack.c.l.b16 %v6056
        %v8110 = vunpack.c.l.b16 %v6057
        %v8111 = vunpack.c.l.b16 %v6058
        %v8112 = vunpack.c.l.b16 %v6059
        %v8113 = vunpack.c.l.b16 %v6060
        %v8114 = vunpack.c.l.b16 %v6061
        %v8115 = vunpack.c.l.b16 %v6062
        %v8116 = vunpack.c.l.b16 %v6063
        %v8117 = vunpack.c.l.b16 %v6064
        %v8118 = vunpack.c.l.b16 %v6065
        %v8119 = vunpack.c.l.b16 %v6066
        %v8120 = vunpack.c.l.b16 %v6067
        %v8121 = vunpack.c.l.b16 %v6068
        %v8122 = vunpack.c.l.b16 %v6069
        %v8123 = vunpack.c.l.b16 %v6070
        %v8124 = vunpack.c.l.b16 %v6071
        %v8125 = vunpack.c.l.b16 %v6072
        %v8126 = vunpack.c.l.b16 %v6073
        %v8127 = vunpack.c.l.b16 %v6074
        %v8128 = vunpack.c.l.b16 %v6075
        %v8129 = vunpack.c.l.b16 %v6076
        %v8130 = vunpack.c.l.b16 %v6077
        %v8131 = vunpack.c.l.b16 %v6078
        %v8132 = vunpack.c.l.b16 %v6079
        %v8133 = vunpack.c.l.b16 %v6080
        %v8134 = vunpack.c.l.b16 %v6081
        %v8135 = vunpack.c.l.b16 %v6082
        %v8136 = vpack.c.b16 %v8105, %v8104
        %v8137 = vpack.c.b16 %v8107, %v8106
        %v8138 = vpack.c.b16 %v8109, %v8108
        %v8139 = vpack.c.b16 %v8111, %v8110
        %v8140 = vpack.c.b16 %v8113, %v8112
        %v8141 = vpack.c.b16 %v8115, %v8114
        %v8142 = vpack.c.b16 %v8117, %v8116
        %v8143 = vpack.c.b16 %v8119, %v8118
        %v8144 = vpack.c.b16 %v8121, %v8120
        %v8145 = vpack.c.b16 %v8123, %v8122
        %v8146 = vpack.c.b16 %v8125, %v8124
        %v8147 = vpack.c.b16 %v8127, %v8126
        %v8148 = vpack.c.b16 %v8129, %v8128
        %v8149 = vpack.c.b16 %v8131, %v8130
        %v8150 = vpack.c.b16 %v8133, %v8132
        %v8151 = vpack.c.b16 %v8135, %v8134
        %8168 = vmatprep.subr.bf16.mxu0 0
        %8169 = vmatpush1.bf16.msra.mxu0 %v8136
        %8170 = vmatprep.subr.bf16.mxu0 0
        %8171 = vmatpush1.bf16.msra.mxu0 %v8137
        %8172 = vmatprep.subr.bf16.mxu0 0
        %8173 = vmatpush1.bf16.msra.mxu0 %v8138
        %8174 = vmatprep.subr.bf16.mxu0 0
        %8175 = vmatpush1.bf16.msra.mxu0 %v8139
        %8176 = vmatprep.subr.bf16.mxu0 0
        %8177 = vmatpush1.bf16.msra.mxu0 %v8140
        %8178 = vmatprep.subr.bf16.mxu0 0
        %8179 = vmatpush1.bf16.msra.mxu0 %v8141
        %8180 = vmatprep.subr.bf16.mxu0 0
        %8181 = vmatpush1.bf16.msra.mxu0 %v8142
        %8182 = vmatprep.subr.bf16.mxu0 0
        %8183 = vmatpush1.bf16.msra.mxu0 %v8143
        %8184 = vmatprep.subr.bf16.mxu0 0
        %8185 = vmatpush1.bf16.msra.mxu0 %v8144
        %8186 = vmatprep.subr.bf16.mxu0 0
        %8187 = vmatpush1.bf16.msra.mxu0 %v8145
        %8188 = vmatprep.subr.bf16.mxu0 0
        %8189 = vmatpush1.bf16.msra.mxu0 %v8146
        %8190 = vmatprep.subr.bf16.mxu0 0
        %8191 = vmatpush1.bf16.msra.mxu0 %v8147
        %8192 = vmatprep.subr.bf16.mxu0 0
        %8193 = vmatpush1.bf16.msra.mxu0 %v8148
        %8194 = vmatprep.subr.bf16.mxu0 0
        %8195 = vmatpush1.bf16.msra.mxu0 %v8149
        %8196 = vmatprep.subr.bf16.mxu0 0
        %8197 = vmatpush1.bf16.msra.mxu0 %v8150
        %8198 = vmatprep.subr.bf16.mxu0 0
        %8199 = vmatpush1.bf16.msra.mxu0 %v8151
        %8200 = vmatprep.mubr.bf16.mxu0 %v8067
        %8201 = vmatmul.mubr.bf16.gmra.mrb[0].mxu0 %v8066
        %v8202 = vpop.f32.mrb[0].mxu0
        %v8203 = vadd.f32 %v8071, %v8202
        %v8204 = vpop.f32.mrb[0].mxu0
        %v8205 = vpop.f32.mrb[0].mxu0
        %v8206 = vpop.f32.mrb[0].mxu0
        %8207 = vdwg.mxu0
        %v8208 = vadd.f32 %v7930, %v8203
        %v8209 = vsel %vm1942, %v8208, 0.0
        %8210 = vadd.xlane.f32.xlu0 %v8209
        %v8211 = vpop.xlane.xlu0 %8210
        %v8212 = vmul.f32 %v8211, 0.0078125
        %v8213 = vmul.f32 %v8208, %v8208
        %v8214 = vsel %vm1942, %v8213, 0.0
        %8215 = vadd.xlane.f32.xlu0 %v8214
        %v8216 = vpop.xlane.xlu0 %8215
        %v8217 = vmul.f32 %v8216, 0.0078125
        %v8218 = vmul.f32 %v8212, %v8212
        %v8219 = vsub.f32 %v8217, %v8218
        %v8220 = vsub.f32 %v8208, %v8212
        %v8221 = vadd.f32 %v8219, 1e-05
        %v8222 = vrsqrt.pop %v8221
        %v8223 = vmul.f32 %v8220, %v8222
        %v8224 = vlaneseq
        %v8225 = vshrl.u32 %v8224, 7
        %v8226 = vsub.s32 0, %v8225
        %v8227 = vrot.slane %v6085, %v8226
        %v8228 = vmul.f32 %v8223, %v8227
        %v8229 = vlaneseq
        %v8230 = vshrl.u32 %v8229, 7
        %v8231 = vsub.s32 1, %v8230
        %v8232 = vrot.slane %v6085, %v8231
        %v8233 = vadd.f32 %v8228, %v8232
        %v8234 = vsel %vm1942, %v8233, 0.0
        %8235 = vadd.xlane.f32.xlu0 %v8234
        %v8236 = vpop.xlane.xlu0 %8235
        %v8237 = vmul.f32 %v8236, 0.0078125
        %v8238 = vmul.f32 %v8233, %v8233
        %v8239 = vsel %vm1942, %v8238, 0.0
        %8240 = vadd.xlane.f32.xlu0 %v8239
        %v8241 = vpop.xlane.xlu0 %8240
        %v8242 = vmul.f32 %v8241, 0.0078125
        %v8243 = vmul.f32 %v8237, %v8237
        %v8244 = vsub.f32 %v8242, %v8243
        %v8245 = vsub.f32 %v8233, %v8237
        %v8246 = vadd.f32 %v8244, 1e-05
        %v8247 = vrsqrt.pop %v8246
        %v8248 = vmul.f32 %v8245, %v8247
        %v8249 = vlaneseq
        %v8250 = vshrl.u32 %v8249, 7
        %v8251 = vsub.s32 2, %v8250
        %v8252 = vrot.slane %v3603, %v8251
        %v8253 = vmul.f32 %v8248, %v8252
        %v8254 = vlaneseq
        %v8255 = vshrl.u32 %v8254, 7
        %v8256 = vsub.s32 3, %v8255
        %v8257 = vrot.slane %v3603, %v8256
        %v8258 = vadd.f32 %v8253, %v8257
        %v8259 = vld [vmem:[%s22] sm:$0xf]
        %v8260 = vld [vmem:[%s22 + $0x4] sm:$0xf]
        %v8261 = vld [vmem:[%s22 + $0x8] sm:$0xf]
        %v8262 = vld [vmem:[%s22 + $0xc] sm:$0xf]
        %v8263 = vld [vmem:[%s22 + $0x10] sm:$0xf]
        %v8264 = vld [vmem:[%s22 + $0x14] sm:$0xf]
        %v8265 = vld [vmem:[%s22 + $0x18] sm:$0xf]
        %v8266 = vld [vmem:[%s22 + $0x1c] sm:$0xf]
        %v8267 = vld [vmem:[%s22 + $0x20] sm:$0xf]
        %v8268 = vld [vmem:[%s22 + $0x24] sm:$0xf]
        %v8269 = vld [vmem:[%s22 + $0x28] sm:$0xf]
        %v8270 = vld [vmem:[%s22 + $0x2c] sm:$0xf]
        %v8271 = vld [vmem:[%s22 + $0x30] sm:$0xf]
        %v8272 = vld [vmem:[%s22 + $0x34] sm:$0xf]
        %v8273 = vld [vmem:[%s22 + $0x38] sm:$0xf]
        %v8274 = vld [vmem:[%s22 + $0x3c] sm:$0xf]
        %v8275 = vld [vmem:[%s21] sm:$0x1]
        %v8276 = vpack.c.bf16 %v8258, %v8258
        %v8278 = vlaneseq
        %v8279 = vshrl.u32 %v8278, 7
        %v8280 = vsub.s32 0, %v8279
        %v8281 = vrot.slane %v8275, %v8280
        %v8299 = vunpack.c.l.b16 %v8259
        %v8300 = vunpack.c.l.b16 %v8260
        %v8301 = vunpack.c.l.b16 %v8261
        %v8302 = vunpack.c.l.b16 %v8262
        %v8303 = vunpack.c.l.b16 %v8263
        %v8304 = vunpack.c.l.b16 %v8264
        %v8305 = vunpack.c.l.b16 %v8265
        %v8306 = vunpack.c.l.b16 %v8266
        %v8307 = vunpack.c.l.b16 %v8267
        %v8308 = vunpack.c.l.b16 %v8268
        %v8309 = vunpack.c.l.b16 %v8269
        %v8310 = vunpack.c.l.b16 %v8270
        %v8311 = vunpack.c.l.b16 %v8271
        %v8312 = vunpack.c.l.b16 %v8272
        %v8313 = vunpack.c.l.b16 %v8273
        %v8314 = vunpack.c.l.b16 %v8274
        %v8315 = vpack.c.b16 %v8300, %v8299
        %v8316 = vpack.c.b16 %v8302, %v8301
        %v8317 = vpack.c.b16 %v8304, %v8303
        %v8318 = vpack.c.b16 %v8306, %v8305
        %v8319 = vpack.c.b16 %v8308, %v8307
        %v8320 = vpack.c.b16 %v8310, %v8309
        %v8321 = vpack.c.b16 %v8312, %v8311
        %v8322 = vpack.c.b16 %v8314, %v8313
        %8331 = vmatprep.subr.bf16.mxu0 0
        %8332 = vmatpush1.bf16.msra.mxu0 %v8315
        %8333 = vmatprep.subr.bf16.mxu0 0
        %8334 = vmatpush1.bf16.msra.mxu0 %v8316
        %8335 = vmatprep.subr.bf16.mxu0 0
        %8336 = vmatpush1.bf16.msra.mxu0 %v8317
        %8337 = vmatprep.subr.bf16.mxu0 0
        %8338 = vmatpush1.bf16.msra.mxu0 %v8318
        %8339 = vmatprep.subr.bf16.mxu0 0
        %8340 = vmatpush1.bf16.msra.mxu0 %v8319
        %8341 = vmatprep.subr.bf16.mxu0 0
        %8342 = vmatpush1.bf16.msra.mxu0 %v8320
        %8343 = vmatprep.subr.bf16.mxu0 0
        %8344 = vmatpush1.bf16.msra.mxu0 %v8321
        %8345 = vmatprep.subr.bf16.mxu0 0
        %8346 = vmatpush1.bf16.msra.mxu0 %v8322
        %8347 = vmatprep.subr.bf16.mxu0 0
        %8348 = vmatpush1.bf16.msra.mxu0 0
        %8349 = vmatprep.subr.bf16.mxu0 0
        %8350 = vmatpush1.bf16.msra.mxu0 0
        %8351 = vmatprep.subr.bf16.mxu0 0
        %8352 = vmatpush1.bf16.msra.mxu0 0
        %8353 = vmatprep.subr.bf16.mxu0 0
        %8354 = vmatpush1.bf16.msra.mxu0 0
        %8355 = vmatprep.subr.bf16.mxu0 0
        %8356 = vmatpush1.bf16.msra.mxu0 0
        %8357 = vmatprep.subr.bf16.mxu0 0
        %8358 = vmatpush1.bf16.msra.mxu0 0
        %8359 = vmatprep.subr.bf16.mxu0 0
        %8360 = vmatpush1.bf16.msra.mxu0 0
        %8361 = vmatprep.subr.bf16.mxu0 0
        %8362 = vmatpush1.bf16.msra.mxu0 0
        %8363 = vmatprep.mubr.bf16.mxu0 0
        %8364 = vmatmul.mubr.bf16.gmra.mrb[0].mxu0 %v8276
        %v8365 = vpop.f32.mrb[0].mxu0
        %v8366 = vadd.f32 %v8281, %v8365
        %v8367 = vpop.f32.mrb[0].mxu0
        %v8368 = vpop.f32.mrb[0].mxu0
        %v8369 = vpop.f32.mrb[0].mxu0
        %8370 = vdwg.mxu0
        %vm8371 = vcmask 74752
        %8372 = vst.msk [vmem:[%s878] sm:$0x3] %vm8371, %v8366
        %p8373 = scmp.lt.s32.totalorder %s41, 7
        %s8374 = scalar_select %p8373, %s41, 7
        %s8375 = smul.addr %s8374, 2
        %s8376 = scalar_lea.vmem %s24, %s8375
        // Predicated region
        $region157: #{tft_forward.1} parent=115 // pred_check
          %p8377 = pneg %p568
        $region158: #{tft_forward.1} parent=115 // pred_check_branch
          %8379 = sbr.rel (%p8377) target = $region160
        $region159: #{tft_forward.1} parent=115 // pred_region
          _
        $region160: #{tft_forward.1} parent=115 // pred_fallthru
          _
      $region116: #{tft_forward.1} parent=5 // pred_fallthru
        _
      %p8380 = scmp.le.s32.totalorder 2, %s36
      // Predicated region
      $region161: #{tft_forward.1} parent=5 // pred_check
        %p8381 = pneg %p8380
      $region162: #{tft_forward.1} parent=5 // pred_check_branch
        %8383 = sbr.rel (%p8381) target = $region164
      $region163: #{tft_forward.1} parent=5 // pred_region
        %s8384 = ssub.s32 %s36, 2
        // Predicated region
        $region165: #{tft_forward.1} parent=163 // pred_check
          %p8385 = pneg %p574
        $region166: #{tft_forward.1} parent=163 // pred_check_branch
          %8387 = sbr.rel (%p8385) target = $region168
        $region167: #{tft_forward.1} parent=163 // pred_region
          %p8388 = scmp.lt.s32.totalorder %s42, 7
          %s8389 = scalar_select %p8388, %s42, 7
          %s8390 = smul.addr %s8389, 2
          %s8391 = scalar_lea.vmem %s24, %s8390
        $region168: #{tft_forward.1} parent=163 // pred_fallthru
          _
      $region164: #{tft_forward.1} parent=5 // pred_fallthru
        _
    $region6: #{tft_forward.1} parent=1 // loop_footer
      %s40 = sadd.s32 1, %s36
    $region7: #{tft_forward.1} parent=1 // loop_footer_branch
      %35 = sbr.rel target = $region3
    $region8: #{tft_forward.1} parent=1 // loop_exit
      _
    %8392 = vsyncpa [#allocation3], 1
    %s8393 = scalar_lea.sflag [#allocation3], 1
    %8394 = vsyncpa %s8393, 1
    %8395 = vsyncpa [#allocation5], 1
    %8396 = vsyncpa [#allocation8], 1
    %8397 = vsyncpa [#allocation11], 1
    %8398 = vsyncpa [#allocation14], 1
    %8399 = vsyncpa [#allocation17], 1

</llo_original>
